<compile_context>
chip_gen: v6e
topology: v6e:2x2x1
jax: 0.10.0
libtpu: 0.0.40
codegen_flags: <defaults>
</compile_context>

<pallas_src>
import jax
import jax.numpy as jnp
from jax import lax
from jax.experimental import pallas as pl
from jax.experimental.pallas import tpu as pltpu


def basic_block_kernel(x_ref, w1_ref, w2_ref, s1_ref, b1_ref, s2_ref, b2_ref,
                       o_ref, xpad_ref, mid_ref):
    # x_ref   : (1, H, W, C)   unpadded NHWC f32 input block (one image)
    # w1_ref  : (9, Cp, Cp)    conv1 weights, tap-major [ky*3+kx, cin, cout], bf16
    # w2_ref  : (9, Cp, Cp)    conv2 weights, bf16
    # s*/b*   : (1, Cp)        folded eval-mode BN scale / bias, f32
    # o_ref   : (1, H, W, C)   output block (no channel padding written back)
    # xpad_ref: (H+2, Wp, Cp)  bf16 staging: spatially + channel padded input
    # mid_ref : (H+2, Wp, Cp)  bf16 staging: spatially padded conv1 output
    _, H, W, C = x_ref.shape
    Cp = s1_ref.shape[-1]
    Wp = xpad_ref.shape[1]
    HW = H * W

    zrow = jnp.zeros((1, Wp, Cp), jnp.bfloat16)
    zcol = jnp.zeros((H, 1, Cp), jnp.bfloat16)

    # ---- stage input: zero only the 1-px halo ring (+ lane-padding strip),
    #      write the interior once, already cast to bf16 (MXU operand dtype).
    #      The ring is re-zeroed each step because scratch is per-core and
    #      uninitialized at each core's first iteration under megacore.
    xpad_ref[0:1, :, :] = zrow
    xpad_ref[H + 1:H + 2, :, :] = zrow
    xpad_ref[1:H + 1, 0:1, :] = zcol
    xpad_ref[1:H + 1, W + 1:W + 2, :] = zcol
    if C < Cp:   # static; padded lanes feed the conv taps -> must be zero
        xpad_ref[1:H + 1, 1:W + 1, C:] = jnp.zeros((H, W, Cp - C), jnp.bfloat16)
    xpad_ref[1:H + 1, 1:W + 1, 0:C] = x_ref[0].astype(jnp.bfloat16)

    # mid staging: only the halo ring needs zeros (interior fully written below)
    mid_ref[0:1, :, :] = zrow
    mid_ref[H + 1:H + 2, :, :] = zrow
    mid_ref[1:H + 1, 0:1, :] = zcol
    mid_ref[1:H + 1, W + 1:W + 2, :] = zcol

    def conv3x3(src_ref, w_ref):
        # 9 accumulating MXU dots over shifted bf16 views; f32 accumulation.
        acc = None
        for k in range(9):
            dy, dx = divmod(k, 3)
            tap = src_ref[dy:dy + H, dx:dx + W, :].reshape(HW, Cp)
            part = jnp.dot(tap, w_ref[k], preferred_element_type=jnp.float32)
            acc = part if acc is None else acc + part
        return acc                                        # (HW, Cp) f32

    # ---- conv1 + bn1 + relu (epilogue in f32), stage bf16 for conv2 ----
    acc1 = conv3x3(xpad_ref, w1_ref)
    mid = jnp.maximum(acc1 * s1_ref[...] + b1_ref[...], 0.0)
    mid_ref[1:H + 1, 1:W + 1, :] = mid.astype(jnp.bfloat16).reshape(H, W, Cp)

    # ---- conv2 + bn2 + residual add + relu (f32) ----
    acc2 = conv3x3(mid_ref, w2_ref)
    y2 = acc2 * s2_ref[...] + b2_ref[...]                 # (HW, Cp) f32
    identity = x_ref[0].reshape(HW, C)                    # exact f32 residual
    out = jnp.maximum(y2[:, 0:C] + identity, 0.0)
    o_ref[...] = out.reshape(1, H, W, C)


def basic_block_forward(x_nchw, w1_oihw, w2_oihw,
                        g1, be1, m1, v1, g2, be2, m2, v2, eps=1e-5):
    """x_nchw: (N, Cin, H, W) float32.  Returns (N, P, H, W) float32."""
    N, C, H, W = x_nchw.shape
    P = w1_oihw.shape[0]
    assert C == P, "BasicBlock with stride=1 / downsample=None requires inplanes == planes"
    Cp = ((C + 127) // 128) * 128          # lane-dense channels inside the kernel
    Wp = ((W + 2 + 7) // 8) * 8            # sublane-aligned staging row width

    # NCHW -> NHWC (boundary glue only; kernel works lane-dense NHWC internally)
    x_nhwc = jnp.transpose(x_nchw, (0, 2, 3, 1)).astype(jnp.float32)

    # OIHW -> (9, Cp, Cp) tap-major weight slabs (zero-padded), bf16 MXU operands
    def pack_w(w_oihw):
        o, i, _, _ = w_oihw.shape
        w = jnp.transpose(w_oihw, (2, 3, 1, 0)).astype(jnp.float32)   # (3,3,I,O)
        w = jnp.pad(w, ((0, 0), (0, 0), (0, Cp - i), (0, Cp - o)))
        return w.reshape(9, Cp, Cp).astype(jnp.bfloat16)

    w1 = pack_w(w1_oihw)
    w2 = pack_w(w2_oihw)

    # fold eval-mode BatchNorm into per-channel scale / bias (padded lanes = 0)
    def fold_bn(g, b, m, v):
        s = (g / jnp.sqrt(v + eps)).astype(jnp.float32)
        t = (b - m * s).astype(jnp.float32)
        return (jnp.pad(s, (0, Cp - P)).reshape(1, Cp),
                jnp.pad(t, (0, Cp - P)).reshape(1, Cp))

    s1, b1 = fold_bn(g1, be1, m1, v1)
    s2, b2 = fold_bn(g2, be2, m2, v2)

    # Grid-invariant operands: single pipeline buffer (default double-buffering
    # would waste VMEM on blocks that are fetched exactly once).
    wspec = pl.BlockSpec((9, Cp, Cp), lambda n: (0, 0, 0),
                         pipeline_mode=pl.Buffered(1))
    vspec = pl.BlockSpec((1, Cp), lambda n: (0, 0),
                         pipeline_mode=pl.Buffered(1))

    out_nhwc = pl.pallas_call(
        basic_block_kernel,
        out_shape=jax.ShapeDtypeStruct((N, H, W, C), jnp.float32),
        grid=(N,),                                        # one image per grid step
        in_specs=[
            pl.BlockSpec((1, H, W, C), lambda n: (n, 0, 0, 0)),
            wspec, wspec, vspec, vspec, vspec, vspec,
        ],
        out_specs=pl.BlockSpec((1, H, W, C), lambda n: (n, 0, 0, 0)),
        scratch_shapes=[
            pltpu.VMEM((H + 2, Wp, Cp), jnp.bfloat16),    # padded input staging
            pltpu.VMEM((H + 2, Wp, Cp), jnp.bfloat16),    # padded conv1 output
        ],
        compiler_params=pltpu.CompilerParams(
            dimension_semantics=("parallel",),            # megacore across batch
            # Working set per step is ~1 MiB here; 32 MiB is safe on every
            # generation (raise toward 48-64 MiB on v5e/v6e only if the
            # row-blocked production tiles are enlarged).
            vmem_limit_bytes=32 * 1024 * 1024,
        ),
    )(x_nhwc, w1, w2, s1, b1, s2, b2)

    # NHWC -> NCHW (glue; kernel already emits exactly C channels, no slice)
    return jnp.transpose(out_nhwc, (0, 3, 1, 2))


def _reference(x_nchw, w1, w2, g1, be1, m1, v1, g2, be2, m2, v2,
               eps=1e-5, mxu_dtype=jnp.float32):
    """Pure-JAX reference (eval-mode BN), NCHW.  mxu_dtype emulates operand cast."""
    dn = lax.conv_dimension_numbers(x_nchw.shape, w1.shape, ('NCHW', 'OIHW', 'NCHW'))

    def conv(a, w):
        return lax.conv_general_dilated(
            a.astype(mxu_dtype), w.astype(mxu_dtype), (1, 1), ((1, 1), (1, 1)),
            dimension_numbers=dn, preferred_element_type=jnp.float32)

    def bn(y, g, b, m, v):
        sh = (1, -1, 1, 1)
        return (y - m.reshape(sh)) / jnp.sqrt(v.reshape(sh) + eps) * g.reshape(sh) + b.reshape(sh)

    out = jnp.maximum(bn(conv(x_nchw, w1), g1, be1, m1, v1), 0.0)
    out = bn(conv(out, w2), g2, be2, m2, v2) + x_nchw
    return jnp.maximum(out, 0.0)


if __name__ == "__main__":
    N, C, H, W = 2, 4, 16, 16     # inplanes = planes = 4, stride = 1, downsample = None
    P = C

    key = jax.random.PRNGKey(0)
    k = jax.random.split(key, 12)
    x = jax.random.normal(k[0], (N, C, H, W), jnp.float32)

    w1 = 0.1 * jax.random.normal(k[1], (P, C, 3, 3), jnp.float32)   # conv1.weight (OIHW)
    w2 = 0.1 * jax.random.normal(k[2], (P, P, 3, 3), jnp.float32)   # conv2.weight (OIHW)

    # deterministic, non-trivial BN params (eval mode)
    g1  = 1.0 + 0.1 * jax.random.normal(k[3], (P,), jnp.float32)
    be1 = 0.1 * jax.random.normal(k[4], (P,), jnp.float32)
    m1  = 0.1 * jax.random.normal(k[5], (P,), jnp.float32)
    v1  = 1.0 + 0.1 * jax.random.uniform(k[6], (P,), jnp.float32)
    g2  = 1.0 + 0.1 * jax.random.normal(k[7], (P,), jnp.float32)
    be2 = 0.1 * jax.random.normal(k[8], (P,), jnp.float32)
    m2  = 0.1 * jax.random.normal(k[9], (P,), jnp.float32)
    v2  = 1.0 + 0.1 * jax.random.uniform(k[10], (P,), jnp.float32)

    out = basic_block_forward(x, w1, w2, g1, be1, m1, v1, g2, be2, m2, v2)
    out = jax.block_until_ready(out)
    assert out.shape == (N, P, H, W)

    # Kernel uses bf16 MXU operands with f32 accumulation: check tightly against
    # a reference that emulates the same operand dtype, and loosely against the
    # pure-f32 reference (bf16 rounding tolerance).
    ref_bf16 = _reference(x, w1, w2, g1, be1, m1, v1, g2, be2, m2, v2,
                          mxu_dtype=jnp.bfloat16)
    ref_f32 = _reference(x, w1, w2, g1, be1, m1, v1, g2, be2, m2, v2,
                         mxu_dtype=jnp.float32)
    err_bf16 = float(jnp.max(jnp.abs(out - ref_bf16)))
    err_f32 = float(jnp.max(jnp.abs(out - ref_f32)))
    assert err_bf16 < 5e-3, err_bf16
    assert err_f32 < 1e-1, err_f32

    print("KERNEL_OK")
</pallas_src>

<mosaic_0001>
module attributes {stable_mosaic.version = 11 : i64} {
  func.func @basic_block_kernel(%arg0: i32, %arg1: memref<1x16x16x4xf32, #tpu.memory_space<vmem>>, %arg2: memref<9x128x128xbf16, #tpu.memory_space<vmem>>, %arg3: memref<9x128x128xbf16, #tpu.memory_space<vmem>>, %arg4: memref<1x128xf32, #tpu.memory_space<vmem>>, %arg5: memref<1x128xf32, #tpu.memory_space<vmem>>, %arg6: memref<1x128xf32, #tpu.memory_space<vmem>>, %arg7: memref<1x128xf32, #tpu.memory_space<vmem>>, %arg8: memref<1x16x16x4xf32, #tpu.memory_space<vmem>>, %arg9: memref<18x24x128xbf16, #tpu.memory_space<vmem>>, %arg10: memref<18x24x128xbf16, #tpu.memory_space<vmem>>) attributes {dimension_semantics = [#tpu.dimension_semantics<parallel>], iteration_bounds = array<i64: 2>, scalar_prefetch = 0 : i64, scratch_operands = 2 : i64, tpu.core_type = #tpu.core_type<tc>, window_params = [{transform_indices = @transform_0, window_bounds = array<i64: 1, 16, 16, 4>}, {pipeline_mode = #tpu.pipeline_mode<synchronous>, transform_indices = @transform_1, window_bounds = array<i64: 9, 128, 128>}, {pipeline_mode = #tpu.pipeline_mode<synchronous>, transform_indices = @transform_2, window_bounds = array<i64: 9, 128, 128>}, {pipeline_mode = #tpu.pipeline_mode<synchronous>, transform_indices = @transform_3, window_bounds = array<i64: 1, 128>}, {pipeline_mode = #tpu.pipeline_mode<synchronous>, transform_indices = @transform_4, window_bounds = array<i64: 1, 128>}, {pipeline_mode = #tpu.pipeline_mode<synchronous>, transform_indices = @transform_5, window_bounds = array<i64: 1, 128>}, {pipeline_mode = #tpu.pipeline_mode<synchronous>, transform_indices = @transform_6, window_bounds = array<i64: 1, 128>}, {transform_indices = @transform_7, window_bounds = array<i64: 1, 16, 16, 4>}]} {
    %cst = arith.constant 0.000000e+00 : bf16
    %0 = vector.broadcast %cst : bf16 to vector<1x24x128xbf16>
    %cst_0 = arith.constant 0.000000e+00 : bf16
    %1 = vector.broadcast %cst_0 : bf16 to vector<16x1x128xbf16>
    %c0 = arith.constant 0 : index
    %c0_1 = arith.constant 0 : index
    %c0_2 = arith.constant 0 : index
    %2 = vector.load %arg9[%c0, %c0_1, %c0_2] : memref<18x24x128xbf16, #tpu.memory_space<vmem>>, vector<1x24x128xbf16>
    tpu.vector_store %arg9[%c0, %c0_1, %c0_2], %0 {strides = array<i32>} : memref<18x24x128xbf16, #tpu.memory_space<vmem>>, vector<1x24x128xbf16>,
    %c17 = arith.constant 17 : index
    %c0_3 = arith.constant 0 : index
    %c0_4 = arith.constant 0 : index
    %3 = vector.load %arg9[%c17, %c0_3, %c0_4] : memref<18x24x128xbf16, #tpu.memory_space<vmem>>, vector<1x24x128xbf16>
    tpu.vector_store %arg9[%c17, %c0_3, %c0_4], %0 {strides = array<i32>} : memref<18x24x128xbf16, #tpu.memory_space<vmem>>, vector<1x24x128xbf16>,
    %c1 = arith.constant 1 : index
    %c0_5 = arith.constant 0 : index
    %c0_6 = arith.constant 0 : index
    %4 = vector.load %arg9[%c1, %c0_5, %c0_6] : memref<18x24x128xbf16, #tpu.memory_space<vmem>>, vector<16x1x128xbf16>
    tpu.vector_store %arg9[%c1, %c0_5, %c0_6], %1 {strides = array<i32>} : memref<18x24x128xbf16, #tpu.memory_space<vmem>>, vector<16x1x128xbf16>,
    %c1_7 = arith.constant 1 : index
    %c17_8 = arith.constant 17 : index
    %c0_9 = arith.constant 0 : index
    %5 = vector.load %arg9[%c1_7, %c17_8, %c0_9] : memref<18x24x128xbf16, #tpu.memory_space<vmem>>, vector<16x1x128xbf16>
    tpu.vector_store %arg9[%c1_7, %c17_8, %c0_9], %1 {strides = array<i32>} : memref<18x24x128xbf16, #tpu.memory_space<vmem>>, vector<16x1x128xbf16>,
    %cst_10 = arith.constant 0.000000e+00 : bf16
    %6 = vector.broadcast %cst_10 : bf16 to vector<16x16x124xbf16>
    %c1_11 = arith.constant 1 : index
    %c1_12 = arith.constant 1 : index
    %c4 = arith.constant 4 : index
    %7 = vector.load %arg9[%c1_11, %c1_12, %c4] : memref<18x24x128xbf16, #tpu.memory_space<vmem>>, vector<16x16x124xbf16>
    tpu.vector_store %arg9[%c1_11, %c1_12, %c4], %6 {strides = array<i32>} : memref<18x24x128xbf16, #tpu.memory_space<vmem>>, vector<16x16x124xbf16>,
    %c0_13 = arith.constant 0 : index
    %c0_14 = arith.constant 0 : index
    %c0_15 = arith.constant 0 : index
    %c0_16 = arith.constant 0 : index
    %8 = vector.load %arg1[%c0_13, %c0_14, %c0_15, %c0_16] : memref<1x16x16x4xf32, #tpu.memory_space<vmem>>, vector<1x16x16x4xf32>
    %9 = vector.shape_cast %8 : vector<1x16x16x4xf32> to vector<16x16x4xf32>
    %10 = arith.truncf %9 : vector<16x16x4xf32> to vector<16x16x4xbf16>
    %c1_17 = arith.constant 1 : index
    %c1_18 = arith.constant 1 : index
    %c0_19 = arith.constant 0 : index
    %11 = vector.load %arg9[%c1_17, %c1_18, %c0_19] : memref<18x24x128xbf16, #tpu.memory_space<vmem>>, vector<16x16x4xbf16>
    tpu.vector_store %arg9[%c1_17, %c1_18, %c0_19], %10 {strides = array<i32>} : memref<18x24x128xbf16, #tpu.memory_space<vmem>>, vector<16x16x4xbf16>,
    %c0_20 = arith.constant 0 : index
    %c0_21 = arith.constant 0 : index
    %c0_22 = arith.constant 0 : index
    %12 = vector.load %arg10[%c0_20, %c0_21, %c0_22] : memref<18x24x128xbf16, #tpu.memory_space<vmem>>, vector<1x24x128xbf16>
    tpu.vector_store %arg10[%c0_20, %c0_21, %c0_22], %0 {strides = array<i32>} : memref<18x24x128xbf16, #tpu.memory_space<vmem>>, vector<1x24x128xbf16>,
    %c17_23 = arith.constant 17 : index
    %c0_24 = arith.constant 0 : index
    %c0_25 = arith.constant 0 : index
    %13 = vector.load %arg10[%c17_23, %c0_24, %c0_25] : memref<18x24x128xbf16, #tpu.memory_space<vmem>>, vector<1x24x128xbf16>
    tpu.vector_store %arg10[%c17_23, %c0_24, %c0_25], %0 {strides = array<i32>} : memref<18x24x128xbf16, #tpu.memory_space<vmem>>, vector<1x24x128xbf16>,
    %c1_26 = arith.constant 1 : index
    %c0_27 = arith.constant 0 : index
    %c0_28 = arith.constant 0 : index
    %14 = vector.load %arg10[%c1_26, %c0_27, %c0_28] : memref<18x24x128xbf16, #tpu.memory_space<vmem>>, vector<16x1x128xbf16>
    tpu.vector_store %arg10[%c1_26, %c0_27, %c0_28], %1 {strides = array<i32>} : memref<18x24x128xbf16, #tpu.memory_space<vmem>>, vector<16x1x128xbf16>,
    %c1_29 = arith.constant 1 : index
    %c17_30 = arith.constant 17 : index
    %c0_31 = arith.constant 0 : index
    %15 = vector.load %arg10[%c1_29, %c17_30, %c0_31] : memref<18x24x128xbf16, #tpu.memory_space<vmem>>, vector<16x1x128xbf16>
    tpu.vector_store %arg10[%c1_29, %c17_30, %c0_31], %1 {strides = array<i32>} : memref<18x24x128xbf16, #tpu.memory_space<vmem>>, vector<16x1x128xbf16>,
    %c0_32 = arith.constant 0 : index
    %c0_33 = arith.constant 0 : index
    %c0_34 = arith.constant 0 : index
    %16 = vector.load %arg9[%c0_32, %c0_33, %c0_34] : memref<18x24x128xbf16, #tpu.memory_space<vmem>>, vector<16x16x128xbf16>
    %17 = vector.shape_cast %16 : vector<16x16x128xbf16> to vector<256x128xbf16>
    %c0_35 = arith.constant 0 : index
    %c0_36 = arith.constant 0 : index
    %c0_37 = arith.constant 0 : index
    %18 = vector.load %arg2[%c0_35, %c0_36, %c0_37] : memref<9x128x128xbf16, #tpu.memory_space<vmem>>, vector<1x128x128xbf16>
    %19 = vector.shape_cast %18 : vector<1x128x128xbf16> to vector<128x128xbf16>
    %cst_38 = arith.constant dense<0.000000e+00> : vector<256x128xf32>
    %20 = tpu.matmul %17, %19, %cst_38 {dimension_numbers = #tpu.dot_dimension_numbers<[1], [0], [0], [1], [0, 0, 1, 1], [], []>} : vector<256x128xbf16>, vector<128x128xbf16>, vector<256x128xf32> -> vector<256x128xf32>
    %c0_39 = arith.constant 0 : index
    %c1_40 = arith.constant 1 : index
    %c0_41 = arith.constant 0 : index
    %21 = vector.load %arg9[%c0_39, %c1_40, %c0_41] : memref<18x24x128xbf16, #tpu.memory_space<vmem>>, vector<16x16x128xbf16>
    %22 = vector.shape_cast %21 : vector<16x16x128xbf16> to vector<256x128xbf16>
    %c1_42 = arith.constant 1 : index
    %c0_43 = arith.constant 0 : index
    %c0_44 = arith.constant 0 : index
    %23 = vector.load %arg2[%c1_42, %c0_43, %c0_44] : memref<9x128x128xbf16, #tpu.memory_space<vmem>>, vector<1x128x128xbf16>
    %24 = vector.shape_cast %23 : vector<1x128x128xbf16> to vector<128x128xbf16>
    %cst_45 = arith.constant dense<0.000000e+00> : vector<256x128xf32>
    %25 = tpu.matmul %22, %24, %cst_45 {dimension_numbers = #tpu.dot_dimension_numbers<[1], [0], [0], [1], [0, 0, 1, 1], [], []>} : vector<256x128xbf16>, vector<128x128xbf16>, vector<256x128xf32> -> vector<256x128xf32>
    %26 = arith.addf %20, %25 : vector<256x128xf32>
    %c0_46 = arith.constant 0 : index
    %c2 = arith.constant 2 : index
    %c0_47 = arith.constant 0 : index
    %27 = vector.load %arg9[%c0_46, %c2, %c0_47] : memref<18x24x128xbf16, #tpu.memory_space<vmem>>, vector<16x16x128xbf16>
    %28 = vector.shape_cast %27 : vector<16x16x128xbf16> to vector<256x128xbf16>
    %c2_48 = arith.constant 2 : index
    %c0_49 = arith.constant 0 : index
    %c0_50 = arith.constant 0 : index
    %29 = vector.load %arg2[%c2_48, %c0_49, %c0_50] : memref<9x128x128xbf16, #tpu.memory_space<vmem>>, vector<1x128x128xbf16>
    %30 = vector.shape_cast %29 : vector<1x128x128xbf16> to vector<128x128xbf16>
    %cst_51 = arith.constant dense<0.000000e+00> : vector<256x128xf32>
    %31 = tpu.matmul %28, %30, %cst_51 {dimension_numbers = #tpu.dot_dimension_numbers<[1], [0], [0], [1], [0, 0, 1, 1], [], []>} : vector<256x128xbf16>, vector<128x128xbf16>, vector<256x128xf32> -> vector<256x128xf32>
    %32 = arith.addf %26, %31 : vector<256x128xf32>
    %c1_52 = arith.constant 1 : index
    %c0_53 = arith.constant 0 : index
    %c0_54 = arith.constant 0 : index
    %33 = vector.load %arg9[%c1_52, %c0_53, %c0_54] : memref<18x24x128xbf16, #tpu.memory_space<vmem>>, vector<16x16x128xbf16>
    %34 = vector.shape_cast %33 : vector<16x16x128xbf16> to vector<256x128xbf16>
    %c3 = arith.constant 3 : index
    %c0_55 = arith.constant 0 : index
    %c0_56 = arith.constant 0 : index
    %35 = vector.load %arg2[%c3, %c0_55, %c0_56] : memref<9x128x128xbf16, #tpu.memory_space<vmem>>, vector<1x128x128xbf16>
    %36 = vector.shape_cast %35 : vector<1x128x128xbf16> to vector<128x128xbf16>
    %cst_57 = arith.constant dense<0.000000e+00> : vector<256x128xf32>
    %37 = tpu.matmul %34, %36, %cst_57 {dimension_numbers = #tpu.dot_dimension_numbers<[1], [0], [0], [1], [0, 0, 1, 1], [], []>} : vector<256x128xbf16>, vector<128x128xbf16>, vector<256x128xf32> -> vector<256x128xf32>
    %38 = arith.addf %32, %37 : vector<256x128xf32>
    %c1_58 = arith.constant 1 : index
    %c1_59 = arith.constant 1 : index
    %c0_60 = arith.constant 0 : index
    %39 = vector.load %arg9[%c1_58, %c1_59, %c0_60] : memref<18x24x128xbf16, #tpu.memory_space<vmem>>, vector<16x16x128xbf16>
    %40 = vector.shape_cast %39 : vector<16x16x128xbf16> to vector<256x128xbf16>
    %c4_61 = arith.constant 4 : index
    %c0_62 = arith.constant 0 : index
    %c0_63 = arith.constant 0 : index
    %41 = vector.load %arg2[%c4_61, %c0_62, %c0_63] : memref<9x128x128xbf16, #tpu.memory_space<vmem>>, vector<1x128x128xbf16>
    %42 = vector.shape_cast %41 : vector<1x128x128xbf16> to vector<128x128xbf16>
    %cst_64 = arith.constant dense<0.000000e+00> : vector<256x128xf32>
    %43 = tpu.matmul %40, %42, %cst_64 {dimension_numbers = #tpu.dot_dimension_numbers<[1], [0], [0], [1], [0, 0, 1, 1], [], []>} : vector<256x128xbf16>, vector<128x128xbf16>, vector<256x128xf32> -> vector<256x128xf32>
    %44 = arith.addf %38, %43 : vector<256x128xf32>
    %c1_65 = arith.constant 1 : index
    %c2_66 = arith.constant 2 : index
    %c0_67 = arith.constant 0 : index
    %45 = vector.load %arg9[%c1_65, %c2_66, %c0_67] : memref<18x24x128xbf16, #tpu.memory_space<vmem>>, vector<16x16x128xbf16>
    %46 = vector.shape_cast %45 : vector<16x16x128xbf16> to vector<256x128xbf16>
    %c5 = arith.constant 5 : index
    %c0_68 = arith.constant 0 : index
    %c0_69 = arith.constant 0 : index
    %47 = vector.load %arg2[%c5, %c0_68, %c0_69] : memref<9x128x128xbf16, #tpu.memory_space<vmem>>, vector<1x128x128xbf16>
    %48 = vector.shape_cast %47 : vector<1x128x128xbf16> to vector<128x128xbf16>
    %cst_70 = arith.constant dense<0.000000e+00> : vector<256x128xf32>
    %49 = tpu.matmul %46, %48, %cst_70 {dimension_numbers = #tpu.dot_dimension_numbers<[1], [0], [0], [1], [0, 0, 1, 1], [], []>} : vector<256x128xbf16>, vector<128x128xbf16>, vector<256x128xf32> -> vector<256x128xf32>
    %50 = arith.addf %44, %49 : vector<256x128xf32>
    %c2_71 = arith.constant 2 : index
    %c0_72 = arith.constant 0 : index
    %c0_73 = arith.constant 0 : index
    %51 = vector.load %arg9[%c2_71, %c0_72, %c0_73] : memref<18x24x128xbf16, #tpu.memory_space<vmem>>, vector<16x16x128xbf16>
    %52 = vector.shape_cast %51 : vector<16x16x128xbf16> to vector<256x128xbf16>
    %c6 = arith.constant 6 : index
    %c0_74 = arith.constant 0 : index
    %c0_75 = arith.constant 0 : index
    %53 = vector.load %arg2[%c6, %c0_74, %c0_75] : memref<9x128x128xbf16, #tpu.memory_space<vmem>>, vector<1x128x128xbf16>
    %54 = vector.shape_cast %53 : vector<1x128x128xbf16> to vector<128x128xbf16>
    %cst_76 = arith.constant dense<0.000000e+00> : vector<256x128xf32>
    %55 = tpu.matmul %52, %54, %cst_76 {dimension_numbers = #tpu.dot_dimension_numbers<[1], [0], [0], [1], [0, 0, 1, 1], [], []>} : vector<256x128xbf16>, vector<128x128xbf16>, vector<256x128xf32> -> vector<256x128xf32>
    %56 = arith.addf %50, %55 : vector<256x128xf32>
    %c2_77 = arith.constant 2 : index
    %c1_78 = arith.constant 1 : index
    %c0_79 = arith.constant 0 : index
    %57 = vector.load %arg9[%c2_77, %c1_78, %c0_79] : memref<18x24x128xbf16, #tpu.memory_space<vmem>>, vector<16x16x128xbf16>
    %58 = vector.shape_cast %57 : vector<16x16x128xbf16> to vector<256x128xbf16>
    %c7 = arith.constant 7 : index
    %c0_80 = arith.constant 0 : index
    %c0_81 = arith.constant 0 : index
    %59 = vector.load %arg2[%c7, %c0_80, %c0_81] : memref<9x128x128xbf16, #tpu.memory_space<vmem>>, vector<1x128x128xbf16>
    %60 = vector.shape_cast %59 : vector<1x128x128xbf16> to vector<128x128xbf16>
    %cst_82 = arith.constant dense<0.000000e+00> : vector<256x128xf32>
    %61 = tpu.matmul %58, %60, %cst_82 {dimension_numbers = #tpu.dot_dimension_numbers<[1], [0], [0], [1], [0, 0, 1, 1], [], []>} : vector<256x128xbf16>, vector<128x128xbf16>, vector<256x128xf32> -> vector<256x128xf32>
    %62 = arith.addf %56, %61 : vector<256x128xf32>
    %c2_83 = arith.constant 2 : index
    %c2_84 = arith.constant 2 : index
    %c0_85 = arith.constant 0 : index
    %63 = vector.load %arg9[%c2_83, %c2_84, %c0_85] : memref<18x24x128xbf16, #tpu.memory_space<vmem>>, vector<16x16x128xbf16>
    %64 = vector.shape_cast %63 : vector<16x16x128xbf16> to vector<256x128xbf16>
    %c8 = arith.constant 8 : index
    %c0_86 = arith.constant 0 : index
    %c0_87 = arith.constant 0 : index
    %65 = vector.load %arg2[%c8, %c0_86, %c0_87] : memref<9x128x128xbf16, #tpu.memory_space<vmem>>, vector<1x128x128xbf16>
    %66 = vector.shape_cast %65 : vector<1x128x128xbf16> to vector<128x128xbf16>
    %cst_88 = arith.constant dense<0.000000e+00> : vector<256x128xf32>
    %67 = tpu.matmul %64, %66, %cst_88 {dimension_numbers = #tpu.dot_dimension_numbers<[1], [0], [0], [1], [0, 0, 1, 1], [], []>} : vector<256x128xbf16>, vector<128x128xbf16>, vector<256x128xf32> -> vector<256x128xf32>
    %68 = arith.addf %62, %67 : vector<256x128xf32>
    %c0_89 = arith.constant 0 : index
    %c0_90 = arith.constant 0 : index
    %69 = vector.load %arg4[%c0_89, %c0_90] : memref<1x128xf32, #tpu.memory_space<vmem>>, vector<1x128xf32>
    %70 = vector.broadcast %69 : vector<1x128xf32> to vector<256x128xf32>
    %71 = arith.mulf %68, %70 : vector<256x128xf32>
    %c0_91 = arith.constant 0 : index
    %c0_92 = arith.constant 0 : index
    %72 = vector.load %arg5[%c0_91, %c0_92] : memref<1x128xf32, #tpu.memory_space<vmem>>, vector<1x128xf32>
    %73 = vector.broadcast %72 : vector<1x128xf32> to vector<256x128xf32>
    %74 = arith.addf %71, %73 : vector<256x128xf32>
    %cst_93 = arith.constant 0.000000e+00 : f32
    %75 = vector.broadcast %cst_93 : f32 to vector<256x128xf32>
    %76 = arith.maximumf %74, %75 : vector<256x128xf32>
    %77 = arith.truncf %76 : vector<256x128xf32> to vector<256x128xbf16>
    %78 = vector.shape_cast %77 : vector<256x128xbf16> to vector<16x16x128xbf16>
    %c1_94 = arith.constant 1 : index
    %c1_95 = arith.constant 1 : index
    %c0_96 = arith.constant 0 : index
    %79 = vector.load %arg10[%c1_94, %c1_95, %c0_96] : memref<18x24x128xbf16, #tpu.memory_space<vmem>>, vector<16x16x128xbf16>
    tpu.vector_store %arg10[%c1_94, %c1_95, %c0_96], %78 {strides = array<i32>} : memref<18x24x128xbf16, #tpu.memory_space<vmem>>, vector<16x16x128xbf16>,
    %c0_97 = arith.constant 0 : index
    %c0_98 = arith.constant 0 : index
    %c0_99 = arith.constant 0 : index
    %80 = vector.load %arg10[%c0_97, %c0_98, %c0_99] : memref<18x24x128xbf16, #tpu.memory_space<vmem>>, vector<16x16x128xbf16>
    %81 = vector.shape_cast %80 : vector<16x16x128xbf16> to vector<256x128xbf16>
    %c0_100 = arith.constant 0 : index
    %c0_101 = arith.constant 0 : index
    %c0_102 = arith.constant 0 : index
    %82 = vector.load %arg3[%c0_100, %c0_101, %c0_102] : memref<9x128x128xbf16, #tpu.memory_space<vmem>>, vector<1x128x128xbf16>
    %83 = vector.shape_cast %82 : vector<1x128x128xbf16> to vector<128x128xbf16>
    %cst_103 = arith.constant dense<0.000000e+00> : vector<256x128xf32>
    %84 = tpu.matmul %81, %83, %cst_103 {dimension_numbers = #tpu.dot_dimension_numbers<[1], [0], [0], [1], [0, 0, 1, 1], [], []>} : vector<256x128xbf16>, vector<128x128xbf16>, vector<256x128xf32> -> vector<256x128xf32>
    %c0_104 = arith.constant 0 : index
    %c1_105 = arith.constant 1 : index
    %c0_106 = arith.constant 0 : index
    %85 = vector.load %arg10[%c0_104, %c1_105, %c0_106] : memref<18x24x128xbf16, #tpu.memory_space<vmem>>, vector<16x16x128xbf16>
    %86 = vector.shape_cast %85 : vector<16x16x128xbf16> to vector<256x128xbf16>
    %c1_107 = arith.constant 1 : index
    %c0_108 = arith.constant 0 : index
    %c0_109 = arith.constant 0 : index
    %87 = vector.load %arg3[%c1_107, %c0_108, %c0_109] : memref<9x128x128xbf16, #tpu.memory_space<vmem>>, vector<1x128x128xbf16>
    %88 = vector.shape_cast %87 : vector<1x128x128xbf16> to vector<128x128xbf16>
    %cst_110 = arith.constant dense<0.000000e+00> : vector<256x128xf32>
    %89 = tpu.matmul %86, %88, %cst_110 {dimension_numbers = #tpu.dot_dimension_numbers<[1], [0], [0], [1], [0, 0, 1, 1], [], []>} : vector<256x128xbf16>, vector<128x128xbf16>, vector<256x128xf32> -> vector<256x128xf32>
    %90 = arith.addf %84, %89 : vector<256x128xf32>
    %c0_111 = arith.constant 0 : index
    %c2_112 = arith.constant 2 : index
    %c0_113 = arith.constant 0 : index
    %91 = vector.load %arg10[%c0_111, %c2_112, %c0_113] : memref<18x24x128xbf16, #tpu.memory_space<vmem>>, vector<16x16x128xbf16>
    %92 = vector.shape_cast %91 : vector<16x16x128xbf16> to vector<256x128xbf16>
    %c2_114 = arith.constant 2 : index
    %c0_115 = arith.constant 0 : index
    %c0_116 = arith.constant 0 : index
    %93 = vector.load %arg3[%c2_114, %c0_115, %c0_116] : memref<9x128x128xbf16, #tpu.memory_space<vmem>>, vector<1x128x128xbf16>
    %94 = vector.shape_cast %93 : vector<1x128x128xbf16> to vector<128x128xbf16>
    %cst_117 = arith.constant dense<0.000000e+00> : vector<256x128xf32>
    %95 = tpu.matmul %92, %94, %cst_117 {dimension_numbers = #tpu.dot_dimension_numbers<[1], [0], [0], [1], [0, 0, 1, 1], [], []>} : vector<256x128xbf16>, vector<128x128xbf16>, vector<256x128xf32> -> vector<256x128xf32>
    %96 = arith.addf %90, %95 : vector<256x128xf32>
    %c1_118 = arith.constant 1 : index
    %c0_119 = arith.constant 0 : index
    %c0_120 = arith.constant 0 : index
    %97 = vector.load %arg10[%c1_118, %c0_119, %c0_120] : memref<18x24x128xbf16, #tpu.memory_space<vmem>>, vector<16x16x128xbf16>
    %98 = vector.shape_cast %97 : vector<16x16x128xbf16> to vector<256x128xbf16>
    %c3_121 = arith.constant 3 : index
    %c0_122 = arith.constant 0 : index
    %c0_123 = arith.constant 0 : index
    %99 = vector.load %arg3[%c3_121, %c0_122, %c0_123] : memref<9x128x128xbf16, #tpu.memory_space<vmem>>, vector<1x128x128xbf16>
    %100 = vector.shape_cast %99 : vector<1x128x128xbf16> to vector<128x128xbf16>
    %cst_124 = arith.constant dense<0.000000e+00> : vector<256x128xf32>
    %101 = tpu.matmul %98, %100, %cst_124 {dimension_numbers = #tpu.dot_dimension_numbers<[1], [0], [0], [1], [0, 0, 1, 1], [], []>} : vector<256x128xbf16>, vector<128x128xbf16>, vector<256x128xf32> -> vector<256x128xf32>
    %102 = arith.addf %96, %101 : vector<256x128xf32>
    %c1_125 = arith.constant 1 : index
    %c1_126 = arith.constant 1 : index
    %c0_127 = arith.constant 0 : index
    %103 = vector.load %arg10[%c1_125, %c1_126, %c0_127] : memref<18x24x128xbf16, #tpu.memory_space<vmem>>, vector<16x16x128xbf16>
    %104 = vector.shape_cast %103 : vector<16x16x128xbf16> to vector<256x128xbf16>
    %c4_128 = arith.constant 4 : index
    %c0_129 = arith.constant 0 : index
    %c0_130 = arith.constant 0 : index
    %105 = vector.load %arg3[%c4_128, %c0_129, %c0_130] : memref<9x128x128xbf16, #tpu.memory_space<vmem>>, vector<1x128x128xbf16>
    %106 = vector.shape_cast %105 : vector<1x128x128xbf16> to vector<128x128xbf16>
    %cst_131 = arith.constant dense<0.000000e+00> : vector<256x128xf32>
    %107 = tpu.matmul %104, %106, %cst_131 {dimension_numbers = #tpu.dot_dimension_numbers<[1], [0], [0], [1], [0, 0, 1, 1], [], []>} : vector<256x128xbf16>, vector<128x128xbf16>, vector<256x128xf32> -> vector<256x128xf32>
    %108 = arith.addf %102, %107 : vector<256x128xf32>
    %c1_132 = arith.constant 1 : index
    %c2_133 = arith.constant 2 : index
    %c0_134 = arith.constant 0 : index
    %109 = vector.load %arg10[%c1_132, %c2_133, %c0_134] : memref<18x24x128xbf16, #tpu.memory_space<vmem>>, vector<16x16x128xbf16>
    %110 = vector.shape_cast %109 : vector<16x16x128xbf16> to vector<256x128xbf16>
    %c5_135 = arith.constant 5 : index
    %c0_136 = arith.constant 0 : index
    %c0_137 = arith.constant 0 : index
    %111 = vector.load %arg3[%c5_135, %c0_136, %c0_137] : memref<9x128x128xbf16, #tpu.memory_space<vmem>>, vector<1x128x128xbf16>
    %112 = vector.shape_cast %111 : vector<1x128x128xbf16> to vector<128x128xbf16>
    %cst_138 = arith.constant dense<0.000000e+00> : vector<256x128xf32>
    %113 = tpu.matmul %110, %112, %cst_138 {dimension_numbers = #tpu.dot_dimension_numbers<[1], [0], [0], [1], [0, 0, 1, 1], [], []>} : vector<256x128xbf16>, vector<128x128xbf16>, vector<256x128xf32> -> vector<256x128xf32>
    %114 = arith.addf %108, %113 : vector<256x128xf32>
    %c2_139 = arith.constant 2 : index
    %c0_140 = arith.constant 0 : index
    %c0_141 = arith.constant 0 : index
    %115 = vector.load %arg10[%c2_139, %c0_140, %c0_141] : memref<18x24x128xbf16, #tpu.memory_space<vmem>>, vector<16x16x128xbf16>
    %116 = vector.shape_cast %115 : vector<16x16x128xbf16> to vector<256x128xbf16>
    %c6_142 = arith.constant 6 : index
    %c0_143 = arith.constant 0 : index
    %c0_144 = arith.constant 0 : index
    %117 = vector.load %arg3[%c6_142, %c0_143, %c0_144] : memref<9x128x128xbf16, #tpu.memory_space<vmem>>, vector<1x128x128xbf16>
    %118 = vector.shape_cast %117 : vector<1x128x128xbf16> to vector<128x128xbf16>
    %cst_145 = arith.constant dense<0.000000e+00> : vector<256x128xf32>
    %119 = tpu.matmul %116, %118, %cst_145 {dimension_numbers = #tpu.dot_dimension_numbers<[1], [0], [0], [1], [0, 0, 1, 1], [], []>} : vector<256x128xbf16>, vector<128x128xbf16>, vector<256x128xf32> -> vector<256x128xf32>
    %120 = arith.addf %114, %119 : vector<256x128xf32>
    %c2_146 = arith.constant 2 : index
    %c1_147 = arith.constant 1 : index
    %c0_148 = arith.constant 0 : index
    %121 = vector.load %arg10[%c2_146, %c1_147, %c0_148] : memref<18x24x128xbf16, #tpu.memory_space<vmem>>, vector<16x16x128xbf16>
    %122 = vector.shape_cast %121 : vector<16x16x128xbf16> to vector<256x128xbf16>
    %c7_149 = arith.constant 7 : index
    %c0_150 = arith.constant 0 : index
    %c0_151 = arith.constant 0 : index
    %123 = vector.load %arg3[%c7_149, %c0_150, %c0_151] : memref<9x128x128xbf16, #tpu.memory_space<vmem>>, vector<1x128x128xbf16>
    %124 = vector.shape_cast %123 : vector<1x128x128xbf16> to vector<128x128xbf16>
    %cst_152 = arith.constant dense<0.000000e+00> : vector<256x128xf32>
    %125 = tpu.matmul %122, %124, %cst_152 {dimension_numbers = #tpu.dot_dimension_numbers<[1], [0], [0], [1], [0, 0, 1, 1], [], []>} : vector<256x128xbf16>, vector<128x128xbf16>, vector<256x128xf32> -> vector<256x128xf32>
    %126 = arith.addf %120, %125 : vector<256x128xf32>
    %c2_153 = arith.constant 2 : index
    %c2_154 = arith.constant 2 : index
    %c0_155 = arith.constant 0 : index
    %127 = vector.load %arg10[%c2_153, %c2_154, %c0_155] : memref<18x24x128xbf16, #tpu.memory_space<vmem>>, vector<16x16x128xbf16>
    %128 = vector.shape_cast %127 : vector<16x16x128xbf16> to vector<256x128xbf16>
    %c8_156 = arith.constant 8 : index
    %c0_157 = arith.constant 0 : index
    %c0_158 = arith.constant 0 : index
    %129 = vector.load %arg3[%c8_156, %c0_157, %c0_158] : memref<9x128x128xbf16, #tpu.memory_space<vmem>>, vector<1x128x128xbf16>
    %130 = vector.shape_cast %129 : vector<1x128x128xbf16> to vector<128x128xbf16>
    %cst_159 = arith.constant dense<0.000000e+00> : vector<256x128xf32>
    %131 = tpu.matmul %128, %130, %cst_159 {dimension_numbers = #tpu.dot_dimension_numbers<[1], [0], [0], [1], [0, 0, 1, 1], [], []>} : vector<256x128xbf16>, vector<128x128xbf16>, vector<256x128xf32> -> vector<256x128xf32>
    %132 = arith.addf %126, %131 : vector<256x128xf32>
    %c0_160 = arith.constant 0 : index
    %c0_161 = arith.constant 0 : index
    %133 = vector.load %arg6[%c0_160, %c0_161] : memref<1x128xf32, #tpu.memory_space<vmem>>, vector<1x128xf32>
    %134 = vector.broadcast %133 : vector<1x128xf32> to vector<256x128xf32>
    %135 = arith.mulf %132, %134 : vector<256x128xf32>
    %c0_162 = arith.constant 0 : index
    %c0_163 = arith.constant 0 : index
    %136 = vector.load %arg7[%c0_162, %c0_163] : memref<1x128xf32, #tpu.memory_space<vmem>>, vector<1x128xf32>
    %137 = vector.broadcast %136 : vector<1x128xf32> to vector<256x128xf32>
    %138 = arith.addf %135, %137 : vector<256x128xf32>
    %c0_164 = arith.constant 0 : index
    %c0_165 = arith.constant 0 : index
    %c0_166 = arith.constant 0 : index
    %c0_167 = arith.constant 0 : index
    %139 = vector.load %arg1[%c0_164, %c0_165, %c0_166, %c0_167] : memref<1x16x16x4xf32, #tpu.memory_space<vmem>>, vector<1x16x16x4xf32>
    %140 = vector.shape_cast %139 : vector<1x16x16x4xf32> to vector<16x16x4xf32>
    %141 = vector.shape_cast %140 : vector<16x16x4xf32> to vector<256x4xf32>
    %142 = vector.extract_strided_slice %138 {offsets = [0, 0], sizes = [256, 4], strides = [1, 1]} : vector<256x128xf32> to vector<256x4xf32>
    %143 = arith.addf %142, %141 : vector<256x4xf32>
    %cst_168 = arith.constant 0.000000e+00 : f32
    %144 = vector.broadcast %cst_168 : f32 to vector<256x4xf32>
    %145 = arith.maximumf %143, %144 : vector<256x4xf32>
    %146 = vector.shape_cast %145 : vector<256x4xf32> to vector<1x16x16x4xf32>
    %c0_169 = arith.constant 0 : index
    %c0_170 = arith.constant 0 : index
    %c0_171 = arith.constant 0 : index
    %c0_172 = arith.constant 0 : index
    %147 = vector.load %arg8[%c0_169, %c0_170, %c0_171, %c0_172] : memref<1x16x16x4xf32, #tpu.memory_space<vmem>>, vector<1x16x16x4xf32>
    tpu.vector_store %arg8[%c0_169, %c0_170, %c0_171, %c0_172], %146 {strides = array<i32>} : memref<1x16x16x4xf32, #tpu.memory_space<vmem>>, vector<1x16x16x4xf32>,
    return
  }
  func.func @transform_0(%arg0: i32) -> (i32, i32, i32, i32) {
    %c0_i32 = arith.constant 0 : i32
    %c0_i32_0 = arith.constant 0 : i32
    %c0_i32_1 = arith.constant 0 : i32
    %c0_i32_2 = arith.constant 0 : i32
    return %arg0, %c0_i32, %c0_i32_0, %c0_i32_1 : i32, i32, i32, i32
  }
  func.func @transform_1(%arg0: i32) -> (i32, i32, i32) {
    %c0_i32 = arith.constant 0 : i32
    %c0_i32_0 = arith.constant 0 : i32
    %c0_i32_1 = arith.constant 0 : i32
    %c0_i32_2 = arith.constant 0 : i32
    return %c0_i32, %c0_i32_0, %c0_i32_1 : i32, i32, i32
  }
  func.func @transform_2(%arg0: i32) -> (i32, i32, i32) {
    %c0_i32 = arith.constant 0 : i32
    %c0_i32_0 = arith.constant 0 : i32
    %c0_i32_1 = arith.constant 0 : i32
    %c0_i32_2 = arith.constant 0 : i32
    return %c0_i32, %c0_i32_0, %c0_i32_1 : i32, i32, i32
  }
  func.func @transform_3(%arg0: i32) -> (i32, i32) {
    %c0_i32 = arith.constant 0 : i32
    %c0_i32_0 = arith.constant 0 : i32
    %c0_i32_1 = arith.constant 0 : i32
    return %c0_i32, %c0_i32_0 : i32, i32
  }
  func.func @transform_4(%arg0: i32) -> (i32, i32) {
    %c0_i32 = arith.constant 0 : i32
    %c0_i32_0 = arith.constant 0 : i32
    %c0_i32_1 = arith.constant 0 : i32
    return %c0_i32, %c0_i32_0 : i32, i32
  }
  func.func @transform_5(%arg0: i32) -> (i32, i32) {
    %c0_i32 = arith.constant 0 : i32
    %c0_i32_0 = arith.constant 0 : i32
    %c0_i32_1 = arith.constant 0 : i32
    return %c0_i32, %c0_i32_0 : i32, i32
  }
  func.func @transform_6(%arg0: i32) -> (i32, i32) {
    %c0_i32 = arith.constant 0 : i32
    %c0_i32_0 = arith.constant 0 : i32
    %c0_i32_1 = arith.constant 0 : i32
    return %c0_i32, %c0_i32_0 : i32, i32
  }
  func.func @transform_7(%arg0: i32) -> (i32, i32, i32, i32) {
    %c0_i32 = arith.constant 0 : i32
    %c0_i32_0 = arith.constant 0 : i32
    %c0_i32_1 = arith.constant 0 : i32
    %c0_i32_2 = arith.constant 0 : i32
    return %arg0, %c0_i32, %c0_i32_0, %c0_i32_1 : i32, i32, i32, i32
  }
}

</mosaic_0001>

<llo_original>
// kernel: tpu_custom_call.1
$region0: #{tpu_custom_call.1}
  #allocation0 [shape = 'u32[]', space=smem, size = 0x4, offset = 0x4, fixed_abs, tag = 'smem constant byte address 0x4 - core index']
  #allocation1 [shape = 'u32[144,128]{1,0:T(1,128)}', space=vmem, size = 0x12000, scoped, tag = 'internal scratch']
  #allocation2 [shape = 'bf16[18,24,128]{2,1,0:T(8,128)(2,1)}', space=vmem, size = 0x1b000, scoped, tag = 'scratch operand']
  #allocation3 [shape = 'bf16[18,24,128]{2,1,0:T(8,128)(2,1)}', space=vmem, size = 0x1b000, scoped, tag = 'scratch operand']
  %s0 = inlined_call_operand.vmem [shape: f32[2,16,16,4], index: 0, kind: input, shape index: {}]
  %s1 = inlined_call_operand.vmem [shape: bf16[9,128,128], index: 1, kind: input, shape index: {}]
  %s2 = inlined_call_operand.hbm [shape: bf16[9,128,128], index: 2, kind: input, shape index: {}]
  %s3 = inlined_call_operand.vmem [shape: f32[1,128], index: 3, kind: input, shape index: {}]
  %s4 = inlined_call_operand.vmem [shape: f32[1,128], index: 4, kind: input, shape index: {}]
  %s5 = inlined_call_operand.vmem [shape: f32[1,128], index: 5, kind: input, shape index: {}]
  %s6 = inlined_call_operand.vmem [shape: f32[1,128], index: 6, kind: input, shape index: {}]
  %s7 = inlined_call_operand.vmem [shape: f32[2,16,16,4], index: 7, kind: output, shape index: {}]
  %s8 = sld [smem:[#allocation0]]
  $region65: #{tpu_custom_call.1} parent=0
    _
  %s10 = ssub.s32 1, %s8
  %s11 = scalar_select 0, %s10, %s8
  $region1: #{tpu_custom_call.1} parent=0
    #allocation4 [shape = 'u8[294912]{0}', space=vmem, size = 0x48000, scoped, tag = 'input window, operand 2, single buffered']
    #allocation5 [shape = 's32[2]{0}', space=sflag, size = 0x8, scoped, tag = 'scoped memory for tpu_custom_call.1']
    %12 = vsyncpa [#allocation5], 0
    loop: start=0, step=1, limit=4
    $region2: #{tpu_custom_call.1} parent=1 // loop_pre_header
      _
    $region3: #{tpu_custom_call.1} parent=1 // loop_header
      %s14 = sphi 0, %s18
      %p15 = scmp.ge.s32.totalorder %s14, 4
      %s24 = sphi 0, %s26
      %s27 = sphi 0, %s24
      %s28 = sphi 0, %s27
      %s44 = sphi 0, %s28
      %s48 = sphi 0, %s48
      %s50 = sphi 0, %s48
      %s51 = sphi 0, %s50
      %s65 = sphi 0, %s51
      %s69 = sphi 0, %s69
      %s71 = sphi 0, %s69
      %s72 = sphi 0, %s71
      %s86 = sphi 0, %s72
      %s90 = sphi 0, %s90
      %s92 = sphi 0, %s90
      %s93 = sphi 0, %s92
      %s107 = sphi 0, %s93
      %s111 = sphi 0, %s111
      %s113 = sphi 0, %s111
      %s114 = sphi 0, %s113
      %s128 = sphi 0, %s114
      %s132 = sphi 0, %s132
      %s134 = sphi 0, %s132
      %s135 = sphi 0, %s134
      %s149 = sphi 0, %s135
      %s153 = sphi 0, %s153
      %s155 = sphi 0, %s153
      %s156 = sphi 0, %s155
      %s170 = sphi 0, %s156
      %s176 = sphi 0, %s178
      %s179 = sphi 0, %s176
      %s180 = sphi 0, %s179
      %s196 = sphi 0, %s180
    $region4: #{tpu_custom_call.1} parent=1 // loop_header_branch
      %17 = sbr.rel (%p15) target = $region8
    $region5: #{tpu_custom_call.1} parent=1 // loop_body
      %s19 = ssub.s32 %s14, 1
      %s20 = ssub.s32 %s14, 2
      %s21 = sadd.s32 %s14, 1
      %s22 = ssub.s32 %s14, %s21
      %p23 = scmp.eq.s32.totalorder %s22, 0
      %s25 = sadd.s32 %s24, 1
      %s26 = scalar_select %p23, %s24, %s25
      %p29 = pneg %p23
      %p30 = scmp.eq.s32.totalorder %s14, 1
      %p31 = por %p29, %p30
      %p32 = scmp.ne.s32.totalorder %s24, %s27
      %p33 = scmp.eq.s32.totalorder %s14, 0
      %p34 = por %p32, %p33
      %p35 = scmp.ne.s32.totalorder %s24, %s27
      %p36 = scmp.eq.s32.totalorder %s19, 1
      %p37 = por %p35, %p36
      %p38 = scmp.ne.s32.totalorder %s27, %s28
      %p39 = scmp.eq.s32.totalorder %s19, 0
      %p40 = por %p38, %p39
      %p41 = scmp.ne.s32.totalorder %s27, %s28
      %p42 = scmp.eq.s32.totalorder %s20, 1
      %p43 = por %p41, %p42
      %p45 = scmp.ne.s32.totalorder %s28, %s44
      %p46 = scmp.eq.s32.totalorder %s20, 0
      %p47 = por %p45, %p46
      %s49 = sadd.s32 %s48, 1
      %p52 = scmp.eq.s32.totalorder %s14, 1
      %p53 = scmp.ne.s32.totalorder %s48, %s50
      %p54 = scmp.eq.s32.totalorder %s14, 0
      %p55 = por %p53, %p54
      %p56 = scmp.ne.s32.totalorder %s48, %s50
      %p57 = scmp.eq.s32.totalorder %s19, 1
      %p58 = por %p56, %p57
      %p59 = scmp.ne.s32.totalorder %s50, %s51
      %p60 = scmp.eq.s32.totalorder %s19, 0
      %p61 = por %p59, %p60
      %p62 = scmp.ne.s32.totalorder %s50, %s51
      %p63 = scmp.eq.s32.totalorder %s20, 1
      %p64 = por %p62, %p63
      %p66 = scmp.ne.s32.totalorder %s51, %s65
      %p67 = scmp.eq.s32.totalorder %s20, 0
      %p68 = por %p66, %p67
      %s70 = sadd.s32 %s69, 1
      %p73 = scmp.eq.s32.totalorder %s14, 1
      %p74 = scmp.ne.s32.totalorder %s69, %s71
      %p75 = scmp.eq.s32.totalorder %s14, 0
      %p76 = por %p74, %p75
      %p77 = scmp.ne.s32.totalorder %s69, %s71
      %p78 = scmp.eq.s32.totalorder %s19, 1
      %p79 = por %p77, %p78
      %p80 = scmp.ne.s32.totalorder %s71, %s72
      %p81 = scmp.eq.s32.totalorder %s19, 0
      %p82 = por %p80, %p81
      %p83 = scmp.ne.s32.totalorder %s71, %s72
      %p84 = scmp.eq.s32.totalorder %s20, 1
      %p85 = por %p83, %p84
      %p87 = scmp.ne.s32.totalorder %s72, %s86
      %p88 = scmp.eq.s32.totalorder %s20, 0
      %p89 = por %p87, %p88
      %s91 = sadd.s32 %s90, 1
      %p94 = scmp.eq.s32.totalorder %s14, 1
      %p95 = scmp.ne.s32.totalorder %s90, %s92
      %p96 = scmp.eq.s32.totalorder %s14, 0
      %p97 = por %p95, %p96
      %p98 = scmp.ne.s32.totalorder %s90, %s92
      %p99 = scmp.eq.s32.totalorder %s19, 1
      %p100 = por %p98, %p99
      %p101 = scmp.ne.s32.totalorder %s92, %s93
      %p102 = scmp.eq.s32.totalorder %s19, 0
      %p103 = por %p101, %p102
      %p104 = scmp.ne.s32.totalorder %s92, %s93
      %p105 = scmp.eq.s32.totalorder %s20, 1
      %p106 = por %p104, %p105
      %p108 = scmp.ne.s32.totalorder %s93, %s107
      %p109 = scmp.eq.s32.totalorder %s20, 0
      %p110 = por %p108, %p109
      %s112 = sadd.s32 %s111, 1
      %p115 = scmp.eq.s32.totalorder %s14, 1
      %p116 = scmp.ne.s32.totalorder %s111, %s113
      %p117 = scmp.eq.s32.totalorder %s14, 0
      %p118 = por %p116, %p117
      %p119 = scmp.ne.s32.totalorder %s111, %s113
      %p120 = scmp.eq.s32.totalorder %s19, 1
      %p121 = por %p119, %p120
      %p122 = scmp.ne.s32.totalorder %s113, %s114
      %p123 = scmp.eq.s32.totalorder %s19, 0
      %p124 = por %p122, %p123
      %p125 = scmp.ne.s32.totalorder %s113, %s114
      %p126 = scmp.eq.s32.totalorder %s20, 1
      %p127 = por %p125, %p126
      %p129 = scmp.ne.s32.totalorder %s114, %s128
      %p130 = scmp.eq.s32.totalorder %s20, 0
      %p131 = por %p129, %p130
      %s133 = sadd.s32 %s132, 1
      %p136 = scmp.eq.s32.totalorder %s14, 1
      %p137 = scmp.ne.s32.totalorder %s132, %s134
      %p138 = scmp.eq.s32.totalorder %s14, 0
      %p139 = por %p137, %p138
      %p140 = scmp.ne.s32.totalorder %s132, %s134
      %p141 = scmp.eq.s32.totalorder %s19, 1
      %p142 = por %p140, %p141
      %p143 = scmp.ne.s32.totalorder %s134, %s135
      %p144 = scmp.eq.s32.totalorder %s19, 0
      %p145 = por %p143, %p144
      %p146 = scmp.ne.s32.totalorder %s134, %s135
      %p147 = scmp.eq.s32.totalorder %s20, 1
      %p148 = por %p146, %p147
      %p150 = scmp.ne.s32.totalorder %s135, %s149
      %p151 = scmp.eq.s32.totalorder %s20, 0
      %p152 = por %p150, %p151
      %s154 = sadd.s32 %s153, 1
      %p157 = scmp.eq.s32.totalorder %s14, 1
      %p158 = scmp.ne.s32.totalorder %s153, %s155
      %p159 = scmp.eq.s32.totalorder %s14, 0
      %p160 = por %p158, %p159
      %p161 = scmp.ne.s32.totalorder %s153, %s155
      %p162 = scmp.eq.s32.totalorder %s19, 1
      %p163 = por %p161, %p162
      %p164 = scmp.ne.s32.totalorder %s155, %s156
      %p165 = scmp.eq.s32.totalorder %s19, 0
      %p166 = por %p164, %p165
      %p167 = scmp.ne.s32.totalorder %s155, %s156
      %p168 = scmp.eq.s32.totalorder %s20, 1
      %p169 = por %p167, %p168
      %p171 = scmp.ne.s32.totalorder %s156, %s170
      %p172 = scmp.eq.s32.totalorder %s20, 0
      %p173 = por %p171, %p172
      %s174 = ssub.s32 %s14, %s21
      %p175 = scmp.eq.s32.totalorder %s174, 0
      %s177 = sadd.s32 %s176, 1
      %s178 = scalar_select %p175, %s176, %s177
      %p181 = pneg %p175
      %p182 = scmp.eq.s32.totalorder %s14, 1
      %p183 = por %p181, %p182
      %p184 = scmp.ne.s32.totalorder %s176, %s179
      %p185 = scmp.eq.s32.totalorder %s14, 0
      %p186 = por %p184, %p185
      %p187 = scmp.ne.s32.totalorder %s176, %s179
      %p188 = scmp.eq.s32.totalorder %s19, 1
      %p189 = por %p187, %p188
      %p190 = scmp.ne.s32.totalorder %s179, %s180
      %p191 = scmp.eq.s32.totalorder %s19, 0
      %p192 = por %p190, %p191
      %p193 = scmp.ne.s32.totalorder %s179, %s180
      %p194 = scmp.eq.s32.totalorder %s20, 1
      %p195 = por %p193, %p194
      %p197 = scmp.ne.s32.totalorder %s180, %s196
      %p198 = scmp.eq.s32.totalorder %s20, 0
      %p199 = por %p197, %p198
      %p200 = scmp.le.s32.totalorder 1, %s14
      %p201 = scmp.lt.s32.totalorder %s14, 3
      %p202 = pnand %p200, %p201
      %p203 = pneg %p202
      // Predicated region
      $region9: #{tpu_custom_call.1} parent=5 // pred_check
        _
      $region10: #{tpu_custom_call.1} parent=5 // pred_check_branch
        %205 = sbr.rel (%p202) target = $region12
      $region11: #{tpu_custom_call.1} parent=5 // pred_region
        %s206 = ssub.s32 %s14, 1
        // Predicated region
        $region13: #{tpu_custom_call.1} parent=11 // pred_check
          %p207 = pneg %p61
        $region14: #{tpu_custom_call.1} parent=11 // pred_check_branch
          %209 = sbr.rel (%p207) target = $region16
        $region15: #{tpu_custom_call.1} parent=11 // pred_region
          _
        $region16: #{tpu_custom_call.1} parent=11 // pred_fallthru
          _
        // Predicated region
        $region17: #{tpu_custom_call.1} parent=11 // pred_check
          %p210 = pneg %p82
        $region18: #{tpu_custom_call.1} parent=11 // pred_check_branch
          %212 = sbr.rel (%p210) target = $region20
        $region19: #{tpu_custom_call.1} parent=11 // pred_region
          %s214 = ssub.s32 9216, 9216
          %215 = vsyncadd [#allocation5], %s214
          %s216 = sshll.u32 [#allocation4], 4
          %s217 = int_to_ptr.vmem [resolvable:$true] %s216
          %222 = dma.hbm_to_vmem [thread:$0]  %s2, 9216, %s217, [#allocation5], 64, 64, 4
        $region20: #{tpu_custom_call.1} parent=11 // pred_fallthru
          _
        // Predicated region
        $region21: #{tpu_custom_call.1} parent=11 // pred_check
          %p223 = pneg %p103
        $region22: #{tpu_custom_call.1} parent=11 // pred_check_branch
          %225 = sbr.rel (%p223) target = $region24
        $region23: #{tpu_custom_call.1} parent=11 // pred_region
          _
        $region24: #{tpu_custom_call.1} parent=11 // pred_fallthru
          _
        // Predicated region
        $region25: #{tpu_custom_call.1} parent=11 // pred_check
          %p226 = pneg %p124
        $region26: #{tpu_custom_call.1} parent=11 // pred_check_branch
          %228 = sbr.rel (%p226) target = $region28
        $region27: #{tpu_custom_call.1} parent=11 // pred_region
          _
        $region28: #{tpu_custom_call.1} parent=11 // pred_fallthru
          _
        // Predicated region
        $region29: #{tpu_custom_call.1} parent=11 // pred_check
          %p229 = pneg %p145
        $region30: #{tpu_custom_call.1} parent=11 // pred_check_branch
          %231 = sbr.rel (%p229) target = $region32
        $region31: #{tpu_custom_call.1} parent=11 // pred_region
          _
        $region32: #{tpu_custom_call.1} parent=11 // pred_fallthru
          _
        // Predicated region
        $region33: #{tpu_custom_call.1} parent=11 // pred_check
          %p232 = pneg %p166
        $region34: #{tpu_custom_call.1} parent=11 // pred_check_branch
          %234 = sbr.rel (%p232) target = $region36
        $region35: #{tpu_custom_call.1} parent=11 // pred_region
          _
        $region36: #{tpu_custom_call.1} parent=11 // pred_fallthru
          _
      $region12: #{tpu_custom_call.1} parent=5 // pred_fallthru
        _
      %p235 = scmp.lt.s32.totalorder %s14, 2
      // Predicated region
      $region37: #{tpu_custom_call.1} parent=5 // pred_check
        %p236 = pneg %p235
      $region38: #{tpu_custom_call.1} parent=5 // pred_check_branch
        %238 = sbr.rel (%p236) target = $region40
      $region39: #{tpu_custom_call.1} parent=5 // pred_region
        // Predicated region
        $region41: #{tpu_custom_call.1} parent=39 // pred_check
          %p239 = pneg %p34
        $region42: #{tpu_custom_call.1} parent=39 // pred_check_branch
          %241 = sbr.rel (%p239) target = $region44
        $region43: #{tpu_custom_call.1} parent=39 // pred_region
          %p242 = scmp.lt.s32.totalorder %s14, 1
          %s243 = scalar_select %p242, %s14, 1
          %s244 = smul.addr %s243, 32
          %s245 = smul.addr %s244, 8
          %s246 = scalar_lea.vmem %s0, %s245
        $region44: #{tpu_custom_call.1} parent=39 // pred_fallthru
          _
      $region40: #{tpu_custom_call.1} parent=5 // pred_fallthru
        _
      %p247 = scmp.le.s32.totalorder 1, %s14
      %p248 = scmp.lt.s32.totalorder %s14, 3
      %p249 = pnand %p247, %p248
      %p250 = pneg %p249
      // Predicated region
      $region45: #{tpu_custom_call.1} parent=5 // pred_check
        _
      $region46: #{tpu_custom_call.1} parent=5 // pred_check_branch
        %252 = sbr.rel (%p249) target = $region48
      $region47: #{tpu_custom_call.1} parent=5 // pred_region
        %s253 = ssub.s32 %s14, 1
        // Predicated region
        $region49: #{tpu_custom_call.1} parent=47 // pred_check
          %p254 = pneg %p82
        $region50: #{tpu_custom_call.1} parent=47 // pred_check_branch
          %256 = sbr.rel (%p254) target = $region52
        $region51: #{tpu_custom_call.1} parent=47 // pred_region
          %257 = dma.done [#allocation5], 9216
        $region52: #{tpu_custom_call.1} parent=47 // pred_fallthru
          _
        %p258 = scmp.lt.s32.totalorder %s19, 1
        %s259 = scalar_select %p258, %s19, 1
        %s260 = smul.addr %s259, 32
        %s261 = smul.addr %s260, 8
        %s262 = scalar_lea.vmem %s0, %s261
        %p263 = pneg %p40
        %p264 = pneg %p37
        %p265 = pneg %p61
        %p266 = pneg %p58
        %p267 = pneg %p82
        %p268 = pneg %p79
        %p269 = pneg %p103
        %p270 = pneg %p100
        %p271 = pneg %p124
        %p272 = pneg %p121
        %p273 = pneg %p145
        %p274 = pneg %p142
        %p275 = pneg %p166
        %p276 = pneg %p163
        %p277 = pneg %p192
        %p278 = pneg %p189
        %p279 = scmp.lt.s32.totalorder %s19, 1
        %s280 = scalar_select %p279, %s19, 1
        %s281 = smul.addr %s280, 32
        %s282 = smul.addr %s281, 8
        %s283 = scalar_lea.vmem %s7, %s282
        %p284 = scmp.lt.s32.totalorder %s19, 1
        %s285 = scalar_select %p284, %s19, 1
        %s286 = smul.addr %s285, 32
        %s287 = smul.addr %s286, 8
        %s288 = scalar_lea.vmem %s0, %s287
        %p289 = scmp.lt.s32.totalorder %s19, 1
        %s290 = scalar_select %p289, %s19, 1
        %s291 = smul.addr %s290, 32
        %s292 = smul.addr %s291, 8
        %s293 = scalar_lea.vmem %s7, %s292
        %295 = vst [vmem:[#allocation2] sm:$0xf] 0
        %296 = vst [vmem:[#allocation2 + $0x4] sm:$0xf] 0
        %297 = vst [vmem:[#allocation2 + $0x8] sm:$0xf] 0
        %s298 = scalar_lea.vmem [#allocation2], 204
        %299 = vst [vmem:[%s298] sm:$0xf] 0
        %300 = vst [vmem:[%s298 + $0x4] sm:$0xf] 0
        %301 = vst [vmem:[%s298 + $0x8] sm:$0xf] 0
        %s302 = scalar_lea.vmem [#allocation2], 12
        %vm303 = vcmask 1040384
        %vm304 = vsmask.f32 256
        %vm305 = vmand %vm303, %vm304
        %v306 = vld [vmem:[%s302] sm:$0x1]
        %v307 = vsel %vm305, 0, %v306
        %308 = vst [vmem:[%s302] sm:$0x1] %v307
        %v309 = vld [vmem:[%s302 + $0xc] sm:$0x1]
        %v310 = vsel %vm305, 0, %v309
        %311 = vst [vmem:[%s302 + $0xc] sm:$0x1] %v310
        %v312 = vld [vmem:[%s302 + $0x18] sm:$0x1]
        %v313 = vsel %vm305, 0, %v312
        %314 = vst [vmem:[%s302 + $0x18] sm:$0x1] %v313
        %v315 = vld [vmem:[%s302 + $0x24] sm:$0x1]
        %v316 = vsel %vm305, 0, %v315
        %317 = vst [vmem:[%s302 + $0x24] sm:$0x1] %v316
        %v318 = vld [vmem:[%s302 + $0x30] sm:$0x1]
        %v319 = vsel %vm305, 0, %v318
        %320 = vst [vmem:[%s302 + $0x30] sm:$0x1] %v319
        %v321 = vld [vmem:[%s302 + $0x3c] sm:$0x1]
        %v322 = vsel %vm305, 0, %v321
        %323 = vst [vmem:[%s302 + $0x3c] sm:$0x1] %v322
        %v324 = vld [vmem:[%s302 + $0x48] sm:$0x1]
        %v325 = vsel %vm305, 0, %v324
        %326 = vst [vmem:[%s302 + $0x48] sm:$0x1] %v325
        %v327 = vld [vmem:[%s302 + $0x54] sm:$0x1]
        %v328 = vsel %vm305, 0, %v327
        %329 = vst [vmem:[%s302 + $0x54] sm:$0x1] %v328
        %v330 = vld [vmem:[%s302 + $0x60] sm:$0x1]
        %v331 = vsel %vm305, 0, %v330
        %332 = vst [vmem:[%s302 + $0x60] sm:$0x1] %v331
        %v333 = vld [vmem:[%s302 + $0x6c] sm:$0x1]
        %v334 = vsel %vm305, 0, %v333
        %335 = vst [vmem:[%s302 + $0x6c] sm:$0x1] %v334
        %v336 = vld [vmem:[%s302 + $0x78] sm:$0x1]
        %v337 = vsel %vm305, 0, %v336
        %338 = vst [vmem:[%s302 + $0x78] sm:$0x1] %v337
        %v339 = vld [vmem:[%s302 + $0x84] sm:$0x1]
        %v340 = vsel %vm305, 0, %v339
        %341 = vst [vmem:[%s302 + $0x84] sm:$0x1] %v340
        %v342 = vld [vmem:[%s302 + $0x90] sm:$0x1]
        %v343 = vsel %vm305, 0, %v342
        %344 = vst [vmem:[%s302 + $0x90] sm:$0x1] %v343
        %v345 = vld [vmem:[%s302 + $0x9c] sm:$0x1]
        %v346 = vsel %vm305, 0, %v345
        %347 = vst [vmem:[%s302 + $0x9c] sm:$0x1] %v346
        %v348 = vld [vmem:[%s302 + $0xa8] sm:$0x1]
        %v349 = vsel %vm305, 0, %v348
        %350 = vst [vmem:[%s302 + $0xa8] sm:$0x1] %v349
        %v351 = vld [vmem:[%s302 + $0xb4] sm:$0x1]
        %v352 = vsel %vm305, 0, %v351
        %353 = vst [vmem:[%s302 + $0xb4] sm:$0x1] %v352
        %vm354 = vsmask.f32 7938
        %vm355 = vmand %vm303, %vm354
        %v356 = vld [vmem:[%s302 + $0x8] sm:$0x1]
        %v357 = vsel %vm355, 0, %v356
        %358 = vst [vmem:[%s302 + $0x8] sm:$0x1] %v357
        %v359 = vld [vmem:[%s302 + $0x14] sm:$0x1]
        %v360 = vsel %vm355, 0, %v359
        %361 = vst [vmem:[%s302 + $0x14] sm:$0x1] %v360
        %v362 = vld [vmem:[%s302 + $0x20] sm:$0x1]
        %v363 = vsel %vm355, 0, %v362
        %364 = vst [vmem:[%s302 + $0x20] sm:$0x1] %v363
        %v365 = vld [vmem:[%s302 + $0x2c] sm:$0x1]
        %v366 = vsel %vm355, 0, %v365
        %367 = vst [vmem:[%s302 + $0x2c] sm:$0x1] %v366
        %v368 = vld [vmem:[%s302 + $0x38] sm:$0x1]
        %v369 = vsel %vm355, 0, %v368
        %370 = vst [vmem:[%s302 + $0x38] sm:$0x1] %v369
        %v371 = vld [vmem:[%s302 + $0x44] sm:$0x1]
        %v372 = vsel %vm355, 0, %v371
        %373 = vst [vmem:[%s302 + $0x44] sm:$0x1] %v372
        %v374 = vld [vmem:[%s302 + $0x50] sm:$0x1]
        %v375 = vsel %vm355, 0, %v374
        %376 = vst [vmem:[%s302 + $0x50] sm:$0x1] %v375
        %v377 = vld [vmem:[%s302 + $0x5c] sm:$0x1]
        %v378 = vsel %vm355, 0, %v377
        %379 = vst [vmem:[%s302 + $0x5c] sm:$0x1] %v378
        %v380 = vld [vmem:[%s302 + $0x68] sm:$0x1]
        %v381 = vsel %vm355, 0, %v380
        %382 = vst [vmem:[%s302 + $0x68] sm:$0x1] %v381
        %v383 = vld [vmem:[%s302 + $0x74] sm:$0x1]
        %v384 = vsel %vm355, 0, %v383
        %385 = vst [vmem:[%s302 + $0x74] sm:$0x1] %v384
        %v386 = vld [vmem:[%s302 + $0x80] sm:$0x1]
        %v387 = vsel %vm355, 0, %v386
        %388 = vst [vmem:[%s302 + $0x80] sm:$0x1] %v387
        %v389 = vld [vmem:[%s302 + $0x8c] sm:$0x1]
        %v390 = vsel %vm355, 0, %v389
        %391 = vst [vmem:[%s302 + $0x8c] sm:$0x1] %v390
        %v392 = vld [vmem:[%s302 + $0x98] sm:$0x1]
        %v393 = vsel %vm355, 0, %v392
        %394 = vst [vmem:[%s302 + $0x98] sm:$0x1] %v393
        %v395 = vld [vmem:[%s302 + $0xa4] sm:$0x1]
        %v396 = vsel %vm355, 0, %v395
        %397 = vst [vmem:[%s302 + $0xa4] sm:$0x1] %v396
        %v398 = vld [vmem:[%s302 + $0xb0] sm:$0x1]
        %v399 = vsel %vm355, 0, %v398
        %400 = vst [vmem:[%s302 + $0xb0] sm:$0x1] %v399
        %v401 = vld [vmem:[%s302 + $0xbc] sm:$0x1]
        %v402 = vsel %vm355, 0, %v401
        %403 = vst [vmem:[%s302 + $0xbc] sm:$0x1] %v402
        %vm404 = vcmask 1043488
        %vm405 = vmand %vm404, %vm354
        %v406 = vld [vmem:[%s302] sm:$0xf]
        %v407 = vsel %vm405, 0, %v406
        %408 = vst [vmem:[%s302] sm:$0xf] %v407
        %vm409 = vcmask 1043488
        %410 = vst.msk [vmem:[%s302 + $0x4] sm:$0xf] %vm409, 0
        %vm411 = vcmask 1040416
        %vm412 = vmand %vm411, %vm304
        %v413 = vld [vmem:[%s302 + $0x8] sm:$0x1]
        %v414 = vsel %vm412, 0, %v413
        %415 = vst [vmem:[%s302 + $0x8] sm:$0x1] %v414
        %v416 = vld [vmem:[%s302 + $0xc] sm:$0xf]
        %v417 = vsel %vm405, 0, %v416
        %418 = vst [vmem:[%s302 + $0xc] sm:$0xf] %v417
        %419 = vst.msk [vmem:[%s302 + $0x10] sm:$0xf] %vm409, 0
        %v420 = vld [vmem:[%s302 + $0x14] sm:$0x1]
        %v421 = vsel %vm412, 0, %v420
        %422 = vst [vmem:[%s302 + $0x14] sm:$0x1] %v421
        %v423 = vld [vmem:[%s302 + $0x18] sm:$0xf]
        %v424 = vsel %vm405, 0, %v423
        %425 = vst [vmem:[%s302 + $0x18] sm:$0xf] %v424
        %426 = vst.msk [vmem:[%s302 + $0x1c] sm:$0xf] %vm409, 0
        %v427 = vld [vmem:[%s302 + $0x20] sm:$0x1]
        %v428 = vsel %vm412, 0, %v427
        %429 = vst [vmem:[%s302 + $0x20] sm:$0x1] %v428
        %v430 = vld [vmem:[%s302 + $0x24] sm:$0xf]
        %v431 = vsel %vm405, 0, %v430
        %432 = vst [vmem:[%s302 + $0x24] sm:$0xf] %v431
        %433 = vst.msk [vmem:[%s302 + $0x28] sm:$0xf] %vm409, 0
        %v434 = vld [vmem:[%s302 + $0x2c] sm:$0x1]
        %v435 = vsel %vm412, 0, %v434
        %436 = vst [vmem:[%s302 + $0x2c] sm:$0x1] %v435
        %v437 = vld [vmem:[%s302 + $0x30] sm:$0xf]
        %v438 = vsel %vm405, 0, %v437
        %439 = vst [vmem:[%s302 + $0x30] sm:$0xf] %v438
        %440 = vst.msk [vmem:[%s302 + $0x34] sm:$0xf] %vm409, 0
        %v441 = vld [vmem:[%s302 + $0x38] sm:$0x1]
        %v442 = vsel %vm412, 0, %v441
        %443 = vst [vmem:[%s302 + $0x38] sm:$0x1] %v442
        %v444 = vld [vmem:[%s302 + $0x3c] sm:$0xf]
        %v445 = vsel %vm405, 0, %v444
        %446 = vst [vmem:[%s302 + $0x3c] sm:$0xf] %v445
        %447 = vst.msk [vmem:[%s302 + $0x40] sm:$0xf] %vm409, 0
        %v448 = vld [vmem:[%s302 + $0x44] sm:$0x1]
        %v449 = vsel %vm412, 0, %v448
        %450 = vst [vmem:[%s302 + $0x44] sm:$0x1] %v449
        %v451 = vld [vmem:[%s302 + $0x48] sm:$0xf]
        %v452 = vsel %vm405, 0, %v451
        %453 = vst [vmem:[%s302 + $0x48] sm:$0xf] %v452
        %454 = vst.msk [vmem:[%s302 + $0x4c] sm:$0xf] %vm409, 0
        %v455 = vld [vmem:[%s302 + $0x50] sm:$0x1]
        %v456 = vsel %vm412, 0, %v455
        %457 = vst [vmem:[%s302 + $0x50] sm:$0x1] %v456
        %v458 = vld [vmem:[%s302 + $0x54] sm:$0xf]
        %v459 = vsel %vm405, 0, %v458
        %460 = vst [vmem:[%s302 + $0x54] sm:$0xf] %v459
        %461 = vst.msk [vmem:[%s302 + $0x58] sm:$0xf] %vm409, 0
        %v462 = vld [vmem:[%s302 + $0x5c] sm:$0x1]
        %v463 = vsel %vm412, 0, %v462
        %464 = vst [vmem:[%s302 + $0x5c] sm:$0x1] %v463
        %v465 = vld [vmem:[%s302 + $0x60] sm:$0xf]
        %v466 = vsel %vm405, 0, %v465
        %467 = vst [vmem:[%s302 + $0x60] sm:$0xf] %v466
        %468 = vst.msk [vmem:[%s302 + $0x64] sm:$0xf] %vm409, 0
        %v469 = vld [vmem:[%s302 + $0x68] sm:$0x1]
        %v470 = vsel %vm412, 0, %v469
        %471 = vst [vmem:[%s302 + $0x68] sm:$0x1] %v470
        %v472 = vld [vmem:[%s302 + $0x6c] sm:$0xf]
        %v473 = vsel %vm405, 0, %v472
        %474 = vst [vmem:[%s302 + $0x6c] sm:$0xf] %v473
        %475 = vst.msk [vmem:[%s302 + $0x70] sm:$0xf] %vm409, 0
        %v476 = vld [vmem:[%s302 + $0x74] sm:$0x1]
        %v477 = vsel %vm412, 0, %v476
        %478 = vst [vmem:[%s302 + $0x74] sm:$0x1] %v477
        %v479 = vld [vmem:[%s302 + $0x78] sm:$0xf]
        %v480 = vsel %vm405, 0, %v479
        %481 = vst [vmem:[%s302 + $0x78] sm:$0xf] %v480
        %482 = vst.msk [vmem:[%s302 + $0x7c] sm:$0xf] %vm409, 0
        %v483 = vld [vmem:[%s302 + $0x80] sm:$0x1]
        %v484 = vsel %vm412, 0, %v483
        %485 = vst [vmem:[%s302 + $0x80] sm:$0x1] %v484
        %v486 = vld [vmem:[%s302 + $0x84] sm:$0xf]
        %v487 = vsel %vm405, 0, %v486
        %488 = vst [vmem:[%s302 + $0x84] sm:$0xf] %v487
        %489 = vst.msk [vmem:[%s302 + $0x88] sm:$0xf] %vm409, 0
        %v490 = vld [vmem:[%s302 + $0x8c] sm:$0x1]
        %v491 = vsel %vm412, 0, %v490
        %492 = vst [vmem:[%s302 + $0x8c] sm:$0x1] %v491
        %v493 = vld [vmem:[%s302 + $0x90] sm:$0xf]
        %v494 = vsel %vm405, 0, %v493
        %495 = vst [vmem:[%s302 + $0x90] sm:$0xf] %v494
        %496 = vst.msk [vmem:[%s302 + $0x94] sm:$0xf] %vm409, 0
        %v497 = vld [vmem:[%s302 + $0x98] sm:$0x1]
        %v498 = vsel %vm412, 0, %v497
        %499 = vst [vmem:[%s302 + $0x98] sm:$0x1] %v498
        %v500 = vld [vmem:[%s302 + $0x9c] sm:$0xf]
        %v501 = vsel %vm405, 0, %v500
        %502 = vst [vmem:[%s302 + $0x9c] sm:$0xf] %v501
        %503 = vst.msk [vmem:[%s302 + $0xa0] sm:$0xf] %vm409, 0
        %v504 = vld [vmem:[%s302 + $0xa4] sm:$0x1]
        %v505 = vsel %vm412, 0, %v504
        %506 = vst [vmem:[%s302 + $0xa4] sm:$0x1] %v505
        %v507 = vld [vmem:[%s302 + $0xa8] sm:$0xf]
        %v508 = vsel %vm405, 0, %v507
        %509 = vst [vmem:[%s302 + $0xa8] sm:$0xf] %v508
        %510 = vst.msk [vmem:[%s302 + $0xac] sm:$0xf] %vm409, 0
        %v511 = vld [vmem:[%s302 + $0xb0] sm:$0x1]
        %v512 = vsel %vm412, 0, %v511
        %513 = vst [vmem:[%s302 + $0xb0] sm:$0x1] %v512
        %v514 = vld [vmem:[%s302 + $0xb4] sm:$0xf]
        %v515 = vsel %vm405, 0, %v514
        %516 = vst [vmem:[%s302 + $0xb4] sm:$0xf] %v515
        %517 = vst.msk [vmem:[%s302 + $0xb8] sm:$0xf] %vm409, 0
        %v518 = vld [vmem:[%s302 + $0xbc] sm:$0x1]
        %v519 = vsel %vm412, 0, %v518
        %520 = vst [vmem:[%s302 + $0xbc] sm:$0x1] %v519
        %v521 = vld [vmem:[%s288] sm:$0xff]
        %v522 = vld [vmem:[%s288 + $0x8] sm:$0xff]
        %v523 = vld [vmem:[%s288 + $0x10] sm:$0xff]
        %v524 = vld [vmem:[%s288 + $0x18] sm:$0xff]
        %v525 = vld [vmem:[%s288 + $0x20] sm:$0xff]
        %v526 = vld [vmem:[%s288 + $0x28] sm:$0xff]
        %v527 = vld [vmem:[%s288 + $0x30] sm:$0xff]
        %v528 = vld [vmem:[%s288 + $0x38] sm:$0xff]
        %v529 = vld [vmem:[%s288 + $0x40] sm:$0xff]
        %v530 = vld [vmem:[%s288 + $0x48] sm:$0xff]
        %v531 = vld [vmem:[%s288 + $0x50] sm:$0xff]
        %v532 = vld [vmem:[%s288 + $0x58] sm:$0xff]
        %v533 = vld [vmem:[%s288 + $0x60] sm:$0xff]
        %v534 = vld [vmem:[%s288 + $0x68] sm:$0xff]
        %v535 = vld [vmem:[%s288 + $0x70] sm:$0xff]
        %v536 = vld [vmem:[%s288 + $0x78] sm:$0xff]
        %v537 = vld [vmem:[%s288 + $0x80] sm:$0xff]
        %v538 = vld [vmem:[%s288 + $0x88] sm:$0xff]
        %v539 = vld [vmem:[%s288 + $0x90] sm:$0xff]
        %v540 = vld [vmem:[%s288 + $0x98] sm:$0xff]
        %v541 = vld [vmem:[%s288 + $0xa0] sm:$0xff]
        %v542 = vld [vmem:[%s288 + $0xa8] sm:$0xff]
        %v543 = vld [vmem:[%s288 + $0xb0] sm:$0xff]
        %v544 = vld [vmem:[%s288 + $0xb8] sm:$0xff]
        %v545 = vld [vmem:[%s288 + $0xc0] sm:$0xff]
        %v546 = vld [vmem:[%s288 + $0xc8] sm:$0xff]
        %v547 = vld [vmem:[%s288 + $0xd0] sm:$0xff]
        %v548 = vld [vmem:[%s288 + $0xd8] sm:$0xff]
        %v549 = vld [vmem:[%s288 + $0xe0] sm:$0xff]
        %v550 = vld [vmem:[%s288 + $0xe8] sm:$0xff]
        %v551 = vld [vmem:[%s288 + $0xf0] sm:$0xff]
        %v552 = vld [vmem:[%s288 + $0xf8] sm:$0xff]
        %v553 = vpack.c.bf16 %v522, %v521
        %v554 = vpack.c.bf16 %v524, %v523
        %v555 = vpack.c.bf16 %v526, %v525
        %v556 = vpack.c.bf16 %v528, %v527
        %v557 = vpack.c.bf16 %v530, %v529
        %v558 = vpack.c.bf16 %v532, %v531
        %v559 = vpack.c.bf16 %v534, %v533
        %v560 = vpack.c.bf16 %v536, %v535
        %v561 = vpack.c.bf16 %v538, %v537
        %v562 = vpack.c.bf16 %v540, %v539
        %v563 = vpack.c.bf16 %v542, %v541
        %v564 = vpack.c.bf16 %v544, %v543
        %v565 = vpack.c.bf16 %v546, %v545
        %v566 = vpack.c.bf16 %v548, %v547
        %v567 = vpack.c.bf16 %v550, %v549
        %v568 = vpack.c.bf16 %v552, %v551
        %v585 = vunpack.c.l.b16 %v553
        %v586 = vunpack.c.h.b16 %v553
        %v587 = vunpack.c.l.b16 %v554
        %v588 = vunpack.c.h.b16 %v554
        %v589 = vunpack.c.l.b16 %v555
        %v590 = vunpack.c.h.b16 %v555
        %v591 = vunpack.c.l.b16 %v556
        %v592 = vunpack.c.h.b16 %v556
        %v593 = vunpack.c.l.b16 %v557
        %v594 = vunpack.c.h.b16 %v557
        %v595 = vunpack.c.l.b16 %v558
        %v596 = vunpack.c.h.b16 %v558
        %v597 = vunpack.c.l.b16 %v559
        %v598 = vunpack.c.h.b16 %v559
        %v599 = vunpack.c.l.b16 %v560
        %v600 = vunpack.c.h.b16 %v560
        %v601 = vunpack.c.l.b16 %v561
        %v602 = vunpack.c.h.b16 %v561
        %v603 = vunpack.c.l.b16 %v562
        %v604 = vunpack.c.h.b16 %v562
        %v605 = vunpack.c.l.b16 %v563
        %v606 = vunpack.c.h.b16 %v563
        %v607 = vunpack.c.l.b16 %v564
        %v608 = vunpack.c.h.b16 %v564
        %v609 = vunpack.c.l.b16 %v565
        %v610 = vunpack.c.h.b16 %v565
        %v611 = vunpack.c.l.b16 %v566
        %v612 = vunpack.c.h.b16 %v566
        %v613 = vunpack.c.l.b16 %v567
        %v614 = vunpack.c.h.b16 %v567
        %v615 = vunpack.c.l.b16 %v568
        %v616 = vunpack.c.h.b16 %v568
        %v617 = vpack.c.b16 %v585, %v585
        %v618 = vpack.c.b16 %v586, %v586
        %v619 = vpack.c.b16 %v587, %v587
        %v620 = vpack.c.b16 %v588, %v588
        %v621 = vpack.c.b16 %v589, %v589
        %v622 = vpack.c.b16 %v590, %v590
        %v623 = vpack.c.b16 %v591, %v591
        %v624 = vpack.c.b16 %v592, %v592
        %v625 = vpack.c.b16 %v593, %v593
        %v626 = vpack.c.b16 %v594, %v594
        %v627 = vpack.c.b16 %v595, %v595
        %v628 = vpack.c.b16 %v596, %v596
        %v629 = vpack.c.b16 %v597, %v597
        %v630 = vpack.c.b16 %v598, %v598
        %v631 = vpack.c.b16 %v599, %v599
        %v632 = vpack.c.b16 %v600, %v600
        %v633 = vpack.c.b16 %v601, %v601
        %v634 = vpack.c.b16 %v602, %v602
        %v635 = vpack.c.b16 %v603, %v603
        %v636 = vpack.c.b16 %v604, %v604
        %v637 = vpack.c.b16 %v605, %v605
        %v638 = vpack.c.b16 %v606, %v606
        %v639 = vpack.c.b16 %v607, %v607
        %v640 = vpack.c.b16 %v608, %v608
        %v641 = vpack.c.b16 %v609, %v609
        %v642 = vpack.c.b16 %v610, %v610
        %v643 = vpack.c.b16 %v611, %v611
        %v644 = vpack.c.b16 %v612, %v612
        %v645 = vpack.c.b16 %v613, %v613
        %v646 = vpack.c.b16 %v614, %v614
        %v647 = vpack.c.b16 %v615, %v615
        %v648 = vpack.c.b16 %v616, %v616
        %vm649 = vsmask.f32 4368
        %vm650 = vmor %vm304, %vm649
        %v652 = vshrl.u32 %v617, 16
        %v654 = vrot.slane %v652, 7
        %v655 = vshll.u32 %v617, 16
        %v657 = vor.u32 %v654, %v655
        %v658 = vrot.slane %v654, 4
        %v660 = vshrl.u32 %v618, 16
        %v662 = vrot.slane %v660, 7
        %v663 = vshll.u32 %v618, 16
        %v665 = vor.u32 %v662, %v663
        %v666 = vsel %vm650, %v658, %v665
        %v667 = vrot.slane %v662, 4
        %v669 = vshrl.u32 %v619, 16
        %v671 = vrot.slane %v669, 7
        %v672 = vshll.u32 %v619, 16
        %v674 = vor.u32 %v671, %v672
        %v675 = vrot.slane %v671, 4
        %v677 = vshrl.u32 %v620, 16
        %v679 = vrot.slane %v677, 7
        %v680 = vshll.u32 %v620, 16
        %v682 = vor.u32 %v679, %v680
        %v683 = vsel %vm650, %v675, %v682
        %v684 = vrot.slane %v679, 4
        %v686 = vshrl.u32 %v621, 16
        %v688 = vrot.slane %v686, 7
        %v689 = vshll.u32 %v621, 16
        %v691 = vor.u32 %v688, %v689
        %v692 = vrot.slane %v688, 4
        %v694 = vshrl.u32 %v622, 16
        %v696 = vrot.slane %v694, 7
        %v697 = vshll.u32 %v622, 16
        %v699 = vor.u32 %v696, %v697
        %v700 = vsel %vm650, %v692, %v699
        %v701 = vrot.slane %v696, 4
        %v703 = vshrl.u32 %v623, 16
        %v705 = vrot.slane %v703, 7
        %v706 = vshll.u32 %v623, 16
        %v708 = vor.u32 %v705, %v706
        %v709 = vrot.slane %v705, 4
        %v711 = vshrl.u32 %v624, 16
        %v713 = vrot.slane %v711, 7
        %v714 = vshll.u32 %v624, 16
        %v716 = vor.u32 %v713, %v714
        %v717 = vsel %vm650, %v709, %v716
        %v718 = vrot.slane %v713, 4
        %v720 = vshrl.u32 %v625, 16
        %v722 = vrot.slane %v720, 7
        %v723 = vshll.u32 %v625, 16
        %v725 = vor.u32 %v722, %v723
        %v726 = vrot.slane %v722, 4
        %v728 = vshrl.u32 %v626, 16
        %v730 = vrot.slane %v728, 7
        %v731 = vshll.u32 %v626, 16
        %v733 = vor.u32 %v730, %v731
        %v734 = vsel %vm650, %v726, %v733
        %v735 = vrot.slane %v730, 4
        %v737 = vshrl.u32 %v627, 16
        %v739 = vrot.slane %v737, 7
        %v740 = vshll.u32 %v627, 16
        %v742 = vor.u32 %v739, %v740
        %v743 = vrot.slane %v739, 4
        %v745 = vshrl.u32 %v628, 16
        %v747 = vrot.slane %v745, 7
        %v748 = vshll.u32 %v628, 16
        %v750 = vor.u32 %v747, %v748
        %v751 = vsel %vm650, %v743, %v750
        %v752 = vrot.slane %v747, 4
        %v754 = vshrl.u32 %v629, 16
        %v756 = vrot.slane %v754, 7
        %v757 = vshll.u32 %v629, 16
        %v759 = vor.u32 %v756, %v757
        %v760 = vrot.slane %v756, 4
        %v762 = vshrl.u32 %v630, 16
        %v764 = vrot.slane %v762, 7
        %v765 = vshll.u32 %v630, 16
        %v767 = vor.u32 %v764, %v765
        %v768 = vsel %vm650, %v760, %v767
        %v769 = vrot.slane %v764, 4
        %v771 = vshrl.u32 %v631, 16
        %v773 = vrot.slane %v771, 7
        %v774 = vshll.u32 %v631, 16
        %v776 = vor.u32 %v773, %v774
        %v777 = vrot.slane %v773, 4
        %v779 = vshrl.u32 %v632, 16
        %v781 = vrot.slane %v779, 7
        %v782 = vshll.u32 %v632, 16
        %v784 = vor.u32 %v781, %v782
        %v785 = vsel %vm650, %v777, %v784
        %v786 = vrot.slane %v781, 4
        %v788 = vshrl.u32 %v633, 16
        %v790 = vrot.slane %v788, 7
        %v791 = vshll.u32 %v633, 16
        %v793 = vor.u32 %v790, %v791
        %v794 = vrot.slane %v790, 4
        %v796 = vshrl.u32 %v634, 16
        %v798 = vrot.slane %v796, 7
        %v799 = vshll.u32 %v634, 16
        %v801 = vor.u32 %v798, %v799
        %v802 = vsel %vm650, %v794, %v801
        %v803 = vrot.slane %v798, 4
        %v805 = vshrl.u32 %v635, 16
        %v807 = vrot.slane %v805, 7
        %v808 = vshll.u32 %v635, 16
        %v810 = vor.u32 %v807, %v808
        %v811 = vrot.slane %v807, 4
        %v813 = vshrl.u32 %v636, 16
        %v815 = vrot.slane %v813, 7
        %v816 = vshll.u32 %v636, 16
        %v818 = vor.u32 %v815, %v816
        %v819 = vsel %vm650, %v811, %v818
        %v820 = vrot.slane %v815, 4
        %v822 = vshrl.u32 %v637, 16
        %v824 = vrot.slane %v822, 7
        %v825 = vshll.u32 %v637, 16
        %v827 = vor.u32 %v824, %v825
        %v828 = vrot.slane %v824, 4
        %v830 = vshrl.u32 %v638, 16
        %v832 = vrot.slane %v830, 7
        %v833 = vshll.u32 %v638, 16
        %v835 = vor.u32 %v832, %v833
        %v836 = vsel %vm650, %v828, %v835
        %v837 = vrot.slane %v832, 4
        %v839 = vshrl.u32 %v639, 16
        %v841 = vrot.slane %v839, 7
        %v842 = vshll.u32 %v639, 16
        %v844 = vor.u32 %v841, %v842
        %v845 = vrot.slane %v841, 4
        %v847 = vshrl.u32 %v640, 16
        %v849 = vrot.slane %v847, 7
        %v850 = vshll.u32 %v640, 16
        %v852 = vor.u32 %v849, %v850
        %v853 = vsel %vm650, %v845, %v852
        %v854 = vrot.slane %v849, 4
        %v856 = vshrl.u32 %v641, 16
        %v858 = vrot.slane %v856, 7
        %v859 = vshll.u32 %v641, 16
        %v861 = vor.u32 %v858, %v859
        %v862 = vrot.slane %v858, 4
        %v864 = vshrl.u32 %v642, 16
        %v866 = vrot.slane %v864, 7
        %v867 = vshll.u32 %v642, 16
        %v869 = vor.u32 %v866, %v867
        %v870 = vsel %vm650, %v862, %v869
        %v871 = vrot.slane %v866, 4
        %v873 = vshrl.u32 %v643, 16
        %v875 = vrot.slane %v873, 7
        %v876 = vshll.u32 %v643, 16
        %v878 = vor.u32 %v875, %v876
        %v879 = vrot.slane %v875, 4
        %v881 = vshrl.u32 %v644, 16
        %v883 = vrot.slane %v881, 7
        %v884 = vshll.u32 %v644, 16
        %v886 = vor.u32 %v883, %v884
        %v887 = vsel %vm650, %v879, %v886
        %v888 = vrot.slane %v883, 4
        %v890 = vshrl.u32 %v645, 16
        %v892 = vrot.slane %v890, 7
        %v893 = vshll.u32 %v645, 16
        %v895 = vor.u32 %v892, %v893
        %v896 = vrot.slane %v892, 4
        %v898 = vshrl.u32 %v646, 16
        %v900 = vrot.slane %v898, 7
        %v901 = vshll.u32 %v646, 16
        %v903 = vor.u32 %v900, %v901
        %v904 = vsel %vm650, %v896, %v903
        %v905 = vrot.slane %v900, 4
        %v907 = vshrl.u32 %v647, 16
        %v909 = vrot.slane %v907, 7
        %v910 = vshll.u32 %v647, 16
        %v912 = vor.u32 %v909, %v910
        %v913 = vrot.slane %v909, 4
        %v915 = vshrl.u32 %v648, 16
        %v917 = vrot.slane %v915, 7
        %v918 = vshll.u32 %v648, 16
        %v920 = vor.u32 %v917, %v918
        %v921 = vsel %vm650, %v913, %v920
        %v922 = vrot.slane %v917, 4
        %vm971 = vcmask 27648
        %vm972 = vmand %vm971, %vm354
        %v973 = vld [vmem:[%s302] sm:$0xf]
        %v974 = vsel %vm972, %v657, %v973
        %975 = vst [vmem:[%s302] sm:$0xf] %v974
        %vm976 = vcmask 27648
        %977 = vst.msk [vmem:[%s302 + $0x4] sm:$0xf] %vm976, %v666
        %vm978 = vcmask 24576
        %vm979 = vmand %vm978, %vm304
        %v980 = vld [vmem:[%s302 + $0x8] sm:$0x1]
        %v981 = vsel %vm979, %v667, %v980
        %982 = vst [vmem:[%s302 + $0x8] sm:$0x1] %v981
        %v983 = vld [vmem:[%s302 + $0xc] sm:$0xf]
        %v984 = vsel %vm972, %v674, %v983
        %985 = vst [vmem:[%s302 + $0xc] sm:$0xf] %v984
        %986 = vst.msk [vmem:[%s302 + $0x10] sm:$0xf] %vm976, %v683
        %v987 = vld [vmem:[%s302 + $0x14] sm:$0x1]
        %v988 = vsel %vm979, %v684, %v987
        %989 = vst [vmem:[%s302 + $0x14] sm:$0x1] %v988
        %v990 = vld [vmem:[%s302 + $0x18] sm:$0xf]
        %v991 = vsel %vm972, %v691, %v990
        %992 = vst [vmem:[%s302 + $0x18] sm:$0xf] %v991
        %993 = vst.msk [vmem:[%s302 + $0x1c] sm:$0xf] %vm976, %v700
        %v994 = vld [vmem:[%s302 + $0x20] sm:$0x1]
        %v995 = vsel %vm979, %v701, %v994
        %996 = vst [vmem:[%s302 + $0x20] sm:$0x1] %v995
        %v997 = vld [vmem:[%s302 + $0x24] sm:$0xf]
        %v998 = vsel %vm972, %v708, %v997
        %999 = vst [vmem:[%s302 + $0x24] sm:$0xf] %v998
        %1000 = vst.msk [vmem:[%s302 + $0x28] sm:$0xf] %vm976, %v717
        %v1001 = vld [vmem:[%s302 + $0x2c] sm:$0x1]
        %v1002 = vsel %vm979, %v718, %v1001
        %1003 = vst [vmem:[%s302 + $0x2c] sm:$0x1] %v1002
        %v1004 = vld [vmem:[%s302 + $0x30] sm:$0xf]
        %v1005 = vsel %vm972, %v725, %v1004
        %1006 = vst [vmem:[%s302 + $0x30] sm:$0xf] %v1005
        %1007 = vst.msk [vmem:[%s302 + $0x34] sm:$0xf] %vm976, %v734
        %v1008 = vld [vmem:[%s302 + $0x38] sm:$0x1]
        %v1009 = vsel %vm979, %v735, %v1008
        %1010 = vst [vmem:[%s302 + $0x38] sm:$0x1] %v1009
        %v1011 = vld [vmem:[%s302 + $0x3c] sm:$0xf]
        %v1012 = vsel %vm972, %v742, %v1011
        %1013 = vst [vmem:[%s302 + $0x3c] sm:$0xf] %v1012
        %1014 = vst.msk [vmem:[%s302 + $0x40] sm:$0xf] %vm976, %v751
        %v1015 = vld [vmem:[%s302 + $0x44] sm:$0x1]
        %v1016 = vsel %vm979, %v752, %v1015
        %1017 = vst [vmem:[%s302 + $0x44] sm:$0x1] %v1016
        %v1018 = vld [vmem:[%s302 + $0x48] sm:$0xf]
        %v1019 = vsel %vm972, %v759, %v1018
        %1020 = vst [vmem:[%s302 + $0x48] sm:$0xf] %v1019
        %1021 = vst.msk [vmem:[%s302 + $0x4c] sm:$0xf] %vm976, %v768
        %v1022 = vld [vmem:[%s302 + $0x50] sm:$0x1]
        %v1023 = vsel %vm979, %v769, %v1022
        %1024 = vst [vmem:[%s302 + $0x50] sm:$0x1] %v1023
        %v1025 = vld [vmem:[%s302 + $0x54] sm:$0xf]
        %v1026 = vsel %vm972, %v776, %v1025
        %1027 = vst [vmem:[%s302 + $0x54] sm:$0xf] %v1026
        %1028 = vst.msk [vmem:[%s302 + $0x58] sm:$0xf] %vm976, %v785
        %v1029 = vld [vmem:[%s302 + $0x5c] sm:$0x1]
        %v1030 = vsel %vm979, %v786, %v1029
        %1031 = vst [vmem:[%s302 + $0x5c] sm:$0x1] %v1030
        %v1032 = vld [vmem:[%s302 + $0x60] sm:$0xf]
        %v1033 = vsel %vm972, %v793, %v1032
        %1034 = vst [vmem:[%s302 + $0x60] sm:$0xf] %v1033
        %1035 = vst.msk [vmem:[%s302 + $0x64] sm:$0xf] %vm976, %v802
        %v1036 = vld [vmem:[%s302 + $0x68] sm:$0x1]
        %v1037 = vsel %vm979, %v803, %v1036
        %1038 = vst [vmem:[%s302 + $0x68] sm:$0x1] %v1037
        %v1039 = vld [vmem:[%s302 + $0x6c] sm:$0xf]
        %v1040 = vsel %vm972, %v810, %v1039
        %1041 = vst [vmem:[%s302 + $0x6c] sm:$0xf] %v1040
        %1042 = vst.msk [vmem:[%s302 + $0x70] sm:$0xf] %vm976, %v819
        %v1043 = vld [vmem:[%s302 + $0x74] sm:$0x1]
        %v1044 = vsel %vm979, %v820, %v1043
        %1045 = vst [vmem:[%s302 + $0x74] sm:$0x1] %v1044
        %v1046 = vld [vmem:[%s302 + $0x78] sm:$0xf]
        %v1047 = vsel %vm972, %v827, %v1046
        %1048 = vst [vmem:[%s302 + $0x78] sm:$0xf] %v1047
        %1049 = vst.msk [vmem:[%s302 + $0x7c] sm:$0xf] %vm976, %v836
        %v1050 = vld [vmem:[%s302 + $0x80] sm:$0x1]
        %v1051 = vsel %vm979, %v837, %v1050
        %1052 = vst [vmem:[%s302 + $0x80] sm:$0x1] %v1051
        %v1053 = vld [vmem:[%s302 + $0x84] sm:$0xf]
        %v1054 = vsel %vm972, %v844, %v1053
        %1055 = vst [vmem:[%s302 + $0x84] sm:$0xf] %v1054
        %1056 = vst.msk [vmem:[%s302 + $0x88] sm:$0xf] %vm976, %v853
        %v1057 = vld [vmem:[%s302 + $0x8c] sm:$0x1]
        %v1058 = vsel %vm979, %v854, %v1057
        %1059 = vst [vmem:[%s302 + $0x8c] sm:$0x1] %v1058
        %v1060 = vld [vmem:[%s302 + $0x90] sm:$0xf]
        %v1061 = vsel %vm972, %v861, %v1060
        %1062 = vst [vmem:[%s302 + $0x90] sm:$0xf] %v1061
        %1063 = vst.msk [vmem:[%s302 + $0x94] sm:$0xf] %vm976, %v870
        %v1064 = vld [vmem:[%s302 + $0x98] sm:$0x1]
        %v1065 = vsel %vm979, %v871, %v1064
        %1066 = vst [vmem:[%s302 + $0x98] sm:$0x1] %v1065
        %v1067 = vld [vmem:[%s302 + $0x9c] sm:$0xf]
        %v1068 = vsel %vm972, %v878, %v1067
        %1069 = vst [vmem:[%s302 + $0x9c] sm:$0xf] %v1068
        %1070 = vst.msk [vmem:[%s302 + $0xa0] sm:$0xf] %vm976, %v887
        %v1071 = vld [vmem:[%s302 + $0xa4] sm:$0x1]
        %v1072 = vsel %vm979, %v888, %v1071
        %1073 = vst [vmem:[%s302 + $0xa4] sm:$0x1] %v1072
        %v1074 = vld [vmem:[%s302 + $0xa8] sm:$0xf]
        %v1075 = vsel %vm972, %v895, %v1074
        %1076 = vst [vmem:[%s302 + $0xa8] sm:$0xf] %v1075
        %1077 = vst.msk [vmem:[%s302 + $0xac] sm:$0xf] %vm976, %v904
        %v1078 = vld [vmem:[%s302 + $0xb0] sm:$0x1]
        %v1079 = vsel %vm979, %v905, %v1078
        %1080 = vst [vmem:[%s302 + $0xb0] sm:$0x1] %v1079
        %v1081 = vld [vmem:[%s302 + $0xb4] sm:$0xf]
        %v1082 = vsel %vm972, %v912, %v1081
        %1083 = vst [vmem:[%s302 + $0xb4] sm:$0xf] %v1082
        %1084 = vst.msk [vmem:[%s302 + $0xb8] sm:$0xf] %vm976, %v921
        %v1085 = vld [vmem:[%s302 + $0xbc] sm:$0x1]
        %v1086 = vsel %vm979, %v922, %v1085
        %1087 = vst [vmem:[%s302 + $0xbc] sm:$0x1] %v1086
        %1088 = vst [vmem:[#allocation3] sm:$0xf] 0
        %1089 = vst [vmem:[#allocation3 + $0x4] sm:$0xf] 0
        %1090 = vst [vmem:[#allocation3 + $0x8] sm:$0xf] 0
        %s1091 = scalar_lea.vmem [#allocation3], 204
        %1092 = vst [vmem:[%s1091] sm:$0xf] 0
        %1093 = vst [vmem:[%s1091 + $0x4] sm:$0xf] 0
        %1094 = vst [vmem:[%s1091 + $0x8] sm:$0xf] 0
        %s1095 = scalar_lea.vmem [#allocation3], 12
        %v1096 = vld [vmem:[%s1095] sm:$0x1]
        %v1097 = vsel %vm305, 0, %v1096
        %1098 = vst [vmem:[%s1095] sm:$0x1] %v1097
        %v1099 = vld [vmem:[%s1095 + $0xc] sm:$0x1]
        %v1100 = vsel %vm305, 0, %v1099
        %1101 = vst [vmem:[%s1095 + $0xc] sm:$0x1] %v1100
        %v1102 = vld [vmem:[%s1095 + $0x18] sm:$0x1]
        %v1103 = vsel %vm305, 0, %v1102
        %1104 = vst [vmem:[%s1095 + $0x18] sm:$0x1] %v1103
        %v1105 = vld [vmem:[%s1095 + $0x24] sm:$0x1]
        %v1106 = vsel %vm305, 0, %v1105
        %1107 = vst [vmem:[%s1095 + $0x24] sm:$0x1] %v1106
        %v1108 = vld [vmem:[%s1095 + $0x30] sm:$0x1]
        %v1109 = vsel %vm305, 0, %v1108
        %1110 = vst [vmem:[%s1095 + $0x30] sm:$0x1] %v1109
        %v1111 = vld [vmem:[%s1095 + $0x3c] sm:$0x1]
        %v1112 = vsel %vm305, 0, %v1111
        %1113 = vst [vmem:[%s1095 + $0x3c] sm:$0x1] %v1112
        %v1114 = vld [vmem:[%s1095 + $0x48] sm:$0x1]
        %v1115 = vsel %vm305, 0, %v1114
        %1116 = vst [vmem:[%s1095 + $0x48] sm:$0x1] %v1115
        %v1117 = vld [vmem:[%s1095 + $0x54] sm:$0x1]
        %v1118 = vsel %vm305, 0, %v1117
        %1119 = vst [vmem:[%s1095 + $0x54] sm:$0x1] %v1118
        %v1120 = vld [vmem:[%s1095 + $0x60] sm:$0x1]
        %v1121 = vsel %vm305, 0, %v1120
        %1122 = vst [vmem:[%s1095 + $0x60] sm:$0x1] %v1121
        %v1123 = vld [vmem:[%s1095 + $0x6c] sm:$0x1]
        %v1124 = vsel %vm305, 0, %v1123
        %1125 = vst [vmem:[%s1095 + $0x6c] sm:$0x1] %v1124
        %v1126 = vld [vmem:[%s1095 + $0x78] sm:$0x1]
        %v1127 = vsel %vm305, 0, %v1126
        %1128 = vst [vmem:[%s1095 + $0x78] sm:$0x1] %v1127
        %v1129 = vld [vmem:[%s1095 + $0x84] sm:$0x1]
        %v1130 = vsel %vm305, 0, %v1129
        %1131 = vst [vmem:[%s1095 + $0x84] sm:$0x1] %v1130
        %v1132 = vld [vmem:[%s1095 + $0x90] sm:$0x1]
        %v1133 = vsel %vm305, 0, %v1132
        %1134 = vst [vmem:[%s1095 + $0x90] sm:$0x1] %v1133
        %v1135 = vld [vmem:[%s1095 + $0x9c] sm:$0x1]
        %v1136 = vsel %vm305, 0, %v1135
        %1137 = vst [vmem:[%s1095 + $0x9c] sm:$0x1] %v1136
        %v1138 = vld [vmem:[%s1095 + $0xa8] sm:$0x1]
        %v1139 = vsel %vm305, 0, %v1138
        %1140 = vst [vmem:[%s1095 + $0xa8] sm:$0x1] %v1139
        %v1141 = vld [vmem:[%s1095 + $0xb4] sm:$0x1]
        %v1142 = vsel %vm305, 0, %v1141
        %1143 = vst [vmem:[%s1095 + $0xb4] sm:$0x1] %v1142
        %v1144 = vld [vmem:[%s1095 + $0x8] sm:$0x1]
        %v1145 = vsel %vm355, 0, %v1144
        %1146 = vst [vmem:[%s1095 + $0x8] sm:$0x1] %v1145
        %v1147 = vld [vmem:[%s1095 + $0x14] sm:$0x1]
        %v1148 = vsel %vm355, 0, %v1147
        %1149 = vst [vmem:[%s1095 + $0x14] sm:$0x1] %v1148
        %v1150 = vld [vmem:[%s1095 + $0x20] sm:$0x1]
        %v1151 = vsel %vm355, 0, %v1150
        %1152 = vst [vmem:[%s1095 + $0x20] sm:$0x1] %v1151
        %v1153 = vld [vmem:[%s1095 + $0x2c] sm:$0x1]
        %v1154 = vsel %vm355, 0, %v1153
        %1155 = vst [vmem:[%s1095 + $0x2c] sm:$0x1] %v1154
        %v1156 = vld [vmem:[%s1095 + $0x38] sm:$0x1]
        %v1157 = vsel %vm355, 0, %v1156
        %1158 = vst [vmem:[%s1095 + $0x38] sm:$0x1] %v1157
        %v1159 = vld [vmem:[%s1095 + $0x44] sm:$0x1]
        %v1160 = vsel %vm355, 0, %v1159
        %1161 = vst [vmem:[%s1095 + $0x44] sm:$0x1] %v1160
        %v1162 = vld [vmem:[%s1095 + $0x50] sm:$0x1]
        %v1163 = vsel %vm355, 0, %v1162
        %1164 = vst [vmem:[%s1095 + $0x50] sm:$0x1] %v1163
        %v1165 = vld [vmem:[%s1095 + $0x5c] sm:$0x1]
        %v1166 = vsel %vm355, 0, %v1165
        %1167 = vst [vmem:[%s1095 + $0x5c] sm:$0x1] %v1166
        %v1168 = vld [vmem:[%s1095 + $0x68] sm:$0x1]
        %v1169 = vsel %vm355, 0, %v1168
        %1170 = vst [vmem:[%s1095 + $0x68] sm:$0x1] %v1169
        %v1171 = vld [vmem:[%s1095 + $0x74] sm:$0x1]
        %v1172 = vsel %vm355, 0, %v1171
        %1173 = vst [vmem:[%s1095 + $0x74] sm:$0x1] %v1172
        %v1174 = vld [vmem:[%s1095 + $0x80] sm:$0x1]
        %v1175 = vsel %vm355, 0, %v1174
        %1176 = vst [vmem:[%s1095 + $0x80] sm:$0x1] %v1175
        %v1177 = vld [vmem:[%s1095 + $0x8c] sm:$0x1]
        %v1178 = vsel %vm355, 0, %v1177
        %1179 = vst [vmem:[%s1095 + $0x8c] sm:$0x1] %v1178
        %v1180 = vld [vmem:[%s1095 + $0x98] sm:$0x1]
        %v1181 = vsel %vm355, 0, %v1180
        %1182 = vst [vmem:[%s1095 + $0x98] sm:$0x1] %v1181
        %v1183 = vld [vmem:[%s1095 + $0xa4] sm:$0x1]
        %v1184 = vsel %vm355, 0, %v1183
        %1185 = vst [vmem:[%s1095 + $0xa4] sm:$0x1] %v1184
        %v1186 = vld [vmem:[%s1095 + $0xb0] sm:$0x1]
        %v1187 = vsel %vm355, 0, %v1186
        %1188 = vst [vmem:[%s1095 + $0xb0] sm:$0x1] %v1187
        %v1189 = vld [vmem:[%s1095 + $0xbc] sm:$0x1]
        %v1190 = vsel %vm355, 0, %v1189
        %1191 = vst [vmem:[%s1095 + $0xbc] sm:$0x1] %v1190
        %v1192 = vld [vmem:[#allocation2] sm:$0xf]
        %v1193 = vld [vmem:[#allocation2 + $0x4] sm:$0xf]
        %v1194 = vld [vmem:[#allocation2 + $0xc] sm:$0xf]
        %v1195 = vld [vmem:[#allocation2 + $0x10] sm:$0xf]
        %v1196 = vld [vmem:[#allocation2 + $0x18] sm:$0xf]
        %v1197 = vld [vmem:[#allocation2 + $0x1c] sm:$0xf]
        %v1198 = vld [vmem:[#allocation2 + $0x24] sm:$0xf]
        %v1199 = vld [vmem:[#allocation2 + $0x28] sm:$0xf]
        %v1200 = vld [vmem:[#allocation2 + $0x30] sm:$0xf]
        %v1201 = vld [vmem:[#allocation2 + $0x34] sm:$0xf]
        %v1202 = vld [vmem:[#allocation2 + $0x3c] sm:$0xf]
        %v1203 = vld [vmem:[#allocation2 + $0x40] sm:$0xf]
        %v1204 = vld [vmem:[#allocation2 + $0x48] sm:$0xf]
        %v1205 = vld [vmem:[#allocation2 + $0x4c] sm:$0xf]
        %v1206 = vld [vmem:[#allocation2 + $0x54] sm:$0xf]
        %v1207 = vld [vmem:[#allocation2 + $0x58] sm:$0xf]
        %v1208 = vld [vmem:[#allocation2 + $0x60] sm:$0xf]
        %v1209 = vld [vmem:[#allocation2 + $0x64] sm:$0xf]
        %v1210 = vld [vmem:[#allocation2 + $0x6c] sm:$0xf]
        %v1211 = vld [vmem:[#allocation2 + $0x70] sm:$0xf]
        %v1212 = vld [vmem:[#allocation2 + $0x78] sm:$0xf]
        %v1213 = vld [vmem:[#allocation2 + $0x7c] sm:$0xf]
        %v1214 = vld [vmem:[#allocation2 + $0x84] sm:$0xf]
        %v1215 = vld [vmem:[#allocation2 + $0x88] sm:$0xf]
        %v1216 = vld [vmem:[#allocation2 + $0x90] sm:$0xf]
        %v1217 = vld [vmem:[#allocation2 + $0x94] sm:$0xf]
        %v1218 = vld [vmem:[#allocation2 + $0x9c] sm:$0xf]
        %v1219 = vld [vmem:[#allocation2 + $0xa0] sm:$0xf]
        %v1220 = vld [vmem:[#allocation2 + $0xa8] sm:$0xf]
        %v1221 = vld [vmem:[#allocation2 + $0xac] sm:$0xf]
        %v1222 = vld [vmem:[#allocation2 + $0xb4] sm:$0xf]
        %v1223 = vld [vmem:[#allocation2 + $0xb8] sm:$0xf]
        %v1224 = vld [vmem:[%s1] sm:$0xf]
        %v1225 = vld [vmem:[%s1 + $0x4] sm:$0xf]
        %v1226 = vld [vmem:[%s1 + $0x8] sm:$0xf]
        %v1227 = vld [vmem:[%s1 + $0xc] sm:$0xf]
        %v1228 = vld [vmem:[%s1 + $0x10] sm:$0xf]
        %v1229 = vld [vmem:[%s1 + $0x14] sm:$0xf]
        %v1230 = vld [vmem:[%s1 + $0x18] sm:$0xf]
        %v1231 = vld [vmem:[%s1 + $0x1c] sm:$0xf]
        %v1232 = vld [vmem:[%s1 + $0x20] sm:$0xf]
        %v1233 = vld [vmem:[%s1 + $0x24] sm:$0xf]
        %v1234 = vld [vmem:[%s1 + $0x28] sm:$0xf]
        %v1235 = vld [vmem:[%s1 + $0x2c] sm:$0xf]
        %v1236 = vld [vmem:[%s1 + $0x30] sm:$0xf]
        %v1237 = vld [vmem:[%s1 + $0x34] sm:$0xf]
        %v1238 = vld [vmem:[%s1 + $0x38] sm:$0xf]
        %v1239 = vld [vmem:[%s1 + $0x3c] sm:$0xf]
        %v1240 = vld [vmem:[#allocation2 + $0x8] sm:$0x1]
        %v1241 = vld [vmem:[#allocation2 + $0x14] sm:$0x1]
        %v1242 = vld [vmem:[#allocation2 + $0x20] sm:$0x1]
        %v1243 = vld [vmem:[#allocation2 + $0x2c] sm:$0x1]
        %v1244 = vld [vmem:[#allocation2 + $0x38] sm:$0x1]
        %v1245 = vld [vmem:[#allocation2 + $0x44] sm:$0x1]
        %v1246 = vld [vmem:[#allocation2 + $0x50] sm:$0x1]
        %v1247 = vld [vmem:[#allocation2 + $0x5c] sm:$0x1]
        %v1248 = vld [vmem:[#allocation2 + $0x68] sm:$0x1]
        %v1249 = vld [vmem:[#allocation2 + $0x74] sm:$0x1]
        %v1250 = vld [vmem:[#allocation2 + $0x80] sm:$0x1]
        %v1251 = vld [vmem:[#allocation2 + $0x8c] sm:$0x1]
        %v1252 = vld [vmem:[#allocation2 + $0x98] sm:$0x1]
        %v1253 = vld [vmem:[#allocation2 + $0xa4] sm:$0x1]
        %v1254 = vld [vmem:[#allocation2 + $0xb0] sm:$0x1]
        %v1255 = vld [vmem:[#allocation2 + $0xbc] sm:$0x1]
        %vm1256 = vsmask.f32 3328
        %vm1257 = vsmask.f32 7440
        %vm1258 = vmor %vm1256, %vm1257
        %v1260 = vshrl.u32 %v1192, 16
        %v1262 = vrot.slane %v1260, 4
        %v1263 = vshll.u32 %v1192, 16
        %v1265 = vrot.slane %v1263, 5
        %v1266 = vor.u32 %v1262, %v1265
        %v1267 = vrot.slane %v1266, 4
        %v1269 = vshll.u32 %v1193, 16
        %v1271 = vrot.slane %v1269, 5
        %v1272 = vsel %vm1258, %v1267, %v1271
        %v1273 = vshrl.u32 %v1193, 16
        %v1275 = vrot.slane %v1273, 4
        %v1276 = vor.u32 %v1275, %v1271
        %v1277 = vrot.slane %v1276, 4
        %v1279 = vshll.u32 %v1240, 16
        %v1281 = vrot.slane %v1279, 5
        %v1282 = vsel %vm1258, %v1277, %v1281
        %v1284 = vshrl.u32 %v1194, 16
        %v1286 = vrot.slane %v1284, 4
        %v1287 = vshll.u32 %v1194, 16
        %v1289 = vrot.slane %v1287, 5
        %v1290 = vor.u32 %v1286, %v1289
        %v1291 = vrot.slane %v1290, 4
        %v1293 = vshll.u32 %v1195, 16
        %v1295 = vrot.slane %v1293, 5
        %v1296 = vsel %vm1258, %v1291, %v1295
        %v1297 = vshrl.u32 %v1195, 16
        %v1299 = vrot.slane %v1297, 4
        %v1300 = vor.u32 %v1299, %v1295
        %v1301 = vrot.slane %v1300, 4
        %v1303 = vshll.u32 %v1241, 16
        %v1305 = vrot.slane %v1303, 5
        %v1306 = vsel %vm1258, %v1301, %v1305
        %v1308 = vshrl.u32 %v1196, 16
        %v1310 = vrot.slane %v1308, 4
        %v1311 = vshll.u32 %v1196, 16
        %v1313 = vrot.slane %v1311, 5
        %v1314 = vor.u32 %v1310, %v1313
        %v1315 = vrot.slane %v1314, 4
        %v1317 = vshll.u32 %v1197, 16
        %v1319 = vrot.slane %v1317, 5
        %v1320 = vsel %vm1258, %v1315, %v1319
        %v1321 = vshrl.u32 %v1197, 16
        %v1323 = vrot.slane %v1321, 4
        %v1324 = vor.u32 %v1323, %v1319
        %v1325 = vrot.slane %v1324, 4
        %v1327 = vshll.u32 %v1242, 16
        %v1329 = vrot.slane %v1327, 5
        %v1330 = vsel %vm1258, %v1325, %v1329
        %v1332 = vshrl.u32 %v1198, 16
        %v1334 = vrot.slane %v1332, 4
        %v1335 = vshll.u32 %v1198, 16
        %v1337 = vrot.slane %v1335, 5
        %v1338 = vor.u32 %v1334, %v1337
        %v1339 = vrot.slane %v1338, 4
        %v1341 = vshll.u32 %v1199, 16
        %v1343 = vrot.slane %v1341, 5
        %v1344 = vsel %vm1258, %v1339, %v1343
        %v1345 = vshrl.u32 %v1199, 16
        %v1347 = vrot.slane %v1345, 4
        %v1348 = vor.u32 %v1347, %v1343
        %v1349 = vrot.slane %v1348, 4
        %v1351 = vshll.u32 %v1243, 16
        %v1353 = vrot.slane %v1351, 5
        %v1354 = vsel %vm1258, %v1349, %v1353
        %v1356 = vshrl.u32 %v1200, 16
        %v1358 = vrot.slane %v1356, 4
        %v1359 = vshll.u32 %v1200, 16
        %v1361 = vrot.slane %v1359, 5
        %v1362 = vor.u32 %v1358, %v1361
        %v1363 = vrot.slane %v1362, 4
        %v1365 = vshll.u32 %v1201, 16
        %v1367 = vrot.slane %v1365, 5
        %v1368 = vsel %vm1258, %v1363, %v1367
        %v1369 = vshrl.u32 %v1201, 16
        %v1371 = vrot.slane %v1369, 4
        %v1372 = vor.u32 %v1371, %v1367
        %v1373 = vrot.slane %v1372, 4
        %v1375 = vshll.u32 %v1244, 16
        %v1377 = vrot.slane %v1375, 5
        %v1378 = vsel %vm1258, %v1373, %v1377
        %v1380 = vshrl.u32 %v1202, 16
        %v1382 = vrot.slane %v1380, 4
        %v1383 = vshll.u32 %v1202, 16
        %v1385 = vrot.slane %v1383, 5
        %v1386 = vor.u32 %v1382, %v1385
        %v1387 = vrot.slane %v1386, 4
        %v1389 = vshll.u32 %v1203, 16
        %v1391 = vrot.slane %v1389, 5
        %v1392 = vsel %vm1258, %v1387, %v1391
        %v1393 = vshrl.u32 %v1203, 16
        %v1395 = vrot.slane %v1393, 4
        %v1396 = vor.u32 %v1395, %v1391
        %v1397 = vrot.slane %v1396, 4
        %v1399 = vshll.u32 %v1245, 16
        %v1401 = vrot.slane %v1399, 5
        %v1402 = vsel %vm1258, %v1397, %v1401
        %v1404 = vshrl.u32 %v1204, 16
        %v1406 = vrot.slane %v1404, 4
        %v1407 = vshll.u32 %v1204, 16
        %v1409 = vrot.slane %v1407, 5
        %v1410 = vor.u32 %v1406, %v1409
        %v1411 = vrot.slane %v1410, 4
        %v1413 = vshll.u32 %v1205, 16
        %v1415 = vrot.slane %v1413, 5
        %v1416 = vsel %vm1258, %v1411, %v1415
        %v1417 = vshrl.u32 %v1205, 16
        %v1419 = vrot.slane %v1417, 4
        %v1420 = vor.u32 %v1419, %v1415
        %v1421 = vrot.slane %v1420, 4
        %v1423 = vshll.u32 %v1246, 16
        %v1425 = vrot.slane %v1423, 5
        %v1426 = vsel %vm1258, %v1421, %v1425
        %v1428 = vshrl.u32 %v1206, 16
        %v1430 = vrot.slane %v1428, 4
        %v1431 = vshll.u32 %v1206, 16
        %v1433 = vrot.slane %v1431, 5
        %v1434 = vor.u32 %v1430, %v1433
        %v1435 = vrot.slane %v1434, 4
        %v1437 = vshll.u32 %v1207, 16
        %v1439 = vrot.slane %v1437, 5
        %v1440 = vsel %vm1258, %v1435, %v1439
        %v1441 = vshrl.u32 %v1207, 16
        %v1443 = vrot.slane %v1441, 4
        %v1444 = vor.u32 %v1443, %v1439
        %v1445 = vrot.slane %v1444, 4
        %v1447 = vshll.u32 %v1247, 16
        %v1449 = vrot.slane %v1447, 5
        %v1450 = vsel %vm1258, %v1445, %v1449
        %v1452 = vshrl.u32 %v1208, 16
        %v1454 = vrot.slane %v1452, 4
        %v1455 = vshll.u32 %v1208, 16
        %v1457 = vrot.slane %v1455, 5
        %v1458 = vor.u32 %v1454, %v1457
        %v1459 = vrot.slane %v1458, 4
        %v1461 = vshll.u32 %v1209, 16
        %v1463 = vrot.slane %v1461, 5
        %v1464 = vsel %vm1258, %v1459, %v1463
        %v1465 = vshrl.u32 %v1209, 16
        %v1467 = vrot.slane %v1465, 4
        %v1468 = vor.u32 %v1467, %v1463
        %v1469 = vrot.slane %v1468, 4
        %v1471 = vshll.u32 %v1248, 16
        %v1473 = vrot.slane %v1471, 5
        %v1474 = vsel %vm1258, %v1469, %v1473
        %v1476 = vshrl.u32 %v1210, 16
        %v1478 = vrot.slane %v1476, 4
        %v1479 = vshll.u32 %v1210, 16
        %v1481 = vrot.slane %v1479, 5
        %v1482 = vor.u32 %v1478, %v1481
        %v1483 = vrot.slane %v1482, 4
        %v1485 = vshll.u32 %v1211, 16
        %v1487 = vrot.slane %v1485, 5
        %v1488 = vsel %vm1258, %v1483, %v1487
        %v1489 = vshrl.u32 %v1211, 16
        %v1491 = vrot.slane %v1489, 4
        %v1492 = vor.u32 %v1491, %v1487
        %v1493 = vrot.slane %v1492, 4
        %v1495 = vshll.u32 %v1249, 16
        %v1497 = vrot.slane %v1495, 5
        %v1498 = vsel %vm1258, %v1493, %v1497
        %v1500 = vshrl.u32 %v1212, 16
        %v1502 = vrot.slane %v1500, 4
        %v1503 = vshll.u32 %v1212, 16
        %v1505 = vrot.slane %v1503, 5
        %v1506 = vor.u32 %v1502, %v1505
        %v1507 = vrot.slane %v1506, 4
        %v1509 = vshll.u32 %v1213, 16
        %v1511 = vrot.slane %v1509, 5
        %v1512 = vsel %vm1258, %v1507, %v1511
        %v1513 = vshrl.u32 %v1213, 16
        %v1515 = vrot.slane %v1513, 4
        %v1516 = vor.u32 %v1515, %v1511
        %v1517 = vrot.slane %v1516, 4
        %v1519 = vshll.u32 %v1250, 16
        %v1521 = vrot.slane %v1519, 5
        %v1522 = vsel %vm1258, %v1517, %v1521
        %v1524 = vshrl.u32 %v1214, 16
        %v1526 = vrot.slane %v1524, 4
        %v1527 = vshll.u32 %v1214, 16
        %v1529 = vrot.slane %v1527, 5
        %v1530 = vor.u32 %v1526, %v1529
        %v1531 = vrot.slane %v1530, 4
        %v1533 = vshll.u32 %v1215, 16
        %v1535 = vrot.slane %v1533, 5
        %v1536 = vsel %vm1258, %v1531, %v1535
        %v1537 = vshrl.u32 %v1215, 16
        %v1539 = vrot.slane %v1537, 4
        %v1540 = vor.u32 %v1539, %v1535
        %v1541 = vrot.slane %v1540, 4
        %v1543 = vshll.u32 %v1251, 16
        %v1545 = vrot.slane %v1543, 5
        %v1546 = vsel %vm1258, %v1541, %v1545
        %v1548 = vshrl.u32 %v1216, 16
        %v1550 = vrot.slane %v1548, 4
        %v1551 = vshll.u32 %v1216, 16
        %v1553 = vrot.slane %v1551, 5
        %v1554 = vor.u32 %v1550, %v1553
        %v1555 = vrot.slane %v1554, 4
        %v1557 = vshll.u32 %v1217, 16
        %v1559 = vrot.slane %v1557, 5
        %v1560 = vsel %vm1258, %v1555, %v1559
        %v1561 = vshrl.u32 %v1217, 16
        %v1563 = vrot.slane %v1561, 4
        %v1564 = vor.u32 %v1563, %v1559
        %v1565 = vrot.slane %v1564, 4
        %v1567 = vshll.u32 %v1252, 16
        %v1569 = vrot.slane %v1567, 5
        %v1570 = vsel %vm1258, %v1565, %v1569
        %v1572 = vshrl.u32 %v1218, 16
        %v1574 = vrot.slane %v1572, 4
        %v1575 = vshll.u32 %v1218, 16
        %v1577 = vrot.slane %v1575, 5
        %v1578 = vor.u32 %v1574, %v1577
        %v1579 = vrot.slane %v1578, 4
        %v1581 = vshll.u32 %v1219, 16
        %v1583 = vrot.slane %v1581, 5
        %v1584 = vsel %vm1258, %v1579, %v1583
        %v1585 = vshrl.u32 %v1219, 16
        %v1587 = vrot.slane %v1585, 4
        %v1588 = vor.u32 %v1587, %v1583
        %v1589 = vrot.slane %v1588, 4
        %v1591 = vshll.u32 %v1253, 16
        %v1593 = vrot.slane %v1591, 5
        %v1594 = vsel %vm1258, %v1589, %v1593
        %v1596 = vshrl.u32 %v1220, 16
        %v1598 = vrot.slane %v1596, 4
        %v1599 = vshll.u32 %v1220, 16
        %v1601 = vrot.slane %v1599, 5
        %v1602 = vor.u32 %v1598, %v1601
        %v1603 = vrot.slane %v1602, 4
        %v1605 = vshll.u32 %v1221, 16
        %v1607 = vrot.slane %v1605, 5
        %v1608 = vsel %vm1258, %v1603, %v1607
        %v1609 = vshrl.u32 %v1221, 16
        %v1611 = vrot.slane %v1609, 4
        %v1612 = vor.u32 %v1611, %v1607
        %v1613 = vrot.slane %v1612, 4
        %v1615 = vshll.u32 %v1254, 16
        %v1617 = vrot.slane %v1615, 5
        %v1618 = vsel %vm1258, %v1613, %v1617
        %v1620 = vshrl.u32 %v1222, 16
        %v1622 = vrot.slane %v1620, 4
        %v1623 = vshll.u32 %v1222, 16
        %v1625 = vrot.slane %v1623, 5
        %v1626 = vor.u32 %v1622, %v1625
        %v1627 = vrot.slane %v1626, 4
        %v1629 = vshll.u32 %v1223, 16
        %v1631 = vrot.slane %v1629, 5
        %v1632 = vsel %vm1258, %v1627, %v1631
        %v1633 = vshrl.u32 %v1223, 16
        %v1635 = vrot.slane %v1633, 4
        %v1636 = vor.u32 %v1635, %v1631
        %v1637 = vrot.slane %v1636, 4
        %v1639 = vshll.u32 %v1255, 16
        %v1641 = vrot.slane %v1639, 5
        %v1642 = vsel %vm1258, %v1637, %v1641
        %s1643 = scalar_lea.vmem %s1, 64
        %v1644 = vld [vmem:[%s1643] sm:$0xf]
        %v1645 = vld [vmem:[%s1643 + $0x4] sm:$0xf]
        %v1646 = vld [vmem:[%s1643 + $0x8] sm:$0xf]
        %v1647 = vld [vmem:[%s1643 + $0xc] sm:$0xf]
        %v1648 = vld [vmem:[%s1643 + $0x10] sm:$0xf]
        %v1649 = vld [vmem:[%s1643 + $0x14] sm:$0xf]
        %v1650 = vld [vmem:[%s1643 + $0x18] sm:$0xf]
        %v1651 = vld [vmem:[%s1643 + $0x1c] sm:$0xf]
        %v1652 = vld [vmem:[%s1643 + $0x20] sm:$0xf]
        %v1653 = vld [vmem:[%s1643 + $0x24] sm:$0xf]
        %v1654 = vld [vmem:[%s1643 + $0x28] sm:$0xf]
        %v1655 = vld [vmem:[%s1643 + $0x2c] sm:$0xf]
        %v1656 = vld [vmem:[%s1643 + $0x30] sm:$0xf]
        %v1657 = vld [vmem:[%s1643 + $0x34] sm:$0xf]
        %v1658 = vld [vmem:[%s1643 + $0x38] sm:$0xf]
        %v1659 = vld [vmem:[%s1643 + $0x3c] sm:$0xf]
        %v1660 = vunpack.c.l.b16 %v1272
        %v1661 = vunpack.c.l.b16 %v1282
        %v1662 = vunpack.c.l.b16 %v1296
        %v1663 = vunpack.c.l.b16 %v1306
        %v1664 = vunpack.c.l.b16 %v1320
        %v1665 = vunpack.c.l.b16 %v1330
        %v1666 = vunpack.c.l.b16 %v1344
        %v1667 = vunpack.c.l.b16 %v1354
        %v1668 = vunpack.c.l.b16 %v1368
        %v1669 = vunpack.c.l.b16 %v1378
        %v1670 = vunpack.c.l.b16 %v1392
        %v1671 = vunpack.c.l.b16 %v1402
        %v1672 = vunpack.c.l.b16 %v1416
        %v1673 = vunpack.c.l.b16 %v1426
        %v1674 = vunpack.c.l.b16 %v1440
        %v1675 = vunpack.c.l.b16 %v1450
        %v1676 = vunpack.c.l.b16 %v1464
        %v1677 = vunpack.c.l.b16 %v1474
        %v1678 = vunpack.c.l.b16 %v1488
        %v1679 = vunpack.c.l.b16 %v1498
        %v1680 = vunpack.c.l.b16 %v1512
        %v1681 = vunpack.c.l.b16 %v1522
        %v1682 = vunpack.c.l.b16 %v1536
        %v1683 = vunpack.c.l.b16 %v1546
        %v1684 = vunpack.c.l.b16 %v1560
        %v1685 = vunpack.c.l.b16 %v1570
        %v1686 = vunpack.c.l.b16 %v1584
        %v1687 = vunpack.c.l.b16 %v1594
        %v1688 = vunpack.c.l.b16 %v1608
        %v1689 = vunpack.c.l.b16 %v1618
        %v1690 = vunpack.c.l.b16 %v1632
        %v1691 = vunpack.c.l.b16 %v1642
        %v1692 = vpack.c.b16 %v1661, %v1660
        %v1693 = vpack.c.b16 %v1663, %v1662
        %v1694 = vpack.c.b16 %v1665, %v1664
        %v1695 = vpack.c.b16 %v1667, %v1666
        %v1696 = vpack.c.b16 %v1669, %v1668
        %v1697 = vpack.c.b16 %v1671, %v1670
        %v1698 = vpack.c.b16 %v1673, %v1672
        %v1699 = vpack.c.b16 %v1675, %v1674
        %v1700 = vpack.c.b16 %v1677, %v1676
        %v1701 = vpack.c.b16 %v1679, %v1678
        %v1702 = vpack.c.b16 %v1681, %v1680
        %v1703 = vpack.c.b16 %v1683, %v1682
        %v1704 = vpack.c.b16 %v1685, %v1684
        %v1705 = vpack.c.b16 %v1687, %v1686
        %v1706 = vpack.c.b16 %v1689, %v1688
        %v1707 = vpack.c.b16 %v1691, %v1690
        %v1740 = vunpack.c.l.b16 %v1644
        %v1741 = vunpack.c.l.b16 %v1645
        %v1742 = vunpack.c.l.b16 %v1646
        %v1743 = vunpack.c.l.b16 %v1647
        %v1744 = vunpack.c.l.b16 %v1648
        %v1745 = vunpack.c.l.b16 %v1649
        %v1746 = vunpack.c.l.b16 %v1650
        %v1747 = vunpack.c.l.b16 %v1651
        %v1748 = vunpack.c.l.b16 %v1652
        %v1749 = vunpack.c.l.b16 %v1653
        %v1750 = vunpack.c.l.b16 %v1654
        %v1751 = vunpack.c.l.b16 %v1655
        %v1752 = vunpack.c.l.b16 %v1656
        %v1753 = vunpack.c.l.b16 %v1657
        %v1754 = vunpack.c.l.b16 %v1658
        %v1755 = vunpack.c.l.b16 %v1659
        %v1756 = vpack.c.b16 %v1741, %v1740
        %v1757 = vpack.c.b16 %v1743, %v1742
        %v1758 = vpack.c.b16 %v1745, %v1744
        %v1759 = vpack.c.b16 %v1747, %v1746
        %v1760 = vpack.c.b16 %v1749, %v1748
        %v1761 = vpack.c.b16 %v1751, %v1750
        %v1762 = vpack.c.b16 %v1753, %v1752
        %v1763 = vpack.c.b16 %v1755, %v1754
        %1772 = vmatprep.subr.bf16.mxu0 0
        %1773 = vmatpush1.bf16.msra.mxu0 %v1763
        %1774 = vmatprep.subr.bf16.mxu0 0
        %1775 = vmatpush1.bf16.msra.mxu0 %v1762
        %1776 = vmatprep.subr.bf16.mxu0 0
        %1777 = vmatpush1.bf16.msra.mxu0 %v1761
        %1778 = vmatprep.subr.bf16.mxu0 0
        %1779 = vmatpush1.bf16.msra.mxu0 %v1760
        %1780 = vmatprep.subr.bf16.mxu0 0
        %1781 = vmatpush1.bf16.msra.mxu0 %v1759
        %1782 = vmatprep.subr.bf16.mxu0 0
        %1783 = vmatpush1.bf16.msra.mxu0 %v1758
        %1784 = vmatprep.subr.bf16.mxu0 0
        %1785 = vmatpush1.bf16.msra.mxu0 %v1757
        %1786 = vmatprep.subr.bf16.mxu0 0
        %1787 = vmatpush1.bf16.msra.mxu0 %v1756
        %1788 = vmatprep.subr.bf16.mxu0 0
        %1789 = vmatpush2.bf16.msra.mxu0 0
        %1790 = vmatprep.subr.bf16.mxu0 0
        %1791 = vmatpush2.bf16.msra.mxu0 0
        %1792 = vmatprep.subr.bf16.mxu0 0
        %1793 = vmatpush2.bf16.msra.mxu0 0
        %1794 = vmatprep.subr.bf16.mxu0 0
        %1795 = vmatpush2.bf16.msra.mxu0 0
        %1796 = vmatprep.subr.bf16.mxu0 0
        %1797 = vmatpush2.bf16.msra.mxu0 0
        %1798 = vmatprep.subr.bf16.mxu0 0
        %1799 = vmatpush2.bf16.msra.mxu0 0
        %1800 = vmatprep.subr.bf16.mxu0 0
        %1801 = vmatpush2.bf16.msra.mxu0 0
        %1802 = vmatprep.subr.bf16.mxu0 0
        %1803 = vmatpush2.bf16.msra.mxu0 0
        %1804 = vmatprep.mubr.bf16.mxu0 0
        %1805 = vmatmul.mubr.bf16.gmra.mxu0 %v1692
        %v1806 = vpop.f32.mrf.mxu0
        %v1807 = vadd.f32 0.0, %v1806
        %v1808 = vpop.f32.mrf.mxu0
        %v1809 = vpop.f32.mrf.mxu0
        %v1810 = vadd.f32 0.0, %v1809
        %v1811 = vpop.f32.mrf.mxu0
        %1812 = vmatprep.mubr.bf16.mxu0 0
        %1813 = vmatmul.mubr.bf16.gmra.mxu0 %v1693
        %v1814 = vpop.f32.mrf.mxu0
        %v1815 = vadd.f32 0.0, %v1814
        %v1816 = vpop.f32.mrf.mxu0
        %v1817 = vpop.f32.mrf.mxu0
        %v1818 = vadd.f32 0.0, %v1817
        %v1819 = vpop.f32.mrf.mxu0
        %1820 = vmatprep.mubr.bf16.mxu0 0
        %1821 = vmatmul.mubr.bf16.gmra.mxu0 %v1694
        %v1822 = vpop.f32.mrf.mxu0
        %v1823 = vadd.f32 0.0, %v1822
        %v1824 = vpop.f32.mrf.mxu0
        %v1825 = vpop.f32.mrf.mxu0
        %v1826 = vadd.f32 0.0, %v1825
        %v1827 = vpop.f32.mrf.mxu0
        %1828 = vmatprep.mubr.bf16.mxu0 0
        %1829 = vmatmul.mubr.bf16.gmra.mxu0 %v1695
        %v1830 = vpop.f32.mrf.mxu0
        %v1831 = vadd.f32 0.0, %v1830
        %v1832 = vpop.f32.mrf.mxu0
        %v1833 = vpop.f32.mrf.mxu0
        %v1834 = vadd.f32 0.0, %v1833
        %v1835 = vpop.f32.mrf.mxu0
        %1836 = vmatprep.mubr.bf16.mxu0 0
        %1837 = vmatmul.mubr.bf16.gmra.mxu0 %v1696
        %v1838 = vpop.f32.mrf.mxu0
        %v1839 = vadd.f32 0.0, %v1838
        %v1840 = vpop.f32.mrf.mxu0
        %v1841 = vpop.f32.mrf.mxu0
        %v1842 = vadd.f32 0.0, %v1841
        %v1843 = vpop.f32.mrf.mxu0
        %1844 = vmatprep.mubr.bf16.mxu0 0
        %1845 = vmatmul.mubr.bf16.gmra.mxu0 %v1697
        %v1846 = vpop.f32.mrf.mxu0
        %v1847 = vadd.f32 0.0, %v1846
        %v1848 = vpop.f32.mrf.mxu0
        %v1849 = vpop.f32.mrf.mxu0
        %v1850 = vadd.f32 0.0, %v1849
        %v1851 = vpop.f32.mrf.mxu0
        %1852 = vmatprep.mubr.bf16.mxu0 0
        %1853 = vmatmul.mubr.bf16.gmra.mxu0 %v1698
        %v1854 = vpop.f32.mrf.mxu0
        %v1855 = vadd.f32 0.0, %v1854
        %v1856 = vpop.f32.mrf.mxu0
        %v1857 = vpop.f32.mrf.mxu0
        %v1858 = vadd.f32 0.0, %v1857
        %v1859 = vpop.f32.mrf.mxu0
        %1860 = vmatprep.mubr.bf16.mxu0 0
        %1861 = vmatmul.mubr.bf16.gmra.mxu0 %v1699
        %v1862 = vpop.f32.mrf.mxu0
        %v1863 = vadd.f32 0.0, %v1862
        %v1864 = vpop.f32.mrf.mxu0
        %v1865 = vpop.f32.mrf.mxu0
        %v1866 = vadd.f32 0.0, %v1865
        %v1867 = vpop.f32.mrf.mxu0
        %1868 = vmatprep.mubr.bf16.mxu0 0
        %1869 = vmatmul.mubr.bf16.gmra.mxu0 %v1700
        %v1870 = vpop.f32.mrf.mxu0
        %v1871 = vadd.f32 0.0, %v1870
        %v1872 = vpop.f32.mrf.mxu0
        %v1873 = vpop.f32.mrf.mxu0
        %v1874 = vadd.f32 0.0, %v1873
        %v1875 = vpop.f32.mrf.mxu0
        %1876 = vmatprep.mubr.bf16.mxu0 0
        %1877 = vmatmul.mubr.bf16.gmra.mxu0 %v1701
        %v1878 = vpop.f32.mrf.mxu0
        %v1879 = vadd.f32 0.0, %v1878
        %v1880 = vpop.f32.mrf.mxu0
        %v1881 = vpop.f32.mrf.mxu0
        %v1882 = vadd.f32 0.0, %v1881
        %v1883 = vpop.f32.mrf.mxu0
        %1884 = vmatprep.mubr.bf16.mxu0 0
        %1885 = vmatmul.mubr.bf16.gmra.mxu0 %v1702
        %v1886 = vpop.f32.mrf.mxu0
        %v1887 = vadd.f32 0.0, %v1886
        %v1888 = vpop.f32.mrf.mxu0
        %v1889 = vpop.f32.mrf.mxu0
        %v1890 = vadd.f32 0.0, %v1889
        %v1891 = vpop.f32.mrf.mxu0
        %1892 = vmatprep.mubr.bf16.mxu0 0
        %1893 = vmatmul.mubr.bf16.gmra.mxu0 %v1703
        %v1894 = vpop.f32.mrf.mxu0
        %v1895 = vadd.f32 0.0, %v1894
        %v1896 = vpop.f32.mrf.mxu0
        %v1897 = vpop.f32.mrf.mxu0
        %v1898 = vadd.f32 0.0, %v1897
        %v1899 = vpop.f32.mrf.mxu0
        %1900 = vmatprep.mubr.bf16.mxu0 0
        %1901 = vmatmul.mubr.bf16.gmra.mxu0 %v1704
        %v1902 = vpop.f32.mrf.mxu0
        %v1903 = vadd.f32 0.0, %v1902
        %v1904 = vpop.f32.mrf.mxu0
        %v1905 = vpop.f32.mrf.mxu0
        %v1906 = vadd.f32 0.0, %v1905
        %v1907 = vpop.f32.mrf.mxu0
        %1908 = vmatprep.mubr.bf16.mxu0 0
        %1909 = vmatmul.mubr.bf16.gmra.mxu0 %v1705
        %v1910 = vpop.f32.mrf.mxu0
        %v1911 = vadd.f32 0.0, %v1910
        %v1912 = vpop.f32.mrf.mxu0
        %v1913 = vpop.f32.mrf.mxu0
        %v1914 = vadd.f32 0.0, %v1913
        %v1915 = vpop.f32.mrf.mxu0
        %1916 = vmatprep.mubr.bf16.mxu0 0
        %1917 = vmatmul.mubr.bf16.gmra.mxu0 %v1706
        %v1918 = vpop.f32.mrf.mxu0
        %v1919 = vadd.f32 0.0, %v1918
        %v1920 = vpop.f32.mrf.mxu0
        %v1921 = vpop.f32.mrf.mxu0
        %v1922 = vadd.f32 0.0, %v1921
        %v1923 = vpop.f32.mrf.mxu0
        %1924 = vmatprep.mubr.bf16.mxu0 0
        %1925 = vmatmul.mubr.bf16.gmra.mxu0 %v1707
        %v1926 = vpop.f32.mrf.mxu0
        %v1927 = vadd.f32 0.0, %v1926
        %v1928 = vpop.f32.mrf.mxu0
        %v1929 = vpop.f32.mrf.mxu0
        %v1930 = vadd.f32 0.0, %v1929
        %v1931 = vpop.f32.mrf.mxu0
        %1932 = vdwg.mxu0
        %v1965 = vunpack.c.l.b16 %v1192
        %v1966 = vunpack.c.l.b16 %v1193
        %v1967 = vunpack.c.l.b16 %v1194
        %v1968 = vunpack.c.l.b16 %v1195
        %v1969 = vunpack.c.l.b16 %v1196
        %v1970 = vunpack.c.l.b16 %v1197
        %v1971 = vunpack.c.l.b16 %v1198
        %v1972 = vunpack.c.l.b16 %v1199
        %v1973 = vunpack.c.l.b16 %v1200
        %v1974 = vunpack.c.l.b16 %v1201
        %v1975 = vunpack.c.l.b16 %v1202
        %v1976 = vunpack.c.l.b16 %v1203
        %v1977 = vunpack.c.l.b16 %v1204
        %v1978 = vunpack.c.l.b16 %v1205
        %v1979 = vunpack.c.l.b16 %v1206
        %v1980 = vunpack.c.l.b16 %v1207
        %v1981 = vunpack.c.l.b16 %v1208
        %v1982 = vunpack.c.l.b16 %v1209
        %v1983 = vunpack.c.l.b16 %v1210
        %v1984 = vunpack.c.l.b16 %v1211
        %v1985 = vunpack.c.l.b16 %v1212
        %v1986 = vunpack.c.l.b16 %v1213
        %v1987 = vunpack.c.l.b16 %v1214
        %v1988 = vunpack.c.l.b16 %v1215
        %v1989 = vunpack.c.l.b16 %v1216
        %v1990 = vunpack.c.l.b16 %v1217
        %v1991 = vunpack.c.l.b16 %v1218
        %v1992 = vunpack.c.l.b16 %v1219
        %v1993 = vunpack.c.l.b16 %v1220
        %v1994 = vunpack.c.l.b16 %v1221
        %v1995 = vunpack.c.l.b16 %v1222
        %v1996 = vunpack.c.l.b16 %v1223
        %v1997 = vpack.c.b16 %v1966, %v1965
        %v1998 = vpack.c.b16 %v1968, %v1967
        %v1999 = vpack.c.b16 %v1970, %v1969
        %v2000 = vpack.c.b16 %v1972, %v1971
        %v2001 = vpack.c.b16 %v1974, %v1973
        %v2002 = vpack.c.b16 %v1976, %v1975
        %v2003 = vpack.c.b16 %v1978, %v1977
        %v2004 = vpack.c.b16 %v1980, %v1979
        %v2005 = vpack.c.b16 %v1982, %v1981
        %v2006 = vpack.c.b16 %v1984, %v1983
        %v2007 = vpack.c.b16 %v1986, %v1985
        %v2008 = vpack.c.b16 %v1988, %v1987
        %v2009 = vpack.c.b16 %v1990, %v1989
        %v2010 = vpack.c.b16 %v1992, %v1991
        %v2011 = vpack.c.b16 %v1994, %v1993
        %v2012 = vpack.c.b16 %v1996, %v1995
        %v2045 = vunpack.c.l.b16 %v1224
        %v2046 = vunpack.c.l.b16 %v1225
        %v2047 = vunpack.c.l.b16 %v1226
        %v2048 = vunpack.c.l.b16 %v1227
        %v2049 = vunpack.c.l.b16 %v1228
        %v2050 = vunpack.c.l.b16 %v1229
        %v2051 = vunpack.c.l.b16 %v1230
        %v2052 = vunpack.c.l.b16 %v1231
        %v2053 = vunpack.c.l.b16 %v1232
        %v2054 = vunpack.c.l.b16 %v1233
        %v2055 = vunpack.c.l.b16 %v1234
        %v2056 = vunpack.c.l.b16 %v1235
        %v2057 = vunpack.c.l.b16 %v1236
        %v2058 = vunpack.c.l.b16 %v1237
        %v2059 = vunpack.c.l.b16 %v1238
        %v2060 = vunpack.c.l.b16 %v1239
        %v2061 = vpack.c.b16 %v2046, %v2045
        %v2062 = vpack.c.b16 %v2048, %v2047
        %v2063 = vpack.c.b16 %v2050, %v2049
        %v2064 = vpack.c.b16 %v2052, %v2051
        %v2065 = vpack.c.b16 %v2054, %v2053
        %v2066 = vpack.c.b16 %v2056, %v2055
        %v2067 = vpack.c.b16 %v2058, %v2057
        %v2068 = vpack.c.b16 %v2060, %v2059
        %2077 = vmatprep.subr.bf16.mxu0 0
        %2078 = vmatpush1.bf16.msra.mxu0 %v2068
        %2079 = vmatprep.subr.bf16.mxu0 0
        %2080 = vmatpush1.bf16.msra.mxu0 %v2067
        %2081 = vmatprep.subr.bf16.mxu0 0
        %2082 = vmatpush1.bf16.msra.mxu0 %v2066
        %2083 = vmatprep.subr.bf16.mxu0 0
        %2084 = vmatpush1.bf16.msra.mxu0 %v2065
        %2085 = vmatprep.subr.bf16.mxu0 0
        %2086 = vmatpush1.bf16.msra.mxu0 %v2064
        %2087 = vmatprep.subr.bf16.mxu0 0
        %2088 = vmatpush1.bf16.msra.mxu0 %v2063
        %2089 = vmatprep.subr.bf16.mxu0 0
        %2090 = vmatpush1.bf16.msra.mxu0 %v2062
        %2091 = vmatprep.subr.bf16.mxu0 0
        %2092 = vmatpush1.bf16.msra.mxu0 %v2061
        %2093 = vmatprep.subr.bf16.mxu0 0
        %2094 = vmatpush2.bf16.msra.mxu0 0
        %2095 = vmatprep.subr.bf16.mxu0 0
        %2096 = vmatpush2.bf16.msra.mxu0 0
        %2097 = vmatprep.subr.bf16.mxu0 0
        %2098 = vmatpush2.bf16.msra.mxu0 0
        %2099 = vmatprep.subr.bf16.mxu0 0
        %2100 = vmatpush2.bf16.msra.mxu0 0
        %2101 = vmatprep.subr.bf16.mxu0 0
        %2102 = vmatpush2.bf16.msra.mxu0 0
        %2103 = vmatprep.subr.bf16.mxu0 0
        %2104 = vmatpush2.bf16.msra.mxu0 0
        %2105 = vmatprep.subr.bf16.mxu0 0
        %2106 = vmatpush2.bf16.msra.mxu0 0
        %2107 = vmatprep.subr.bf16.mxu0 0
        %2108 = vmatpush2.bf16.msra.mxu0 0
        %2109 = vmatprep.mubr.bf16.mxu0 0
        %2110 = vmatmul.mubr.bf16.gmra.mxu0 %v1997
        %v2111 = vpop.f32.mrf.mxu0
        %v2112 = vadd.f32 %v1807, %v2111
        %v2113 = vpop.f32.mrf.mxu0
        %v2114 = vpop.f32.mrf.mxu0
        %v2115 = vadd.f32 %v1810, %v2114
        %v2116 = vpop.f32.mrf.mxu0
        %2117 = vmatprep.mubr.bf16.mxu0 0
        %2118 = vmatmul.mubr.bf16.gmra.mxu0 %v1998
        %v2119 = vpop.f32.mrf.mxu0
        %v2120 = vadd.f32 %v1815, %v2119
        %v2121 = vpop.f32.mrf.mxu0
        %v2122 = vpop.f32.mrf.mxu0
        %v2123 = vadd.f32 %v1818, %v2122
        %v2124 = vpop.f32.mrf.mxu0
        %2125 = vmatprep.mubr.bf16.mxu0 0
        %2126 = vmatmul.mubr.bf16.gmra.mxu0 %v1999
        %v2127 = vpop.f32.mrf.mxu0
        %v2128 = vadd.f32 %v1823, %v2127
        %v2129 = vpop.f32.mrf.mxu0
        %v2130 = vpop.f32.mrf.mxu0
        %v2131 = vadd.f32 %v1826, %v2130
        %v2132 = vpop.f32.mrf.mxu0
        %2133 = vmatprep.mubr.bf16.mxu0 0
        %2134 = vmatmul.mubr.bf16.gmra.mxu0 %v2000
        %v2135 = vpop.f32.mrf.mxu0
        %v2136 = vadd.f32 %v1831, %v2135
        %v2137 = vpop.f32.mrf.mxu0
        %v2138 = vpop.f32.mrf.mxu0
        %v2139 = vadd.f32 %v1834, %v2138
        %v2140 = vpop.f32.mrf.mxu0
        %2141 = vmatprep.mubr.bf16.mxu0 0
        %2142 = vmatmul.mubr.bf16.gmra.mxu0 %v2001
        %v2143 = vpop.f32.mrf.mxu0
        %v2144 = vadd.f32 %v1839, %v2143
        %v2145 = vpop.f32.mrf.mxu0
        %v2146 = vpop.f32.mrf.mxu0
        %v2147 = vadd.f32 %v1842, %v2146
        %v2148 = vpop.f32.mrf.mxu0
        %2149 = vmatprep.mubr.bf16.mxu0 0
        %2150 = vmatmul.mubr.bf16.gmra.mxu0 %v2002
        %v2151 = vpop.f32.mrf.mxu0
        %v2152 = vadd.f32 %v1847, %v2151
        %v2153 = vpop.f32.mrf.mxu0
        %v2154 = vpop.f32.mrf.mxu0
        %v2155 = vadd.f32 %v1850, %v2154
        %v2156 = vpop.f32.mrf.mxu0
        %2157 = vmatprep.mubr.bf16.mxu0 0
        %2158 = vmatmul.mubr.bf16.gmra.mxu0 %v2003
        %v2159 = vpop.f32.mrf.mxu0
        %v2160 = vadd.f32 %v1855, %v2159
        %v2161 = vpop.f32.mrf.mxu0
        %v2162 = vpop.f32.mrf.mxu0
        %v2163 = vadd.f32 %v1858, %v2162
        %v2164 = vpop.f32.mrf.mxu0
        %2165 = vmatprep.mubr.bf16.mxu0 0
        %2166 = vmatmul.mubr.bf16.gmra.mxu0 %v2004
        %v2167 = vpop.f32.mrf.mxu0
        %v2168 = vadd.f32 %v1863, %v2167
        %v2169 = vpop.f32.mrf.mxu0
        %v2170 = vpop.f32.mrf.mxu0
        %v2171 = vadd.f32 %v1866, %v2170
        %v2172 = vpop.f32.mrf.mxu0
        %2173 = vmatprep.mubr.bf16.mxu0 0
        %2174 = vmatmul.mubr.bf16.gmra.mxu0 %v2005
        %v2175 = vpop.f32.mrf.mxu0
        %v2176 = vadd.f32 %v1871, %v2175
        %v2177 = vpop.f32.mrf.mxu0
        %v2178 = vpop.f32.mrf.mxu0
        %v2179 = vadd.f32 %v1874, %v2178
        %v2180 = vpop.f32.mrf.mxu0
        %2181 = vmatprep.mubr.bf16.mxu0 0
        %2182 = vmatmul.mubr.bf16.gmra.mxu0 %v2006
        %v2183 = vpop.f32.mrf.mxu0
        %v2184 = vadd.f32 %v1879, %v2183
        %v2185 = vpop.f32.mrf.mxu0
        %v2186 = vpop.f32.mrf.mxu0
        %v2187 = vadd.f32 %v1882, %v2186
        %v2188 = vpop.f32.mrf.mxu0
        %2189 = vmatprep.mubr.bf16.mxu0 0
        %2190 = vmatmul.mubr.bf16.gmra.mxu0 %v2007
        %v2191 = vpop.f32.mrf.mxu0
        %v2192 = vadd.f32 %v1887, %v2191
        %v2193 = vpop.f32.mrf.mxu0
        %v2194 = vpop.f32.mrf.mxu0
        %v2195 = vadd.f32 %v1890, %v2194
        %v2196 = vpop.f32.mrf.mxu0
        %2197 = vmatprep.mubr.bf16.mxu0 0
        %2198 = vmatmul.mubr.bf16.gmra.mxu0 %v2008
        %v2199 = vpop.f32.mrf.mxu0
        %v2200 = vadd.f32 %v1895, %v2199
        %v2201 = vpop.f32.mrf.mxu0
        %v2202 = vpop.f32.mrf.mxu0
        %v2203 = vadd.f32 %v1898, %v2202
        %v2204 = vpop.f32.mrf.mxu0
        %2205 = vmatprep.mubr.bf16.mxu0 0
        %2206 = vmatmul.mubr.bf16.gmra.mxu0 %v2009
        %v2207 = vpop.f32.mrf.mxu0
        %v2208 = vadd.f32 %v1903, %v2207
        %v2209 = vpop.f32.mrf.mxu0
        %v2210 = vpop.f32.mrf.mxu0
        %v2211 = vadd.f32 %v1906, %v2210
        %v2212 = vpop.f32.mrf.mxu0
        %2213 = vmatprep.mubr.bf16.mxu0 0
        %2214 = vmatmul.mubr.bf16.gmra.mxu0 %v2010
        %v2215 = vpop.f32.mrf.mxu0
        %v2216 = vadd.f32 %v1911, %v2215
        %v2217 = vpop.f32.mrf.mxu0
        %v2218 = vpop.f32.mrf.mxu0
        %v2219 = vadd.f32 %v1914, %v2218
        %v2220 = vpop.f32.mrf.mxu0
        %2221 = vmatprep.mubr.bf16.mxu0 0
        %2222 = vmatmul.mubr.bf16.gmra.mxu0 %v2011
        %v2223 = vpop.f32.mrf.mxu0
        %v2224 = vadd.f32 %v1919, %v2223
        %v2225 = vpop.f32.mrf.mxu0
        %v2226 = vpop.f32.mrf.mxu0
        %v2227 = vadd.f32 %v1922, %v2226
        %v2228 = vpop.f32.mrf.mxu0
        %2229 = vmatprep.mubr.bf16.mxu0 0
        %2230 = vmatmul.mubr.bf16.gmra.mxu0 %v2012
        %v2231 = vpop.f32.mrf.mxu0
        %v2232 = vadd.f32 %v1927, %v2231
        %v2233 = vpop.f32.mrf.mxu0
        %v2234 = vpop.f32.mrf.mxu0
        %v2235 = vadd.f32 %v1930, %v2234
        %v2236 = vpop.f32.mrf.mxu0
        %2237 = vdwg.mxu0
        %v2238 = vld [vmem:[#allocation2] sm:$0xe]
        %v2239 = vld [vmem:[#allocation2 + $0xc] sm:$0xe]
        %v2240 = vld [vmem:[#allocation2 + $0x18] sm:$0xe]
        %v2241 = vld [vmem:[#allocation2 + $0x24] sm:$0xe]
        %v2242 = vld [vmem:[#allocation2 + $0x30] sm:$0xe]
        %v2243 = vld [vmem:[#allocation2 + $0x3c] sm:$0xe]
        %v2244 = vld [vmem:[#allocation2 + $0x48] sm:$0xe]
        %v2245 = vld [vmem:[#allocation2 + $0x54] sm:$0xe]
        %v2246 = vld [vmem:[#allocation2 + $0x60] sm:$0xe]
        %v2247 = vld [vmem:[#allocation2 + $0x6c] sm:$0xe]
        %v2248 = vld [vmem:[#allocation2 + $0x78] sm:$0xe]
        %v2249 = vld [vmem:[#allocation2 + $0x84] sm:$0xe]
        %v2250 = vld [vmem:[#allocation2 + $0x90] sm:$0xe]
        %v2251 = vld [vmem:[#allocation2 + $0x9c] sm:$0xe]
        %v2252 = vld [vmem:[#allocation2 + $0xa8] sm:$0xe]
        %v2253 = vld [vmem:[#allocation2 + $0xb4] sm:$0xe]
        %vm2286 = vcmask 1042432
        %vm2287 = vcmask 1046532
        %vm2288 = vmor %vm2286, %vm2287
        %v2289 = vrot.slane %v2238, 5
        %v2290 = vrot.slane %v2289, 4
        %v2291 = vrot.slane %v1193, 5
        %v2292 = vsel %vm2288, %v2290, %v2291
        %v2293 = vrot.slane %v2291, 4
        %v2294 = vrot.slane %v1240, 5
        %v2295 = vsel %vm2288, %v2293, %v2294
        %v2296 = vrot.slane %v2239, 5
        %v2297 = vrot.slane %v2296, 4
        %v2298 = vrot.slane %v1195, 5
        %v2299 = vsel %vm2288, %v2297, %v2298
        %v2300 = vrot.slane %v2298, 4
        %v2301 = vrot.slane %v1241, 5
        %v2302 = vsel %vm2288, %v2300, %v2301
        %v2303 = vrot.slane %v2240, 5
        %v2304 = vrot.slane %v2303, 4
        %v2305 = vrot.slane %v1197, 5
        %v2306 = vsel %vm2288, %v2304, %v2305
        %v2307 = vrot.slane %v2305, 4
        %v2308 = vrot.slane %v1242, 5
        %v2309 = vsel %vm2288, %v2307, %v2308
        %v2310 = vrot.slane %v2241, 5
        %v2311 = vrot.slane %v2310, 4
        %v2312 = vrot.slane %v1199, 5
        %v2313 = vsel %vm2288, %v2311, %v2312
        %v2314 = vrot.slane %v2312, 4
        %v2315 = vrot.slane %v1243, 5
        %v2316 = vsel %vm2288, %v2314, %v2315
        %v2317 = vrot.slane %v2242, 5
        %v2318 = vrot.slane %v2317, 4
        %v2319 = vrot.slane %v1201, 5
        %v2320 = vsel %vm2288, %v2318, %v2319
        %v2321 = vrot.slane %v2319, 4
        %v2322 = vrot.slane %v1244, 5
        %v2323 = vsel %vm2288, %v2321, %v2322
        %v2324 = vrot.slane %v2243, 5
        %v2325 = vrot.slane %v2324, 4
        %v2326 = vrot.slane %v1203, 5
        %v2327 = vsel %vm2288, %v2325, %v2326
        %v2328 = vrot.slane %v2326, 4
        %v2329 = vrot.slane %v1245, 5
        %v2330 = vsel %vm2288, %v2328, %v2329
        %v2331 = vrot.slane %v2244, 5
        %v2332 = vrot.slane %v2331, 4
        %v2333 = vrot.slane %v1205, 5
        %v2334 = vsel %vm2288, %v2332, %v2333
        %v2335 = vrot.slane %v2333, 4
        %v2336 = vrot.slane %v1246, 5
        %v2337 = vsel %vm2288, %v2335, %v2336
        %v2338 = vrot.slane %v2245, 5
        %v2339 = vrot.slane %v2338, 4
        %v2340 = vrot.slane %v1207, 5
        %v2341 = vsel %vm2288, %v2339, %v2340
        %v2342 = vrot.slane %v2340, 4
        %v2343 = vrot.slane %v1247, 5
        %v2344 = vsel %vm2288, %v2342, %v2343
        %v2345 = vrot.slane %v2246, 5
        %v2346 = vrot.slane %v2345, 4
        %v2347 = vrot.slane %v1209, 5
        %v2348 = vsel %vm2288, %v2346, %v2347
        %v2349 = vrot.slane %v2347, 4
        %v2350 = vrot.slane %v1248, 5
        %v2351 = vsel %vm2288, %v2349, %v2350
        %v2352 = vrot.slane %v2247, 5
        %v2353 = vrot.slane %v2352, 4
        %v2354 = vrot.slane %v1211, 5
        %v2355 = vsel %vm2288, %v2353, %v2354
        %v2356 = vrot.slane %v2354, 4
        %v2357 = vrot.slane %v1249, 5
        %v2358 = vsel %vm2288, %v2356, %v2357
        %v2359 = vrot.slane %v2248, 5
        %v2360 = vrot.slane %v2359, 4
        %v2361 = vrot.slane %v1213, 5
        %v2362 = vsel %vm2288, %v2360, %v2361
        %v2363 = vrot.slane %v2361, 4
        %v2364 = vrot.slane %v1250, 5
        %v2365 = vsel %vm2288, %v2363, %v2364
        %v2366 = vrot.slane %v2249, 5
        %v2367 = vrot.slane %v2366, 4
        %v2368 = vrot.slane %v1215, 5
        %v2369 = vsel %vm2288, %v2367, %v2368
        %v2370 = vrot.slane %v2368, 4
        %v2371 = vrot.slane %v1251, 5
        %v2372 = vsel %vm2288, %v2370, %v2371
        %v2373 = vrot.slane %v2250, 5
        %v2374 = vrot.slane %v2373, 4
        %v2375 = vrot.slane %v1217, 5
        %v2376 = vsel %vm2288, %v2374, %v2375
        %v2377 = vrot.slane %v2375, 4
        %v2378 = vrot.slane %v1252, 5
        %v2379 = vsel %vm2288, %v2377, %v2378
        %v2380 = vrot.slane %v2251, 5
        %v2381 = vrot.slane %v2380, 4
        %v2382 = vrot.slane %v1219, 5
        %v2383 = vsel %vm2288, %v2381, %v2382
        %v2384 = vrot.slane %v2382, 4
        %v2385 = vrot.slane %v1253, 5
        %v2386 = vsel %vm2288, %v2384, %v2385
        %v2387 = vrot.slane %v2252, 5
        %v2388 = vrot.slane %v2387, 4
        %v2389 = vrot.slane %v1221, 5
        %v2390 = vsel %vm2288, %v2388, %v2389
        %v2391 = vrot.slane %v2389, 4
        %v2392 = vrot.slane %v1254, 5
        %v2393 = vsel %vm2288, %v2391, %v2392
        %v2394 = vrot.slane %v2253, 5
        %v2395 = vrot.slane %v2394, 4
        %v2396 = vrot.slane %v1223, 5
        %v2397 = vsel %vm2288, %v2395, %v2396
        %v2398 = vrot.slane %v2396, 4
        %v2399 = vrot.slane %v1255, 5
        %v2400 = vsel %vm2288, %v2398, %v2399
        %s2401 = scalar_lea.vmem %s1, 128
        %v2402 = vld [vmem:[%s2401] sm:$0xf]
        %v2403 = vld [vmem:[%s2401 + $0x4] sm:$0xf]
        %v2404 = vld [vmem:[%s2401 + $0x8] sm:$0xf]
        %v2405 = vld [vmem:[%s2401 + $0xc] sm:$0xf]
        %v2406 = vld [vmem:[%s2401 + $0x10] sm:$0xf]
        %v2407 = vld [vmem:[%s2401 + $0x14] sm:$0xf]
        %v2408 = vld [vmem:[%s2401 + $0x18] sm:$0xf]
        %v2409 = vld [vmem:[%s2401 + $0x1c] sm:$0xf]
        %v2410 = vld [vmem:[%s2401 + $0x20] sm:$0xf]
        %v2411 = vld [vmem:[%s2401 + $0x24] sm:$0xf]
        %v2412 = vld [vmem:[%s2401 + $0x28] sm:$0xf]
        %v2413 = vld [vmem:[%s2401 + $0x2c] sm:$0xf]
        %v2414 = vld [vmem:[%s2401 + $0x30] sm:$0xf]
        %v2415 = vld [vmem:[%s2401 + $0x34] sm:$0xf]
        %v2416 = vld [vmem:[%s2401 + $0x38] sm:$0xf]
        %v2417 = vld [vmem:[%s2401 + $0x3c] sm:$0xf]
        %v2418 = vunpack.c.l.b16 %v2292
        %v2419 = vunpack.c.l.b16 %v2295
        %v2420 = vunpack.c.l.b16 %v2299
        %v2421 = vunpack.c.l.b16 %v2302
        %v2422 = vunpack.c.l.b16 %v2306
        %v2423 = vunpack.c.l.b16 %v2309
        %v2424 = vunpack.c.l.b16 %v2313
        %v2425 = vunpack.c.l.b16 %v2316
        %v2426 = vunpack.c.l.b16 %v2320
        %v2427 = vunpack.c.l.b16 %v2323
        %v2428 = vunpack.c.l.b16 %v2327
        %v2429 = vunpack.c.l.b16 %v2330
        %v2430 = vunpack.c.l.b16 %v2334
        %v2431 = vunpack.c.l.b16 %v2337
        %v2432 = vunpack.c.l.b16 %v2341
        %v2433 = vunpack.c.l.b16 %v2344
        %v2434 = vunpack.c.l.b16 %v2348
        %v2435 = vunpack.c.l.b16 %v2351
        %v2436 = vunpack.c.l.b16 %v2355
        %v2437 = vunpack.c.l.b16 %v2358
        %v2438 = vunpack.c.l.b16 %v2362
        %v2439 = vunpack.c.l.b16 %v2365
        %v2440 = vunpack.c.l.b16 %v2369
        %v2441 = vunpack.c.l.b16 %v2372
        %v2442 = vunpack.c.l.b16 %v2376
        %v2443 = vunpack.c.l.b16 %v2379
        %v2444 = vunpack.c.l.b16 %v2383
        %v2445 = vunpack.c.l.b16 %v2386
        %v2446 = vunpack.c.l.b16 %v2390
        %v2447 = vunpack.c.l.b16 %v2393
        %v2448 = vunpack.c.l.b16 %v2397
        %v2449 = vunpack.c.l.b16 %v2400
        %v2450 = vpack.c.b16 %v2419, %v2418
        %v2451 = vpack.c.b16 %v2421, %v2420
        %v2452 = vpack.c.b16 %v2423, %v2422
        %v2453 = vpack.c.b16 %v2425, %v2424
        %v2454 = vpack.c.b16 %v2427, %v2426
        %v2455 = vpack.c.b16 %v2429, %v2428
        %v2456 = vpack.c.b16 %v2431, %v2430
        %v2457 = vpack.c.b16 %v2433, %v2432
        %v2458 = vpack.c.b16 %v2435, %v2434
        %v2459 = vpack.c.b16 %v2437, %v2436
        %v2460 = vpack.c.b16 %v2439, %v2438
        %v2461 = vpack.c.b16 %v2441, %v2440
        %v2462 = vpack.c.b16 %v2443, %v2442
        %v2463 = vpack.c.b16 %v2445, %v2444
        %v2464 = vpack.c.b16 %v2447, %v2446
        %v2465 = vpack.c.b16 %v2449, %v2448
        %v2498 = vunpack.c.l.b16 %v2402
        %v2499 = vunpack.c.l.b16 %v2403
        %v2500 = vunpack.c.l.b16 %v2404
        %v2501 = vunpack.c.l.b16 %v2405
        %v2502 = vunpack.c.l.b16 %v2406
        %v2503 = vunpack.c.l.b16 %v2407
        %v2504 = vunpack.c.l.b16 %v2408
        %v2505 = vunpack.c.l.b16 %v2409
        %v2506 = vunpack.c.l.b16 %v2410
        %v2507 = vunpack.c.l.b16 %v2411
        %v2508 = vunpack.c.l.b16 %v2412
        %v2509 = vunpack.c.l.b16 %v2413
        %v2510 = vunpack.c.l.b16 %v2414
        %v2511 = vunpack.c.l.b16 %v2415
        %v2512 = vunpack.c.l.b16 %v2416
        %v2513 = vunpack.c.l.b16 %v2417
        %v2514 = vpack.c.b16 %v2499, %v2498
        %v2515 = vpack.c.b16 %v2501, %v2500
        %v2516 = vpack.c.b16 %v2503, %v2502
        %v2517 = vpack.c.b16 %v2505, %v2504
        %v2518 = vpack.c.b16 %v2507, %v2506
        %v2519 = vpack.c.b16 %v2509, %v2508
        %v2520 = vpack.c.b16 %v2511, %v2510
        %v2521 = vpack.c.b16 %v2513, %v2512
        %2530 = vmatprep.subr.bf16.mxu0 0
        %2531 = vmatpush1.bf16.msra.mxu0 %v2521
        %2532 = vmatprep.subr.bf16.mxu0 0
        %2533 = vmatpush1.bf16.msra.mxu0 %v2520
        %2534 = vmatprep.subr.bf16.mxu0 0
        %2535 = vmatpush1.bf16.msra.mxu0 %v2519
        %2536 = vmatprep.subr.bf16.mxu0 0
        %2537 = vmatpush1.bf16.msra.mxu0 %v2518
        %2538 = vmatprep.subr.bf16.mxu0 0
        %2539 = vmatpush1.bf16.msra.mxu0 %v2517
        %2540 = vmatprep.subr.bf16.mxu0 0
        %2541 = vmatpush1.bf16.msra.mxu0 %v2516
        %2542 = vmatprep.subr.bf16.mxu0 0
        %2543 = vmatpush1.bf16.msra.mxu0 %v2515
        %2544 = vmatprep.subr.bf16.mxu0 0
        %2545 = vmatpush1.bf16.msra.mxu0 %v2514
        %2546 = vmatprep.subr.bf16.mxu0 0
        %2547 = vmatpush2.bf16.msra.mxu0 0
        %2548 = vmatprep.subr.bf16.mxu0 0
        %2549 = vmatpush2.bf16.msra.mxu0 0
        %2550 = vmatprep.subr.bf16.mxu0 0
        %2551 = vmatpush2.bf16.msra.mxu0 0
        %2552 = vmatprep.subr.bf16.mxu0 0
        %2553 = vmatpush2.bf16.msra.mxu0 0
        %2554 = vmatprep.subr.bf16.mxu0 0
        %2555 = vmatpush2.bf16.msra.mxu0 0
        %2556 = vmatprep.subr.bf16.mxu0 0
        %2557 = vmatpush2.bf16.msra.mxu0 0
        %2558 = vmatprep.subr.bf16.mxu0 0
        %2559 = vmatpush2.bf16.msra.mxu0 0
        %2560 = vmatprep.subr.bf16.mxu0 0
        %2561 = vmatpush2.bf16.msra.mxu0 0
        %2562 = vmatprep.mubr.bf16.mxu0 0
        %2563 = vmatmul.mubr.bf16.gmra.mxu0 %v2450
        %v2564 = vpop.f32.mrf.mxu0
        %v2565 = vadd.f32 0.0, %v2564
        %v2566 = vpop.f32.mrf.mxu0
        %v2567 = vpop.f32.mrf.mxu0
        %v2568 = vadd.f32 0.0, %v2567
        %v2569 = vpop.f32.mrf.mxu0
        %2570 = vmatprep.mubr.bf16.mxu0 0
        %2571 = vmatmul.mubr.bf16.gmra.mxu0 %v2451
        %v2572 = vpop.f32.mrf.mxu0
        %v2573 = vadd.f32 0.0, %v2572
        %v2574 = vpop.f32.mrf.mxu0
        %v2575 = vpop.f32.mrf.mxu0
        %v2576 = vadd.f32 0.0, %v2575
        %v2577 = vpop.f32.mrf.mxu0
        %2578 = vmatprep.mubr.bf16.mxu0 0
        %2579 = vmatmul.mubr.bf16.gmra.mxu0 %v2452
        %v2580 = vpop.f32.mrf.mxu0
        %v2581 = vadd.f32 0.0, %v2580
        %v2582 = vpop.f32.mrf.mxu0
        %v2583 = vpop.f32.mrf.mxu0
        %v2584 = vadd.f32 0.0, %v2583
        %v2585 = vpop.f32.mrf.mxu0
        %2586 = vmatprep.mubr.bf16.mxu0 0
        %2587 = vmatmul.mubr.bf16.gmra.mxu0 %v2453
        %v2588 = vpop.f32.mrf.mxu0
        %v2589 = vadd.f32 0.0, %v2588
        %v2590 = vpop.f32.mrf.mxu0
        %v2591 = vpop.f32.mrf.mxu0
        %v2592 = vadd.f32 0.0, %v2591
        %v2593 = vpop.f32.mrf.mxu0
        %2594 = vmatprep.mubr.bf16.mxu0 0
        %2595 = vmatmul.mubr.bf16.gmra.mxu0 %v2454
        %v2596 = vpop.f32.mrf.mxu0
        %v2597 = vadd.f32 0.0, %v2596
        %v2598 = vpop.f32.mrf.mxu0
        %v2599 = vpop.f32.mrf.mxu0
        %v2600 = vadd.f32 0.0, %v2599
        %v2601 = vpop.f32.mrf.mxu0
        %2602 = vmatprep.mubr.bf16.mxu0 0
        %2603 = vmatmul.mubr.bf16.gmra.mxu0 %v2455
        %v2604 = vpop.f32.mrf.mxu0
        %v2605 = vadd.f32 0.0, %v2604
        %v2606 = vpop.f32.mrf.mxu0
        %v2607 = vpop.f32.mrf.mxu0
        %v2608 = vadd.f32 0.0, %v2607
        %v2609 = vpop.f32.mrf.mxu0
        %2610 = vmatprep.mubr.bf16.mxu0 0
        %2611 = vmatmul.mubr.bf16.gmra.mxu0 %v2456
        %v2612 = vpop.f32.mrf.mxu0
        %v2613 = vadd.f32 0.0, %v2612
        %v2614 = vpop.f32.mrf.mxu0
        %v2615 = vpop.f32.mrf.mxu0
        %v2616 = vadd.f32 0.0, %v2615
        %v2617 = vpop.f32.mrf.mxu0
        %2618 = vmatprep.mubr.bf16.mxu0 0
        %2619 = vmatmul.mubr.bf16.gmra.mxu0 %v2457
        %v2620 = vpop.f32.mrf.mxu0
        %v2621 = vadd.f32 0.0, %v2620
        %v2622 = vpop.f32.mrf.mxu0
        %v2623 = vpop.f32.mrf.mxu0
        %v2624 = vadd.f32 0.0, %v2623
        %v2625 = vpop.f32.mrf.mxu0
        %2626 = vmatprep.mubr.bf16.mxu0 0
        %2627 = vmatmul.mubr.bf16.gmra.mxu0 %v2458
        %v2628 = vpop.f32.mrf.mxu0
        %v2629 = vadd.f32 0.0, %v2628
        %v2630 = vpop.f32.mrf.mxu0
        %v2631 = vpop.f32.mrf.mxu0
        %v2632 = vadd.f32 0.0, %v2631
        %v2633 = vpop.f32.mrf.mxu0
        %2634 = vmatprep.mubr.bf16.mxu0 0
        %2635 = vmatmul.mubr.bf16.gmra.mxu0 %v2459
        %v2636 = vpop.f32.mrf.mxu0
        %v2637 = vadd.f32 0.0, %v2636
        %v2638 = vpop.f32.mrf.mxu0
        %v2639 = vpop.f32.mrf.mxu0
        %v2640 = vadd.f32 0.0, %v2639
        %v2641 = vpop.f32.mrf.mxu0
        %2642 = vmatprep.mubr.bf16.mxu0 0
        %2643 = vmatmul.mubr.bf16.gmra.mxu0 %v2460
        %v2644 = vpop.f32.mrf.mxu0
        %v2645 = vadd.f32 0.0, %v2644
        %v2646 = vpop.f32.mrf.mxu0
        %v2647 = vpop.f32.mrf.mxu0
        %v2648 = vadd.f32 0.0, %v2647
        %v2649 = vpop.f32.mrf.mxu0
        %2650 = vmatprep.mubr.bf16.mxu0 0
        %2651 = vmatmul.mubr.bf16.gmra.mxu0 %v2461
        %v2652 = vpop.f32.mrf.mxu0
        %v2653 = vadd.f32 0.0, %v2652
        %v2654 = vpop.f32.mrf.mxu0
        %v2655 = vpop.f32.mrf.mxu0
        %v2656 = vadd.f32 0.0, %v2655
        %v2657 = vpop.f32.mrf.mxu0
        %2658 = vmatprep.mubr.bf16.mxu0 0
        %2659 = vmatmul.mubr.bf16.gmra.mxu0 %v2462
        %v2660 = vpop.f32.mrf.mxu0
        %v2661 = vadd.f32 0.0, %v2660
        %v2662 = vpop.f32.mrf.mxu0
        %v2663 = vpop.f32.mrf.mxu0
        %v2664 = vadd.f32 0.0, %v2663
        %v2665 = vpop.f32.mrf.mxu0
        %2666 = vmatprep.mubr.bf16.mxu0 0
        %2667 = vmatmul.mubr.bf16.gmra.mxu0 %v2463
        %v2668 = vpop.f32.mrf.mxu0
        %v2669 = vadd.f32 0.0, %v2668
        %v2670 = vpop.f32.mrf.mxu0
        %v2671 = vpop.f32.mrf.mxu0
        %v2672 = vadd.f32 0.0, %v2671
        %v2673 = vpop.f32.mrf.mxu0
        %2674 = vmatprep.mubr.bf16.mxu0 0
        %2675 = vmatmul.mubr.bf16.gmra.mxu0 %v2464
        %v2676 = vpop.f32.mrf.mxu0
        %v2677 = vadd.f32 0.0, %v2676
        %v2678 = vpop.f32.mrf.mxu0
        %v2679 = vpop.f32.mrf.mxu0
        %v2680 = vadd.f32 0.0, %v2679
        %v2681 = vpop.f32.mrf.mxu0
        %2682 = vmatprep.mubr.bf16.mxu0 0
        %2683 = vmatmul.mubr.bf16.gmra.mxu0 %v2465
        %v2684 = vpop.f32.mrf.mxu0
        %v2685 = vadd.f32 0.0, %v2684
        %v2686 = vpop.f32.mrf.mxu0
        %v2687 = vpop.f32.mrf.mxu0
        %v2688 = vadd.f32 0.0, %v2687
        %v2689 = vpop.f32.mrf.mxu0
        %2690 = vdwg.mxu0
        %v2691 = vadd.f32 %v2112, %v2565
        %v2692 = vadd.f32 %v2115, %v2568
        %v2693 = vadd.f32 %v2120, %v2573
        %v2694 = vadd.f32 %v2123, %v2576
        %v2695 = vadd.f32 %v2128, %v2581
        %v2696 = vadd.f32 %v2131, %v2584
        %v2697 = vadd.f32 %v2136, %v2589
        %v2698 = vadd.f32 %v2139, %v2592
        %v2699 = vadd.f32 %v2144, %v2597
        %v2700 = vadd.f32 %v2147, %v2600
        %v2701 = vadd.f32 %v2152, %v2605
        %v2702 = vadd.f32 %v2155, %v2608
        %v2703 = vadd.f32 %v2160, %v2613
        %v2704 = vadd.f32 %v2163, %v2616
        %v2705 = vadd.f32 %v2168, %v2621
        %v2706 = vadd.f32 %v2171, %v2624
        %v2707 = vadd.f32 %v2176, %v2629
        %v2708 = vadd.f32 %v2179, %v2632
        %v2709 = vadd.f32 %v2184, %v2637
        %v2710 = vadd.f32 %v2187, %v2640
        %v2711 = vadd.f32 %v2192, %v2645
        %v2712 = vadd.f32 %v2195, %v2648
        %v2713 = vadd.f32 %v2200, %v2653
        %v2714 = vadd.f32 %v2203, %v2656
        %v2715 = vadd.f32 %v2208, %v2661
        %v2716 = vadd.f32 %v2211, %v2664
        %v2717 = vadd.f32 %v2216, %v2669
        %v2718 = vadd.f32 %v2219, %v2672
        %v2719 = vadd.f32 %v2224, %v2677
        %v2720 = vadd.f32 %v2227, %v2680
        %v2721 = vadd.f32 %v2232, %v2685
        %v2722 = vadd.f32 %v2235, %v2688
        %v2723 = vld [vmem:[%s302] sm:$0xf]
        %v2724 = vld [vmem:[%s302 + $0x4] sm:$0xf]
        %v2725 = vld [vmem:[%s302 + $0xc] sm:$0xf]
        %v2726 = vld [vmem:[%s302 + $0x10] sm:$0xf]
        %v2727 = vld [vmem:[%s302 + $0x18] sm:$0xf]
        %v2728 = vld [vmem:[%s302 + $0x1c] sm:$0xf]
        %v2729 = vld [vmem:[%s302 + $0x24] sm:$0xf]
        %v2730 = vld [vmem:[%s302 + $0x28] sm:$0xf]
        %v2731 = vld [vmem:[%s302 + $0x30] sm:$0xf]
        %v2732 = vld [vmem:[%s302 + $0x34] sm:$0xf]
        %v2733 = vld [vmem:[%s302 + $0x3c] sm:$0xf]
        %v2734 = vld [vmem:[%s302 + $0x40] sm:$0xf]
        %v2735 = vld [vmem:[%s302 + $0x48] sm:$0xf]
        %v2736 = vld [vmem:[%s302 + $0x4c] sm:$0xf]
        %v2737 = vld [vmem:[%s302 + $0x54] sm:$0xf]
        %v2738 = vld [vmem:[%s302 + $0x58] sm:$0xf]
        %v2739 = vld [vmem:[%s302 + $0x60] sm:$0xf]
        %v2740 = vld [vmem:[%s302 + $0x64] sm:$0xf]
        %v2741 = vld [vmem:[%s302 + $0x6c] sm:$0xf]
        %v2742 = vld [vmem:[%s302 + $0x70] sm:$0xf]
        %v2743 = vld [vmem:[%s302 + $0x78] sm:$0xf]
        %v2744 = vld [vmem:[%s302 + $0x7c] sm:$0xf]
        %v2745 = vld [vmem:[%s302 + $0x84] sm:$0xf]
        %v2746 = vld [vmem:[%s302 + $0x88] sm:$0xf]
        %v2747 = vld [vmem:[%s302 + $0x90] sm:$0xf]
        %v2748 = vld [vmem:[%s302 + $0x94] sm:$0xf]
        %v2749 = vld [vmem:[%s302 + $0x9c] sm:$0xf]
        %v2750 = vld [vmem:[%s302 + $0xa0] sm:$0xf]
        %v2751 = vld [vmem:[%s302 + $0xa8] sm:$0xf]
        %v2752 = vld [vmem:[%s302 + $0xac] sm:$0xf]
        %v2753 = vld [vmem:[%s302 + $0xb4] sm:$0xf]
        %v2754 = vld [vmem:[%s302 + $0xb8] sm:$0xf]
        %s2755 = scalar_lea.vmem %s1, 192
        %v2756 = vld [vmem:[%s2755] sm:$0xf]
        %v2757 = vld [vmem:[%s2755 + $0x4] sm:$0xf]
        %v2758 = vld [vmem:[%s2755 + $0x8] sm:$0xf]
        %v2759 = vld [vmem:[%s2755 + $0xc] sm:$0xf]
        %v2760 = vld [vmem:[%s2755 + $0x10] sm:$0xf]
        %v2761 = vld [vmem:[%s2755 + $0x14] sm:$0xf]
        %v2762 = vld [vmem:[%s2755 + $0x18] sm:$0xf]
        %v2763 = vld [vmem:[%s2755 + $0x1c] sm:$0xf]
        %v2764 = vld [vmem:[%s2755 + $0x20] sm:$0xf]
        %v2765 = vld [vmem:[%s2755 + $0x24] sm:$0xf]
        %v2766 = vld [vmem:[%s2755 + $0x28] sm:$0xf]
        %v2767 = vld [vmem:[%s2755 + $0x2c] sm:$0xf]
        %v2768 = vld [vmem:[%s2755 + $0x30] sm:$0xf]
        %v2769 = vld [vmem:[%s2755 + $0x34] sm:$0xf]
        %v2770 = vld [vmem:[%s2755 + $0x38] sm:$0xf]
        %v2771 = vld [vmem:[%s2755 + $0x3c] sm:$0xf]
        %v2804 = vunpack.c.l.b16 %v2723
        %v2805 = vunpack.c.l.b16 %v2724
        %v2806 = vunpack.c.l.b16 %v2725
        %v2807 = vunpack.c.l.b16 %v2726
        %v2808 = vunpack.c.l.b16 %v2727
        %v2809 = vunpack.c.l.b16 %v2728
        %v2810 = vunpack.c.l.b16 %v2729
        %v2811 = vunpack.c.l.b16 %v2730
        %v2812 = vunpack.c.l.b16 %v2731
        %v2813 = vunpack.c.l.b16 %v2732
        %v2814 = vunpack.c.l.b16 %v2733
        %v2815 = vunpack.c.l.b16 %v2734
        %v2816 = vunpack.c.l.b16 %v2735
        %v2817 = vunpack.c.l.b16 %v2736
        %v2818 = vunpack.c.l.b16 %v2737
        %v2819 = vunpack.c.l.b16 %v2738
        %v2820 = vunpack.c.l.b16 %v2739
        %v2821 = vunpack.c.l.b16 %v2740
        %v2822 = vunpack.c.l.b16 %v2741
        %v2823 = vunpack.c.l.b16 %v2742
        %v2824 = vunpack.c.l.b16 %v2743
        %v2825 = vunpack.c.l.b16 %v2744
        %v2826 = vunpack.c.l.b16 %v2745
        %v2827 = vunpack.c.l.b16 %v2746
        %v2828 = vunpack.c.l.b16 %v2747
        %v2829 = vunpack.c.l.b16 %v2748
        %v2830 = vunpack.c.l.b16 %v2749
        %v2831 = vunpack.c.l.b16 %v2750
        %v2832 = vunpack.c.l.b16 %v2751
        %v2833 = vunpack.c.l.b16 %v2752
        %v2834 = vunpack.c.l.b16 %v2753
        %v2835 = vunpack.c.l.b16 %v2754
        %v2836 = vpack.c.b16 %v2805, %v2804
        %v2837 = vpack.c.b16 %v2807, %v2806
        %v2838 = vpack.c.b16 %v2809, %v2808
        %v2839 = vpack.c.b16 %v2811, %v2810
        %v2840 = vpack.c.b16 %v2813, %v2812
        %v2841 = vpack.c.b16 %v2815, %v2814
        %v2842 = vpack.c.b16 %v2817, %v2816
        %v2843 = vpack.c.b16 %v2819, %v2818
        %v2844 = vpack.c.b16 %v2821, %v2820
        %v2845 = vpack.c.b16 %v2823, %v2822
        %v2846 = vpack.c.b16 %v2825, %v2824
        %v2847 = vpack.c.b16 %v2827, %v2826
        %v2848 = vpack.c.b16 %v2829, %v2828
        %v2849 = vpack.c.b16 %v2831, %v2830
        %v2850 = vpack.c.b16 %v2833, %v2832
        %v2851 = vpack.c.b16 %v2835, %v2834
        %v2884 = vunpack.c.l.b16 %v2756
        %v2885 = vunpack.c.l.b16 %v2757
        %v2886 = vunpack.c.l.b16 %v2758
        %v2887 = vunpack.c.l.b16 %v2759
        %v2888 = vunpack.c.l.b16 %v2760
        %v2889 = vunpack.c.l.b16 %v2761
        %v2890 = vunpack.c.l.b16 %v2762
        %v2891 = vunpack.c.l.b16 %v2763
        %v2892 = vunpack.c.l.b16 %v2764
        %v2893 = vunpack.c.l.b16 %v2765
        %v2894 = vunpack.c.l.b16 %v2766
        %v2895 = vunpack.c.l.b16 %v2767
        %v2896 = vunpack.c.l.b16 %v2768
        %v2897 = vunpack.c.l.b16 %v2769
        %v2898 = vunpack.c.l.b16 %v2770
        %v2899 = vunpack.c.l.b16 %v2771
        %v2900 = vpack.c.b16 %v2885, %v2884
        %v2901 = vpack.c.b16 %v2887, %v2886
        %v2902 = vpack.c.b16 %v2889, %v2888
        %v2903 = vpack.c.b16 %v2891, %v2890
        %v2904 = vpack.c.b16 %v2893, %v2892
        %v2905 = vpack.c.b16 %v2895, %v2894
        %v2906 = vpack.c.b16 %v2897, %v2896
        %v2907 = vpack.c.b16 %v2899, %v2898
        %2916 = vmatprep.subr.bf16.mxu0 0
        %2917 = vmatpush1.bf16.msra.mxu0 %v2907
        %2918 = vmatprep.subr.bf16.mxu0 0
        %2919 = vmatpush1.bf16.msra.mxu0 %v2906
        %2920 = vmatprep.subr.bf16.mxu0 0
        %2921 = vmatpush1.bf16.msra.mxu0 %v2905
        %2922 = vmatprep.subr.bf16.mxu0 0
        %2923 = vmatpush1.bf16.msra.mxu0 %v2904
        %2924 = vmatprep.subr.bf16.mxu0 0
        %2925 = vmatpush1.bf16.msra.mxu0 %v2903
        %2926 = vmatprep.subr.bf16.mxu0 0
        %2927 = vmatpush1.bf16.msra.mxu0 %v2902
        %2928 = vmatprep.subr.bf16.mxu0 0
        %2929 = vmatpush1.bf16.msra.mxu0 %v2901
        %2930 = vmatprep.subr.bf16.mxu0 0
        %2931 = vmatpush1.bf16.msra.mxu0 %v2900
        %2932 = vmatprep.subr.bf16.mxu0 0
        %2933 = vmatpush2.bf16.msra.mxu0 0
        %2934 = vmatprep.subr.bf16.mxu0 0
        %2935 = vmatpush2.bf16.msra.mxu0 0
        %2936 = vmatprep.subr.bf16.mxu0 0
        %2937 = vmatpush2.bf16.msra.mxu0 0
        %2938 = vmatprep.subr.bf16.mxu0 0
        %2939 = vmatpush2.bf16.msra.mxu0 0
        %2940 = vmatprep.subr.bf16.mxu0 0
        %2941 = vmatpush2.bf16.msra.mxu0 0
        %2942 = vmatprep.subr.bf16.mxu0 0
        %2943 = vmatpush2.bf16.msra.mxu0 0
        %2944 = vmatprep.subr.bf16.mxu0 0
        %2945 = vmatpush2.bf16.msra.mxu0 0
        %2946 = vmatprep.subr.bf16.mxu0 0
        %2947 = vmatpush2.bf16.msra.mxu0 0
        %2948 = vmatprep.mubr.bf16.mxu0 0
        %2949 = vmatmul.mubr.bf16.gmra.mxu0 %v2836
        %v2950 = vpop.f32.mrf.mxu0
        %v2951 = vadd.f32 0.0, %v2950
        %v2952 = vpop.f32.mrf.mxu0
        %v2953 = vpop.f32.mrf.mxu0
        %v2954 = vadd.f32 0.0, %v2953
        %v2955 = vpop.f32.mrf.mxu0
        %2956 = vmatprep.mubr.bf16.mxu0 0
        %2957 = vmatmul.mubr.bf16.gmra.mxu0 %v2837
        %v2958 = vpop.f32.mrf.mxu0
        %v2959 = vadd.f32 0.0, %v2958
        %v2960 = vpop.f32.mrf.mxu0
        %v2961 = vpop.f32.mrf.mxu0
        %v2962 = vadd.f32 0.0, %v2961
        %v2963 = vpop.f32.mrf.mxu0
        %2964 = vmatprep.mubr.bf16.mxu0 0
        %2965 = vmatmul.mubr.bf16.gmra.mxu0 %v2838
        %v2966 = vpop.f32.mrf.mxu0
        %v2967 = vadd.f32 0.0, %v2966
        %v2968 = vpop.f32.mrf.mxu0
        %v2969 = vpop.f32.mrf.mxu0
        %v2970 = vadd.f32 0.0, %v2969
        %v2971 = vpop.f32.mrf.mxu0
        %2972 = vmatprep.mubr.bf16.mxu0 0
        %2973 = vmatmul.mubr.bf16.gmra.mxu0 %v2839
        %v2974 = vpop.f32.mrf.mxu0
        %v2975 = vadd.f32 0.0, %v2974
        %v2976 = vpop.f32.mrf.mxu0
        %v2977 = vpop.f32.mrf.mxu0
        %v2978 = vadd.f32 0.0, %v2977
        %v2979 = vpop.f32.mrf.mxu0
        %2980 = vmatprep.mubr.bf16.mxu0 0
        %2981 = vmatmul.mubr.bf16.gmra.mxu0 %v2840
        %v2982 = vpop.f32.mrf.mxu0
        %v2983 = vadd.f32 0.0, %v2982
        %v2984 = vpop.f32.mrf.mxu0
        %v2985 = vpop.f32.mrf.mxu0
        %v2986 = vadd.f32 0.0, %v2985
        %v2987 = vpop.f32.mrf.mxu0
        %2988 = vmatprep.mubr.bf16.mxu0 0
        %2989 = vmatmul.mubr.bf16.gmra.mxu0 %v2841
        %v2990 = vpop.f32.mrf.mxu0
        %v2991 = vadd.f32 0.0, %v2990
        %v2992 = vpop.f32.mrf.mxu0
        %v2993 = vpop.f32.mrf.mxu0
        %v2994 = vadd.f32 0.0, %v2993
        %v2995 = vpop.f32.mrf.mxu0
        %2996 = vmatprep.mubr.bf16.mxu0 0
        %2997 = vmatmul.mubr.bf16.gmra.mxu0 %v2842
        %v2998 = vpop.f32.mrf.mxu0
        %v2999 = vadd.f32 0.0, %v2998
        %v3000 = vpop.f32.mrf.mxu0
        %v3001 = vpop.f32.mrf.mxu0
        %v3002 = vadd.f32 0.0, %v3001
        %v3003 = vpop.f32.mrf.mxu0
        %3004 = vmatprep.mubr.bf16.mxu0 0
        %3005 = vmatmul.mubr.bf16.gmra.mxu0 %v2843
        %v3006 = vpop.f32.mrf.mxu0
        %v3007 = vadd.f32 0.0, %v3006
        %v3008 = vpop.f32.mrf.mxu0
        %v3009 = vpop.f32.mrf.mxu0
        %v3010 = vadd.f32 0.0, %v3009
        %v3011 = vpop.f32.mrf.mxu0
        %3012 = vmatprep.mubr.bf16.mxu0 0
        %3013 = vmatmul.mubr.bf16.gmra.mxu0 %v2844
        %v3014 = vpop.f32.mrf.mxu0
        %v3015 = vadd.f32 0.0, %v3014
        %v3016 = vpop.f32.mrf.mxu0
        %v3017 = vpop.f32.mrf.mxu0
        %v3018 = vadd.f32 0.0, %v3017
        %v3019 = vpop.f32.mrf.mxu0
        %3020 = vmatprep.mubr.bf16.mxu0 0
        %3021 = vmatmul.mubr.bf16.gmra.mxu0 %v2845
        %v3022 = vpop.f32.mrf.mxu0
        %v3023 = vadd.f32 0.0, %v3022
        %v3024 = vpop.f32.mrf.mxu0
        %v3025 = vpop.f32.mrf.mxu0
        %v3026 = vadd.f32 0.0, %v3025
        %v3027 = vpop.f32.mrf.mxu0
        %3028 = vmatprep.mubr.bf16.mxu0 0
        %3029 = vmatmul.mubr.bf16.gmra.mxu0 %v2846
        %v3030 = vpop.f32.mrf.mxu0
        %v3031 = vadd.f32 0.0, %v3030
        %v3032 = vpop.f32.mrf.mxu0
        %v3033 = vpop.f32.mrf.mxu0
        %v3034 = vadd.f32 0.0, %v3033
        %v3035 = vpop.f32.mrf.mxu0
        %3036 = vmatprep.mubr.bf16.mxu0 0
        %3037 = vmatmul.mubr.bf16.gmra.mxu0 %v2847
        %v3038 = vpop.f32.mrf.mxu0
        %v3039 = vadd.f32 0.0, %v3038
        %v3040 = vpop.f32.mrf.mxu0
        %v3041 = vpop.f32.mrf.mxu0
        %v3042 = vadd.f32 0.0, %v3041
        %v3043 = vpop.f32.mrf.mxu0
        %3044 = vmatprep.mubr.bf16.mxu0 0
        %3045 = vmatmul.mubr.bf16.gmra.mxu0 %v2848
        %v3046 = vpop.f32.mrf.mxu0
        %v3047 = vadd.f32 0.0, %v3046
        %v3048 = vpop.f32.mrf.mxu0
        %v3049 = vpop.f32.mrf.mxu0
        %v3050 = vadd.f32 0.0, %v3049
        %v3051 = vpop.f32.mrf.mxu0
        %3052 = vmatprep.mubr.bf16.mxu0 0
        %3053 = vmatmul.mubr.bf16.gmra.mxu0 %v2849
        %v3054 = vpop.f32.mrf.mxu0
        %v3055 = vadd.f32 0.0, %v3054
        %v3056 = vpop.f32.mrf.mxu0
        %v3057 = vpop.f32.mrf.mxu0
        %v3058 = vadd.f32 0.0, %v3057
        %v3059 = vpop.f32.mrf.mxu0
        %3060 = vmatprep.mubr.bf16.mxu0 0
        %3061 = vmatmul.mubr.bf16.gmra.mxu0 %v2850
        %v3062 = vpop.f32.mrf.mxu0
        %v3063 = vadd.f32 0.0, %v3062
        %v3064 = vpop.f32.mrf.mxu0
        %v3065 = vpop.f32.mrf.mxu0
        %v3066 = vadd.f32 0.0, %v3065
        %v3067 = vpop.f32.mrf.mxu0
        %3068 = vmatprep.mubr.bf16.mxu0 0
        %3069 = vmatmul.mubr.bf16.gmra.mxu0 %v2851
        %v3070 = vpop.f32.mrf.mxu0
        %v3071 = vadd.f32 0.0, %v3070
        %v3072 = vpop.f32.mrf.mxu0
        %v3073 = vpop.f32.mrf.mxu0
        %v3074 = vadd.f32 0.0, %v3073
        %v3075 = vpop.f32.mrf.mxu0
        %3076 = vdwg.mxu0
        %v3077 = vadd.f32 %v2691, %v2951
        %v3078 = vadd.f32 %v2692, %v2954
        %v3079 = vadd.f32 %v2693, %v2959
        %v3080 = vadd.f32 %v2694, %v2962
        %v3081 = vadd.f32 %v2695, %v2967
        %v3082 = vadd.f32 %v2696, %v2970
        %v3083 = vadd.f32 %v2697, %v2975
        %v3084 = vadd.f32 %v2698, %v2978
        %v3085 = vadd.f32 %v2699, %v2983
        %v3086 = vadd.f32 %v2700, %v2986
        %v3087 = vadd.f32 %v2701, %v2991
        %v3088 = vadd.f32 %v2702, %v2994
        %v3089 = vadd.f32 %v2703, %v2999
        %v3090 = vadd.f32 %v2704, %v3002
        %v3091 = vadd.f32 %v2705, %v3007
        %v3092 = vadd.f32 %v2706, %v3010
        %v3093 = vadd.f32 %v2707, %v3015
        %v3094 = vadd.f32 %v2708, %v3018
        %v3095 = vadd.f32 %v2709, %v3023
        %v3096 = vadd.f32 %v2710, %v3026
        %v3097 = vadd.f32 %v2711, %v3031
        %v3098 = vadd.f32 %v2712, %v3034
        %v3099 = vadd.f32 %v2713, %v3039
        %v3100 = vadd.f32 %v2714, %v3042
        %v3101 = vadd.f32 %v2715, %v3047
        %v3102 = vadd.f32 %v2716, %v3050
        %v3103 = vadd.f32 %v2717, %v3055
        %v3104 = vadd.f32 %v2718, %v3058
        %v3105 = vadd.f32 %v2719, %v3063
        %v3106 = vadd.f32 %v2720, %v3066
        %v3107 = vadd.f32 %v2721, %v3071
        %v3108 = vadd.f32 %v2722, %v3074
        %v3109 = vld [vmem:[%s302] sm:$0xf]
        %v3110 = vld [vmem:[%s302 + $0x4] sm:$0xf]
        %v3111 = vld [vmem:[%s302 + $0x8] sm:$0x1]
        %v3112 = vld [vmem:[%s302 + $0xc] sm:$0xf]
        %v3113 = vld [vmem:[%s302 + $0x10] sm:$0xf]
        %v3114 = vld [vmem:[%s302 + $0x14] sm:$0x1]
        %v3115 = vld [vmem:[%s302 + $0x18] sm:$0xf]
        %v3116 = vld [vmem:[%s302 + $0x1c] sm:$0xf]
        %v3117 = vld [vmem:[%s302 + $0x20] sm:$0x1]
        %v3118 = vld [vmem:[%s302 + $0x24] sm:$0xf]
        %v3119 = vld [vmem:[%s302 + $0x28] sm:$0xf]
        %v3120 = vld [vmem:[%s302 + $0x2c] sm:$0x1]
        %v3121 = vld [vmem:[%s302 + $0x30] sm:$0xf]
        %v3122 = vld [vmem:[%s302 + $0x34] sm:$0xf]
        %v3123 = vld [vmem:[%s302 + $0x38] sm:$0x1]
        %v3124 = vld [vmem:[%s302 + $0x3c] sm:$0xf]
        %v3125 = vld [vmem:[%s302 + $0x40] sm:$0xf]
        %v3126 = vld [vmem:[%s302 + $0x44] sm:$0x1]
        %v3127 = vld [vmem:[%s302 + $0x48] sm:$0xf]
        %v3128 = vld [vmem:[%s302 + $0x4c] sm:$0xf]
        %v3129 = vld [vmem:[%s302 + $0x50] sm:$0x1]
        %v3130 = vld [vmem:[%s302 + $0x54] sm:$0xf]
        %v3131 = vld [vmem:[%s302 + $0x58] sm:$0xf]
        %v3132 = vld [vmem:[%s302 + $0x5c] sm:$0x1]
        %v3133 = vld [vmem:[%s302 + $0x60] sm:$0xf]
        %v3134 = vld [vmem:[%s302 + $0x64] sm:$0xf]
        %v3135 = vld [vmem:[%s302 + $0x68] sm:$0x1]
        %v3136 = vld [vmem:[%s302 + $0x6c] sm:$0xf]
        %v3137 = vld [vmem:[%s302 + $0x70] sm:$0xf]
        %v3138 = vld [vmem:[%s302 + $0x74] sm:$0x1]
        %v3139 = vld [vmem:[%s302 + $0x78] sm:$0xf]
        %v3140 = vld [vmem:[%s302 + $0x7c] sm:$0xf]
        %v3141 = vld [vmem:[%s302 + $0x80] sm:$0x1]
        %v3142 = vld [vmem:[%s302 + $0x84] sm:$0xf]
        %v3143 = vld [vmem:[%s302 + $0x88] sm:$0xf]
        %v3144 = vld [vmem:[%s302 + $0x8c] sm:$0x1]
        %v3145 = vld [vmem:[%s302 + $0x90] sm:$0xf]
        %v3146 = vld [vmem:[%s302 + $0x94] sm:$0xf]
        %v3147 = vld [vmem:[%s302 + $0x98] sm:$0x1]
        %v3148 = vld [vmem:[%s302 + $0x9c] sm:$0xf]
        %v3149 = vld [vmem:[%s302 + $0xa0] sm:$0xf]
        %v3150 = vld [vmem:[%s302 + $0xa4] sm:$0x1]
        %v3151 = vld [vmem:[%s302 + $0xa8] sm:$0xf]
        %v3152 = vld [vmem:[%s302 + $0xac] sm:$0xf]
        %v3153 = vld [vmem:[%s302 + $0xb0] sm:$0x1]
        %v3154 = vld [vmem:[%s302 + $0xb4] sm:$0xf]
        %v3155 = vld [vmem:[%s302 + $0xb8] sm:$0xf]
        %v3156 = vld [vmem:[%s302 + $0xbc] sm:$0x1]
        %v3158 = vshrl.u32 %v3109, 16
        %v3160 = vrot.slane %v3158, 4
        %v3161 = vshll.u32 %v3109, 16
        %v3163 = vrot.slane %v3161, 5
        %v3164 = vor.u32 %v3160, %v3163
        %v3165 = vrot.slane %v3164, 4
        %v3167 = vshll.u32 %v3110, 16
        %v3169 = vrot.slane %v3167, 5
        %v3170 = vsel %vm1258, %v3165, %v3169
        %v3171 = vshrl.u32 %v3110, 16
        %v3173 = vrot.slane %v3171, 4
        %v3174 = vor.u32 %v3173, %v3169
        %v3175 = vrot.slane %v3174, 4
        %v3177 = vshll.u32 %v3111, 16
        %v3179 = vrot.slane %v3177, 5
        %v3180 = vsel %vm1258, %v3175, %v3179
        %v3182 = vshrl.u32 %v3112, 16
        %v3184 = vrot.slane %v3182, 4
        %v3185 = vshll.u32 %v3112, 16
        %v3187 = vrot.slane %v3185, 5
        %v3188 = vor.u32 %v3184, %v3187
        %v3189 = vrot.slane %v3188, 4
        %v3191 = vshll.u32 %v3113, 16
        %v3193 = vrot.slane %v3191, 5
        %v3194 = vsel %vm1258, %v3189, %v3193
        %v3195 = vshrl.u32 %v3113, 16
        %v3197 = vrot.slane %v3195, 4
        %v3198 = vor.u32 %v3197, %v3193
        %v3199 = vrot.slane %v3198, 4
        %v3201 = vshll.u32 %v3114, 16
        %v3203 = vrot.slane %v3201, 5
        %v3204 = vsel %vm1258, %v3199, %v3203
        %v3206 = vshrl.u32 %v3115, 16
        %v3208 = vrot.slane %v3206, 4
        %v3209 = vshll.u32 %v3115, 16
        %v3211 = vrot.slane %v3209, 5
        %v3212 = vor.u32 %v3208, %v3211
        %v3213 = vrot.slane %v3212, 4
        %v3215 = vshll.u32 %v3116, 16
        %v3217 = vrot.slane %v3215, 5
        %v3218 = vsel %vm1258, %v3213, %v3217
        %v3219 = vshrl.u32 %v3116, 16
        %v3221 = vrot.slane %v3219, 4
        %v3222 = vor.u32 %v3221, %v3217
        %v3223 = vrot.slane %v3222, 4
        %v3225 = vshll.u32 %v3117, 16
        %v3227 = vrot.slane %v3225, 5
        %v3228 = vsel %vm1258, %v3223, %v3227
        %v3230 = vshrl.u32 %v3118, 16
        %v3232 = vrot.slane %v3230, 4
        %v3233 = vshll.u32 %v3118, 16
        %v3235 = vrot.slane %v3233, 5
        %v3236 = vor.u32 %v3232, %v3235
        %v3237 = vrot.slane %v3236, 4
        %v3239 = vshll.u32 %v3119, 16
        %v3241 = vrot.slane %v3239, 5
        %v3242 = vsel %vm1258, %v3237, %v3241
        %v3243 = vshrl.u32 %v3119, 16
        %v3245 = vrot.slane %v3243, 4
        %v3246 = vor.u32 %v3245, %v3241
        %v3247 = vrot.slane %v3246, 4
        %v3249 = vshll.u32 %v3120, 16
        %v3251 = vrot.slane %v3249, 5
        %v3252 = vsel %vm1258, %v3247, %v3251
        %v3254 = vshrl.u32 %v3121, 16
        %v3256 = vrot.slane %v3254, 4
        %v3257 = vshll.u32 %v3121, 16
        %v3259 = vrot.slane %v3257, 5
        %v3260 = vor.u32 %v3256, %v3259
        %v3261 = vrot.slane %v3260, 4
        %v3263 = vshll.u32 %v3122, 16
        %v3265 = vrot.slane %v3263, 5
        %v3266 = vsel %vm1258, %v3261, %v3265
        %v3267 = vshrl.u32 %v3122, 16
        %v3269 = vrot.slane %v3267, 4
        %v3270 = vor.u32 %v3269, %v3265
        %v3271 = vrot.slane %v3270, 4
        %v3273 = vshll.u32 %v3123, 16
        %v3275 = vrot.slane %v3273, 5
        %v3276 = vsel %vm1258, %v3271, %v3275
        %v3278 = vshrl.u32 %v3124, 16
        %v3280 = vrot.slane %v3278, 4
        %v3281 = vshll.u32 %v3124, 16
        %v3283 = vrot.slane %v3281, 5
        %v3284 = vor.u32 %v3280, %v3283
        %v3285 = vrot.slane %v3284, 4
        %v3287 = vshll.u32 %v3125, 16
        %v3289 = vrot.slane %v3287, 5
        %v3290 = vsel %vm1258, %v3285, %v3289
        %v3291 = vshrl.u32 %v3125, 16
        %v3293 = vrot.slane %v3291, 4
        %v3294 = vor.u32 %v3293, %v3289
        %v3295 = vrot.slane %v3294, 4
        %v3297 = vshll.u32 %v3126, 16
        %v3299 = vrot.slane %v3297, 5
        %v3300 = vsel %vm1258, %v3295, %v3299
        %v3302 = vshrl.u32 %v3127, 16
        %v3304 = vrot.slane %v3302, 4
        %v3305 = vshll.u32 %v3127, 16
        %v3307 = vrot.slane %v3305, 5
        %v3308 = vor.u32 %v3304, %v3307
        %v3309 = vrot.slane %v3308, 4
        %v3311 = vshll.u32 %v3128, 16
        %v3313 = vrot.slane %v3311, 5
        %v3314 = vsel %vm1258, %v3309, %v3313
        %v3315 = vshrl.u32 %v3128, 16
        %v3317 = vrot.slane %v3315, 4
        %v3318 = vor.u32 %v3317, %v3313
        %v3319 = vrot.slane %v3318, 4
        %v3321 = vshll.u32 %v3129, 16
        %v3323 = vrot.slane %v3321, 5
        %v3324 = vsel %vm1258, %v3319, %v3323
        %v3326 = vshrl.u32 %v3130, 16
        %v3328 = vrot.slane %v3326, 4
        %v3329 = vshll.u32 %v3130, 16
        %v3331 = vrot.slane %v3329, 5
        %v3332 = vor.u32 %v3328, %v3331
        %v3333 = vrot.slane %v3332, 4
        %v3335 = vshll.u32 %v3131, 16
        %v3337 = vrot.slane %v3335, 5
        %v3338 = vsel %vm1258, %v3333, %v3337
        %v3339 = vshrl.u32 %v3131, 16
        %v3341 = vrot.slane %v3339, 4
        %v3342 = vor.u32 %v3341, %v3337
        %v3343 = vrot.slane %v3342, 4
        %v3345 = vshll.u32 %v3132, 16
        %v3347 = vrot.slane %v3345, 5
        %v3348 = vsel %vm1258, %v3343, %v3347
        %v3350 = vshrl.u32 %v3133, 16
        %v3352 = vrot.slane %v3350, 4
        %v3353 = vshll.u32 %v3133, 16
        %v3355 = vrot.slane %v3353, 5
        %v3356 = vor.u32 %v3352, %v3355
        %v3357 = vrot.slane %v3356, 4
        %v3359 = vshll.u32 %v3134, 16
        %v3361 = vrot.slane %v3359, 5
        %v3362 = vsel %vm1258, %v3357, %v3361
        %v3363 = vshrl.u32 %v3134, 16
        %v3365 = vrot.slane %v3363, 4
        %v3366 = vor.u32 %v3365, %v3361
        %v3367 = vrot.slane %v3366, 4
        %v3369 = vshll.u32 %v3135, 16
        %v3371 = vrot.slane %v3369, 5
        %v3372 = vsel %vm1258, %v3367, %v3371
        %v3374 = vshrl.u32 %v3136, 16
        %v3376 = vrot.slane %v3374, 4
        %v3377 = vshll.u32 %v3136, 16
        %v3379 = vrot.slane %v3377, 5
        %v3380 = vor.u32 %v3376, %v3379
        %v3381 = vrot.slane %v3380, 4
        %v3383 = vshll.u32 %v3137, 16
        %v3385 = vrot.slane %v3383, 5
        %v3386 = vsel %vm1258, %v3381, %v3385
        %v3387 = vshrl.u32 %v3137, 16
        %v3389 = vrot.slane %v3387, 4
        %v3390 = vor.u32 %v3389, %v3385
        %v3391 = vrot.slane %v3390, 4
        %v3393 = vshll.u32 %v3138, 16
        %v3395 = vrot.slane %v3393, 5
        %v3396 = vsel %vm1258, %v3391, %v3395
        %v3398 = vshrl.u32 %v3139, 16
        %v3400 = vrot.slane %v3398, 4
        %v3401 = vshll.u32 %v3139, 16
        %v3403 = vrot.slane %v3401, 5
        %v3404 = vor.u32 %v3400, %v3403
        %v3405 = vrot.slane %v3404, 4
        %v3407 = vshll.u32 %v3140, 16
        %v3409 = vrot.slane %v3407, 5
        %v3410 = vsel %vm1258, %v3405, %v3409
        %v3411 = vshrl.u32 %v3140, 16
        %v3413 = vrot.slane %v3411, 4
        %v3414 = vor.u32 %v3413, %v3409
        %v3415 = vrot.slane %v3414, 4
        %v3417 = vshll.u32 %v3141, 16
        %v3419 = vrot.slane %v3417, 5
        %v3420 = vsel %vm1258, %v3415, %v3419
        %v3422 = vshrl.u32 %v3142, 16
        %v3424 = vrot.slane %v3422, 4
        %v3425 = vshll.u32 %v3142, 16
        %v3427 = vrot.slane %v3425, 5
        %v3428 = vor.u32 %v3424, %v3427
        %v3429 = vrot.slane %v3428, 4
        %v3431 = vshll.u32 %v3143, 16
        %v3433 = vrot.slane %v3431, 5
        %v3434 = vsel %vm1258, %v3429, %v3433
        %v3435 = vshrl.u32 %v3143, 16
        %v3437 = vrot.slane %v3435, 4
        %v3438 = vor.u32 %v3437, %v3433
        %v3439 = vrot.slane %v3438, 4
        %v3441 = vshll.u32 %v3144, 16
        %v3443 = vrot.slane %v3441, 5
        %v3444 = vsel %vm1258, %v3439, %v3443
        %v3446 = vshrl.u32 %v3145, 16
        %v3448 = vrot.slane %v3446, 4
        %v3449 = vshll.u32 %v3145, 16
        %v3451 = vrot.slane %v3449, 5
        %v3452 = vor.u32 %v3448, %v3451
        %v3453 = vrot.slane %v3452, 4
        %v3455 = vshll.u32 %v3146, 16
        %v3457 = vrot.slane %v3455, 5
        %v3458 = vsel %vm1258, %v3453, %v3457
        %v3459 = vshrl.u32 %v3146, 16
        %v3461 = vrot.slane %v3459, 4
        %v3462 = vor.u32 %v3461, %v3457
        %v3463 = vrot.slane %v3462, 4
        %v3465 = vshll.u32 %v3147, 16
        %v3467 = vrot.slane %v3465, 5
        %v3468 = vsel %vm1258, %v3463, %v3467
        %v3470 = vshrl.u32 %v3148, 16
        %v3472 = vrot.slane %v3470, 4
        %v3473 = vshll.u32 %v3148, 16
        %v3475 = vrot.slane %v3473, 5
        %v3476 = vor.u32 %v3472, %v3475
        %v3477 = vrot.slane %v3476, 4
        %v3479 = vshll.u32 %v3149, 16
        %v3481 = vrot.slane %v3479, 5
        %v3482 = vsel %vm1258, %v3477, %v3481
        %v3483 = vshrl.u32 %v3149, 16
        %v3485 = vrot.slane %v3483, 4
        %v3486 = vor.u32 %v3485, %v3481
        %v3487 = vrot.slane %v3486, 4
        %v3489 = vshll.u32 %v3150, 16
        %v3491 = vrot.slane %v3489, 5
        %v3492 = vsel %vm1258, %v3487, %v3491
        %v3494 = vshrl.u32 %v3151, 16
        %v3496 = vrot.slane %v3494, 4
        %v3497 = vshll.u32 %v3151, 16
        %v3499 = vrot.slane %v3497, 5
        %v3500 = vor.u32 %v3496, %v3499
        %v3501 = vrot.slane %v3500, 4
        %v3503 = vshll.u32 %v3152, 16
        %v3505 = vrot.slane %v3503, 5
        %v3506 = vsel %vm1258, %v3501, %v3505
        %v3507 = vshrl.u32 %v3152, 16
        %v3509 = vrot.slane %v3507, 4
        %v3510 = vor.u32 %v3509, %v3505
        %v3511 = vrot.slane %v3510, 4
        %v3513 = vshll.u32 %v3153, 16
        %v3515 = vrot.slane %v3513, 5
        %v3516 = vsel %vm1258, %v3511, %v3515
        %v3518 = vshrl.u32 %v3154, 16
        %v3520 = vrot.slane %v3518, 4
        %v3521 = vshll.u32 %v3154, 16
        %v3523 = vrot.slane %v3521, 5
        %v3524 = vor.u32 %v3520, %v3523
        %v3525 = vrot.slane %v3524, 4
        %v3527 = vshll.u32 %v3155, 16
        %v3529 = vrot.slane %v3527, 5
        %v3530 = vsel %vm1258, %v3525, %v3529
        %v3531 = vshrl.u32 %v3155, 16
        %v3533 = vrot.slane %v3531, 4
        %v3534 = vor.u32 %v3533, %v3529
        %v3535 = vrot.slane %v3534, 4
        %v3537 = vshll.u32 %v3156, 16
        %v3539 = vrot.slane %v3537, 5
        %v3540 = vsel %vm1258, %v3535, %v3539
        %s3541 = scalar_lea.vmem %s1, 256
        %v3542 = vld [vmem:[%s3541] sm:$0xf]
        %v3543 = vld [vmem:[%s3541 + $0x4] sm:$0xf]
        %v3544 = vld [vmem:[%s3541 + $0x8] sm:$0xf]
        %v3545 = vld [vmem:[%s3541 + $0xc] sm:$0xf]
        %v3546 = vld [vmem:[%s3541 + $0x10] sm:$0xf]
        %v3547 = vld [vmem:[%s3541 + $0x14] sm:$0xf]
        %v3548 = vld [vmem:[%s3541 + $0x18] sm:$0xf]
        %v3549 = vld [vmem:[%s3541 + $0x1c] sm:$0xf]
        %v3550 = vld [vmem:[%s3541 + $0x20] sm:$0xf]
        %v3551 = vld [vmem:[%s3541 + $0x24] sm:$0xf]
        %v3552 = vld [vmem:[%s3541 + $0x28] sm:$0xf]
        %v3553 = vld [vmem:[%s3541 + $0x2c] sm:$0xf]
        %v3554 = vld [vmem:[%s3541 + $0x30] sm:$0xf]
        %v3555 = vld [vmem:[%s3541 + $0x34] sm:$0xf]
        %v3556 = vld [vmem:[%s3541 + $0x38] sm:$0xf]
        %v3557 = vld [vmem:[%s3541 + $0x3c] sm:$0xf]
        %v3558 = vunpack.c.l.b16 %v3170
        %v3559 = vunpack.c.l.b16 %v3180
        %v3560 = vunpack.c.l.b16 %v3194
        %v3561 = vunpack.c.l.b16 %v3204
        %v3562 = vunpack.c.l.b16 %v3218
        %v3563 = vunpack.c.l.b16 %v3228
        %v3564 = vunpack.c.l.b16 %v3242
        %v3565 = vunpack.c.l.b16 %v3252
        %v3566 = vunpack.c.l.b16 %v3266
        %v3567 = vunpack.c.l.b16 %v3276
        %v3568 = vunpack.c.l.b16 %v3290
        %v3569 = vunpack.c.l.b16 %v3300
        %v3570 = vunpack.c.l.b16 %v3314
        %v3571 = vunpack.c.l.b16 %v3324
        %v3572 = vunpack.c.l.b16 %v3338
        %v3573 = vunpack.c.l.b16 %v3348
        %v3574 = vunpack.c.l.b16 %v3362
        %v3575 = vunpack.c.l.b16 %v3372
        %v3576 = vunpack.c.l.b16 %v3386
        %v3577 = vunpack.c.l.b16 %v3396
        %v3578 = vunpack.c.l.b16 %v3410
        %v3579 = vunpack.c.l.b16 %v3420
        %v3580 = vunpack.c.l.b16 %v3434
        %v3581 = vunpack.c.l.b16 %v3444
        %v3582 = vunpack.c.l.b16 %v3458
        %v3583 = vunpack.c.l.b16 %v3468
        %v3584 = vunpack.c.l.b16 %v3482
        %v3585 = vunpack.c.l.b16 %v3492
        %v3586 = vunpack.c.l.b16 %v3506
        %v3587 = vunpack.c.l.b16 %v3516
        %v3588 = vunpack.c.l.b16 %v3530
        %v3589 = vunpack.c.l.b16 %v3540
        %v3590 = vpack.c.b16 %v3559, %v3558
        %v3591 = vpack.c.b16 %v3561, %v3560
        %v3592 = vpack.c.b16 %v3563, %v3562
        %v3593 = vpack.c.b16 %v3565, %v3564
        %v3594 = vpack.c.b16 %v3567, %v3566
        %v3595 = vpack.c.b16 %v3569, %v3568
        %v3596 = vpack.c.b16 %v3571, %v3570
        %v3597 = vpack.c.b16 %v3573, %v3572
        %v3598 = vpack.c.b16 %v3575, %v3574
        %v3599 = vpack.c.b16 %v3577, %v3576
        %v3600 = vpack.c.b16 %v3579, %v3578
        %v3601 = vpack.c.b16 %v3581, %v3580
        %v3602 = vpack.c.b16 %v3583, %v3582
        %v3603 = vpack.c.b16 %v3585, %v3584
        %v3604 = vpack.c.b16 %v3587, %v3586
        %v3605 = vpack.c.b16 %v3589, %v3588
        %v3638 = vunpack.c.l.b16 %v3542
        %v3639 = vunpack.c.l.b16 %v3543
        %v3640 = vunpack.c.l.b16 %v3544
        %v3641 = vunpack.c.l.b16 %v3545
        %v3642 = vunpack.c.l.b16 %v3546
        %v3643 = vunpack.c.l.b16 %v3547
        %v3644 = vunpack.c.l.b16 %v3548
        %v3645 = vunpack.c.l.b16 %v3549
        %v3646 = vunpack.c.l.b16 %v3550
        %v3647 = vunpack.c.l.b16 %v3551
        %v3648 = vunpack.c.l.b16 %v3552
        %v3649 = vunpack.c.l.b16 %v3553
        %v3650 = vunpack.c.l.b16 %v3554
        %v3651 = vunpack.c.l.b16 %v3555
        %v3652 = vunpack.c.l.b16 %v3556
        %v3653 = vunpack.c.l.b16 %v3557
        %v3654 = vpack.c.b16 %v3639, %v3638
        %v3655 = vpack.c.b16 %v3641, %v3640
        %v3656 = vpack.c.b16 %v3643, %v3642
        %v3657 = vpack.c.b16 %v3645, %v3644
        %v3658 = vpack.c.b16 %v3647, %v3646
        %v3659 = vpack.c.b16 %v3649, %v3648
        %v3660 = vpack.c.b16 %v3651, %v3650
        %v3661 = vpack.c.b16 %v3653, %v3652
        %3670 = vmatprep.subr.bf16.mxu0 0
        %3671 = vmatpush1.bf16.msra.mxu0 %v3661
        %3672 = vmatprep.subr.bf16.mxu0 0
        %3673 = vmatpush1.bf16.msra.mxu0 %v3660
        %3674 = vmatprep.subr.bf16.mxu0 0
        %3675 = vmatpush1.bf16.msra.mxu0 %v3659
        %3676 = vmatprep.subr.bf16.mxu0 0
        %3677 = vmatpush1.bf16.msra.mxu0 %v3658
        %3678 = vmatprep.subr.bf16.mxu0 0
        %3679 = vmatpush1.bf16.msra.mxu0 %v3657
        %3680 = vmatprep.subr.bf16.mxu0 0
        %3681 = vmatpush1.bf16.msra.mxu0 %v3656
        %3682 = vmatprep.subr.bf16.mxu0 0
        %3683 = vmatpush1.bf16.msra.mxu0 %v3655
        %3684 = vmatprep.subr.bf16.mxu0 0
        %3685 = vmatpush1.bf16.msra.mxu0 %v3654
        %3686 = vmatprep.subr.bf16.mxu0 0
        %3687 = vmatpush2.bf16.msra.mxu0 0
        %3688 = vmatprep.subr.bf16.mxu0 0
        %3689 = vmatpush2.bf16.msra.mxu0 0
        %3690 = vmatprep.subr.bf16.mxu0 0
        %3691 = vmatpush2.bf16.msra.mxu0 0
        %3692 = vmatprep.subr.bf16.mxu0 0
        %3693 = vmatpush2.bf16.msra.mxu0 0
        %3694 = vmatprep.subr.bf16.mxu0 0
        %3695 = vmatpush2.bf16.msra.mxu0 0
        %3696 = vmatprep.subr.bf16.mxu0 0
        %3697 = vmatpush2.bf16.msra.mxu0 0
        %3698 = vmatprep.subr.bf16.mxu0 0
        %3699 = vmatpush2.bf16.msra.mxu0 0
        %3700 = vmatprep.subr.bf16.mxu0 0
        %3701 = vmatpush2.bf16.msra.mxu0 0
        %3702 = vmatprep.mubr.bf16.mxu0 0
        %3703 = vmatmul.mubr.bf16.gmra.mxu0 %v3590
        %v3704 = vpop.f32.mrf.mxu0
        %v3705 = vadd.f32 0.0, %v3704
        %v3706 = vpop.f32.mrf.mxu0
        %v3707 = vpop.f32.mrf.mxu0
        %v3708 = vadd.f32 0.0, %v3707
        %v3709 = vpop.f32.mrf.mxu0
        %3710 = vmatprep.mubr.bf16.mxu0 0
        %3711 = vmatmul.mubr.bf16.gmra.mxu0 %v3591
        %v3712 = vpop.f32.mrf.mxu0
        %v3713 = vadd.f32 0.0, %v3712
        %v3714 = vpop.f32.mrf.mxu0
        %v3715 = vpop.f32.mrf.mxu0
        %v3716 = vadd.f32 0.0, %v3715
        %v3717 = vpop.f32.mrf.mxu0
        %3718 = vmatprep.mubr.bf16.mxu0 0
        %3719 = vmatmul.mubr.bf16.gmra.mxu0 %v3592
        %v3720 = vpop.f32.mrf.mxu0
        %v3721 = vadd.f32 0.0, %v3720
        %v3722 = vpop.f32.mrf.mxu0
        %v3723 = vpop.f32.mrf.mxu0
        %v3724 = vadd.f32 0.0, %v3723
        %v3725 = vpop.f32.mrf.mxu0
        %3726 = vmatprep.mubr.bf16.mxu0 0
        %3727 = vmatmul.mubr.bf16.gmra.mxu0 %v3593
        %v3728 = vpop.f32.mrf.mxu0
        %v3729 = vadd.f32 0.0, %v3728
        %v3730 = vpop.f32.mrf.mxu0
        %v3731 = vpop.f32.mrf.mxu0
        %v3732 = vadd.f32 0.0, %v3731
        %v3733 = vpop.f32.mrf.mxu0
        %3734 = vmatprep.mubr.bf16.mxu0 0
        %3735 = vmatmul.mubr.bf16.gmra.mxu0 %v3594
        %v3736 = vpop.f32.mrf.mxu0
        %v3737 = vadd.f32 0.0, %v3736
        %v3738 = vpop.f32.mrf.mxu0
        %v3739 = vpop.f32.mrf.mxu0
        %v3740 = vadd.f32 0.0, %v3739
        %v3741 = vpop.f32.mrf.mxu0
        %3742 = vmatprep.mubr.bf16.mxu0 0
        %3743 = vmatmul.mubr.bf16.gmra.mxu0 %v3595
        %v3744 = vpop.f32.mrf.mxu0
        %v3745 = vadd.f32 0.0, %v3744
        %v3746 = vpop.f32.mrf.mxu0
        %v3747 = vpop.f32.mrf.mxu0
        %v3748 = vadd.f32 0.0, %v3747
        %v3749 = vpop.f32.mrf.mxu0
        %3750 = vmatprep.mubr.bf16.mxu0 0
        %3751 = vmatmul.mubr.bf16.gmra.mxu0 %v3596
        %v3752 = vpop.f32.mrf.mxu0
        %v3753 = vadd.f32 0.0, %v3752
        %v3754 = vpop.f32.mrf.mxu0
        %v3755 = vpop.f32.mrf.mxu0
        %v3756 = vadd.f32 0.0, %v3755
        %v3757 = vpop.f32.mrf.mxu0
        %3758 = vmatprep.mubr.bf16.mxu0 0
        %3759 = vmatmul.mubr.bf16.gmra.mxu0 %v3597
        %v3760 = vpop.f32.mrf.mxu0
        %v3761 = vadd.f32 0.0, %v3760
        %v3762 = vpop.f32.mrf.mxu0
        %v3763 = vpop.f32.mrf.mxu0
        %v3764 = vadd.f32 0.0, %v3763
        %v3765 = vpop.f32.mrf.mxu0
        %3766 = vmatprep.mubr.bf16.mxu0 0
        %3767 = vmatmul.mubr.bf16.gmra.mxu0 %v3598
        %v3768 = vpop.f32.mrf.mxu0
        %v3769 = vadd.f32 0.0, %v3768
        %v3770 = vpop.f32.mrf.mxu0
        %v3771 = vpop.f32.mrf.mxu0
        %v3772 = vadd.f32 0.0, %v3771
        %v3773 = vpop.f32.mrf.mxu0
        %3774 = vmatprep.mubr.bf16.mxu0 0
        %3775 = vmatmul.mubr.bf16.gmra.mxu0 %v3599
        %v3776 = vpop.f32.mrf.mxu0
        %v3777 = vadd.f32 0.0, %v3776
        %v3778 = vpop.f32.mrf.mxu0
        %v3779 = vpop.f32.mrf.mxu0
        %v3780 = vadd.f32 0.0, %v3779
        %v3781 = vpop.f32.mrf.mxu0
        %3782 = vmatprep.mubr.bf16.mxu0 0
        %3783 = vmatmul.mubr.bf16.gmra.mxu0 %v3600
        %v3784 = vpop.f32.mrf.mxu0
        %v3785 = vadd.f32 0.0, %v3784
        %v3786 = vpop.f32.mrf.mxu0
        %v3787 = vpop.f32.mrf.mxu0
        %v3788 = vadd.f32 0.0, %v3787
        %v3789 = vpop.f32.mrf.mxu0
        %3790 = vmatprep.mubr.bf16.mxu0 0
        %3791 = vmatmul.mubr.bf16.gmra.mxu0 %v3601
        %v3792 = vpop.f32.mrf.mxu0
        %v3793 = vadd.f32 0.0, %v3792
        %v3794 = vpop.f32.mrf.mxu0
        %v3795 = vpop.f32.mrf.mxu0
        %v3796 = vadd.f32 0.0, %v3795
        %v3797 = vpop.f32.mrf.mxu0
        %3798 = vmatprep.mubr.bf16.mxu0 0
        %3799 = vmatmul.mubr.bf16.gmra.mxu0 %v3602
        %v3800 = vpop.f32.mrf.mxu0
        %v3801 = vadd.f32 0.0, %v3800
        %v3802 = vpop.f32.mrf.mxu0
        %v3803 = vpop.f32.mrf.mxu0
        %v3804 = vadd.f32 0.0, %v3803
        %v3805 = vpop.f32.mrf.mxu0
        %3806 = vmatprep.mubr.bf16.mxu0 0
        %3807 = vmatmul.mubr.bf16.gmra.mxu0 %v3603
        %v3808 = vpop.f32.mrf.mxu0
        %v3809 = vadd.f32 0.0, %v3808
        %v3810 = vpop.f32.mrf.mxu0
        %v3811 = vpop.f32.mrf.mxu0
        %v3812 = vadd.f32 0.0, %v3811
        %v3813 = vpop.f32.mrf.mxu0
        %3814 = vmatprep.mubr.bf16.mxu0 0
        %3815 = vmatmul.mubr.bf16.gmra.mxu0 %v3604
        %v3816 = vpop.f32.mrf.mxu0
        %v3817 = vadd.f32 0.0, %v3816
        %v3818 = vpop.f32.mrf.mxu0
        %v3819 = vpop.f32.mrf.mxu0
        %v3820 = vadd.f32 0.0, %v3819
        %v3821 = vpop.f32.mrf.mxu0
        %3822 = vmatprep.mubr.bf16.mxu0 0
        %3823 = vmatmul.mubr.bf16.gmra.mxu0 %v3605
        %v3824 = vpop.f32.mrf.mxu0
        %v3825 = vadd.f32 0.0, %v3824
        %v3826 = vpop.f32.mrf.mxu0
        %v3827 = vpop.f32.mrf.mxu0
        %v3828 = vadd.f32 0.0, %v3827
        %v3829 = vpop.f32.mrf.mxu0
        %3830 = vdwg.mxu0
        %v3831 = vadd.f32 %v3077, %v3705
        %v3832 = vadd.f32 %v3078, %v3708
        %v3833 = vadd.f32 %v3079, %v3713
        %v3834 = vadd.f32 %v3080, %v3716
        %v3835 = vadd.f32 %v3081, %v3721
        %v3836 = vadd.f32 %v3082, %v3724
        %v3837 = vadd.f32 %v3083, %v3729
        %v3838 = vadd.f32 %v3084, %v3732
        %v3839 = vadd.f32 %v3085, %v3737
        %v3840 = vadd.f32 %v3086, %v3740
        %v3841 = vadd.f32 %v3087, %v3745
        %v3842 = vadd.f32 %v3088, %v3748
        %v3843 = vadd.f32 %v3089, %v3753
        %v3844 = vadd.f32 %v3090, %v3756
        %v3845 = vadd.f32 %v3091, %v3761
        %v3846 = vadd.f32 %v3092, %v3764
        %v3847 = vadd.f32 %v3093, %v3769
        %v3848 = vadd.f32 %v3094, %v3772
        %v3849 = vadd.f32 %v3095, %v3777
        %v3850 = vadd.f32 %v3096, %v3780
        %v3851 = vadd.f32 %v3097, %v3785
        %v3852 = vadd.f32 %v3098, %v3788
        %v3853 = vadd.f32 %v3099, %v3793
        %v3854 = vadd.f32 %v3100, %v3796
        %v3855 = vadd.f32 %v3101, %v3801
        %v3856 = vadd.f32 %v3102, %v3804
        %v3857 = vadd.f32 %v3103, %v3809
        %v3858 = vadd.f32 %v3104, %v3812
        %v3859 = vadd.f32 %v3105, %v3817
        %v3860 = vadd.f32 %v3106, %v3820
        %v3861 = vadd.f32 %v3107, %v3825
        %v3862 = vadd.f32 %v3108, %v3828
        %v3863 = vld [vmem:[%s302] sm:$0xe]
        %v3864 = vld [vmem:[%s302 + $0xc] sm:$0xe]
        %v3865 = vld [vmem:[%s302 + $0x18] sm:$0xe]
        %v3866 = vld [vmem:[%s302 + $0x24] sm:$0xe]
        %v3867 = vld [vmem:[%s302 + $0x30] sm:$0xe]
        %v3868 = vld [vmem:[%s302 + $0x3c] sm:$0xe]
        %v3869 = vld [vmem:[%s302 + $0x48] sm:$0xe]
        %v3870 = vld [vmem:[%s302 + $0x54] sm:$0xe]
        %v3871 = vld [vmem:[%s302 + $0x60] sm:$0xe]
        %v3872 = vld [vmem:[%s302 + $0x6c] sm:$0xe]
        %v3873 = vld [vmem:[%s302 + $0x78] sm:$0xe]
        %v3874 = vld [vmem:[%s302 + $0x84] sm:$0xe]
        %v3875 = vld [vmem:[%s302 + $0x90] sm:$0xe]
        %v3876 = vld [vmem:[%s302 + $0x9c] sm:$0xe]
        %v3877 = vld [vmem:[%s302 + $0xa8] sm:$0xe]
        %v3878 = vld [vmem:[%s302 + $0xb4] sm:$0xe]
        %v3927 = vrot.slane %v3863, 5
        %v3928 = vrot.slane %v3927, 4
        %v3929 = vrot.slane %v3110, 5
        %v3930 = vsel %vm2288, %v3928, %v3929
        %v3931 = vrot.slane %v3929, 4
        %v3932 = vrot.slane %v3111, 5
        %v3933 = vsel %vm2288, %v3931, %v3932
        %v3934 = vrot.slane %v3864, 5
        %v3935 = vrot.slane %v3934, 4
        %v3936 = vrot.slane %v3113, 5
        %v3937 = vsel %vm2288, %v3935, %v3936
        %v3938 = vrot.slane %v3936, 4
        %v3939 = vrot.slane %v3114, 5
        %v3940 = vsel %vm2288, %v3938, %v3939
        %v3941 = vrot.slane %v3865, 5
        %v3942 = vrot.slane %v3941, 4
        %v3943 = vrot.slane %v3116, 5
        %v3944 = vsel %vm2288, %v3942, %v3943
        %v3945 = vrot.slane %v3943, 4
        %v3946 = vrot.slane %v3117, 5
        %v3947 = vsel %vm2288, %v3945, %v3946
        %v3948 = vrot.slane %v3866, 5
        %v3949 = vrot.slane %v3948, 4
        %v3950 = vrot.slane %v3119, 5
        %v3951 = vsel %vm2288, %v3949, %v3950
        %v3952 = vrot.slane %v3950, 4
        %v3953 = vrot.slane %v3120, 5
        %v3954 = vsel %vm2288, %v3952, %v3953
        %v3955 = vrot.slane %v3867, 5
        %v3956 = vrot.slane %v3955, 4
        %v3957 = vrot.slane %v3122, 5
        %v3958 = vsel %vm2288, %v3956, %v3957
        %v3959 = vrot.slane %v3957, 4
        %v3960 = vrot.slane %v3123, 5
        %v3961 = vsel %vm2288, %v3959, %v3960
        %v3962 = vrot.slane %v3868, 5
        %v3963 = vrot.slane %v3962, 4
        %v3964 = vrot.slane %v3125, 5
        %v3965 = vsel %vm2288, %v3963, %v3964
        %v3966 = vrot.slane %v3964, 4
        %v3967 = vrot.slane %v3126, 5
        %v3968 = vsel %vm2288, %v3966, %v3967
        %v3969 = vrot.slane %v3869, 5
        %v3970 = vrot.slane %v3969, 4
        %v3971 = vrot.slane %v3128, 5
        %v3972 = vsel %vm2288, %v3970, %v3971
        %v3973 = vrot.slane %v3971, 4
        %v3974 = vrot.slane %v3129, 5
        %v3975 = vsel %vm2288, %v3973, %v3974
        %v3976 = vrot.slane %v3870, 5
        %v3977 = vrot.slane %v3976, 4
        %v3978 = vrot.slane %v3131, 5
        %v3979 = vsel %vm2288, %v3977, %v3978
        %v3980 = vrot.slane %v3978, 4
        %v3981 = vrot.slane %v3132, 5
        %v3982 = vsel %vm2288, %v3980, %v3981
        %v3983 = vrot.slane %v3871, 5
        %v3984 = vrot.slane %v3983, 4
        %v3985 = vrot.slane %v3134, 5
        %v3986 = vsel %vm2288, %v3984, %v3985
        %v3987 = vrot.slane %v3985, 4
        %v3988 = vrot.slane %v3135, 5
        %v3989 = vsel %vm2288, %v3987, %v3988
        %v3990 = vrot.slane %v3872, 5
        %v3991 = vrot.slane %v3990, 4
        %v3992 = vrot.slane %v3137, 5
        %v3993 = vsel %vm2288, %v3991, %v3992
        %v3994 = vrot.slane %v3992, 4
        %v3995 = vrot.slane %v3138, 5
        %v3996 = vsel %vm2288, %v3994, %v3995
        %v3997 = vrot.slane %v3873, 5
        %v3998 = vrot.slane %v3997, 4
        %v3999 = vrot.slane %v3140, 5
        %v4000 = vsel %vm2288, %v3998, %v3999
        %v4001 = vrot.slane %v3999, 4
        %v4002 = vrot.slane %v3141, 5
        %v4003 = vsel %vm2288, %v4001, %v4002
        %v4004 = vrot.slane %v3874, 5
        %v4005 = vrot.slane %v4004, 4
        %v4006 = vrot.slane %v3143, 5
        %v4007 = vsel %vm2288, %v4005, %v4006
        %v4008 = vrot.slane %v4006, 4
        %v4009 = vrot.slane %v3144, 5
        %v4010 = vsel %vm2288, %v4008, %v4009
        %v4011 = vrot.slane %v3875, 5
        %v4012 = vrot.slane %v4011, 4
        %v4013 = vrot.slane %v3146, 5
        %v4014 = vsel %vm2288, %v4012, %v4013
        %v4015 = vrot.slane %v4013, 4
        %v4016 = vrot.slane %v3147, 5
        %v4017 = vsel %vm2288, %v4015, %v4016
        %v4018 = vrot.slane %v3876, 5
        %v4019 = vrot.slane %v4018, 4
        %v4020 = vrot.slane %v3149, 5
        %v4021 = vsel %vm2288, %v4019, %v4020
        %v4022 = vrot.slane %v4020, 4
        %v4023 = vrot.slane %v3150, 5
        %v4024 = vsel %vm2288, %v4022, %v4023
        %v4025 = vrot.slane %v3877, 5
        %v4026 = vrot.slane %v4025, 4
        %v4027 = vrot.slane %v3152, 5
        %v4028 = vsel %vm2288, %v4026, %v4027
        %v4029 = vrot.slane %v4027, 4
        %v4030 = vrot.slane %v3153, 5
        %v4031 = vsel %vm2288, %v4029, %v4030
        %v4032 = vrot.slane %v3878, 5
        %v4033 = vrot.slane %v4032, 4
        %v4034 = vrot.slane %v3155, 5
        %v4035 = vsel %vm2288, %v4033, %v4034
        %v4036 = vrot.slane %v4034, 4
        %v4037 = vrot.slane %v3156, 5
        %v4038 = vsel %vm2288, %v4036, %v4037
        %s4039 = scalar_lea.vmem %s1, 320
        %v4040 = vld [vmem:[%s4039] sm:$0xf]
        %v4041 = vld [vmem:[%s4039 + $0x4] sm:$0xf]
        %v4042 = vld [vmem:[%s4039 + $0x8] sm:$0xf]
        %v4043 = vld [vmem:[%s4039 + $0xc] sm:$0xf]
        %v4044 = vld [vmem:[%s4039 + $0x10] sm:$0xf]
        %v4045 = vld [vmem:[%s4039 + $0x14] sm:$0xf]
        %v4046 = vld [vmem:[%s4039 + $0x18] sm:$0xf]
        %v4047 = vld [vmem:[%s4039 + $0x1c] sm:$0xf]
        %v4048 = vld [vmem:[%s4039 + $0x20] sm:$0xf]
        %v4049 = vld [vmem:[%s4039 + $0x24] sm:$0xf]
        %v4050 = vld [vmem:[%s4039 + $0x28] sm:$0xf]
        %v4051 = vld [vmem:[%s4039 + $0x2c] sm:$0xf]
        %v4052 = vld [vmem:[%s4039 + $0x30] sm:$0xf]
        %v4053 = vld [vmem:[%s4039 + $0x34] sm:$0xf]
        %v4054 = vld [vmem:[%s4039 + $0x38] sm:$0xf]
        %v4055 = vld [vmem:[%s4039 + $0x3c] sm:$0xf]
        %v4056 = vunpack.c.l.b16 %v3930
        %v4057 = vunpack.c.l.b16 %v3933
        %v4058 = vunpack.c.l.b16 %v3937
        %v4059 = vunpack.c.l.b16 %v3940
        %v4060 = vunpack.c.l.b16 %v3944
        %v4061 = vunpack.c.l.b16 %v3947
        %v4062 = vunpack.c.l.b16 %v3951
        %v4063 = vunpack.c.l.b16 %v3954
        %v4064 = vunpack.c.l.b16 %v3958
        %v4065 = vunpack.c.l.b16 %v3961
        %v4066 = vunpack.c.l.b16 %v3965
        %v4067 = vunpack.c.l.b16 %v3968
        %v4068 = vunpack.c.l.b16 %v3972
        %v4069 = vunpack.c.l.b16 %v3975
        %v4070 = vunpack.c.l.b16 %v3979
        %v4071 = vunpack.c.l.b16 %v3982
        %v4072 = vunpack.c.l.b16 %v3986
        %v4073 = vunpack.c.l.b16 %v3989
        %v4074 = vunpack.c.l.b16 %v3993
        %v4075 = vunpack.c.l.b16 %v3996
        %v4076 = vunpack.c.l.b16 %v4000
        %v4077 = vunpack.c.l.b16 %v4003
        %v4078 = vunpack.c.l.b16 %v4007
        %v4079 = vunpack.c.l.b16 %v4010
        %v4080 = vunpack.c.l.b16 %v4014
        %v4081 = vunpack.c.l.b16 %v4017
        %v4082 = vunpack.c.l.b16 %v4021
        %v4083 = vunpack.c.l.b16 %v4024
        %v4084 = vunpack.c.l.b16 %v4028
        %v4085 = vunpack.c.l.b16 %v4031
        %v4086 = vunpack.c.l.b16 %v4035
        %v4087 = vunpack.c.l.b16 %v4038
        %v4088 = vpack.c.b16 %v4057, %v4056
        %v4089 = vpack.c.b16 %v4059, %v4058
        %v4090 = vpack.c.b16 %v4061, %v4060
        %v4091 = vpack.c.b16 %v4063, %v4062
        %v4092 = vpack.c.b16 %v4065, %v4064
        %v4093 = vpack.c.b16 %v4067, %v4066
        %v4094 = vpack.c.b16 %v4069, %v4068
        %v4095 = vpack.c.b16 %v4071, %v4070
        %v4096 = vpack.c.b16 %v4073, %v4072
        %v4097 = vpack.c.b16 %v4075, %v4074
        %v4098 = vpack.c.b16 %v4077, %v4076
        %v4099 = vpack.c.b16 %v4079, %v4078
        %v4100 = vpack.c.b16 %v4081, %v4080
        %v4101 = vpack.c.b16 %v4083, %v4082
        %v4102 = vpack.c.b16 %v4085, %v4084
        %v4103 = vpack.c.b16 %v4087, %v4086
        %v4136 = vunpack.c.l.b16 %v4040
        %v4137 = vunpack.c.l.b16 %v4041
        %v4138 = vunpack.c.l.b16 %v4042
        %v4139 = vunpack.c.l.b16 %v4043
        %v4140 = vunpack.c.l.b16 %v4044
        %v4141 = vunpack.c.l.b16 %v4045
        %v4142 = vunpack.c.l.b16 %v4046
        %v4143 = vunpack.c.l.b16 %v4047
        %v4144 = vunpack.c.l.b16 %v4048
        %v4145 = vunpack.c.l.b16 %v4049
        %v4146 = vunpack.c.l.b16 %v4050
        %v4147 = vunpack.c.l.b16 %v4051
        %v4148 = vunpack.c.l.b16 %v4052
        %v4149 = vunpack.c.l.b16 %v4053
        %v4150 = vunpack.c.l.b16 %v4054
        %v4151 = vunpack.c.l.b16 %v4055
        %v4152 = vpack.c.b16 %v4137, %v4136
        %v4153 = vpack.c.b16 %v4139, %v4138
        %v4154 = vpack.c.b16 %v4141, %v4140
        %v4155 = vpack.c.b16 %v4143, %v4142
        %v4156 = vpack.c.b16 %v4145, %v4144
        %v4157 = vpack.c.b16 %v4147, %v4146
        %v4158 = vpack.c.b16 %v4149, %v4148
        %v4159 = vpack.c.b16 %v4151, %v4150
        %4168 = vmatprep.subr.bf16.mxu0 0
        %4169 = vmatpush1.bf16.msra.mxu0 %v4159
        %4170 = vmatprep.subr.bf16.mxu0 0
        %4171 = vmatpush1.bf16.msra.mxu0 %v4158
        %4172 = vmatprep.subr.bf16.mxu0 0
        %4173 = vmatpush1.bf16.msra.mxu0 %v4157
        %4174 = vmatprep.subr.bf16.mxu0 0
        %4175 = vmatpush1.bf16.msra.mxu0 %v4156
        %4176 = vmatprep.subr.bf16.mxu0 0
        %4177 = vmatpush1.bf16.msra.mxu0 %v4155
        %4178 = vmatprep.subr.bf16.mxu0 0
        %4179 = vmatpush1.bf16.msra.mxu0 %v4154
        %4180 = vmatprep.subr.bf16.mxu0 0
        %4181 = vmatpush1.bf16.msra.mxu0 %v4153
        %4182 = vmatprep.subr.bf16.mxu0 0
        %4183 = vmatpush1.bf16.msra.mxu0 %v4152
        %4184 = vmatprep.subr.bf16.mxu0 0
        %4185 = vmatpush2.bf16.msra.mxu0 0
        %4186 = vmatprep.subr.bf16.mxu0 0
        %4187 = vmatpush2.bf16.msra.mxu0 0
        %4188 = vmatprep.subr.bf16.mxu0 0
        %4189 = vmatpush2.bf16.msra.mxu0 0
        %4190 = vmatprep.subr.bf16.mxu0 0
        %4191 = vmatpush2.bf16.msra.mxu0 0
        %4192 = vmatprep.subr.bf16.mxu0 0
        %4193 = vmatpush2.bf16.msra.mxu0 0
        %4194 = vmatprep.subr.bf16.mxu0 0
        %4195 = vmatpush2.bf16.msra.mxu0 0
        %4196 = vmatprep.subr.bf16.mxu0 0
        %4197 = vmatpush2.bf16.msra.mxu0 0
        %4198 = vmatprep.subr.bf16.mxu0 0
        %4199 = vmatpush2.bf16.msra.mxu0 0
        %4200 = vmatprep.mubr.bf16.mxu0 0
        %4201 = vmatmul.mubr.bf16.gmra.mxu0 %v4088
        %v4202 = vpop.f32.mrf.mxu0
        %v4203 = vadd.f32 0.0, %v4202
        %v4204 = vpop.f32.mrf.mxu0
        %v4205 = vpop.f32.mrf.mxu0
        %v4206 = vadd.f32 0.0, %v4205
        %v4207 = vpop.f32.mrf.mxu0
        %4208 = vmatprep.mubr.bf16.mxu0 0
        %4209 = vmatmul.mubr.bf16.gmra.mxu0 %v4089
        %v4210 = vpop.f32.mrf.mxu0
        %v4211 = vadd.f32 0.0, %v4210
        %v4212 = vpop.f32.mrf.mxu0
        %v4213 = vpop.f32.mrf.mxu0
        %v4214 = vadd.f32 0.0, %v4213
        %v4215 = vpop.f32.mrf.mxu0
        %4216 = vmatprep.mubr.bf16.mxu0 0
        %4217 = vmatmul.mubr.bf16.gmra.mxu0 %v4090
        %v4218 = vpop.f32.mrf.mxu0
        %v4219 = vadd.f32 0.0, %v4218
        %v4220 = vpop.f32.mrf.mxu0
        %v4221 = vpop.f32.mrf.mxu0
        %v4222 = vadd.f32 0.0, %v4221
        %v4223 = vpop.f32.mrf.mxu0
        %4224 = vmatprep.mubr.bf16.mxu0 0
        %4225 = vmatmul.mubr.bf16.gmra.mxu0 %v4091
        %v4226 = vpop.f32.mrf.mxu0
        %v4227 = vadd.f32 0.0, %v4226
        %v4228 = vpop.f32.mrf.mxu0
        %v4229 = vpop.f32.mrf.mxu0
        %v4230 = vadd.f32 0.0, %v4229
        %v4231 = vpop.f32.mrf.mxu0
        %4232 = vmatprep.mubr.bf16.mxu0 0
        %4233 = vmatmul.mubr.bf16.gmra.mxu0 %v4092
        %v4234 = vpop.f32.mrf.mxu0
        %v4235 = vadd.f32 0.0, %v4234
        %v4236 = vpop.f32.mrf.mxu0
        %v4237 = vpop.f32.mrf.mxu0
        %v4238 = vadd.f32 0.0, %v4237
        %v4239 = vpop.f32.mrf.mxu0
        %4240 = vmatprep.mubr.bf16.mxu0 0
        %4241 = vmatmul.mubr.bf16.gmra.mxu0 %v4093
        %v4242 = vpop.f32.mrf.mxu0
        %v4243 = vadd.f32 0.0, %v4242
        %v4244 = vpop.f32.mrf.mxu0
        %v4245 = vpop.f32.mrf.mxu0
        %v4246 = vadd.f32 0.0, %v4245
        %v4247 = vpop.f32.mrf.mxu0
        %4248 = vmatprep.mubr.bf16.mxu0 0
        %4249 = vmatmul.mubr.bf16.gmra.mxu0 %v4094
        %v4250 = vpop.f32.mrf.mxu0
        %v4251 = vadd.f32 0.0, %v4250
        %v4252 = vpop.f32.mrf.mxu0
        %v4253 = vpop.f32.mrf.mxu0
        %v4254 = vadd.f32 0.0, %v4253
        %v4255 = vpop.f32.mrf.mxu0
        %4256 = vmatprep.mubr.bf16.mxu0 0
        %4257 = vmatmul.mubr.bf16.gmra.mxu0 %v4095
        %v4258 = vpop.f32.mrf.mxu0
        %v4259 = vadd.f32 0.0, %v4258
        %v4260 = vpop.f32.mrf.mxu0
        %v4261 = vpop.f32.mrf.mxu0
        %v4262 = vadd.f32 0.0, %v4261
        %v4263 = vpop.f32.mrf.mxu0
        %4264 = vmatprep.mubr.bf16.mxu0 0
        %4265 = vmatmul.mubr.bf16.gmra.mxu0 %v4096
        %v4266 = vpop.f32.mrf.mxu0
        %v4267 = vadd.f32 0.0, %v4266
        %v4268 = vpop.f32.mrf.mxu0
        %v4269 = vpop.f32.mrf.mxu0
        %v4270 = vadd.f32 0.0, %v4269
        %v4271 = vpop.f32.mrf.mxu0
        %4272 = vmatprep.mubr.bf16.mxu0 0
        %4273 = vmatmul.mubr.bf16.gmra.mxu0 %v4097
        %v4274 = vpop.f32.mrf.mxu0
        %v4275 = vadd.f32 0.0, %v4274
        %v4276 = vpop.f32.mrf.mxu0
        %v4277 = vpop.f32.mrf.mxu0
        %v4278 = vadd.f32 0.0, %v4277
        %v4279 = vpop.f32.mrf.mxu0
        %4280 = vmatprep.mubr.bf16.mxu0 0
        %4281 = vmatmul.mubr.bf16.gmra.mxu0 %v4098
        %v4282 = vpop.f32.mrf.mxu0
        %v4283 = vadd.f32 0.0, %v4282
        %v4284 = vpop.f32.mrf.mxu0
        %v4285 = vpop.f32.mrf.mxu0
        %v4286 = vadd.f32 0.0, %v4285
        %v4287 = vpop.f32.mrf.mxu0
        %4288 = vmatprep.mubr.bf16.mxu0 0
        %4289 = vmatmul.mubr.bf16.gmra.mxu0 %v4099
        %v4290 = vpop.f32.mrf.mxu0
        %v4291 = vadd.f32 0.0, %v4290
        %v4292 = vpop.f32.mrf.mxu0
        %v4293 = vpop.f32.mrf.mxu0
        %v4294 = vadd.f32 0.0, %v4293
        %v4295 = vpop.f32.mrf.mxu0
        %4296 = vmatprep.mubr.bf16.mxu0 0
        %4297 = vmatmul.mubr.bf16.gmra.mxu0 %v4100
        %v4298 = vpop.f32.mrf.mxu0
        %v4299 = vadd.f32 0.0, %v4298
        %v4300 = vpop.f32.mrf.mxu0
        %v4301 = vpop.f32.mrf.mxu0
        %v4302 = vadd.f32 0.0, %v4301
        %v4303 = vpop.f32.mrf.mxu0
        %4304 = vmatprep.mubr.bf16.mxu0 0
        %4305 = vmatmul.mubr.bf16.gmra.mxu0 %v4101
        %v4306 = vpop.f32.mrf.mxu0
        %v4307 = vadd.f32 0.0, %v4306
        %v4308 = vpop.f32.mrf.mxu0
        %v4309 = vpop.f32.mrf.mxu0
        %v4310 = vadd.f32 0.0, %v4309
        %v4311 = vpop.f32.mrf.mxu0
        %4312 = vmatprep.mubr.bf16.mxu0 0
        %4313 = vmatmul.mubr.bf16.gmra.mxu0 %v4102
        %v4314 = vpop.f32.mrf.mxu0
        %v4315 = vadd.f32 0.0, %v4314
        %v4316 = vpop.f32.mrf.mxu0
        %v4317 = vpop.f32.mrf.mxu0
        %v4318 = vadd.f32 0.0, %v4317
        %v4319 = vpop.f32.mrf.mxu0
        %4320 = vmatprep.mubr.bf16.mxu0 0
        %4321 = vmatmul.mubr.bf16.gmra.mxu0 %v4103
        %v4322 = vpop.f32.mrf.mxu0
        %v4323 = vadd.f32 0.0, %v4322
        %v4324 = vpop.f32.mrf.mxu0
        %v4325 = vpop.f32.mrf.mxu0
        %v4326 = vadd.f32 0.0, %v4325
        %v4327 = vpop.f32.mrf.mxu0
        %4328 = vdwg.mxu0
        %v4329 = vadd.f32 %v3831, %v4203
        %v4330 = vadd.f32 %v3832, %v4206
        %v4331 = vadd.f32 %v3833, %v4211
        %v4332 = vadd.f32 %v3834, %v4214
        %v4333 = vadd.f32 %v3835, %v4219
        %v4334 = vadd.f32 %v3836, %v4222
        %v4335 = vadd.f32 %v3837, %v4227
        %v4336 = vadd.f32 %v3838, %v4230
        %v4337 = vadd.f32 %v3839, %v4235
        %v4338 = vadd.f32 %v3840, %v4238
        %v4339 = vadd.f32 %v3841, %v4243
        %v4340 = vadd.f32 %v3842, %v4246
        %v4341 = vadd.f32 %v3843, %v4251
        %v4342 = vadd.f32 %v3844, %v4254
        %v4343 = vadd.f32 %v3845, %v4259
        %v4344 = vadd.f32 %v3846, %v4262
        %v4345 = vadd.f32 %v3847, %v4267
        %v4346 = vadd.f32 %v3848, %v4270
        %v4347 = vadd.f32 %v3849, %v4275
        %v4348 = vadd.f32 %v3850, %v4278
        %v4349 = vadd.f32 %v3851, %v4283
        %v4350 = vadd.f32 %v3852, %v4286
        %v4351 = vadd.f32 %v3853, %v4291
        %v4352 = vadd.f32 %v3854, %v4294
        %v4353 = vadd.f32 %v3855, %v4299
        %v4354 = vadd.f32 %v3856, %v4302
        %v4355 = vadd.f32 %v3857, %v4307
        %v4356 = vadd.f32 %v3858, %v4310
        %v4357 = vadd.f32 %v3859, %v4315
        %v4358 = vadd.f32 %v3860, %v4318
        %v4359 = vadd.f32 %v3861, %v4323
        %v4360 = vadd.f32 %v3862, %v4326
        %s4361 = scalar_lea.vmem [#allocation2], 24
        %v4362 = vld [vmem:[%s4361] sm:$0xf]
        %v4363 = vld [vmem:[%s4361 + $0x4] sm:$0xf]
        %v4364 = vld [vmem:[%s4361 + $0xc] sm:$0xf]
        %v4365 = vld [vmem:[%s4361 + $0x10] sm:$0xf]
        %v4366 = vld [vmem:[%s4361 + $0x18] sm:$0xf]
        %v4367 = vld [vmem:[%s4361 + $0x1c] sm:$0xf]
        %v4368 = vld [vmem:[%s4361 + $0x24] sm:$0xf]
        %v4369 = vld [vmem:[%s4361 + $0x28] sm:$0xf]
        %v4370 = vld [vmem:[%s4361 + $0x30] sm:$0xf]
        %v4371 = vld [vmem:[%s4361 + $0x34] sm:$0xf]
        %v4372 = vld [vmem:[%s4361 + $0x3c] sm:$0xf]
        %v4373 = vld [vmem:[%s4361 + $0x40] sm:$0xf]
        %v4374 = vld [vmem:[%s4361 + $0x48] sm:$0xf]
        %v4375 = vld [vmem:[%s4361 + $0x4c] sm:$0xf]
        %v4376 = vld [vmem:[%s4361 + $0x54] sm:$0xf]
        %v4377 = vld [vmem:[%s4361 + $0x58] sm:$0xf]
        %v4378 = vld [vmem:[%s4361 + $0x60] sm:$0xf]
        %v4379 = vld [vmem:[%s4361 + $0x64] sm:$0xf]
        %v4380 = vld [vmem:[%s4361 + $0x6c] sm:$0xf]
        %v4381 = vld [vmem:[%s4361 + $0x70] sm:$0xf]
        %v4382 = vld [vmem:[%s4361 + $0x78] sm:$0xf]
        %v4383 = vld [vmem:[%s4361 + $0x7c] sm:$0xf]
        %v4384 = vld [vmem:[%s4361 + $0x84] sm:$0xf]
        %v4385 = vld [vmem:[%s4361 + $0x88] sm:$0xf]
        %v4386 = vld [vmem:[%s4361 + $0x90] sm:$0xf]
        %v4387 = vld [vmem:[%s4361 + $0x94] sm:$0xf]
        %v4388 = vld [vmem:[%s4361 + $0x9c] sm:$0xf]
        %v4389 = vld [vmem:[%s4361 + $0xa0] sm:$0xf]
        %v4390 = vld [vmem:[%s4361 + $0xa8] sm:$0xf]
        %v4391 = vld [vmem:[%s4361 + $0xac] sm:$0xf]
        %v4392 = vld [vmem:[%s4361 + $0xb4] sm:$0xf]
        %v4393 = vld [vmem:[%s4361 + $0xb8] sm:$0xf]
        %s4394 = scalar_lea.vmem %s1, 384
        %v4395 = vld [vmem:[%s4394] sm:$0xf]
        %v4396 = vld [vmem:[%s4394 + $0x4] sm:$0xf]
        %v4397 = vld [vmem:[%s4394 + $0x8] sm:$0xf]
        %v4398 = vld [vmem:[%s4394 + $0xc] sm:$0xf]
        %v4399 = vld [vmem:[%s4394 + $0x10] sm:$0xf]
        %v4400 = vld [vmem:[%s4394 + $0x14] sm:$0xf]
        %v4401 = vld [vmem:[%s4394 + $0x18] sm:$0xf]
        %v4402 = vld [vmem:[%s4394 + $0x1c] sm:$0xf]
        %v4403 = vld [vmem:[%s4394 + $0x20] sm:$0xf]
        %v4404 = vld [vmem:[%s4394 + $0x24] sm:$0xf]
        %v4405 = vld [vmem:[%s4394 + $0x28] sm:$0xf]
        %v4406 = vld [vmem:[%s4394 + $0x2c] sm:$0xf]
        %v4407 = vld [vmem:[%s4394 + $0x30] sm:$0xf]
        %v4408 = vld [vmem:[%s4394 + $0x34] sm:$0xf]
        %v4409 = vld [vmem:[%s4394 + $0x38] sm:$0xf]
        %v4410 = vld [vmem:[%s4394 + $0x3c] sm:$0xf]
        %v4443 = vunpack.c.l.b16 %v4362
        %v4444 = vunpack.c.l.b16 %v4363
        %v4445 = vunpack.c.l.b16 %v4364
        %v4446 = vunpack.c.l.b16 %v4365
        %v4447 = vunpack.c.l.b16 %v4366
        %v4448 = vunpack.c.l.b16 %v4367
        %v4449 = vunpack.c.l.b16 %v4368
        %v4450 = vunpack.c.l.b16 %v4369
        %v4451 = vunpack.c.l.b16 %v4370
        %v4452 = vunpack.c.l.b16 %v4371
        %v4453 = vunpack.c.l.b16 %v4372
        %v4454 = vunpack.c.l.b16 %v4373
        %v4455 = vunpack.c.l.b16 %v4374
        %v4456 = vunpack.c.l.b16 %v4375
        %v4457 = vunpack.c.l.b16 %v4376
        %v4458 = vunpack.c.l.b16 %v4377
        %v4459 = vunpack.c.l.b16 %v4378
        %v4460 = vunpack.c.l.b16 %v4379
        %v4461 = vunpack.c.l.b16 %v4380
        %v4462 = vunpack.c.l.b16 %v4381
        %v4463 = vunpack.c.l.b16 %v4382
        %v4464 = vunpack.c.l.b16 %v4383
        %v4465 = vunpack.c.l.b16 %v4384
        %v4466 = vunpack.c.l.b16 %v4385
        %v4467 = vunpack.c.l.b16 %v4386
        %v4468 = vunpack.c.l.b16 %v4387
        %v4469 = vunpack.c.l.b16 %v4388
        %v4470 = vunpack.c.l.b16 %v4389
        %v4471 = vunpack.c.l.b16 %v4390
        %v4472 = vunpack.c.l.b16 %v4391
        %v4473 = vunpack.c.l.b16 %v4392
        %v4474 = vunpack.c.l.b16 %v4393
        %v4475 = vpack.c.b16 %v4444, %v4443
        %v4476 = vpack.c.b16 %v4446, %v4445
        %v4477 = vpack.c.b16 %v4448, %v4447
        %v4478 = vpack.c.b16 %v4450, %v4449
        %v4479 = vpack.c.b16 %v4452, %v4451
        %v4480 = vpack.c.b16 %v4454, %v4453
        %v4481 = vpack.c.b16 %v4456, %v4455
        %v4482 = vpack.c.b16 %v4458, %v4457
        %v4483 = vpack.c.b16 %v4460, %v4459
        %v4484 = vpack.c.b16 %v4462, %v4461
        %v4485 = vpack.c.b16 %v4464, %v4463
        %v4486 = vpack.c.b16 %v4466, %v4465
        %v4487 = vpack.c.b16 %v4468, %v4467
        %v4488 = vpack.c.b16 %v4470, %v4469
        %v4489 = vpack.c.b16 %v4472, %v4471
        %v4490 = vpack.c.b16 %v4474, %v4473
        %v4523 = vunpack.c.l.b16 %v4395
        %v4524 = vunpack.c.l.b16 %v4396
        %v4525 = vunpack.c.l.b16 %v4397
        %v4526 = vunpack.c.l.b16 %v4398
        %v4527 = vunpack.c.l.b16 %v4399
        %v4528 = vunpack.c.l.b16 %v4400
        %v4529 = vunpack.c.l.b16 %v4401
        %v4530 = vunpack.c.l.b16 %v4402
        %v4531 = vunpack.c.l.b16 %v4403
        %v4532 = vunpack.c.l.b16 %v4404
        %v4533 = vunpack.c.l.b16 %v4405
        %v4534 = vunpack.c.l.b16 %v4406
        %v4535 = vunpack.c.l.b16 %v4407
        %v4536 = vunpack.c.l.b16 %v4408
        %v4537 = vunpack.c.l.b16 %v4409
        %v4538 = vunpack.c.l.b16 %v4410
        %v4539 = vpack.c.b16 %v4524, %v4523
        %v4540 = vpack.c.b16 %v4526, %v4525
        %v4541 = vpack.c.b16 %v4528, %v4527
        %v4542 = vpack.c.b16 %v4530, %v4529
        %v4543 = vpack.c.b16 %v4532, %v4531
        %v4544 = vpack.c.b16 %v4534, %v4533
        %v4545 = vpack.c.b16 %v4536, %v4535
        %v4546 = vpack.c.b16 %v4538, %v4537
        %4555 = vmatprep.subr.bf16.mxu0 0
        %4556 = vmatpush1.bf16.msra.mxu0 %v4546
        %4557 = vmatprep.subr.bf16.mxu0 0
        %4558 = vmatpush1.bf16.msra.mxu0 %v4545
        %4559 = vmatprep.subr.bf16.mxu0 0
        %4560 = vmatpush1.bf16.msra.mxu0 %v4544
        %4561 = vmatprep.subr.bf16.mxu0 0
        %4562 = vmatpush1.bf16.msra.mxu0 %v4543
        %4563 = vmatprep.subr.bf16.mxu0 0
        %4564 = vmatpush1.bf16.msra.mxu0 %v4542
        %4565 = vmatprep.subr.bf16.mxu0 0
        %4566 = vmatpush1.bf16.msra.mxu0 %v4541
        %4567 = vmatprep.subr.bf16.mxu0 0
        %4568 = vmatpush1.bf16.msra.mxu0 %v4540
        %4569 = vmatprep.subr.bf16.mxu0 0
        %4570 = vmatpush1.bf16.msra.mxu0 %v4539
        %4571 = vmatprep.subr.bf16.mxu0 0
        %4572 = vmatpush2.bf16.msra.mxu0 0
        %4573 = vmatprep.subr.bf16.mxu0 0
        %4574 = vmatpush2.bf16.msra.mxu0 0
        %4575 = vmatprep.subr.bf16.mxu0 0
        %4576 = vmatpush2.bf16.msra.mxu0 0
        %4577 = vmatprep.subr.bf16.mxu0 0
        %4578 = vmatpush2.bf16.msra.mxu0 0
        %4579 = vmatprep.subr.bf16.mxu0 0
        %4580 = vmatpush2.bf16.msra.mxu0 0
        %4581 = vmatprep.subr.bf16.mxu0 0
        %4582 = vmatpush2.bf16.msra.mxu0 0
        %4583 = vmatprep.subr.bf16.mxu0 0
        %4584 = vmatpush2.bf16.msra.mxu0 0
        %4585 = vmatprep.subr.bf16.mxu0 0
        %4586 = vmatpush2.bf16.msra.mxu0 0
        %4587 = vmatprep.mubr.bf16.mxu0 0
        %4588 = vmatmul.mubr.bf16.gmra.mxu0 %v4475
        %v4589 = vpop.f32.mrf.mxu0
        %v4590 = vadd.f32 0.0, %v4589
        %v4591 = vpop.f32.mrf.mxu0
        %v4592 = vpop.f32.mrf.mxu0
        %v4593 = vadd.f32 0.0, %v4592
        %v4594 = vpop.f32.mrf.mxu0
        %4595 = vmatprep.mubr.bf16.mxu0 0
        %4596 = vmatmul.mubr.bf16.gmra.mxu0 %v4476
        %v4597 = vpop.f32.mrf.mxu0
        %v4598 = vadd.f32 0.0, %v4597
        %v4599 = vpop.f32.mrf.mxu0
        %v4600 = vpop.f32.mrf.mxu0
        %v4601 = vadd.f32 0.0, %v4600
        %v4602 = vpop.f32.mrf.mxu0
        %4603 = vmatprep.mubr.bf16.mxu0 0
        %4604 = vmatmul.mubr.bf16.gmra.mxu0 %v4477
        %v4605 = vpop.f32.mrf.mxu0
        %v4606 = vadd.f32 0.0, %v4605
        %v4607 = vpop.f32.mrf.mxu0
        %v4608 = vpop.f32.mrf.mxu0
        %v4609 = vadd.f32 0.0, %v4608
        %v4610 = vpop.f32.mrf.mxu0
        %4611 = vmatprep.mubr.bf16.mxu0 0
        %4612 = vmatmul.mubr.bf16.gmra.mxu0 %v4478
        %v4613 = vpop.f32.mrf.mxu0
        %v4614 = vadd.f32 0.0, %v4613
        %v4615 = vpop.f32.mrf.mxu0
        %v4616 = vpop.f32.mrf.mxu0
        %v4617 = vadd.f32 0.0, %v4616
        %v4618 = vpop.f32.mrf.mxu0
        %4619 = vmatprep.mubr.bf16.mxu0 0
        %4620 = vmatmul.mubr.bf16.gmra.mxu0 %v4479
        %v4621 = vpop.f32.mrf.mxu0
        %v4622 = vadd.f32 0.0, %v4621
        %v4623 = vpop.f32.mrf.mxu0
        %v4624 = vpop.f32.mrf.mxu0
        %v4625 = vadd.f32 0.0, %v4624
        %v4626 = vpop.f32.mrf.mxu0
        %4627 = vmatprep.mubr.bf16.mxu0 0
        %4628 = vmatmul.mubr.bf16.gmra.mxu0 %v4480
        %v4629 = vpop.f32.mrf.mxu0
        %v4630 = vadd.f32 0.0, %v4629
        %v4631 = vpop.f32.mrf.mxu0
        %v4632 = vpop.f32.mrf.mxu0
        %v4633 = vadd.f32 0.0, %v4632
        %v4634 = vpop.f32.mrf.mxu0
        %4635 = vmatprep.mubr.bf16.mxu0 0
        %4636 = vmatmul.mubr.bf16.gmra.mxu0 %v4481
        %v4637 = vpop.f32.mrf.mxu0
        %v4638 = vadd.f32 0.0, %v4637
        %v4639 = vpop.f32.mrf.mxu0
        %v4640 = vpop.f32.mrf.mxu0
        %v4641 = vadd.f32 0.0, %v4640
        %v4642 = vpop.f32.mrf.mxu0
        %4643 = vmatprep.mubr.bf16.mxu0 0
        %4644 = vmatmul.mubr.bf16.gmra.mxu0 %v4482
        %v4645 = vpop.f32.mrf.mxu0
        %v4646 = vadd.f32 0.0, %v4645
        %v4647 = vpop.f32.mrf.mxu0
        %v4648 = vpop.f32.mrf.mxu0
        %v4649 = vadd.f32 0.0, %v4648
        %v4650 = vpop.f32.mrf.mxu0
        %4651 = vmatprep.mubr.bf16.mxu0 0
        %4652 = vmatmul.mubr.bf16.gmra.mxu0 %v4483
        %v4653 = vpop.f32.mrf.mxu0
        %v4654 = vadd.f32 0.0, %v4653
        %v4655 = vpop.f32.mrf.mxu0
        %v4656 = vpop.f32.mrf.mxu0
        %v4657 = vadd.f32 0.0, %v4656
        %v4658 = vpop.f32.mrf.mxu0
        %4659 = vmatprep.mubr.bf16.mxu0 0
        %4660 = vmatmul.mubr.bf16.gmra.mxu0 %v4484
        %v4661 = vpop.f32.mrf.mxu0
        %v4662 = vadd.f32 0.0, %v4661
        %v4663 = vpop.f32.mrf.mxu0
        %v4664 = vpop.f32.mrf.mxu0
        %v4665 = vadd.f32 0.0, %v4664
        %v4666 = vpop.f32.mrf.mxu0
        %4667 = vmatprep.mubr.bf16.mxu0 0
        %4668 = vmatmul.mubr.bf16.gmra.mxu0 %v4485
        %v4669 = vpop.f32.mrf.mxu0
        %v4670 = vadd.f32 0.0, %v4669
        %v4671 = vpop.f32.mrf.mxu0
        %v4672 = vpop.f32.mrf.mxu0
        %v4673 = vadd.f32 0.0, %v4672
        %v4674 = vpop.f32.mrf.mxu0
        %4675 = vmatprep.mubr.bf16.mxu0 0
        %4676 = vmatmul.mubr.bf16.gmra.mxu0 %v4486
        %v4677 = vpop.f32.mrf.mxu0
        %v4678 = vadd.f32 0.0, %v4677
        %v4679 = vpop.f32.mrf.mxu0
        %v4680 = vpop.f32.mrf.mxu0
        %v4681 = vadd.f32 0.0, %v4680
        %v4682 = vpop.f32.mrf.mxu0
        %4683 = vmatprep.mubr.bf16.mxu0 0
        %4684 = vmatmul.mubr.bf16.gmra.mxu0 %v4487
        %v4685 = vpop.f32.mrf.mxu0
        %v4686 = vadd.f32 0.0, %v4685
        %v4687 = vpop.f32.mrf.mxu0
        %v4688 = vpop.f32.mrf.mxu0
        %v4689 = vadd.f32 0.0, %v4688
        %v4690 = vpop.f32.mrf.mxu0
        %4691 = vmatprep.mubr.bf16.mxu0 0
        %4692 = vmatmul.mubr.bf16.gmra.mxu0 %v4488
        %v4693 = vpop.f32.mrf.mxu0
        %v4694 = vadd.f32 0.0, %v4693
        %v4695 = vpop.f32.mrf.mxu0
        %v4696 = vpop.f32.mrf.mxu0
        %v4697 = vadd.f32 0.0, %v4696
        %v4698 = vpop.f32.mrf.mxu0
        %4699 = vmatprep.mubr.bf16.mxu0 0
        %4700 = vmatmul.mubr.bf16.gmra.mxu0 %v4489
        %v4701 = vpop.f32.mrf.mxu0
        %v4702 = vadd.f32 0.0, %v4701
        %v4703 = vpop.f32.mrf.mxu0
        %v4704 = vpop.f32.mrf.mxu0
        %v4705 = vadd.f32 0.0, %v4704
        %v4706 = vpop.f32.mrf.mxu0
        %4707 = vmatprep.mubr.bf16.mxu0 0
        %4708 = vmatmul.mubr.bf16.gmra.mxu0 %v4490
        %v4709 = vpop.f32.mrf.mxu0
        %v4710 = vadd.f32 0.0, %v4709
        %v4711 = vpop.f32.mrf.mxu0
        %v4712 = vpop.f32.mrf.mxu0
        %v4713 = vadd.f32 0.0, %v4712
        %v4714 = vpop.f32.mrf.mxu0
        %4715 = vdwg.mxu0
        %v4716 = vadd.f32 %v4329, %v4590
        %v4717 = vadd.f32 %v4330, %v4593
        %v4718 = vadd.f32 %v4331, %v4598
        %v4719 = vadd.f32 %v4332, %v4601
        %v4720 = vadd.f32 %v4333, %v4606
        %v4721 = vadd.f32 %v4334, %v4609
        %v4722 = vadd.f32 %v4335, %v4614
        %v4723 = vadd.f32 %v4336, %v4617
        %v4724 = vadd.f32 %v4337, %v4622
        %v4725 = vadd.f32 %v4338, %v4625
        %v4726 = vadd.f32 %v4339, %v4630
        %v4727 = vadd.f32 %v4340, %v4633
        %v4728 = vadd.f32 %v4341, %v4638
        %v4729 = vadd.f32 %v4342, %v4641
        %v4730 = vadd.f32 %v4343, %v4646
        %v4731 = vadd.f32 %v4344, %v4649
        %v4732 = vadd.f32 %v4345, %v4654
        %v4733 = vadd.f32 %v4346, %v4657
        %v4734 = vadd.f32 %v4347, %v4662
        %v4735 = vadd.f32 %v4348, %v4665
        %v4736 = vadd.f32 %v4349, %v4670
        %v4737 = vadd.f32 %v4350, %v4673
        %v4738 = vadd.f32 %v4351, %v4678
        %v4739 = vadd.f32 %v4352, %v4681
        %v4740 = vadd.f32 %v4353, %v4686
        %v4741 = vadd.f32 %v4354, %v4689
        %v4742 = vadd.f32 %v4355, %v4694
        %v4743 = vadd.f32 %v4356, %v4697
        %v4744 = vadd.f32 %v4357, %v4702
        %v4745 = vadd.f32 %v4358, %v4705
        %v4746 = vadd.f32 %v4359, %v4710
        %v4747 = vadd.f32 %v4360, %v4713
        %v4748 = vld [vmem:[%s4361] sm:$0xf]
        %v4749 = vld [vmem:[%s4361 + $0x4] sm:$0xf]
        %v4750 = vld [vmem:[%s4361 + $0x8] sm:$0x1]
        %v4751 = vld [vmem:[%s4361 + $0xc] sm:$0xf]
        %v4752 = vld [vmem:[%s4361 + $0x10] sm:$0xf]
        %v4753 = vld [vmem:[%s4361 + $0x14] sm:$0x1]
        %v4754 = vld [vmem:[%s4361 + $0x18] sm:$0xf]
        %v4755 = vld [vmem:[%s4361 + $0x1c] sm:$0xf]
        %v4756 = vld [vmem:[%s4361 + $0x20] sm:$0x1]
        %v4757 = vld [vmem:[%s4361 + $0x24] sm:$0xf]
        %v4758 = vld [vmem:[%s4361 + $0x28] sm:$0xf]
        %v4759 = vld [vmem:[%s4361 + $0x2c] sm:$0x1]
        %v4760 = vld [vmem:[%s4361 + $0x30] sm:$0xf]
        %v4761 = vld [vmem:[%s4361 + $0x34] sm:$0xf]
        %v4762 = vld [vmem:[%s4361 + $0x38] sm:$0x1]
        %v4763 = vld [vmem:[%s4361 + $0x3c] sm:$0xf]
        %v4764 = vld [vmem:[%s4361 + $0x40] sm:$0xf]
        %v4765 = vld [vmem:[%s4361 + $0x44] sm:$0x1]
        %v4766 = vld [vmem:[%s4361 + $0x48] sm:$0xf]
        %v4767 = vld [vmem:[%s4361 + $0x4c] sm:$0xf]
        %v4768 = vld [vmem:[%s4361 + $0x50] sm:$0x1]
        %v4769 = vld [vmem:[%s4361 + $0x54] sm:$0xf]
        %v4770 = vld [vmem:[%s4361 + $0x58] sm:$0xf]
        %v4771 = vld [vmem:[%s4361 + $0x5c] sm:$0x1]
        %v4772 = vld [vmem:[%s4361 + $0x60] sm:$0xf]
        %v4773 = vld [vmem:[%s4361 + $0x64] sm:$0xf]
        %v4774 = vld [vmem:[%s4361 + $0x68] sm:$0x1]
        %v4775 = vld [vmem:[%s4361 + $0x6c] sm:$0xf]
        %v4776 = vld [vmem:[%s4361 + $0x70] sm:$0xf]
        %v4777 = vld [vmem:[%s4361 + $0x74] sm:$0x1]
        %v4778 = vld [vmem:[%s4361 + $0x78] sm:$0xf]
        %v4779 = vld [vmem:[%s4361 + $0x7c] sm:$0xf]
        %v4780 = vld [vmem:[%s4361 + $0x80] sm:$0x1]
        %v4781 = vld [vmem:[%s4361 + $0x84] sm:$0xf]
        %v4782 = vld [vmem:[%s4361 + $0x88] sm:$0xf]
        %v4783 = vld [vmem:[%s4361 + $0x8c] sm:$0x1]
        %v4784 = vld [vmem:[%s4361 + $0x90] sm:$0xf]
        %v4785 = vld [vmem:[%s4361 + $0x94] sm:$0xf]
        %v4786 = vld [vmem:[%s4361 + $0x98] sm:$0x1]
        %v4787 = vld [vmem:[%s4361 + $0x9c] sm:$0xf]
        %v4788 = vld [vmem:[%s4361 + $0xa0] sm:$0xf]
        %v4789 = vld [vmem:[%s4361 + $0xa4] sm:$0x1]
        %v4790 = vld [vmem:[%s4361 + $0xa8] sm:$0xf]
        %v4791 = vld [vmem:[%s4361 + $0xac] sm:$0xf]
        %v4792 = vld [vmem:[%s4361 + $0xb0] sm:$0x1]
        %v4793 = vld [vmem:[%s4361 + $0xb4] sm:$0xf]
        %v4794 = vld [vmem:[%s4361 + $0xb8] sm:$0xf]
        %v4795 = vld [vmem:[%s4361 + $0xbc] sm:$0x1]
        %v4797 = vshrl.u32 %v4748, 16
        %v4799 = vrot.slane %v4797, 4
        %v4800 = vshll.u32 %v4748, 16
        %v4802 = vrot.slane %v4800, 5
        %v4803 = vor.u32 %v4799, %v4802
        %v4804 = vrot.slane %v4803, 4
        %v4806 = vshll.u32 %v4749, 16
        %v4808 = vrot.slane %v4806, 5
        %v4809 = vsel %vm1258, %v4804, %v4808
        %v4810 = vshrl.u32 %v4749, 16
        %v4812 = vrot.slane %v4810, 4
        %v4813 = vor.u32 %v4812, %v4808
        %v4814 = vrot.slane %v4813, 4
        %v4816 = vshll.u32 %v4750, 16
        %v4818 = vrot.slane %v4816, 5
        %v4819 = vsel %vm1258, %v4814, %v4818
        %v4821 = vshrl.u32 %v4751, 16
        %v4823 = vrot.slane %v4821, 4
        %v4824 = vshll.u32 %v4751, 16
        %v4826 = vrot.slane %v4824, 5
        %v4827 = vor.u32 %v4823, %v4826
        %v4828 = vrot.slane %v4827, 4
        %v4830 = vshll.u32 %v4752, 16
        %v4832 = vrot.slane %v4830, 5
        %v4833 = vsel %vm1258, %v4828, %v4832
        %v4834 = vshrl.u32 %v4752, 16
        %v4836 = vrot.slane %v4834, 4
        %v4837 = vor.u32 %v4836, %v4832
        %v4838 = vrot.slane %v4837, 4
        %v4840 = vshll.u32 %v4753, 16
        %v4842 = vrot.slane %v4840, 5
        %v4843 = vsel %vm1258, %v4838, %v4842
        %v4845 = vshrl.u32 %v4754, 16
        %v4847 = vrot.slane %v4845, 4
        %v4848 = vshll.u32 %v4754, 16
        %v4850 = vrot.slane %v4848, 5
        %v4851 = vor.u32 %v4847, %v4850
        %v4852 = vrot.slane %v4851, 4
        %v4854 = vshll.u32 %v4755, 16
        %v4856 = vrot.slane %v4854, 5
        %v4857 = vsel %vm1258, %v4852, %v4856
        %v4858 = vshrl.u32 %v4755, 16
        %v4860 = vrot.slane %v4858, 4
        %v4861 = vor.u32 %v4860, %v4856
        %v4862 = vrot.slane %v4861, 4
        %v4864 = vshll.u32 %v4756, 16
        %v4866 = vrot.slane %v4864, 5
        %v4867 = vsel %vm1258, %v4862, %v4866
        %v4869 = vshrl.u32 %v4757, 16
        %v4871 = vrot.slane %v4869, 4
        %v4872 = vshll.u32 %v4757, 16
        %v4874 = vrot.slane %v4872, 5
        %v4875 = vor.u32 %v4871, %v4874
        %v4876 = vrot.slane %v4875, 4
        %v4878 = vshll.u32 %v4758, 16
        %v4880 = vrot.slane %v4878, 5
        %v4881 = vsel %vm1258, %v4876, %v4880
        %v4882 = vshrl.u32 %v4758, 16
        %v4884 = vrot.slane %v4882, 4
        %v4885 = vor.u32 %v4884, %v4880
        %v4886 = vrot.slane %v4885, 4
        %v4888 = vshll.u32 %v4759, 16
        %v4890 = vrot.slane %v4888, 5
        %v4891 = vsel %vm1258, %v4886, %v4890
        %v4893 = vshrl.u32 %v4760, 16
        %v4895 = vrot.slane %v4893, 4
        %v4896 = vshll.u32 %v4760, 16
        %v4898 = vrot.slane %v4896, 5
        %v4899 = vor.u32 %v4895, %v4898
        %v4900 = vrot.slane %v4899, 4
        %v4902 = vshll.u32 %v4761, 16
        %v4904 = vrot.slane %v4902, 5
        %v4905 = vsel %vm1258, %v4900, %v4904
        %v4906 = vshrl.u32 %v4761, 16
        %v4908 = vrot.slane %v4906, 4
        %v4909 = vor.u32 %v4908, %v4904
        %v4910 = vrot.slane %v4909, 4
        %v4912 = vshll.u32 %v4762, 16
        %v4914 = vrot.slane %v4912, 5
        %v4915 = vsel %vm1258, %v4910, %v4914
        %v4917 = vshrl.u32 %v4763, 16
        %v4919 = vrot.slane %v4917, 4
        %v4920 = vshll.u32 %v4763, 16
        %v4922 = vrot.slane %v4920, 5
        %v4923 = vor.u32 %v4919, %v4922
        %v4924 = vrot.slane %v4923, 4
        %v4926 = vshll.u32 %v4764, 16
        %v4928 = vrot.slane %v4926, 5
        %v4929 = vsel %vm1258, %v4924, %v4928
        %v4930 = vshrl.u32 %v4764, 16
        %v4932 = vrot.slane %v4930, 4
        %v4933 = vor.u32 %v4932, %v4928
        %v4934 = vrot.slane %v4933, 4
        %v4936 = vshll.u32 %v4765, 16
        %v4938 = vrot.slane %v4936, 5
        %v4939 = vsel %vm1258, %v4934, %v4938
        %v4941 = vshrl.u32 %v4766, 16
        %v4943 = vrot.slane %v4941, 4
        %v4944 = vshll.u32 %v4766, 16
        %v4946 = vrot.slane %v4944, 5
        %v4947 = vor.u32 %v4943, %v4946
        %v4948 = vrot.slane %v4947, 4
        %v4950 = vshll.u32 %v4767, 16
        %v4952 = vrot.slane %v4950, 5
        %v4953 = vsel %vm1258, %v4948, %v4952
        %v4954 = vshrl.u32 %v4767, 16
        %v4956 = vrot.slane %v4954, 4
        %v4957 = vor.u32 %v4956, %v4952
        %v4958 = vrot.slane %v4957, 4
        %v4960 = vshll.u32 %v4768, 16
        %v4962 = vrot.slane %v4960, 5
        %v4963 = vsel %vm1258, %v4958, %v4962
        %v4965 = vshrl.u32 %v4769, 16
        %v4967 = vrot.slane %v4965, 4
        %v4968 = vshll.u32 %v4769, 16
        %v4970 = vrot.slane %v4968, 5
        %v4971 = vor.u32 %v4967, %v4970
        %v4972 = vrot.slane %v4971, 4
        %v4974 = vshll.u32 %v4770, 16
        %v4976 = vrot.slane %v4974, 5
        %v4977 = vsel %vm1258, %v4972, %v4976
        %v4978 = vshrl.u32 %v4770, 16
        %v4980 = vrot.slane %v4978, 4
        %v4981 = vor.u32 %v4980, %v4976
        %v4982 = vrot.slane %v4981, 4
        %v4984 = vshll.u32 %v4771, 16
        %v4986 = vrot.slane %v4984, 5
        %v4987 = vsel %vm1258, %v4982, %v4986
        %v4989 = vshrl.u32 %v4772, 16
        %v4991 = vrot.slane %v4989, 4
        %v4992 = vshll.u32 %v4772, 16
        %v4994 = vrot.slane %v4992, 5
        %v4995 = vor.u32 %v4991, %v4994
        %v4996 = vrot.slane %v4995, 4
        %v4998 = vshll.u32 %v4773, 16
        %v5000 = vrot.slane %v4998, 5
        %v5001 = vsel %vm1258, %v4996, %v5000
        %v5002 = vshrl.u32 %v4773, 16
        %v5004 = vrot.slane %v5002, 4
        %v5005 = vor.u32 %v5004, %v5000
        %v5006 = vrot.slane %v5005, 4
        %v5008 = vshll.u32 %v4774, 16
        %v5010 = vrot.slane %v5008, 5
        %v5011 = vsel %vm1258, %v5006, %v5010
        %v5013 = vshrl.u32 %v4775, 16
        %v5015 = vrot.slane %v5013, 4
        %v5016 = vshll.u32 %v4775, 16
        %v5018 = vrot.slane %v5016, 5
        %v5019 = vor.u32 %v5015, %v5018
        %v5020 = vrot.slane %v5019, 4
        %v5022 = vshll.u32 %v4776, 16
        %v5024 = vrot.slane %v5022, 5
        %v5025 = vsel %vm1258, %v5020, %v5024
        %v5026 = vshrl.u32 %v4776, 16
        %v5028 = vrot.slane %v5026, 4
        %v5029 = vor.u32 %v5028, %v5024
        %v5030 = vrot.slane %v5029, 4
        %v5032 = vshll.u32 %v4777, 16
        %v5034 = vrot.slane %v5032, 5
        %v5035 = vsel %vm1258, %v5030, %v5034
        %v5037 = vshrl.u32 %v4778, 16
        %v5039 = vrot.slane %v5037, 4
        %v5040 = vshll.u32 %v4778, 16
        %v5042 = vrot.slane %v5040, 5
        %v5043 = vor.u32 %v5039, %v5042
        %v5044 = vrot.slane %v5043, 4
        %v5046 = vshll.u32 %v4779, 16
        %v5048 = vrot.slane %v5046, 5
        %v5049 = vsel %vm1258, %v5044, %v5048
        %v5050 = vshrl.u32 %v4779, 16
        %v5052 = vrot.slane %v5050, 4
        %v5053 = vor.u32 %v5052, %v5048
        %v5054 = vrot.slane %v5053, 4
        %v5056 = vshll.u32 %v4780, 16
        %v5058 = vrot.slane %v5056, 5
        %v5059 = vsel %vm1258, %v5054, %v5058
        %v5061 = vshrl.u32 %v4781, 16
        %v5063 = vrot.slane %v5061, 4
        %v5064 = vshll.u32 %v4781, 16
        %v5066 = vrot.slane %v5064, 5
        %v5067 = vor.u32 %v5063, %v5066
        %v5068 = vrot.slane %v5067, 4
        %v5070 = vshll.u32 %v4782, 16
        %v5072 = vrot.slane %v5070, 5
        %v5073 = vsel %vm1258, %v5068, %v5072
        %v5074 = vshrl.u32 %v4782, 16
        %v5076 = vrot.slane %v5074, 4
        %v5077 = vor.u32 %v5076, %v5072
        %v5078 = vrot.slane %v5077, 4
        %v5080 = vshll.u32 %v4783, 16
        %v5082 = vrot.slane %v5080, 5
        %v5083 = vsel %vm1258, %v5078, %v5082
        %v5085 = vshrl.u32 %v4784, 16
        %v5087 = vrot.slane %v5085, 4
        %v5088 = vshll.u32 %v4784, 16
        %v5090 = vrot.slane %v5088, 5
        %v5091 = vor.u32 %v5087, %v5090
        %v5092 = vrot.slane %v5091, 4
        %v5094 = vshll.u32 %v4785, 16
        %v5096 = vrot.slane %v5094, 5
        %v5097 = vsel %vm1258, %v5092, %v5096
        %v5098 = vshrl.u32 %v4785, 16
        %v5100 = vrot.slane %v5098, 4
        %v5101 = vor.u32 %v5100, %v5096
        %v5102 = vrot.slane %v5101, 4
        %v5104 = vshll.u32 %v4786, 16
        %v5106 = vrot.slane %v5104, 5
        %v5107 = vsel %vm1258, %v5102, %v5106
        %v5109 = vshrl.u32 %v4787, 16
        %v5111 = vrot.slane %v5109, 4
        %v5112 = vshll.u32 %v4787, 16
        %v5114 = vrot.slane %v5112, 5
        %v5115 = vor.u32 %v5111, %v5114
        %v5116 = vrot.slane %v5115, 4
        %v5118 = vshll.u32 %v4788, 16
        %v5120 = vrot.slane %v5118, 5
        %v5121 = vsel %vm1258, %v5116, %v5120
        %v5122 = vshrl.u32 %v4788, 16
        %v5124 = vrot.slane %v5122, 4
        %v5125 = vor.u32 %v5124, %v5120
        %v5126 = vrot.slane %v5125, 4
        %v5128 = vshll.u32 %v4789, 16
        %v5130 = vrot.slane %v5128, 5
        %v5131 = vsel %vm1258, %v5126, %v5130
        %v5133 = vshrl.u32 %v4790, 16
        %v5135 = vrot.slane %v5133, 4
        %v5136 = vshll.u32 %v4790, 16
        %v5138 = vrot.slane %v5136, 5
        %v5139 = vor.u32 %v5135, %v5138
        %v5140 = vrot.slane %v5139, 4
        %v5142 = vshll.u32 %v4791, 16
        %v5144 = vrot.slane %v5142, 5
        %v5145 = vsel %vm1258, %v5140, %v5144
        %v5146 = vshrl.u32 %v4791, 16
        %v5148 = vrot.slane %v5146, 4
        %v5149 = vor.u32 %v5148, %v5144
        %v5150 = vrot.slane %v5149, 4
        %v5152 = vshll.u32 %v4792, 16
        %v5154 = vrot.slane %v5152, 5
        %v5155 = vsel %vm1258, %v5150, %v5154
        %v5157 = vshrl.u32 %v4793, 16
        %v5159 = vrot.slane %v5157, 4
        %v5160 = vshll.u32 %v4793, 16
        %v5162 = vrot.slane %v5160, 5
        %v5163 = vor.u32 %v5159, %v5162
        %v5164 = vrot.slane %v5163, 4
        %v5166 = vshll.u32 %v4794, 16
        %v5168 = vrot.slane %v5166, 5
        %v5169 = vsel %vm1258, %v5164, %v5168
        %v5170 = vshrl.u32 %v4794, 16
        %v5172 = vrot.slane %v5170, 4
        %v5173 = vor.u32 %v5172, %v5168
        %v5174 = vrot.slane %v5173, 4
        %v5176 = vshll.u32 %v4795, 16
        %v5178 = vrot.slane %v5176, 5
        %v5179 = vsel %vm1258, %v5174, %v5178
        %s5180 = scalar_lea.vmem %s1, 448
        %v5181 = vld [vmem:[%s5180] sm:$0xf]
        %v5182 = vld [vmem:[%s5180 + $0x4] sm:$0xf]
        %v5183 = vld [vmem:[%s5180 + $0x8] sm:$0xf]
        %v5184 = vld [vmem:[%s5180 + $0xc] sm:$0xf]
        %v5185 = vld [vmem:[%s5180 + $0x10] sm:$0xf]
        %v5186 = vld [vmem:[%s5180 + $0x14] sm:$0xf]
        %v5187 = vld [vmem:[%s5180 + $0x18] sm:$0xf]
        %v5188 = vld [vmem:[%s5180 + $0x1c] sm:$0xf]
        %v5189 = vld [vmem:[%s5180 + $0x20] sm:$0xf]
        %v5190 = vld [vmem:[%s5180 + $0x24] sm:$0xf]
        %v5191 = vld [vmem:[%s5180 + $0x28] sm:$0xf]
        %v5192 = vld [vmem:[%s5180 + $0x2c] sm:$0xf]
        %v5193 = vld [vmem:[%s5180 + $0x30] sm:$0xf]
        %v5194 = vld [vmem:[%s5180 + $0x34] sm:$0xf]
        %v5195 = vld [vmem:[%s5180 + $0x38] sm:$0xf]
        %v5196 = vld [vmem:[%s5180 + $0x3c] sm:$0xf]
        %v5197 = vunpack.c.l.b16 %v4809
        %v5198 = vunpack.c.l.b16 %v4819
        %v5199 = vunpack.c.l.b16 %v4833
        %v5200 = vunpack.c.l.b16 %v4843
        %v5201 = vunpack.c.l.b16 %v4857
        %v5202 = vunpack.c.l.b16 %v4867
        %v5203 = vunpack.c.l.b16 %v4881
        %v5204 = vunpack.c.l.b16 %v4891
        %v5205 = vunpack.c.l.b16 %v4905
        %v5206 = vunpack.c.l.b16 %v4915
        %v5207 = vunpack.c.l.b16 %v4929
        %v5208 = vunpack.c.l.b16 %v4939
        %v5209 = vunpack.c.l.b16 %v4953
        %v5210 = vunpack.c.l.b16 %v4963
        %v5211 = vunpack.c.l.b16 %v4977
        %v5212 = vunpack.c.l.b16 %v4987
        %v5213 = vunpack.c.l.b16 %v5001
        %v5214 = vunpack.c.l.b16 %v5011
        %v5215 = vunpack.c.l.b16 %v5025
        %v5216 = vunpack.c.l.b16 %v5035
        %v5217 = vunpack.c.l.b16 %v5049
        %v5218 = vunpack.c.l.b16 %v5059
        %v5219 = vunpack.c.l.b16 %v5073
        %v5220 = vunpack.c.l.b16 %v5083
        %v5221 = vunpack.c.l.b16 %v5097
        %v5222 = vunpack.c.l.b16 %v5107
        %v5223 = vunpack.c.l.b16 %v5121
        %v5224 = vunpack.c.l.b16 %v5131
        %v5225 = vunpack.c.l.b16 %v5145
        %v5226 = vunpack.c.l.b16 %v5155
        %v5227 = vunpack.c.l.b16 %v5169
        %v5228 = vunpack.c.l.b16 %v5179
        %v5229 = vpack.c.b16 %v5198, %v5197
        %v5230 = vpack.c.b16 %v5200, %v5199
        %v5231 = vpack.c.b16 %v5202, %v5201
        %v5232 = vpack.c.b16 %v5204, %v5203
        %v5233 = vpack.c.b16 %v5206, %v5205
        %v5234 = vpack.c.b16 %v5208, %v5207
        %v5235 = vpack.c.b16 %v5210, %v5209
        %v5236 = vpack.c.b16 %v5212, %v5211
        %v5237 = vpack.c.b16 %v5214, %v5213
        %v5238 = vpack.c.b16 %v5216, %v5215
        %v5239 = vpack.c.b16 %v5218, %v5217
        %v5240 = vpack.c.b16 %v5220, %v5219
        %v5241 = vpack.c.b16 %v5222, %v5221
        %v5242 = vpack.c.b16 %v5224, %v5223
        %v5243 = vpack.c.b16 %v5226, %v5225
        %v5244 = vpack.c.b16 %v5228, %v5227
        %v5277 = vunpack.c.l.b16 %v5181
        %v5278 = vunpack.c.l.b16 %v5182
        %v5279 = vunpack.c.l.b16 %v5183
        %v5280 = vunpack.c.l.b16 %v5184
        %v5281 = vunpack.c.l.b16 %v5185
        %v5282 = vunpack.c.l.b16 %v5186
        %v5283 = vunpack.c.l.b16 %v5187
        %v5284 = vunpack.c.l.b16 %v5188
        %v5285 = vunpack.c.l.b16 %v5189
        %v5286 = vunpack.c.l.b16 %v5190
        %v5287 = vunpack.c.l.b16 %v5191
        %v5288 = vunpack.c.l.b16 %v5192
        %v5289 = vunpack.c.l.b16 %v5193
        %v5290 = vunpack.c.l.b16 %v5194
        %v5291 = vunpack.c.l.b16 %v5195
        %v5292 = vunpack.c.l.b16 %v5196
        %v5293 = vpack.c.b16 %v5278, %v5277
        %v5294 = vpack.c.b16 %v5280, %v5279
        %v5295 = vpack.c.b16 %v5282, %v5281
        %v5296 = vpack.c.b16 %v5284, %v5283
        %v5297 = vpack.c.b16 %v5286, %v5285
        %v5298 = vpack.c.b16 %v5288, %v5287
        %v5299 = vpack.c.b16 %v5290, %v5289
        %v5300 = vpack.c.b16 %v5292, %v5291
        %5309 = vmatprep.subr.bf16.mxu0 0
        %5310 = vmatpush1.bf16.msra.mxu0 %v5300
        %5311 = vmatprep.subr.bf16.mxu0 0
        %5312 = vmatpush1.bf16.msra.mxu0 %v5299
        %5313 = vmatprep.subr.bf16.mxu0 0
        %5314 = vmatpush1.bf16.msra.mxu0 %v5298
        %5315 = vmatprep.subr.bf16.mxu0 0
        %5316 = vmatpush1.bf16.msra.mxu0 %v5297
        %5317 = vmatprep.subr.bf16.mxu0 0
        %5318 = vmatpush1.bf16.msra.mxu0 %v5296
        %5319 = vmatprep.subr.bf16.mxu0 0
        %5320 = vmatpush1.bf16.msra.mxu0 %v5295
        %5321 = vmatprep.subr.bf16.mxu0 0
        %5322 = vmatpush1.bf16.msra.mxu0 %v5294
        %5323 = vmatprep.subr.bf16.mxu0 0
        %5324 = vmatpush1.bf16.msra.mxu0 %v5293
        %5325 = vmatprep.subr.bf16.mxu0 0
        %5326 = vmatpush2.bf16.msra.mxu0 0
        %5327 = vmatprep.subr.bf16.mxu0 0
        %5328 = vmatpush2.bf16.msra.mxu0 0
        %5329 = vmatprep.subr.bf16.mxu0 0
        %5330 = vmatpush2.bf16.msra.mxu0 0
        %5331 = vmatprep.subr.bf16.mxu0 0
        %5332 = vmatpush2.bf16.msra.mxu0 0
        %5333 = vmatprep.subr.bf16.mxu0 0
        %5334 = vmatpush2.bf16.msra.mxu0 0
        %5335 = vmatprep.subr.bf16.mxu0 0
        %5336 = vmatpush2.bf16.msra.mxu0 0
        %5337 = vmatprep.subr.bf16.mxu0 0
        %5338 = vmatpush2.bf16.msra.mxu0 0
        %5339 = vmatprep.subr.bf16.mxu0 0
        %5340 = vmatpush2.bf16.msra.mxu0 0
        %5341 = vmatprep.mubr.bf16.mxu0 0
        %5342 = vmatmul.mubr.bf16.gmra.mxu0 %v5229
        %v5343 = vpop.f32.mrf.mxu0
        %v5344 = vadd.f32 0.0, %v5343
        %v5345 = vpop.f32.mrf.mxu0
        %v5346 = vpop.f32.mrf.mxu0
        %v5347 = vadd.f32 0.0, %v5346
        %v5348 = vpop.f32.mrf.mxu0
        %5349 = vmatprep.mubr.bf16.mxu0 0
        %5350 = vmatmul.mubr.bf16.gmra.mxu0 %v5230
        %v5351 = vpop.f32.mrf.mxu0
        %v5352 = vadd.f32 0.0, %v5351
        %v5353 = vpop.f32.mrf.mxu0
        %v5354 = vpop.f32.mrf.mxu0
        %v5355 = vadd.f32 0.0, %v5354
        %v5356 = vpop.f32.mrf.mxu0
        %5357 = vmatprep.mubr.bf16.mxu0 0
        %5358 = vmatmul.mubr.bf16.gmra.mxu0 %v5231
        %v5359 = vpop.f32.mrf.mxu0
        %v5360 = vadd.f32 0.0, %v5359
        %v5361 = vpop.f32.mrf.mxu0
        %v5362 = vpop.f32.mrf.mxu0
        %v5363 = vadd.f32 0.0, %v5362
        %v5364 = vpop.f32.mrf.mxu0
        %5365 = vmatprep.mubr.bf16.mxu0 0
        %5366 = vmatmul.mubr.bf16.gmra.mxu0 %v5232
        %v5367 = vpop.f32.mrf.mxu0
        %v5368 = vadd.f32 0.0, %v5367
        %v5369 = vpop.f32.mrf.mxu0
        %v5370 = vpop.f32.mrf.mxu0
        %v5371 = vadd.f32 0.0, %v5370
        %v5372 = vpop.f32.mrf.mxu0
        %5373 = vmatprep.mubr.bf16.mxu0 0
        %5374 = vmatmul.mubr.bf16.gmra.mxu0 %v5233
        %v5375 = vpop.f32.mrf.mxu0
        %v5376 = vadd.f32 0.0, %v5375
        %v5377 = vpop.f32.mrf.mxu0
        %v5378 = vpop.f32.mrf.mxu0
        %v5379 = vadd.f32 0.0, %v5378
        %v5380 = vpop.f32.mrf.mxu0
        %5381 = vmatprep.mubr.bf16.mxu0 0
        %5382 = vmatmul.mubr.bf16.gmra.mxu0 %v5234
        %v5383 = vpop.f32.mrf.mxu0
        %v5384 = vadd.f32 0.0, %v5383
        %v5385 = vpop.f32.mrf.mxu0
        %v5386 = vpop.f32.mrf.mxu0
        %v5387 = vadd.f32 0.0, %v5386
        %v5388 = vpop.f32.mrf.mxu0
        %5389 = vmatprep.mubr.bf16.mxu0 0
        %5390 = vmatmul.mubr.bf16.gmra.mxu0 %v5235
        %v5391 = vpop.f32.mrf.mxu0
        %v5392 = vadd.f32 0.0, %v5391
        %v5393 = vpop.f32.mrf.mxu0
        %v5394 = vpop.f32.mrf.mxu0
        %v5395 = vadd.f32 0.0, %v5394
        %v5396 = vpop.f32.mrf.mxu0
        %5397 = vmatprep.mubr.bf16.mxu0 0
        %5398 = vmatmul.mubr.bf16.gmra.mxu0 %v5236
        %v5399 = vpop.f32.mrf.mxu0
        %v5400 = vadd.f32 0.0, %v5399
        %v5401 = vpop.f32.mrf.mxu0
        %v5402 = vpop.f32.mrf.mxu0
        %v5403 = vadd.f32 0.0, %v5402
        %v5404 = vpop.f32.mrf.mxu0
        %5405 = vmatprep.mubr.bf16.mxu0 0
        %5406 = vmatmul.mubr.bf16.gmra.mxu0 %v5237
        %v5407 = vpop.f32.mrf.mxu0
        %v5408 = vadd.f32 0.0, %v5407
        %v5409 = vpop.f32.mrf.mxu0
        %v5410 = vpop.f32.mrf.mxu0
        %v5411 = vadd.f32 0.0, %v5410
        %v5412 = vpop.f32.mrf.mxu0
        %5413 = vmatprep.mubr.bf16.mxu0 0
        %5414 = vmatmul.mubr.bf16.gmra.mxu0 %v5238
        %v5415 = vpop.f32.mrf.mxu0
        %v5416 = vadd.f32 0.0, %v5415
        %v5417 = vpop.f32.mrf.mxu0
        %v5418 = vpop.f32.mrf.mxu0
        %v5419 = vadd.f32 0.0, %v5418
        %v5420 = vpop.f32.mrf.mxu0
        %5421 = vmatprep.mubr.bf16.mxu0 0
        %5422 = vmatmul.mubr.bf16.gmra.mxu0 %v5239
        %v5423 = vpop.f32.mrf.mxu0
        %v5424 = vadd.f32 0.0, %v5423
        %v5425 = vpop.f32.mrf.mxu0
        %v5426 = vpop.f32.mrf.mxu0
        %v5427 = vadd.f32 0.0, %v5426
        %v5428 = vpop.f32.mrf.mxu0
        %5429 = vmatprep.mubr.bf16.mxu0 0
        %5430 = vmatmul.mubr.bf16.gmra.mxu0 %v5240
        %v5431 = vpop.f32.mrf.mxu0
        %v5432 = vadd.f32 0.0, %v5431
        %v5433 = vpop.f32.mrf.mxu0
        %v5434 = vpop.f32.mrf.mxu0
        %v5435 = vadd.f32 0.0, %v5434
        %v5436 = vpop.f32.mrf.mxu0
        %5437 = vmatprep.mubr.bf16.mxu0 0
        %5438 = vmatmul.mubr.bf16.gmra.mxu0 %v5241
        %v5439 = vpop.f32.mrf.mxu0
        %v5440 = vadd.f32 0.0, %v5439
        %v5441 = vpop.f32.mrf.mxu0
        %v5442 = vpop.f32.mrf.mxu0
        %v5443 = vadd.f32 0.0, %v5442
        %v5444 = vpop.f32.mrf.mxu0
        %5445 = vmatprep.mubr.bf16.mxu0 0
        %5446 = vmatmul.mubr.bf16.gmra.mxu0 %v5242
        %v5447 = vpop.f32.mrf.mxu0
        %v5448 = vadd.f32 0.0, %v5447
        %v5449 = vpop.f32.mrf.mxu0
        %v5450 = vpop.f32.mrf.mxu0
        %v5451 = vadd.f32 0.0, %v5450
        %v5452 = vpop.f32.mrf.mxu0
        %5453 = vmatprep.mubr.bf16.mxu0 0
        %5454 = vmatmul.mubr.bf16.gmra.mxu0 %v5243
        %v5455 = vpop.f32.mrf.mxu0
        %v5456 = vadd.f32 0.0, %v5455
        %v5457 = vpop.f32.mrf.mxu0
        %v5458 = vpop.f32.mrf.mxu0
        %v5459 = vadd.f32 0.0, %v5458
        %v5460 = vpop.f32.mrf.mxu0
        %5461 = vmatprep.mubr.bf16.mxu0 0
        %5462 = vmatmul.mubr.bf16.gmra.mxu0 %v5244
        %v5463 = vpop.f32.mrf.mxu0
        %v5464 = vadd.f32 0.0, %v5463
        %v5465 = vpop.f32.mrf.mxu0
        %v5466 = vpop.f32.mrf.mxu0
        %v5467 = vadd.f32 0.0, %v5466
        %v5468 = vpop.f32.mrf.mxu0
        %5469 = vdwg.mxu0
        %v5470 = vadd.f32 %v4716, %v5344
        %v5471 = vadd.f32 %v4717, %v5347
        %v5472 = vadd.f32 %v4718, %v5352
        %v5473 = vadd.f32 %v4719, %v5355
        %v5474 = vadd.f32 %v4720, %v5360
        %v5475 = vadd.f32 %v4721, %v5363
        %v5476 = vadd.f32 %v4722, %v5368
        %v5477 = vadd.f32 %v4723, %v5371
        %v5478 = vadd.f32 %v4724, %v5376
        %v5479 = vadd.f32 %v4725, %v5379
        %v5480 = vadd.f32 %v4726, %v5384
        %v5481 = vadd.f32 %v4727, %v5387
        %v5482 = vadd.f32 %v4728, %v5392
        %v5483 = vadd.f32 %v4729, %v5395
        %v5484 = vadd.f32 %v4730, %v5400
        %v5485 = vadd.f32 %v4731, %v5403
        %v5486 = vadd.f32 %v4732, %v5408
        %v5487 = vadd.f32 %v4733, %v5411
        %v5488 = vadd.f32 %v4734, %v5416
        %v5489 = vadd.f32 %v4735, %v5419
        %v5490 = vadd.f32 %v4736, %v5424
        %v5491 = vadd.f32 %v4737, %v5427
        %v5492 = vadd.f32 %v4738, %v5432
        %v5493 = vadd.f32 %v4739, %v5435
        %v5494 = vadd.f32 %v4740, %v5440
        %v5495 = vadd.f32 %v4741, %v5443
        %v5496 = vadd.f32 %v4742, %v5448
        %v5497 = vadd.f32 %v4743, %v5451
        %v5498 = vadd.f32 %v4744, %v5456
        %v5499 = vadd.f32 %v4745, %v5459
        %v5500 = vadd.f32 %v4746, %v5464
        %v5501 = vadd.f32 %v4747, %v5467
        %v5502 = vld [vmem:[%s4361] sm:$0xe]
        %v5503 = vld [vmem:[%s4361 + $0xc] sm:$0xe]
        %v5504 = vld [vmem:[%s4361 + $0x18] sm:$0xe]
        %v5505 = vld [vmem:[%s4361 + $0x24] sm:$0xe]
        %v5506 = vld [vmem:[%s4361 + $0x30] sm:$0xe]
        %v5507 = vld [vmem:[%s4361 + $0x3c] sm:$0xe]
        %v5508 = vld [vmem:[%s4361 + $0x48] sm:$0xe]
        %v5509 = vld [vmem:[%s4361 + $0x54] sm:$0xe]
        %v5510 = vld [vmem:[%s4361 + $0x60] sm:$0xe]
        %v5511 = vld [vmem:[%s4361 + $0x6c] sm:$0xe]
        %v5512 = vld [vmem:[%s4361 + $0x78] sm:$0xe]
        %v5513 = vld [vmem:[%s4361 + $0x84] sm:$0xe]
        %v5514 = vld [vmem:[%s4361 + $0x90] sm:$0xe]
        %v5515 = vld [vmem:[%s4361 + $0x9c] sm:$0xe]
        %v5516 = vld [vmem:[%s4361 + $0xa8] sm:$0xe]
        %v5517 = vld [vmem:[%s4361 + $0xb4] sm:$0xe]
        %v5566 = vrot.slane %v5502, 5
        %v5567 = vrot.slane %v5566, 4
        %v5568 = vrot.slane %v4749, 5
        %v5569 = vsel %vm2288, %v5567, %v5568
        %v5570 = vrot.slane %v5568, 4
        %v5571 = vrot.slane %v4750, 5
        %v5572 = vsel %vm2288, %v5570, %v5571
        %v5573 = vrot.slane %v5503, 5
        %v5574 = vrot.slane %v5573, 4
        %v5575 = vrot.slane %v4752, 5
        %v5576 = vsel %vm2288, %v5574, %v5575
        %v5577 = vrot.slane %v5575, 4
        %v5578 = vrot.slane %v4753, 5
        %v5579 = vsel %vm2288, %v5577, %v5578
        %v5580 = vrot.slane %v5504, 5
        %v5581 = vrot.slane %v5580, 4
        %v5582 = vrot.slane %v4755, 5
        %v5583 = vsel %vm2288, %v5581, %v5582
        %v5584 = vrot.slane %v5582, 4
        %v5585 = vrot.slane %v4756, 5
        %v5586 = vsel %vm2288, %v5584, %v5585
        %v5587 = vrot.slane %v5505, 5
        %v5588 = vrot.slane %v5587, 4
        %v5589 = vrot.slane %v4758, 5
        %v5590 = vsel %vm2288, %v5588, %v5589
        %v5591 = vrot.slane %v5589, 4
        %v5592 = vrot.slane %v4759, 5
        %v5593 = vsel %vm2288, %v5591, %v5592
        %v5594 = vrot.slane %v5506, 5
        %v5595 = vrot.slane %v5594, 4
        %v5596 = vrot.slane %v4761, 5
        %v5597 = vsel %vm2288, %v5595, %v5596
        %v5598 = vrot.slane %v5596, 4
        %v5599 = vrot.slane %v4762, 5
        %v5600 = vsel %vm2288, %v5598, %v5599
        %v5601 = vrot.slane %v5507, 5
        %v5602 = vrot.slane %v5601, 4
        %v5603 = vrot.slane %v4764, 5
        %v5604 = vsel %vm2288, %v5602, %v5603
        %v5605 = vrot.slane %v5603, 4
        %v5606 = vrot.slane %v4765, 5
        %v5607 = vsel %vm2288, %v5605, %v5606
        %v5608 = vrot.slane %v5508, 5
        %v5609 = vrot.slane %v5608, 4
        %v5610 = vrot.slane %v4767, 5
        %v5611 = vsel %vm2288, %v5609, %v5610
        %v5612 = vrot.slane %v5610, 4
        %v5613 = vrot.slane %v4768, 5
        %v5614 = vsel %vm2288, %v5612, %v5613
        %v5615 = vrot.slane %v5509, 5
        %v5616 = vrot.slane %v5615, 4
        %v5617 = vrot.slane %v4770, 5
        %v5618 = vsel %vm2288, %v5616, %v5617
        %v5619 = vrot.slane %v5617, 4
        %v5620 = vrot.slane %v4771, 5
        %v5621 = vsel %vm2288, %v5619, %v5620
        %v5622 = vrot.slane %v5510, 5
        %v5623 = vrot.slane %v5622, 4
        %v5624 = vrot.slane %v4773, 5
        %v5625 = vsel %vm2288, %v5623, %v5624
        %v5626 = vrot.slane %v5624, 4
        %v5627 = vrot.slane %v4774, 5
        %v5628 = vsel %vm2288, %v5626, %v5627
        %v5629 = vrot.slane %v5511, 5
        %v5630 = vrot.slane %v5629, 4
        %v5631 = vrot.slane %v4776, 5
        %v5632 = vsel %vm2288, %v5630, %v5631
        %v5633 = vrot.slane %v5631, 4
        %v5634 = vrot.slane %v4777, 5
        %v5635 = vsel %vm2288, %v5633, %v5634
        %v5636 = vrot.slane %v5512, 5
        %v5637 = vrot.slane %v5636, 4
        %v5638 = vrot.slane %v4779, 5
        %v5639 = vsel %vm2288, %v5637, %v5638
        %v5640 = vrot.slane %v5638, 4
        %v5641 = vrot.slane %v4780, 5
        %v5642 = vsel %vm2288, %v5640, %v5641
        %v5643 = vrot.slane %v5513, 5
        %v5644 = vrot.slane %v5643, 4
        %v5645 = vrot.slane %v4782, 5
        %v5646 = vsel %vm2288, %v5644, %v5645
        %v5647 = vrot.slane %v5645, 4
        %v5648 = vrot.slane %v4783, 5
        %v5649 = vsel %vm2288, %v5647, %v5648
        %v5650 = vrot.slane %v5514, 5
        %v5651 = vrot.slane %v5650, 4
        %v5652 = vrot.slane %v4785, 5
        %v5653 = vsel %vm2288, %v5651, %v5652
        %v5654 = vrot.slane %v5652, 4
        %v5655 = vrot.slane %v4786, 5
        %v5656 = vsel %vm2288, %v5654, %v5655
        %v5657 = vrot.slane %v5515, 5
        %v5658 = vrot.slane %v5657, 4
        %v5659 = vrot.slane %v4788, 5
        %v5660 = vsel %vm2288, %v5658, %v5659
        %v5661 = vrot.slane %v5659, 4
        %v5662 = vrot.slane %v4789, 5
        %v5663 = vsel %vm2288, %v5661, %v5662
        %v5664 = vrot.slane %v5516, 5
        %v5665 = vrot.slane %v5664, 4
        %v5666 = vrot.slane %v4791, 5
        %v5667 = vsel %vm2288, %v5665, %v5666
        %v5668 = vrot.slane %v5666, 4
        %v5669 = vrot.slane %v4792, 5
        %v5670 = vsel %vm2288, %v5668, %v5669
        %v5671 = vrot.slane %v5517, 5
        %v5672 = vrot.slane %v5671, 4
        %v5673 = vrot.slane %v4794, 5
        %v5674 = vsel %vm2288, %v5672, %v5673
        %v5675 = vrot.slane %v5673, 4
        %v5676 = vrot.slane %v4795, 5
        %v5677 = vsel %vm2288, %v5675, %v5676
        %s5678 = scalar_lea.vmem %s1, 512
        %v5679 = vld [vmem:[%s5678] sm:$0xf]
        %v5680 = vld [vmem:[%s5678 + $0x4] sm:$0xf]
        %v5681 = vld [vmem:[%s5678 + $0x8] sm:$0xf]
        %v5682 = vld [vmem:[%s5678 + $0xc] sm:$0xf]
        %v5683 = vld [vmem:[%s5678 + $0x10] sm:$0xf]
        %v5684 = vld [vmem:[%s5678 + $0x14] sm:$0xf]
        %v5685 = vld [vmem:[%s5678 + $0x18] sm:$0xf]
        %v5686 = vld [vmem:[%s5678 + $0x1c] sm:$0xf]
        %v5687 = vld [vmem:[%s5678 + $0x20] sm:$0xf]
        %v5688 = vld [vmem:[%s5678 + $0x24] sm:$0xf]
        %v5689 = vld [vmem:[%s5678 + $0x28] sm:$0xf]
        %v5690 = vld [vmem:[%s5678 + $0x2c] sm:$0xf]
        %v5691 = vld [vmem:[%s5678 + $0x30] sm:$0xf]
        %v5692 = vld [vmem:[%s5678 + $0x34] sm:$0xf]
        %v5693 = vld [vmem:[%s5678 + $0x38] sm:$0xf]
        %v5694 = vld [vmem:[%s5678 + $0x3c] sm:$0xf]
        %v5695 = vunpack.c.l.b16 %v5569
        %v5696 = vunpack.c.l.b16 %v5572
        %v5697 = vunpack.c.l.b16 %v5576
        %v5698 = vunpack.c.l.b16 %v5579
        %v5699 = vunpack.c.l.b16 %v5583
        %v5700 = vunpack.c.l.b16 %v5586
        %v5701 = vunpack.c.l.b16 %v5590
        %v5702 = vunpack.c.l.b16 %v5593
        %v5703 = vunpack.c.l.b16 %v5597
        %v5704 = vunpack.c.l.b16 %v5600
        %v5705 = vunpack.c.l.b16 %v5604
        %v5706 = vunpack.c.l.b16 %v5607
        %v5707 = vunpack.c.l.b16 %v5611
        %v5708 = vunpack.c.l.b16 %v5614
        %v5709 = vunpack.c.l.b16 %v5618
        %v5710 = vunpack.c.l.b16 %v5621
        %v5711 = vunpack.c.l.b16 %v5625
        %v5712 = vunpack.c.l.b16 %v5628
        %v5713 = vunpack.c.l.b16 %v5632
        %v5714 = vunpack.c.l.b16 %v5635
        %v5715 = vunpack.c.l.b16 %v5639
        %v5716 = vunpack.c.l.b16 %v5642
        %v5717 = vunpack.c.l.b16 %v5646
        %v5718 = vunpack.c.l.b16 %v5649
        %v5719 = vunpack.c.l.b16 %v5653
        %v5720 = vunpack.c.l.b16 %v5656
        %v5721 = vunpack.c.l.b16 %v5660
        %v5722 = vunpack.c.l.b16 %v5663
        %v5723 = vunpack.c.l.b16 %v5667
        %v5724 = vunpack.c.l.b16 %v5670
        %v5725 = vunpack.c.l.b16 %v5674
        %v5726 = vunpack.c.l.b16 %v5677
        %v5727 = vpack.c.b16 %v5696, %v5695
        %v5728 = vpack.c.b16 %v5698, %v5697
        %v5729 = vpack.c.b16 %v5700, %v5699
        %v5730 = vpack.c.b16 %v5702, %v5701
        %v5731 = vpack.c.b16 %v5704, %v5703
        %v5732 = vpack.c.b16 %v5706, %v5705
        %v5733 = vpack.c.b16 %v5708, %v5707
        %v5734 = vpack.c.b16 %v5710, %v5709
        %v5735 = vpack.c.b16 %v5712, %v5711
        %v5736 = vpack.c.b16 %v5714, %v5713
        %v5737 = vpack.c.b16 %v5716, %v5715
        %v5738 = vpack.c.b16 %v5718, %v5717
        %v5739 = vpack.c.b16 %v5720, %v5719
        %v5740 = vpack.c.b16 %v5722, %v5721
        %v5741 = vpack.c.b16 %v5724, %v5723
        %v5742 = vpack.c.b16 %v5726, %v5725
        %v5775 = vunpack.c.l.b16 %v5679
        %v5776 = vunpack.c.l.b16 %v5680
        %v5777 = vunpack.c.l.b16 %v5681
        %v5778 = vunpack.c.l.b16 %v5682
        %v5779 = vunpack.c.l.b16 %v5683
        %v5780 = vunpack.c.l.b16 %v5684
        %v5781 = vunpack.c.l.b16 %v5685
        %v5782 = vunpack.c.l.b16 %v5686
        %v5783 = vunpack.c.l.b16 %v5687
        %v5784 = vunpack.c.l.b16 %v5688
        %v5785 = vunpack.c.l.b16 %v5689
        %v5786 = vunpack.c.l.b16 %v5690
        %v5787 = vunpack.c.l.b16 %v5691
        %v5788 = vunpack.c.l.b16 %v5692
        %v5789 = vunpack.c.l.b16 %v5693
        %v5790 = vunpack.c.l.b16 %v5694
        %v5791 = vpack.c.b16 %v5776, %v5775
        %v5792 = vpack.c.b16 %v5778, %v5777
        %v5793 = vpack.c.b16 %v5780, %v5779
        %v5794 = vpack.c.b16 %v5782, %v5781
        %v5795 = vpack.c.b16 %v5784, %v5783
        %v5796 = vpack.c.b16 %v5786, %v5785
        %v5797 = vpack.c.b16 %v5788, %v5787
        %v5798 = vpack.c.b16 %v5790, %v5789
        %5807 = vmatprep.subr.bf16.mxu0 0
        %5808 = vmatpush1.bf16.msra.mxu0 %v5798
        %5809 = vmatprep.subr.bf16.mxu0 0
        %5810 = vmatpush1.bf16.msra.mxu0 %v5797
        %5811 = vmatprep.subr.bf16.mxu0 0
        %5812 = vmatpush1.bf16.msra.mxu0 %v5796
        %5813 = vmatprep.subr.bf16.mxu0 0
        %5814 = vmatpush1.bf16.msra.mxu0 %v5795
        %5815 = vmatprep.subr.bf16.mxu0 0
        %5816 = vmatpush1.bf16.msra.mxu0 %v5794
        %5817 = vmatprep.subr.bf16.mxu0 0
        %5818 = vmatpush1.bf16.msra.mxu0 %v5793
        %5819 = vmatprep.subr.bf16.mxu0 0
        %5820 = vmatpush1.bf16.msra.mxu0 %v5792
        %5821 = vmatprep.subr.bf16.mxu0 0
        %5822 = vmatpush1.bf16.msra.mxu0 %v5791
        %5823 = vmatprep.subr.bf16.mxu0 0
        %5824 = vmatpush2.bf16.msra.mxu0 0
        %5825 = vmatprep.subr.bf16.mxu0 0
        %5826 = vmatpush2.bf16.msra.mxu0 0
        %5827 = vmatprep.subr.bf16.mxu0 0
        %5828 = vmatpush2.bf16.msra.mxu0 0
        %5829 = vmatprep.subr.bf16.mxu0 0
        %5830 = vmatpush2.bf16.msra.mxu0 0
        %5831 = vmatprep.subr.bf16.mxu0 0
        %5832 = vmatpush2.bf16.msra.mxu0 0
        %5833 = vmatprep.subr.bf16.mxu0 0
        %5834 = vmatpush2.bf16.msra.mxu0 0
        %5835 = vmatprep.subr.bf16.mxu0 0
        %5836 = vmatpush2.bf16.msra.mxu0 0
        %5837 = vmatprep.subr.bf16.mxu0 0
        %5838 = vmatpush2.bf16.msra.mxu0 0
        %5839 = vmatprep.mubr.bf16.mxu0 0
        %5840 = vmatmul.mubr.bf16.gmra.mxu0 %v5727
        %v5841 = vpop.f32.mrf.mxu0
        %v5842 = vadd.f32 0.0, %v5841
        %v5843 = vpop.f32.mrf.mxu0
        %v5844 = vpop.f32.mrf.mxu0
        %v5845 = vadd.f32 0.0, %v5844
        %v5846 = vpop.f32.mrf.mxu0
        %5847 = vmatprep.mubr.bf16.mxu0 0
        %5848 = vmatmul.mubr.bf16.gmra.mxu0 %v5728
        %v5849 = vpop.f32.mrf.mxu0
        %v5850 = vadd.f32 0.0, %v5849
        %v5851 = vpop.f32.mrf.mxu0
        %v5852 = vpop.f32.mrf.mxu0
        %v5853 = vadd.f32 0.0, %v5852
        %v5854 = vpop.f32.mrf.mxu0
        %5855 = vmatprep.mubr.bf16.mxu0 0
        %5856 = vmatmul.mubr.bf16.gmra.mxu0 %v5729
        %v5857 = vpop.f32.mrf.mxu0
        %v5858 = vadd.f32 0.0, %v5857
        %v5859 = vpop.f32.mrf.mxu0
        %v5860 = vpop.f32.mrf.mxu0
        %v5861 = vadd.f32 0.0, %v5860
        %v5862 = vpop.f32.mrf.mxu0
        %5863 = vmatprep.mubr.bf16.mxu0 0
        %5864 = vmatmul.mubr.bf16.gmra.mxu0 %v5730
        %v5865 = vpop.f32.mrf.mxu0
        %v5866 = vadd.f32 0.0, %v5865
        %v5867 = vpop.f32.mrf.mxu0
        %v5868 = vpop.f32.mrf.mxu0
        %v5869 = vadd.f32 0.0, %v5868
        %v5870 = vpop.f32.mrf.mxu0
        %5871 = vmatprep.mubr.bf16.mxu0 0
        %5872 = vmatmul.mubr.bf16.gmra.mxu0 %v5731
        %v5873 = vpop.f32.mrf.mxu0
        %v5874 = vadd.f32 0.0, %v5873
        %v5875 = vpop.f32.mrf.mxu0
        %v5876 = vpop.f32.mrf.mxu0
        %v5877 = vadd.f32 0.0, %v5876
        %v5878 = vpop.f32.mrf.mxu0
        %5879 = vmatprep.mubr.bf16.mxu0 0
        %5880 = vmatmul.mubr.bf16.gmra.mxu0 %v5732
        %v5881 = vpop.f32.mrf.mxu0
        %v5882 = vadd.f32 0.0, %v5881
        %v5883 = vpop.f32.mrf.mxu0
        %v5884 = vpop.f32.mrf.mxu0
        %v5885 = vadd.f32 0.0, %v5884
        %v5886 = vpop.f32.mrf.mxu0
        %5887 = vmatprep.mubr.bf16.mxu0 0
        %5888 = vmatmul.mubr.bf16.gmra.mxu0 %v5733
        %v5889 = vpop.f32.mrf.mxu0
        %v5890 = vadd.f32 0.0, %v5889
        %v5891 = vpop.f32.mrf.mxu0
        %v5892 = vpop.f32.mrf.mxu0
        %v5893 = vadd.f32 0.0, %v5892
        %v5894 = vpop.f32.mrf.mxu0
        %5895 = vmatprep.mubr.bf16.mxu0 0
        %5896 = vmatmul.mubr.bf16.gmra.mxu0 %v5734
        %v5897 = vpop.f32.mrf.mxu0
        %v5898 = vadd.f32 0.0, %v5897
        %v5899 = vpop.f32.mrf.mxu0
        %v5900 = vpop.f32.mrf.mxu0
        %v5901 = vadd.f32 0.0, %v5900
        %v5902 = vpop.f32.mrf.mxu0
        %5903 = vmatprep.mubr.bf16.mxu0 0
        %5904 = vmatmul.mubr.bf16.gmra.mxu0 %v5735
        %v5905 = vpop.f32.mrf.mxu0
        %v5906 = vadd.f32 0.0, %v5905
        %v5907 = vpop.f32.mrf.mxu0
        %v5908 = vpop.f32.mrf.mxu0
        %v5909 = vadd.f32 0.0, %v5908
        %v5910 = vpop.f32.mrf.mxu0
        %5911 = vmatprep.mubr.bf16.mxu0 0
        %5912 = vmatmul.mubr.bf16.gmra.mxu0 %v5736
        %v5913 = vpop.f32.mrf.mxu0
        %v5914 = vadd.f32 0.0, %v5913
        %v5915 = vpop.f32.mrf.mxu0
        %v5916 = vpop.f32.mrf.mxu0
        %v5917 = vadd.f32 0.0, %v5916
        %v5918 = vpop.f32.mrf.mxu0
        %5919 = vmatprep.mubr.bf16.mxu0 0
        %5920 = vmatmul.mubr.bf16.gmra.mxu0 %v5737
        %v5921 = vpop.f32.mrf.mxu0
        %v5922 = vadd.f32 0.0, %v5921
        %v5923 = vpop.f32.mrf.mxu0
        %v5924 = vpop.f32.mrf.mxu0
        %v5925 = vadd.f32 0.0, %v5924
        %v5926 = vpop.f32.mrf.mxu0
        %5927 = vmatprep.mubr.bf16.mxu0 0
        %5928 = vmatmul.mubr.bf16.gmra.mxu0 %v5738
        %v5929 = vpop.f32.mrf.mxu0
        %v5930 = vadd.f32 0.0, %v5929
        %v5931 = vpop.f32.mrf.mxu0
        %v5932 = vpop.f32.mrf.mxu0
        %v5933 = vadd.f32 0.0, %v5932
        %v5934 = vpop.f32.mrf.mxu0
        %5935 = vmatprep.mubr.bf16.mxu0 0
        %5936 = vmatmul.mubr.bf16.gmra.mxu0 %v5739
        %v5937 = vpop.f32.mrf.mxu0
        %v5938 = vadd.f32 0.0, %v5937
        %v5939 = vpop.f32.mrf.mxu0
        %v5940 = vpop.f32.mrf.mxu0
        %v5941 = vadd.f32 0.0, %v5940
        %v5942 = vpop.f32.mrf.mxu0
        %5943 = vmatprep.mubr.bf16.mxu0 0
        %5944 = vmatmul.mubr.bf16.gmra.mxu0 %v5740
        %v5945 = vpop.f32.mrf.mxu0
        %v5946 = vadd.f32 0.0, %v5945
        %v5947 = vpop.f32.mrf.mxu0
        %v5948 = vpop.f32.mrf.mxu0
        %v5949 = vadd.f32 0.0, %v5948
        %v5950 = vpop.f32.mrf.mxu0
        %5951 = vmatprep.mubr.bf16.mxu0 0
        %5952 = vmatmul.mubr.bf16.gmra.mxu0 %v5741
        %v5953 = vpop.f32.mrf.mxu0
        %v5954 = vadd.f32 0.0, %v5953
        %v5955 = vpop.f32.mrf.mxu0
        %v5956 = vpop.f32.mrf.mxu0
        %v5957 = vadd.f32 0.0, %v5956
        %v5958 = vpop.f32.mrf.mxu0
        %5959 = vmatprep.mubr.bf16.mxu0 0
        %5960 = vmatmul.mubr.bf16.gmra.mxu0 %v5742
        %v5961 = vpop.f32.mrf.mxu0
        %v5962 = vadd.f32 0.0, %v5961
        %v5963 = vpop.f32.mrf.mxu0
        %v5964 = vpop.f32.mrf.mxu0
        %v5965 = vadd.f32 0.0, %v5964
        %v5966 = vpop.f32.mrf.mxu0
        %5967 = vdwg.mxu0
        %v5968 = vadd.f32 %v5470, %v5842
        %v5969 = vadd.f32 %v5471, %v5845
        %v5970 = vadd.f32 %v5472, %v5850
        %v5971 = vadd.f32 %v5473, %v5853
        %v5972 = vadd.f32 %v5474, %v5858
        %v5973 = vadd.f32 %v5475, %v5861
        %v5974 = vadd.f32 %v5476, %v5866
        %v5975 = vadd.f32 %v5477, %v5869
        %v5976 = vadd.f32 %v5478, %v5874
        %v5977 = vadd.f32 %v5479, %v5877
        %v5978 = vadd.f32 %v5480, %v5882
        %v5979 = vadd.f32 %v5481, %v5885
        %v5980 = vadd.f32 %v5482, %v5890
        %v5981 = vadd.f32 %v5483, %v5893
        %v5982 = vadd.f32 %v5484, %v5898
        %v5983 = vadd.f32 %v5485, %v5901
        %v5984 = vadd.f32 %v5486, %v5906
        %v5985 = vadd.f32 %v5487, %v5909
        %v5986 = vadd.f32 %v5488, %v5914
        %v5987 = vadd.f32 %v5489, %v5917
        %v5988 = vadd.f32 %v5490, %v5922
        %v5989 = vadd.f32 %v5491, %v5925
        %v5990 = vadd.f32 %v5492, %v5930
        %v5991 = vadd.f32 %v5493, %v5933
        %v5992 = vadd.f32 %v5494, %v5938
        %v5993 = vadd.f32 %v5495, %v5941
        %v5994 = vadd.f32 %v5496, %v5946
        %v5995 = vadd.f32 %v5497, %v5949
        %v5996 = vadd.f32 %v5498, %v5954
        %v5997 = vadd.f32 %v5499, %v5957
        %v5998 = vadd.f32 %v5500, %v5962
        %v5999 = vadd.f32 %v5501, %v5965
        %v6000 = vld [vmem:[%s3] sm:$0x1]
        %v6002 = vlaneseq
        %v6003 = vshrl.u32 %v6002, 7
        %v6004 = vsub.s32 0, %v6003
        %v6005 = vrot.slane %v6000, %v6004
        %v6007 = vmul.f32 %v5968, %v6005
        %v6008 = vmul.f32 %v5969, %v6005
        %v6009 = vmul.f32 %v5970, %v6005
        %v6010 = vmul.f32 %v5971, %v6005
        %v6011 = vmul.f32 %v5972, %v6005
        %v6012 = vmul.f32 %v5973, %v6005
        %v6013 = vmul.f32 %v5974, %v6005
        %v6014 = vmul.f32 %v5975, %v6005
        %v6015 = vmul.f32 %v5976, %v6005
        %v6016 = vmul.f32 %v5977, %v6005
        %v6017 = vmul.f32 %v5978, %v6005
        %v6018 = vmul.f32 %v5979, %v6005
        %v6019 = vmul.f32 %v5980, %v6005
        %v6020 = vmul.f32 %v5981, %v6005
        %v6021 = vmul.f32 %v5982, %v6005
        %v6022 = vmul.f32 %v5983, %v6005
        %v6023 = vmul.f32 %v5984, %v6005
        %v6024 = vmul.f32 %v5985, %v6005
        %v6025 = vmul.f32 %v5986, %v6005
        %v6026 = vmul.f32 %v5987, %v6005
        %v6027 = vmul.f32 %v5988, %v6005
        %v6028 = vmul.f32 %v5989, %v6005
        %v6029 = vmul.f32 %v5990, %v6005
        %v6030 = vmul.f32 %v5991, %v6005
        %v6031 = vmul.f32 %v5992, %v6005
        %v6032 = vmul.f32 %v5993, %v6005
        %v6033 = vmul.f32 %v5994, %v6005
        %v6034 = vmul.f32 %v5995, %v6005
        %v6035 = vmul.f32 %v5996, %v6005
        %v6036 = vmul.f32 %v5997, %v6005
        %v6037 = vmul.f32 %v5998, %v6005
        %v6038 = vmul.f32 %v5999, %v6005
        %v6039 = vld [vmem:[%s4] sm:$0x1]
        %v6041 = vlaneseq
        %v6042 = vshrl.u32 %v6041, 7
        %v6043 = vsub.s32 0, %v6042
        %v6044 = vrot.slane %v6039, %v6043
        %v6046 = vadd.f32 %v6007, %v6044
        %v6047 = vadd.f32 %v6008, %v6044
        %v6048 = vadd.f32 %v6009, %v6044
        %v6049 = vadd.f32 %v6010, %v6044
        %v6050 = vadd.f32 %v6011, %v6044
        %v6051 = vadd.f32 %v6012, %v6044
        %v6052 = vadd.f32 %v6013, %v6044
        %v6053 = vadd.f32 %v6014, %v6044
        %v6054 = vadd.f32 %v6015, %v6044
        %v6055 = vadd.f32 %v6016, %v6044
        %v6056 = vadd.f32 %v6017, %v6044
        %v6057 = vadd.f32 %v6018, %v6044
        %v6058 = vadd.f32 %v6019, %v6044
        %v6059 = vadd.f32 %v6020, %v6044
        %v6060 = vadd.f32 %v6021, %v6044
        %v6061 = vadd.f32 %v6022, %v6044
        %v6062 = vadd.f32 %v6023, %v6044
        %v6063 = vadd.f32 %v6024, %v6044
        %v6064 = vadd.f32 %v6025, %v6044
        %v6065 = vadd.f32 %v6026, %v6044
        %v6066 = vadd.f32 %v6027, %v6044
        %v6067 = vadd.f32 %v6028, %v6044
        %v6068 = vadd.f32 %v6029, %v6044
        %v6069 = vadd.f32 %v6030, %v6044
        %v6070 = vadd.f32 %v6031, %v6044
        %v6071 = vadd.f32 %v6032, %v6044
        %v6072 = vadd.f32 %v6033, %v6044
        %v6073 = vadd.f32 %v6034, %v6044
        %v6074 = vadd.f32 %v6035, %v6044
        %v6075 = vadd.f32 %v6036, %v6044
        %v6076 = vadd.f32 %v6037, %v6044
        %v6077 = vadd.f32 %v6038, %v6044
        %v6078 = vmax.f32 %v6046, 0.0
        %v6079 = vmax.f32 %v6047, 0.0
        %v6080 = vmax.f32 %v6048, 0.0
        %v6081 = vmax.f32 %v6049, 0.0
        %v6082 = vmax.f32 %v6050, 0.0
        %v6083 = vmax.f32 %v6051, 0.0
        %v6084 = vmax.f32 %v6052, 0.0
        %v6085 = vmax.f32 %v6053, 0.0
        %v6086 = vmax.f32 %v6054, 0.0
        %v6087 = vmax.f32 %v6055, 0.0
        %v6088 = vmax.f32 %v6056, 0.0
        %v6089 = vmax.f32 %v6057, 0.0
        %v6090 = vmax.f32 %v6058, 0.0
        %v6091 = vmax.f32 %v6059, 0.0
        %v6092 = vmax.f32 %v6060, 0.0
        %v6093 = vmax.f32 %v6061, 0.0
        %v6094 = vmax.f32 %v6062, 0.0
        %v6095 = vmax.f32 %v6063, 0.0
        %v6096 = vmax.f32 %v6064, 0.0
        %v6097 = vmax.f32 %v6065, 0.0
        %v6098 = vmax.f32 %v6066, 0.0
        %v6099 = vmax.f32 %v6067, 0.0
        %v6100 = vmax.f32 %v6068, 0.0
        %v6101 = vmax.f32 %v6069, 0.0
        %v6102 = vmax.f32 %v6070, 0.0
        %v6103 = vmax.f32 %v6071, 0.0
        %v6104 = vmax.f32 %v6072, 0.0
        %v6105 = vmax.f32 %v6073, 0.0
        %v6106 = vmax.f32 %v6074, 0.0
        %v6107 = vmax.f32 %v6075, 0.0
        %v6108 = vmax.f32 %v6076, 0.0
        %v6109 = vmax.f32 %v6077, 0.0
        %v6110 = vpack.c.bf16 %v6079, %v6078
        %v6111 = vpack.c.bf16 %v6081, %v6080
        %v6112 = vpack.c.bf16 %v6083, %v6082
        %v6113 = vpack.c.bf16 %v6085, %v6084
        %v6114 = vpack.c.bf16 %v6087, %v6086
        %v6115 = vpack.c.bf16 %v6089, %v6088
        %v6116 = vpack.c.bf16 %v6091, %v6090
        %v6117 = vpack.c.bf16 %v6093, %v6092
        %v6118 = vpack.c.bf16 %v6095, %v6094
        %v6119 = vpack.c.bf16 %v6097, %v6096
        %v6120 = vpack.c.bf16 %v6099, %v6098
        %v6121 = vpack.c.bf16 %v6101, %v6100
        %v6122 = vpack.c.bf16 %v6103, %v6102
        %v6123 = vpack.c.bf16 %v6105, %v6104
        %v6124 = vpack.c.bf16 %v6107, %v6106
        %v6125 = vpack.c.bf16 %v6109, %v6108
        %v6142 = vunpack.c.l.b16 %v6110
        %v6143 = vunpack.c.h.b16 %v6110
        %v6144 = vunpack.c.l.b16 %v6111
        %v6145 = vunpack.c.h.b16 %v6111
        %v6146 = vunpack.c.l.b16 %v6112
        %v6147 = vunpack.c.h.b16 %v6112
        %v6148 = vunpack.c.l.b16 %v6113
        %v6149 = vunpack.c.h.b16 %v6113
        %v6150 = vunpack.c.l.b16 %v6114
        %v6151 = vunpack.c.h.b16 %v6114
        %v6152 = vunpack.c.l.b16 %v6115
        %v6153 = vunpack.c.h.b16 %v6115
        %v6154 = vunpack.c.l.b16 %v6116
        %v6155 = vunpack.c.h.b16 %v6116
        %v6156 = vunpack.c.l.b16 %v6117
        %v6157 = vunpack.c.h.b16 %v6117
        %v6158 = vunpack.c.l.b16 %v6118
        %v6159 = vunpack.c.h.b16 %v6118
        %v6160 = vunpack.c.l.b16 %v6119
        %v6161 = vunpack.c.h.b16 %v6119
        %v6162 = vunpack.c.l.b16 %v6120
        %v6163 = vunpack.c.h.b16 %v6120
        %v6164 = vunpack.c.l.b16 %v6121
        %v6165 = vunpack.c.h.b16 %v6121
        %v6166 = vunpack.c.l.b16 %v6122
        %v6167 = vunpack.c.h.b16 %v6122
        %v6168 = vunpack.c.l.b16 %v6123
        %v6169 = vunpack.c.h.b16 %v6123
        %v6170 = vunpack.c.l.b16 %v6124
        %v6171 = vunpack.c.h.b16 %v6124
        %v6172 = vunpack.c.l.b16 %v6125
        %v6173 = vunpack.c.h.b16 %v6125
        %v6174 = vpack.c.b16 %v6142, %v6142
        %v6175 = vpack.c.b16 %v6143, %v6143
        %v6176 = vpack.c.b16 %v6144, %v6144
        %v6177 = vpack.c.b16 %v6145, %v6145
        %v6178 = vpack.c.b16 %v6146, %v6146
        %v6179 = vpack.c.b16 %v6147, %v6147
        %v6180 = vpack.c.b16 %v6148, %v6148
        %v6181 = vpack.c.b16 %v6149, %v6149
        %v6182 = vpack.c.b16 %v6150, %v6150
        %v6183 = vpack.c.b16 %v6151, %v6151
        %v6184 = vpack.c.b16 %v6152, %v6152
        %v6185 = vpack.c.b16 %v6153, %v6153
        %v6186 = vpack.c.b16 %v6154, %v6154
        %v6187 = vpack.c.b16 %v6155, %v6155
        %v6188 = vpack.c.b16 %v6156, %v6156
        %v6189 = vpack.c.b16 %v6157, %v6157
        %v6190 = vpack.c.b16 %v6158, %v6158
        %v6191 = vpack.c.b16 %v6159, %v6159
        %v6192 = vpack.c.b16 %v6160, %v6160
        %v6193 = vpack.c.b16 %v6161, %v6161
        %v6194 = vpack.c.b16 %v6162, %v6162
        %v6195 = vpack.c.b16 %v6163, %v6163
        %v6196 = vpack.c.b16 %v6164, %v6164
        %v6197 = vpack.c.b16 %v6165, %v6165
        %v6198 = vpack.c.b16 %v6166, %v6166
        %v6199 = vpack.c.b16 %v6167, %v6167
        %v6200 = vpack.c.b16 %v6168, %v6168
        %v6201 = vpack.c.b16 %v6169, %v6169
        %v6202 = vpack.c.b16 %v6170, %v6170
        %v6203 = vpack.c.b16 %v6171, %v6171
        %v6204 = vpack.c.b16 %v6172, %v6172
        %v6205 = vpack.c.b16 %v6173, %v6173
        %v6207 = vshrl.u32 %v6174, 16
        %v6209 = vrot.slane %v6207, 7
        %v6210 = vshll.u32 %v6174, 16
        %v6212 = vor.u32 %v6209, %v6210
        %v6213 = vrot.slane %v6209, 4
        %v6215 = vshrl.u32 %v6175, 16
        %v6217 = vrot.slane %v6215, 7
        %v6218 = vshll.u32 %v6175, 16
        %v6220 = vor.u32 %v6217, %v6218
        %v6221 = vsel %vm650, %v6213, %v6220
        %v6222 = vrot.slane %v6217, 4
        %v6224 = vshrl.u32 %v6176, 16
        %v6226 = vrot.slane %v6224, 7
        %v6227 = vshll.u32 %v6176, 16
        %v6229 = vor.u32 %v6226, %v6227
        %v6230 = vrot.slane %v6226, 4
        %v6232 = vshrl.u32 %v6177, 16
        %v6234 = vrot.slane %v6232, 7
        %v6235 = vshll.u32 %v6177, 16
        %v6237 = vor.u32 %v6234, %v6235
        %v6238 = vsel %vm650, %v6230, %v6237
        %v6239 = vrot.slane %v6234, 4
        %v6241 = vshrl.u32 %v6178, 16
        %v6243 = vrot.slane %v6241, 7
        %v6244 = vshll.u32 %v6178, 16
        %v6246 = vor.u32 %v6243, %v6244
        %v6247 = vrot.slane %v6243, 4
        %v6249 = vshrl.u32 %v6179, 16
        %v6251 = vrot.slane %v6249, 7
        %v6252 = vshll.u32 %v6179, 16
        %v6254 = vor.u32 %v6251, %v6252
        %v6255 = vsel %vm650, %v6247, %v6254
        %v6256 = vrot.slane %v6251, 4
        %v6258 = vshrl.u32 %v6180, 16
        %v6260 = vrot.slane %v6258, 7
        %v6261 = vshll.u32 %v6180, 16
        %v6263 = vor.u32 %v6260, %v6261
        %v6264 = vrot.slane %v6260, 4
        %v6266 = vshrl.u32 %v6181, 16
        %v6268 = vrot.slane %v6266, 7
        %v6269 = vshll.u32 %v6181, 16
        %v6271 = vor.u32 %v6268, %v6269
        %v6272 = vsel %vm650, %v6264, %v6271
        %v6273 = vrot.slane %v6268, 4
        %v6275 = vshrl.u32 %v6182, 16
        %v6277 = vrot.slane %v6275, 7
        %v6278 = vshll.u32 %v6182, 16
        %v6280 = vor.u32 %v6277, %v6278
        %v6281 = vrot.slane %v6277, 4
        %v6283 = vshrl.u32 %v6183, 16
        %v6285 = vrot.slane %v6283, 7
        %v6286 = vshll.u32 %v6183, 16
        %v6288 = vor.u32 %v6285, %v6286
        %v6289 = vsel %vm650, %v6281, %v6288
        %v6290 = vrot.slane %v6285, 4
        %v6292 = vshrl.u32 %v6184, 16
        %v6294 = vrot.slane %v6292, 7
        %v6295 = vshll.u32 %v6184, 16
        %v6297 = vor.u32 %v6294, %v6295
        %v6298 = vrot.slane %v6294, 4
        %v6300 = vshrl.u32 %v6185, 16
        %v6302 = vrot.slane %v6300, 7
        %v6303 = vshll.u32 %v6185, 16
        %v6305 = vor.u32 %v6302, %v6303
        %v6306 = vsel %vm650, %v6298, %v6305
        %v6307 = vrot.slane %v6302, 4
        %v6309 = vshrl.u32 %v6186, 16
        %v6311 = vrot.slane %v6309, 7
        %v6312 = vshll.u32 %v6186, 16
        %v6314 = vor.u32 %v6311, %v6312
        %v6315 = vrot.slane %v6311, 4
        %v6317 = vshrl.u32 %v6187, 16
        %v6319 = vrot.slane %v6317, 7
        %v6320 = vshll.u32 %v6187, 16
        %v6322 = vor.u32 %v6319, %v6320
        %v6323 = vsel %vm650, %v6315, %v6322
        %v6324 = vrot.slane %v6319, 4
        %v6326 = vshrl.u32 %v6188, 16
        %v6328 = vrot.slane %v6326, 7
        %v6329 = vshll.u32 %v6188, 16
        %v6331 = vor.u32 %v6328, %v6329
        %v6332 = vrot.slane %v6328, 4
        %v6334 = vshrl.u32 %v6189, 16
        %v6336 = vrot.slane %v6334, 7
        %v6337 = vshll.u32 %v6189, 16
        %v6339 = vor.u32 %v6336, %v6337
        %v6340 = vsel %vm650, %v6332, %v6339
        %v6341 = vrot.slane %v6336, 4
        %v6343 = vshrl.u32 %v6190, 16
        %v6345 = vrot.slane %v6343, 7
        %v6346 = vshll.u32 %v6190, 16
        %v6348 = vor.u32 %v6345, %v6346
        %v6349 = vrot.slane %v6345, 4
        %v6351 = vshrl.u32 %v6191, 16
        %v6353 = vrot.slane %v6351, 7
        %v6354 = vshll.u32 %v6191, 16
        %v6356 = vor.u32 %v6353, %v6354
        %v6357 = vsel %vm650, %v6349, %v6356
        %v6358 = vrot.slane %v6353, 4
        %v6360 = vshrl.u32 %v6192, 16
        %v6362 = vrot.slane %v6360, 7
        %v6363 = vshll.u32 %v6192, 16
        %v6365 = vor.u32 %v6362, %v6363
        %v6366 = vrot.slane %v6362, 4
        %v6368 = vshrl.u32 %v6193, 16
        %v6370 = vrot.slane %v6368, 7
        %v6371 = vshll.u32 %v6193, 16
        %v6373 = vor.u32 %v6370, %v6371
        %v6374 = vsel %vm650, %v6366, %v6373
        %v6375 = vrot.slane %v6370, 4
        %v6377 = vshrl.u32 %v6194, 16
        %v6379 = vrot.slane %v6377, 7
        %v6380 = vshll.u32 %v6194, 16
        %v6382 = vor.u32 %v6379, %v6380
        %v6383 = vrot.slane %v6379, 4
        %v6385 = vshrl.u32 %v6195, 16
        %v6387 = vrot.slane %v6385, 7
        %v6388 = vshll.u32 %v6195, 16
        %v6390 = vor.u32 %v6387, %v6388
        %v6391 = vsel %vm650, %v6383, %v6390
        %v6392 = vrot.slane %v6387, 4
        %v6394 = vshrl.u32 %v6196, 16
        %v6396 = vrot.slane %v6394, 7
        %v6397 = vshll.u32 %v6196, 16
        %v6399 = vor.u32 %v6396, %v6397
        %v6400 = vrot.slane %v6396, 4
        %v6402 = vshrl.u32 %v6197, 16
        %v6404 = vrot.slane %v6402, 7
        %v6405 = vshll.u32 %v6197, 16
        %v6407 = vor.u32 %v6404, %v6405
        %v6408 = vsel %vm650, %v6400, %v6407
        %v6409 = vrot.slane %v6404, 4
        %v6411 = vshrl.u32 %v6198, 16
        %v6413 = vrot.slane %v6411, 7
        %v6414 = vshll.u32 %v6198, 16
        %v6416 = vor.u32 %v6413, %v6414
        %v6417 = vrot.slane %v6413, 4
        %v6419 = vshrl.u32 %v6199, 16
        %v6421 = vrot.slane %v6419, 7
        %v6422 = vshll.u32 %v6199, 16
        %v6424 = vor.u32 %v6421, %v6422
        %v6425 = vsel %vm650, %v6417, %v6424
        %v6426 = vrot.slane %v6421, 4
        %v6428 = vshrl.u32 %v6200, 16
        %v6430 = vrot.slane %v6428, 7
        %v6431 = vshll.u32 %v6200, 16
        %v6433 = vor.u32 %v6430, %v6431
        %v6434 = vrot.slane %v6430, 4
        %v6436 = vshrl.u32 %v6201, 16
        %v6438 = vrot.slane %v6436, 7
        %v6439 = vshll.u32 %v6201, 16
        %v6441 = vor.u32 %v6438, %v6439
        %v6442 = vsel %vm650, %v6434, %v6441
        %v6443 = vrot.slane %v6438, 4
        %v6445 = vshrl.u32 %v6202, 16
        %v6447 = vrot.slane %v6445, 7
        %v6448 = vshll.u32 %v6202, 16
        %v6450 = vor.u32 %v6447, %v6448
        %v6451 = vrot.slane %v6447, 4
        %v6453 = vshrl.u32 %v6203, 16
        %v6455 = vrot.slane %v6453, 7
        %v6456 = vshll.u32 %v6203, 16
        %v6458 = vor.u32 %v6455, %v6456
        %v6459 = vsel %vm650, %v6451, %v6458
        %v6460 = vrot.slane %v6455, 4
        %v6462 = vshrl.u32 %v6204, 16
        %v6464 = vrot.slane %v6462, 7
        %v6465 = vshll.u32 %v6204, 16
        %v6467 = vor.u32 %v6464, %v6465
        %v6468 = vrot.slane %v6464, 4
        %v6470 = vshrl.u32 %v6205, 16
        %v6472 = vrot.slane %v6470, 7
        %v6473 = vshll.u32 %v6205, 16
        %v6475 = vor.u32 %v6472, %v6473
        %v6476 = vsel %vm650, %v6468, %v6475
        %v6477 = vrot.slane %v6472, 4
        %vm6526 = vcmask 1043456
        %vm6527 = vmand %vm6526, %vm354
        %v6528 = vld [vmem:[%s1095] sm:$0xf]
        %v6529 = vsel %vm6527, %v6212, %v6528
        %6530 = vst [vmem:[%s1095] sm:$0xf] %v6529
        %6531 = vst [vmem:[%s1095 + $0x4] sm:$0xf] %v6221
        %v6532 = vld [vmem:[%s1095 + $0x8] sm:$0x1]
        %v6533 = vsel %vm305, %v6222, %v6532
        %6534 = vst [vmem:[%s1095 + $0x8] sm:$0x1] %v6533
        %v6535 = vld [vmem:[%s1095 + $0xc] sm:$0xf]
        %v6536 = vsel %vm6527, %v6229, %v6535
        %6537 = vst [vmem:[%s1095 + $0xc] sm:$0xf] %v6536
        %6538 = vst [vmem:[%s1095 + $0x10] sm:$0xf] %v6238
        %v6539 = vld [vmem:[%s1095 + $0x14] sm:$0x1]
        %v6540 = vsel %vm305, %v6239, %v6539
        %6541 = vst [vmem:[%s1095 + $0x14] sm:$0x1] %v6540
        %v6542 = vld [vmem:[%s1095 + $0x18] sm:$0xf]
        %v6543 = vsel %vm6527, %v6246, %v6542
        %6544 = vst [vmem:[%s1095 + $0x18] sm:$0xf] %v6543
        %6545 = vst [vmem:[%s1095 + $0x1c] sm:$0xf] %v6255
        %v6546 = vld [vmem:[%s1095 + $0x20] sm:$0x1]
        %v6547 = vsel %vm305, %v6256, %v6546
        %6548 = vst [vmem:[%s1095 + $0x20] sm:$0x1] %v6547
        %v6549 = vld [vmem:[%s1095 + $0x24] sm:$0xf]
        %v6550 = vsel %vm6527, %v6263, %v6549
        %6551 = vst [vmem:[%s1095 + $0x24] sm:$0xf] %v6550
        %6552 = vst [vmem:[%s1095 + $0x28] sm:$0xf] %v6272
        %v6553 = vld [vmem:[%s1095 + $0x2c] sm:$0x1]
        %v6554 = vsel %vm305, %v6273, %v6553
        %6555 = vst [vmem:[%s1095 + $0x2c] sm:$0x1] %v6554
        %v6556 = vld [vmem:[%s1095 + $0x30] sm:$0xf]
        %v6557 = vsel %vm6527, %v6280, %v6556
        %6558 = vst [vmem:[%s1095 + $0x30] sm:$0xf] %v6557
        %6559 = vst [vmem:[%s1095 + $0x34] sm:$0xf] %v6289
        %v6560 = vld [vmem:[%s1095 + $0x38] sm:$0x1]
        %v6561 = vsel %vm305, %v6290, %v6560
        %6562 = vst [vmem:[%s1095 + $0x38] sm:$0x1] %v6561
        %v6563 = vld [vmem:[%s1095 + $0x3c] sm:$0xf]
        %v6564 = vsel %vm6527, %v6297, %v6563
        %6565 = vst [vmem:[%s1095 + $0x3c] sm:$0xf] %v6564
        %6566 = vst [vmem:[%s1095 + $0x40] sm:$0xf] %v6306
        %v6567 = vld [vmem:[%s1095 + $0x44] sm:$0x1]
        %v6568 = vsel %vm305, %v6307, %v6567
        %6569 = vst [vmem:[%s1095 + $0x44] sm:$0x1] %v6568
        %v6570 = vld [vmem:[%s1095 + $0x48] sm:$0xf]
        %v6571 = vsel %vm6527, %v6314, %v6570
        %6572 = vst [vmem:[%s1095 + $0x48] sm:$0xf] %v6571
        %6573 = vst [vmem:[%s1095 + $0x4c] sm:$0xf] %v6323
        %v6574 = vld [vmem:[%s1095 + $0x50] sm:$0x1]
        %v6575 = vsel %vm305, %v6324, %v6574
        %6576 = vst [vmem:[%s1095 + $0x50] sm:$0x1] %v6575
        %v6577 = vld [vmem:[%s1095 + $0x54] sm:$0xf]
        %v6578 = vsel %vm6527, %v6331, %v6577
        %6579 = vst [vmem:[%s1095 + $0x54] sm:$0xf] %v6578
        %6580 = vst [vmem:[%s1095 + $0x58] sm:$0xf] %v6340
        %v6581 = vld [vmem:[%s1095 + $0x5c] sm:$0x1]
        %v6582 = vsel %vm305, %v6341, %v6581
        %6583 = vst [vmem:[%s1095 + $0x5c] sm:$0x1] %v6582
        %v6584 = vld [vmem:[%s1095 + $0x60] sm:$0xf]
        %v6585 = vsel %vm6527, %v6348, %v6584
        %6586 = vst [vmem:[%s1095 + $0x60] sm:$0xf] %v6585
        %6587 = vst [vmem:[%s1095 + $0x64] sm:$0xf] %v6357
        %v6588 = vld [vmem:[%s1095 + $0x68] sm:$0x1]
        %v6589 = vsel %vm305, %v6358, %v6588
        %6590 = vst [vmem:[%s1095 + $0x68] sm:$0x1] %v6589
        %v6591 = vld [vmem:[%s1095 + $0x6c] sm:$0xf]
        %v6592 = vsel %vm6527, %v6365, %v6591
        %6593 = vst [vmem:[%s1095 + $0x6c] sm:$0xf] %v6592
        %6594 = vst [vmem:[%s1095 + $0x70] sm:$0xf] %v6374
        %v6595 = vld [vmem:[%s1095 + $0x74] sm:$0x1]
        %v6596 = vsel %vm305, %v6375, %v6595
        %6597 = vst [vmem:[%s1095 + $0x74] sm:$0x1] %v6596
        %v6598 = vld [vmem:[%s1095 + $0x78] sm:$0xf]
        %v6599 = vsel %vm6527, %v6382, %v6598
        %6600 = vst [vmem:[%s1095 + $0x78] sm:$0xf] %v6599
        %6601 = vst [vmem:[%s1095 + $0x7c] sm:$0xf] %v6391
        %v6602 = vld [vmem:[%s1095 + $0x80] sm:$0x1]
        %v6603 = vsel %vm305, %v6392, %v6602
        %6604 = vst [vmem:[%s1095 + $0x80] sm:$0x1] %v6603
        %v6605 = vld [vmem:[%s1095 + $0x84] sm:$0xf]
        %v6606 = vsel %vm6527, %v6399, %v6605
        %6607 = vst [vmem:[%s1095 + $0x84] sm:$0xf] %v6606
        %6608 = vst [vmem:[%s1095 + $0x88] sm:$0xf] %v6408
        %v6609 = vld [vmem:[%s1095 + $0x8c] sm:$0x1]
        %v6610 = vsel %vm305, %v6409, %v6609
        %6611 = vst [vmem:[%s1095 + $0x8c] sm:$0x1] %v6610
        %v6612 = vld [vmem:[%s1095 + $0x90] sm:$0xf]
        %v6613 = vsel %vm6527, %v6416, %v6612
        %6614 = vst [vmem:[%s1095 + $0x90] sm:$0xf] %v6613
        %6615 = vst [vmem:[%s1095 + $0x94] sm:$0xf] %v6425
        %v6616 = vld [vmem:[%s1095 + $0x98] sm:$0x1]
        %v6617 = vsel %vm305, %v6426, %v6616
        %6618 = vst [vmem:[%s1095 + $0x98] sm:$0x1] %v6617
        %v6619 = vld [vmem:[%s1095 + $0x9c] sm:$0xf]
        %v6620 = vsel %vm6527, %v6433, %v6619
        %6621 = vst [vmem:[%s1095 + $0x9c] sm:$0xf] %v6620
        %6622 = vst [vmem:[%s1095 + $0xa0] sm:$0xf] %v6442
        %v6623 = vld [vmem:[%s1095 + $0xa4] sm:$0x1]
        %v6624 = vsel %vm305, %v6443, %v6623
        %6625 = vst [vmem:[%s1095 + $0xa4] sm:$0x1] %v6624
        %v6626 = vld [vmem:[%s1095 + $0xa8] sm:$0xf]
        %v6627 = vsel %vm6527, %v6450, %v6626
        %6628 = vst [vmem:[%s1095 + $0xa8] sm:$0xf] %v6627
        %6629 = vst [vmem:[%s1095 + $0xac] sm:$0xf] %v6459
        %v6630 = vld [vmem:[%s1095 + $0xb0] sm:$0x1]
        %v6631 = vsel %vm305, %v6460, %v6630
        %6632 = vst [vmem:[%s1095 + $0xb0] sm:$0x1] %v6631
        %v6633 = vld [vmem:[%s1095 + $0xb4] sm:$0xf]
        %v6634 = vsel %vm6527, %v6467, %v6633
        %6635 = vst [vmem:[%s1095 + $0xb4] sm:$0xf] %v6634
        %6636 = vst [vmem:[%s1095 + $0xb8] sm:$0xf] %v6476
        %v6637 = vld [vmem:[%s1095 + $0xbc] sm:$0x1]
        %v6638 = vsel %vm305, %v6477, %v6637
        %6639 = vst [vmem:[%s1095 + $0xbc] sm:$0x1] %v6638
        %v6640 = vld [vmem:[#allocation3] sm:$0xf]
        %v6641 = vld [vmem:[#allocation3 + $0x4] sm:$0xf]
        %v6642 = vld [vmem:[#allocation3 + $0xc] sm:$0xf]
        %v6643 = vld [vmem:[#allocation3 + $0x10] sm:$0xf]
        %v6644 = vld [vmem:[#allocation3 + $0x18] sm:$0xf]
        %v6645 = vld [vmem:[#allocation3 + $0x1c] sm:$0xf]
        %v6646 = vld [vmem:[#allocation3 + $0x24] sm:$0xf]
        %v6647 = vld [vmem:[#allocation3 + $0x28] sm:$0xf]
        %v6648 = vld [vmem:[#allocation3 + $0x30] sm:$0xf]
        %v6649 = vld [vmem:[#allocation3 + $0x34] sm:$0xf]
        %v6650 = vld [vmem:[#allocation3 + $0x3c] sm:$0xf]
        %v6651 = vld [vmem:[#allocation3 + $0x40] sm:$0xf]
        %v6652 = vld [vmem:[#allocation3 + $0x48] sm:$0xf]
        %v6653 = vld [vmem:[#allocation3 + $0x4c] sm:$0xf]
        %v6654 = vld [vmem:[#allocation3 + $0x54] sm:$0xf]
        %v6655 = vld [vmem:[#allocation3 + $0x58] sm:$0xf]
        %v6656 = vld [vmem:[#allocation3 + $0x60] sm:$0xf]
        %v6657 = vld [vmem:[#allocation3 + $0x64] sm:$0xf]
        %v6658 = vld [vmem:[#allocation3 + $0x6c] sm:$0xf]
        %v6659 = vld [vmem:[#allocation3 + $0x70] sm:$0xf]
        %v6660 = vld [vmem:[#allocation3 + $0x78] sm:$0xf]
        %v6661 = vld [vmem:[#allocation3 + $0x7c] sm:$0xf]
        %v6662 = vld [vmem:[#allocation3 + $0x84] sm:$0xf]
        %v6663 = vld [vmem:[#allocation3 + $0x88] sm:$0xf]
        %v6664 = vld [vmem:[#allocation3 + $0x90] sm:$0xf]
        %v6665 = vld [vmem:[#allocation3 + $0x94] sm:$0xf]
        %v6666 = vld [vmem:[#allocation3 + $0x9c] sm:$0xf]
        %v6667 = vld [vmem:[#allocation3 + $0xa0] sm:$0xf]
        %v6668 = vld [vmem:[#allocation3 + $0xa8] sm:$0xf]
        %v6669 = vld [vmem:[#allocation3 + $0xac] sm:$0xf]
        %v6670 = vld [vmem:[#allocation3 + $0xb4] sm:$0xf]
        %v6671 = vld [vmem:[#allocation3 + $0xb8] sm:$0xf]
        %v6672 = vld [vmem:[#allocation4] sm:$0xf]
        %v6673 = vld [vmem:[#allocation4 + $0x4] sm:$0xf]
        %v6674 = vld [vmem:[#allocation4 + $0x8] sm:$0xf]
        %v6675 = vld [vmem:[#allocation4 + $0xc] sm:$0xf]
        %v6676 = vld [vmem:[#allocation4 + $0x10] sm:$0xf]
        %v6677 = vld [vmem:[#allocation4 + $0x14] sm:$0xf]
        %v6678 = vld [vmem:[#allocation4 + $0x18] sm:$0xf]
        %v6679 = vld [vmem:[#allocation4 + $0x1c] sm:$0xf]
        %v6680 = vld [vmem:[#allocation4 + $0x20] sm:$0xf]
        %v6681 = vld [vmem:[#allocation4 + $0x24] sm:$0xf]
        %v6682 = vld [vmem:[#allocation4 + $0x28] sm:$0xf]
        %v6683 = vld [vmem:[#allocation4 + $0x2c] sm:$0xf]
        %v6684 = vld [vmem:[#allocation4 + $0x30] sm:$0xf]
        %v6685 = vld [vmem:[#allocation4 + $0x34] sm:$0xf]
        %v6686 = vld [vmem:[#allocation4 + $0x38] sm:$0xf]
        %v6687 = vld [vmem:[#allocation4 + $0x3c] sm:$0xf]
        %v6688 = vld [vmem:[#allocation3 + $0x8] sm:$0x1]
        %v6689 = vld [vmem:[#allocation3 + $0x14] sm:$0x1]
        %v6690 = vld [vmem:[#allocation3 + $0x20] sm:$0x1]
        %v6691 = vld [vmem:[#allocation3 + $0x2c] sm:$0x1]
        %v6692 = vld [vmem:[#allocation3 + $0x38] sm:$0x1]
        %v6693 = vld [vmem:[#allocation3 + $0x44] sm:$0x1]
        %v6694 = vld [vmem:[#allocation3 + $0x50] sm:$0x1]
        %v6695 = vld [vmem:[#allocation3 + $0x5c] sm:$0x1]
        %v6696 = vld [vmem:[#allocation3 + $0x68] sm:$0x1]
        %v6697 = vld [vmem:[#allocation3 + $0x74] sm:$0x1]
        %v6698 = vld [vmem:[#allocation3 + $0x80] sm:$0x1]
        %v6699 = vld [vmem:[#allocation3 + $0x8c] sm:$0x1]
        %v6700 = vld [vmem:[#allocation3 + $0x98] sm:$0x1]
        %v6701 = vld [vmem:[#allocation3 + $0xa4] sm:$0x1]
        %v6702 = vld [vmem:[#allocation3 + $0xb0] sm:$0x1]
        %v6703 = vld [vmem:[#allocation3 + $0xbc] sm:$0x1]
        %v6705 = vshrl.u32 %v6640, 16
        %v6707 = vrot.slane %v6705, 4
        %v6708 = vshll.u32 %v6640, 16
        %v6710 = vrot.slane %v6708, 5
        %v6711 = vor.u32 %v6707, %v6710
        %v6712 = vrot.slane %v6711, 4
        %v6714 = vshll.u32 %v6641, 16
        %v6716 = vrot.slane %v6714, 5
        %v6717 = vsel %vm1258, %v6712, %v6716
        %v6718 = vshrl.u32 %v6641, 16
        %v6720 = vrot.slane %v6718, 4
        %v6721 = vor.u32 %v6720, %v6716
        %v6722 = vrot.slane %v6721, 4
        %v6724 = vshll.u32 %v6688, 16
        %v6726 = vrot.slane %v6724, 5
        %v6727 = vsel %vm1258, %v6722, %v6726
        %v6729 = vshrl.u32 %v6642, 16
        %v6731 = vrot.slane %v6729, 4
        %v6732 = vshll.u32 %v6642, 16
        %v6734 = vrot.slane %v6732, 5
        %v6735 = vor.u32 %v6731, %v6734
        %v6736 = vrot.slane %v6735, 4
        %v6738 = vshll.u32 %v6643, 16
        %v6740 = vrot.slane %v6738, 5
        %v6741 = vsel %vm1258, %v6736, %v6740
        %v6742 = vshrl.u32 %v6643, 16
        %v6744 = vrot.slane %v6742, 4
        %v6745 = vor.u32 %v6744, %v6740
        %v6746 = vrot.slane %v6745, 4
        %v6748 = vshll.u32 %v6689, 16
        %v6750 = vrot.slane %v6748, 5
        %v6751 = vsel %vm1258, %v6746, %v6750
        %v6753 = vshrl.u32 %v6644, 16
        %v6755 = vrot.slane %v6753, 4
        %v6756 = vshll.u32 %v6644, 16
        %v6758 = vrot.slane %v6756, 5
        %v6759 = vor.u32 %v6755, %v6758
        %v6760 = vrot.slane %v6759, 4
        %v6762 = vshll.u32 %v6645, 16
        %v6764 = vrot.slane %v6762, 5
        %v6765 = vsel %vm1258, %v6760, %v6764
        %v6766 = vshrl.u32 %v6645, 16
        %v6768 = vrot.slane %v6766, 4
        %v6769 = vor.u32 %v6768, %v6764
        %v6770 = vrot.slane %v6769, 4
        %v6772 = vshll.u32 %v6690, 16
        %v6774 = vrot.slane %v6772, 5
        %v6775 = vsel %vm1258, %v6770, %v6774
        %v6777 = vshrl.u32 %v6646, 16
        %v6779 = vrot.slane %v6777, 4
        %v6780 = vshll.u32 %v6646, 16
        %v6782 = vrot.slane %v6780, 5
        %v6783 = vor.u32 %v6779, %v6782
        %v6784 = vrot.slane %v6783, 4
        %v6786 = vshll.u32 %v6647, 16
        %v6788 = vrot.slane %v6786, 5
        %v6789 = vsel %vm1258, %v6784, %v6788
        %v6790 = vshrl.u32 %v6647, 16
        %v6792 = vrot.slane %v6790, 4
        %v6793 = vor.u32 %v6792, %v6788
        %v6794 = vrot.slane %v6793, 4
        %v6796 = vshll.u32 %v6691, 16
        %v6798 = vrot.slane %v6796, 5
        %v6799 = vsel %vm1258, %v6794, %v6798
        %v6801 = vshrl.u32 %v6648, 16
        %v6803 = vrot.slane %v6801, 4
        %v6804 = vshll.u32 %v6648, 16
        %v6806 = vrot.slane %v6804, 5
        %v6807 = vor.u32 %v6803, %v6806
        %v6808 = vrot.slane %v6807, 4
        %v6810 = vshll.u32 %v6649, 16
        %v6812 = vrot.slane %v6810, 5
        %v6813 = vsel %vm1258, %v6808, %v6812
        %v6814 = vshrl.u32 %v6649, 16
        %v6816 = vrot.slane %v6814, 4
        %v6817 = vor.u32 %v6816, %v6812
        %v6818 = vrot.slane %v6817, 4
        %v6820 = vshll.u32 %v6692, 16
        %v6822 = vrot.slane %v6820, 5
        %v6823 = vsel %vm1258, %v6818, %v6822
        %v6825 = vshrl.u32 %v6650, 16
        %v6827 = vrot.slane %v6825, 4
        %v6828 = vshll.u32 %v6650, 16
        %v6830 = vrot.slane %v6828, 5
        %v6831 = vor.u32 %v6827, %v6830
        %v6832 = vrot.slane %v6831, 4
        %v6834 = vshll.u32 %v6651, 16
        %v6836 = vrot.slane %v6834, 5
        %v6837 = vsel %vm1258, %v6832, %v6836
        %v6838 = vshrl.u32 %v6651, 16
        %v6840 = vrot.slane %v6838, 4
        %v6841 = vor.u32 %v6840, %v6836
        %v6842 = vrot.slane %v6841, 4
        %v6844 = vshll.u32 %v6693, 16
        %v6846 = vrot.slane %v6844, 5
        %v6847 = vsel %vm1258, %v6842, %v6846
        %v6849 = vshrl.u32 %v6652, 16
        %v6851 = vrot.slane %v6849, 4
        %v6852 = vshll.u32 %v6652, 16
        %v6854 = vrot.slane %v6852, 5
        %v6855 = vor.u32 %v6851, %v6854
        %v6856 = vrot.slane %v6855, 4
        %v6858 = vshll.u32 %v6653, 16
        %v6860 = vrot.slane %v6858, 5
        %v6861 = vsel %vm1258, %v6856, %v6860
        %v6862 = vshrl.u32 %v6653, 16
        %v6864 = vrot.slane %v6862, 4
        %v6865 = vor.u32 %v6864, %v6860
        %v6866 = vrot.slane %v6865, 4
        %v6868 = vshll.u32 %v6694, 16
        %v6870 = vrot.slane %v6868, 5
        %v6871 = vsel %vm1258, %v6866, %v6870
        %v6873 = vshrl.u32 %v6654, 16
        %v6875 = vrot.slane %v6873, 4
        %v6876 = vshll.u32 %v6654, 16
        %v6878 = vrot.slane %v6876, 5
        %v6879 = vor.u32 %v6875, %v6878
        %v6880 = vrot.slane %v6879, 4
        %v6882 = vshll.u32 %v6655, 16
        %v6884 = vrot.slane %v6882, 5
        %v6885 = vsel %vm1258, %v6880, %v6884
        %v6886 = vshrl.u32 %v6655, 16
        %v6888 = vrot.slane %v6886, 4
        %v6889 = vor.u32 %v6888, %v6884
        %v6890 = vrot.slane %v6889, 4
        %v6892 = vshll.u32 %v6695, 16
        %v6894 = vrot.slane %v6892, 5
        %v6895 = vsel %vm1258, %v6890, %v6894
        %v6897 = vshrl.u32 %v6656, 16
        %v6899 = vrot.slane %v6897, 4
        %v6900 = vshll.u32 %v6656, 16
        %v6902 = vrot.slane %v6900, 5
        %v6903 = vor.u32 %v6899, %v6902
        %v6904 = vrot.slane %v6903, 4
        %v6906 = vshll.u32 %v6657, 16
        %v6908 = vrot.slane %v6906, 5
        %v6909 = vsel %vm1258, %v6904, %v6908
        %v6910 = vshrl.u32 %v6657, 16
        %v6912 = vrot.slane %v6910, 4
        %v6913 = vor.u32 %v6912, %v6908
        %v6914 = vrot.slane %v6913, 4
        %v6916 = vshll.u32 %v6696, 16
        %v6918 = vrot.slane %v6916, 5
        %v6919 = vsel %vm1258, %v6914, %v6918
        %v6921 = vshrl.u32 %v6658, 16
        %v6923 = vrot.slane %v6921, 4
        %v6924 = vshll.u32 %v6658, 16
        %v6926 = vrot.slane %v6924, 5
        %v6927 = vor.u32 %v6923, %v6926
        %v6928 = vrot.slane %v6927, 4
        %v6930 = vshll.u32 %v6659, 16
        %v6932 = vrot.slane %v6930, 5
        %v6933 = vsel %vm1258, %v6928, %v6932
        %v6934 = vshrl.u32 %v6659, 16
        %v6936 = vrot.slane %v6934, 4
        %v6937 = vor.u32 %v6936, %v6932
        %v6938 = vrot.slane %v6937, 4
        %v6940 = vshll.u32 %v6697, 16
        %v6942 = vrot.slane %v6940, 5
        %v6943 = vsel %vm1258, %v6938, %v6942
        %v6945 = vshrl.u32 %v6660, 16
        %v6947 = vrot.slane %v6945, 4
        %v6948 = vshll.u32 %v6660, 16
        %v6950 = vrot.slane %v6948, 5
        %v6951 = vor.u32 %v6947, %v6950
        %v6952 = vrot.slane %v6951, 4
        %v6954 = vshll.u32 %v6661, 16
        %v6956 = vrot.slane %v6954, 5
        %v6957 = vsel %vm1258, %v6952, %v6956
        %v6958 = vshrl.u32 %v6661, 16
        %v6960 = vrot.slane %v6958, 4
        %v6961 = vor.u32 %v6960, %v6956
        %v6962 = vrot.slane %v6961, 4
        %v6964 = vshll.u32 %v6698, 16
        %v6966 = vrot.slane %v6964, 5
        %v6967 = vsel %vm1258, %v6962, %v6966
        %v6969 = vshrl.u32 %v6662, 16
        %v6971 = vrot.slane %v6969, 4
        %v6972 = vshll.u32 %v6662, 16
        %v6974 = vrot.slane %v6972, 5
        %v6975 = vor.u32 %v6971, %v6974
        %v6976 = vrot.slane %v6975, 4
        %v6978 = vshll.u32 %v6663, 16
        %v6980 = vrot.slane %v6978, 5
        %v6981 = vsel %vm1258, %v6976, %v6980
        %v6982 = vshrl.u32 %v6663, 16
        %v6984 = vrot.slane %v6982, 4
        %v6985 = vor.u32 %v6984, %v6980
        %v6986 = vrot.slane %v6985, 4
        %v6988 = vshll.u32 %v6699, 16
        %v6990 = vrot.slane %v6988, 5
        %v6991 = vsel %vm1258, %v6986, %v6990
        %v6993 = vshrl.u32 %v6664, 16
        %v6995 = vrot.slane %v6993, 4
        %v6996 = vshll.u32 %v6664, 16
        %v6998 = vrot.slane %v6996, 5
        %v6999 = vor.u32 %v6995, %v6998
        %v7000 = vrot.slane %v6999, 4
        %v7002 = vshll.u32 %v6665, 16
        %v7004 = vrot.slane %v7002, 5
        %v7005 = vsel %vm1258, %v7000, %v7004
        %v7006 = vshrl.u32 %v6665, 16
        %v7008 = vrot.slane %v7006, 4
        %v7009 = vor.u32 %v7008, %v7004
        %v7010 = vrot.slane %v7009, 4
        %v7012 = vshll.u32 %v6700, 16
        %v7014 = vrot.slane %v7012, 5
        %v7015 = vsel %vm1258, %v7010, %v7014
        %v7017 = vshrl.u32 %v6666, 16
        %v7019 = vrot.slane %v7017, 4
        %v7020 = vshll.u32 %v6666, 16
        %v7022 = vrot.slane %v7020, 5
        %v7023 = vor.u32 %v7019, %v7022
        %v7024 = vrot.slane %v7023, 4
        %v7026 = vshll.u32 %v6667, 16
        %v7028 = vrot.slane %v7026, 5
        %v7029 = vsel %vm1258, %v7024, %v7028
        %v7030 = vshrl.u32 %v6667, 16
        %v7032 = vrot.slane %v7030, 4
        %v7033 = vor.u32 %v7032, %v7028
        %v7034 = vrot.slane %v7033, 4
        %v7036 = vshll.u32 %v6701, 16
        %v7038 = vrot.slane %v7036, 5
        %v7039 = vsel %vm1258, %v7034, %v7038
        %v7041 = vshrl.u32 %v6668, 16
        %v7043 = vrot.slane %v7041, 4
        %v7044 = vshll.u32 %v6668, 16
        %v7046 = vrot.slane %v7044, 5
        %v7047 = vor.u32 %v7043, %v7046
        %v7048 = vrot.slane %v7047, 4
        %v7050 = vshll.u32 %v6669, 16
        %v7052 = vrot.slane %v7050, 5
        %v7053 = vsel %vm1258, %v7048, %v7052
        %v7054 = vshrl.u32 %v6669, 16
        %v7056 = vrot.slane %v7054, 4
        %v7057 = vor.u32 %v7056, %v7052
        %v7058 = vrot.slane %v7057, 4
        %v7060 = vshll.u32 %v6702, 16
        %v7062 = vrot.slane %v7060, 5
        %v7063 = vsel %vm1258, %v7058, %v7062
        %v7065 = vshrl.u32 %v6670, 16
        %v7067 = vrot.slane %v7065, 4
        %v7068 = vshll.u32 %v6670, 16
        %v7070 = vrot.slane %v7068, 5
        %v7071 = vor.u32 %v7067, %v7070
        %v7072 = vrot.slane %v7071, 4
        %v7074 = vshll.u32 %v6671, 16
        %v7076 = vrot.slane %v7074, 5
        %v7077 = vsel %vm1258, %v7072, %v7076
        %v7078 = vshrl.u32 %v6671, 16
        %v7080 = vrot.slane %v7078, 4
        %v7081 = vor.u32 %v7080, %v7076
        %v7082 = vrot.slane %v7081, 4
        %v7084 = vshll.u32 %v6703, 16
        %v7086 = vrot.slane %v7084, 5
        %v7087 = vsel %vm1258, %v7082, %v7086
        %s7088 = scalar_lea.vmem [#allocation4], 64
        %v7089 = vld [vmem:[%s7088] sm:$0xf]
        %v7090 = vld [vmem:[%s7088 + $0x4] sm:$0xf]
        %v7091 = vld [vmem:[%s7088 + $0x8] sm:$0xf]
        %v7092 = vld [vmem:[%s7088 + $0xc] sm:$0xf]
        %v7093 = vld [vmem:[%s7088 + $0x10] sm:$0xf]
        %v7094 = vld [vmem:[%s7088 + $0x14] sm:$0xf]
        %v7095 = vld [vmem:[%s7088 + $0x18] sm:$0xf]
        %v7096 = vld [vmem:[%s7088 + $0x1c] sm:$0xf]
        %v7097 = vld [vmem:[%s7088 + $0x20] sm:$0xf]
        %v7098 = vld [vmem:[%s7088 + $0x24] sm:$0xf]
        %v7099 = vld [vmem:[%s7088 + $0x28] sm:$0xf]
        %v7100 = vld [vmem:[%s7088 + $0x2c] sm:$0xf]
        %v7101 = vld [vmem:[%s7088 + $0x30] sm:$0xf]
        %v7102 = vld [vmem:[%s7088 + $0x34] sm:$0xf]
        %v7103 = vld [vmem:[%s7088 + $0x38] sm:$0xf]
        %v7104 = vld [vmem:[%s7088 + $0x3c] sm:$0xf]
        %v7105 = vunpack.c.l.b16 %v6717
        %v7106 = vunpack.c.l.b16 %v6727
        %v7107 = vunpack.c.l.b16 %v6741
        %v7108 = vunpack.c.l.b16 %v6751
        %v7109 = vunpack.c.l.b16 %v6765
        %v7110 = vunpack.c.l.b16 %v6775
        %v7111 = vunpack.c.l.b16 %v6789
        %v7112 = vunpack.c.l.b16 %v6799
        %v7113 = vunpack.c.l.b16 %v6813
        %v7114 = vunpack.c.l.b16 %v6823
        %v7115 = vunpack.c.l.b16 %v6837
        %v7116 = vunpack.c.l.b16 %v6847
        %v7117 = vunpack.c.l.b16 %v6861
        %v7118 = vunpack.c.l.b16 %v6871
        %v7119 = vunpack.c.l.b16 %v6885
        %v7120 = vunpack.c.l.b16 %v6895
        %v7121 = vunpack.c.l.b16 %v6909
        %v7122 = vunpack.c.l.b16 %v6919
        %v7123 = vunpack.c.l.b16 %v6933
        %v7124 = vunpack.c.l.b16 %v6943
        %v7125 = vunpack.c.l.b16 %v6957
        %v7126 = vunpack.c.l.b16 %v6967
        %v7127 = vunpack.c.l.b16 %v6981
        %v7128 = vunpack.c.l.b16 %v6991
        %v7129 = vunpack.c.l.b16 %v7005
        %v7130 = vunpack.c.l.b16 %v7015
        %v7131 = vunpack.c.l.b16 %v7029
        %v7132 = vunpack.c.l.b16 %v7039
        %v7133 = vunpack.c.l.b16 %v7053
        %v7134 = vunpack.c.l.b16 %v7063
        %v7135 = vunpack.c.l.b16 %v7077
        %v7136 = vunpack.c.l.b16 %v7087
        %v7137 = vpack.c.b16 %v7106, %v7105
        %v7138 = vpack.c.b16 %v7108, %v7107
        %v7139 = vpack.c.b16 %v7110, %v7109
        %v7140 = vpack.c.b16 %v7112, %v7111
        %v7141 = vpack.c.b16 %v7114, %v7113
        %v7142 = vpack.c.b16 %v7116, %v7115
        %v7143 = vpack.c.b16 %v7118, %v7117
        %v7144 = vpack.c.b16 %v7120, %v7119
        %v7145 = vpack.c.b16 %v7122, %v7121
        %v7146 = vpack.c.b16 %v7124, %v7123
        %v7147 = vpack.c.b16 %v7126, %v7125
        %v7148 = vpack.c.b16 %v7128, %v7127
        %v7149 = vpack.c.b16 %v7130, %v7129
        %v7150 = vpack.c.b16 %v7132, %v7131
        %v7151 = vpack.c.b16 %v7134, %v7133
        %v7152 = vpack.c.b16 %v7136, %v7135
        %v7185 = vunpack.c.l.b16 %v7089
        %v7186 = vunpack.c.l.b16 %v7090
        %v7187 = vunpack.c.l.b16 %v7091
        %v7188 = vunpack.c.l.b16 %v7092
        %v7189 = vunpack.c.l.b16 %v7093
        %v7190 = vunpack.c.l.b16 %v7094
        %v7191 = vunpack.c.l.b16 %v7095
        %v7192 = vunpack.c.l.b16 %v7096
        %v7193 = vunpack.c.l.b16 %v7097
        %v7194 = vunpack.c.l.b16 %v7098
        %v7195 = vunpack.c.l.b16 %v7099
        %v7196 = vunpack.c.l.b16 %v7100
        %v7197 = vunpack.c.l.b16 %v7101
        %v7198 = vunpack.c.l.b16 %v7102
        %v7199 = vunpack.c.l.b16 %v7103
        %v7200 = vunpack.c.l.b16 %v7104
        %v7201 = vpack.c.b16 %v7186, %v7185
        %v7202 = vpack.c.b16 %v7188, %v7187
        %v7203 = vpack.c.b16 %v7190, %v7189
        %v7204 = vpack.c.b16 %v7192, %v7191
        %v7205 = vpack.c.b16 %v7194, %v7193
        %v7206 = vpack.c.b16 %v7196, %v7195
        %v7207 = vpack.c.b16 %v7198, %v7197
        %v7208 = vpack.c.b16 %v7200, %v7199
        %7217 = vmatprep.subr.bf16.mxu0 0
        %7218 = vmatpush1.bf16.msra.mxu0 %v7208
        %7219 = vmatprep.subr.bf16.mxu0 0
        %7220 = vmatpush1.bf16.msra.mxu0 %v7207
        %7221 = vmatprep.subr.bf16.mxu0 0
        %7222 = vmatpush1.bf16.msra.mxu0 %v7206
        %7223 = vmatprep.subr.bf16.mxu0 0
        %7224 = vmatpush1.bf16.msra.mxu0 %v7205
        %7225 = vmatprep.subr.bf16.mxu0 0
        %7226 = vmatpush1.bf16.msra.mxu0 %v7204
        %7227 = vmatprep.subr.bf16.mxu0 0
        %7228 = vmatpush1.bf16.msra.mxu0 %v7203
        %7229 = vmatprep.subr.bf16.mxu0 0
        %7230 = vmatpush1.bf16.msra.mxu0 %v7202
        %7231 = vmatprep.subr.bf16.mxu0 0
        %7232 = vmatpush1.bf16.msra.mxu0 %v7201
        %7233 = vmatprep.subr.bf16.mxu0 0
        %7234 = vmatpush2.bf16.msra.mxu0 0
        %7235 = vmatprep.subr.bf16.mxu0 0
        %7236 = vmatpush2.bf16.msra.mxu0 0
        %7237 = vmatprep.subr.bf16.mxu0 0
        %7238 = vmatpush2.bf16.msra.mxu0 0
        %7239 = vmatprep.subr.bf16.mxu0 0
        %7240 = vmatpush2.bf16.msra.mxu0 0
        %7241 = vmatprep.subr.bf16.mxu0 0
        %7242 = vmatpush2.bf16.msra.mxu0 0
        %7243 = vmatprep.subr.bf16.mxu0 0
        %7244 = vmatpush2.bf16.msra.mxu0 0
        %7245 = vmatprep.subr.bf16.mxu0 0
        %7246 = vmatpush2.bf16.msra.mxu0 0
        %7247 = vmatprep.subr.bf16.mxu0 0
        %7248 = vmatpush2.bf16.msra.mxu0 0
        %7249 = vmatprep.mubr.bf16.mxu0 0
        %7250 = vmatmul.mubr.bf16.gmra.mxu0 %v7137
        %v7251 = vpop.f32.mrf.mxu0
        %v7252 = vadd.f32 0.0, %v7251
        %v7253 = vpop.f32.mrf.mxu0
        %v7254 = vpop.f32.mrf.mxu0
        %v7255 = vadd.f32 0.0, %v7254
        %v7256 = vpop.f32.mrf.mxu0
        %7257 = vmatprep.mubr.bf16.mxu0 0
        %7258 = vmatmul.mubr.bf16.gmra.mxu0 %v7138
        %v7259 = vpop.f32.mrf.mxu0
        %v7260 = vadd.f32 0.0, %v7259
        %v7261 = vpop.f32.mrf.mxu0
        %v7262 = vpop.f32.mrf.mxu0
        %v7263 = vadd.f32 0.0, %v7262
        %v7264 = vpop.f32.mrf.mxu0
        %7265 = vmatprep.mubr.bf16.mxu0 0
        %7266 = vmatmul.mubr.bf16.gmra.mxu0 %v7139
        %v7267 = vpop.f32.mrf.mxu0
        %v7268 = vadd.f32 0.0, %v7267
        %v7269 = vpop.f32.mrf.mxu0
        %v7270 = vpop.f32.mrf.mxu0
        %v7271 = vadd.f32 0.0, %v7270
        %v7272 = vpop.f32.mrf.mxu0
        %7273 = vmatprep.mubr.bf16.mxu0 0
        %7274 = vmatmul.mubr.bf16.gmra.mxu0 %v7140
        %v7275 = vpop.f32.mrf.mxu0
        %v7276 = vadd.f32 0.0, %v7275
        %v7277 = vpop.f32.mrf.mxu0
        %v7278 = vpop.f32.mrf.mxu0
        %v7279 = vadd.f32 0.0, %v7278
        %v7280 = vpop.f32.mrf.mxu0
        %7281 = vmatprep.mubr.bf16.mxu0 0
        %7282 = vmatmul.mubr.bf16.gmra.mxu0 %v7141
        %v7283 = vpop.f32.mrf.mxu0
        %v7284 = vadd.f32 0.0, %v7283
        %v7285 = vpop.f32.mrf.mxu0
        %v7286 = vpop.f32.mrf.mxu0
        %v7287 = vadd.f32 0.0, %v7286
        %v7288 = vpop.f32.mrf.mxu0
        %7289 = vmatprep.mubr.bf16.mxu0 0
        %7290 = vmatmul.mubr.bf16.gmra.mxu0 %v7142
        %v7291 = vpop.f32.mrf.mxu0
        %v7292 = vadd.f32 0.0, %v7291
        %v7293 = vpop.f32.mrf.mxu0
        %v7294 = vpop.f32.mrf.mxu0
        %v7295 = vadd.f32 0.0, %v7294
        %v7296 = vpop.f32.mrf.mxu0
        %7297 = vmatprep.mubr.bf16.mxu0 0
        %7298 = vmatmul.mubr.bf16.gmra.mxu0 %v7143
        %v7299 = vpop.f32.mrf.mxu0
        %v7300 = vadd.f32 0.0, %v7299
        %v7301 = vpop.f32.mrf.mxu0
        %v7302 = vpop.f32.mrf.mxu0
        %v7303 = vadd.f32 0.0, %v7302
        %v7304 = vpop.f32.mrf.mxu0
        %7305 = vmatprep.mubr.bf16.mxu0 0
        %7306 = vmatmul.mubr.bf16.gmra.mxu0 %v7144
        %v7307 = vpop.f32.mrf.mxu0
        %v7308 = vadd.f32 0.0, %v7307
        %v7309 = vpop.f32.mrf.mxu0
        %v7310 = vpop.f32.mrf.mxu0
        %v7311 = vadd.f32 0.0, %v7310
        %v7312 = vpop.f32.mrf.mxu0
        %7313 = vmatprep.mubr.bf16.mxu0 0
        %7314 = vmatmul.mubr.bf16.gmra.mxu0 %v7145
        %v7315 = vpop.f32.mrf.mxu0
        %v7316 = vadd.f32 0.0, %v7315
        %v7317 = vpop.f32.mrf.mxu0
        %v7318 = vpop.f32.mrf.mxu0
        %v7319 = vadd.f32 0.0, %v7318
        %v7320 = vpop.f32.mrf.mxu0
        %7321 = vmatprep.mubr.bf16.mxu0 0
        %7322 = vmatmul.mubr.bf16.gmra.mxu0 %v7146
        %v7323 = vpop.f32.mrf.mxu0
        %v7324 = vadd.f32 0.0, %v7323
        %v7325 = vpop.f32.mrf.mxu0
        %v7326 = vpop.f32.mrf.mxu0
        %v7327 = vadd.f32 0.0, %v7326
        %v7328 = vpop.f32.mrf.mxu0
        %7329 = vmatprep.mubr.bf16.mxu0 0
        %7330 = vmatmul.mubr.bf16.gmra.mxu0 %v7147
        %v7331 = vpop.f32.mrf.mxu0
        %v7332 = vadd.f32 0.0, %v7331
        %v7333 = vpop.f32.mrf.mxu0
        %v7334 = vpop.f32.mrf.mxu0
        %v7335 = vadd.f32 0.0, %v7334
        %v7336 = vpop.f32.mrf.mxu0
        %7337 = vmatprep.mubr.bf16.mxu0 0
        %7338 = vmatmul.mubr.bf16.gmra.mxu0 %v7148
        %v7339 = vpop.f32.mrf.mxu0
        %v7340 = vadd.f32 0.0, %v7339
        %v7341 = vpop.f32.mrf.mxu0
        %v7342 = vpop.f32.mrf.mxu0
        %v7343 = vadd.f32 0.0, %v7342
        %v7344 = vpop.f32.mrf.mxu0
        %7345 = vmatprep.mubr.bf16.mxu0 0
        %7346 = vmatmul.mubr.bf16.gmra.mxu0 %v7149
        %v7347 = vpop.f32.mrf.mxu0
        %v7348 = vadd.f32 0.0, %v7347
        %v7349 = vpop.f32.mrf.mxu0
        %v7350 = vpop.f32.mrf.mxu0
        %v7351 = vadd.f32 0.0, %v7350
        %v7352 = vpop.f32.mrf.mxu0
        %7353 = vmatprep.mubr.bf16.mxu0 0
        %7354 = vmatmul.mubr.bf16.gmra.mxu0 %v7150
        %v7355 = vpop.f32.mrf.mxu0
        %v7356 = vadd.f32 0.0, %v7355
        %v7357 = vpop.f32.mrf.mxu0
        %v7358 = vpop.f32.mrf.mxu0
        %v7359 = vadd.f32 0.0, %v7358
        %v7360 = vpop.f32.mrf.mxu0
        %7361 = vmatprep.mubr.bf16.mxu0 0
        %7362 = vmatmul.mubr.bf16.gmra.mxu0 %v7151
        %v7363 = vpop.f32.mrf.mxu0
        %v7364 = vadd.f32 0.0, %v7363
        %v7365 = vpop.f32.mrf.mxu0
        %v7366 = vpop.f32.mrf.mxu0
        %v7367 = vadd.f32 0.0, %v7366
        %v7368 = vpop.f32.mrf.mxu0
        %7369 = vmatprep.mubr.bf16.mxu0 0
        %7370 = vmatmul.mubr.bf16.gmra.mxu0 %v7152
        %v7371 = vpop.f32.mrf.mxu0
        %v7372 = vadd.f32 0.0, %v7371
        %v7373 = vpop.f32.mrf.mxu0
        %v7374 = vpop.f32.mrf.mxu0
        %v7375 = vadd.f32 0.0, %v7374
        %v7376 = vpop.f32.mrf.mxu0
        %7377 = vdwg.mxu0
        %v7410 = vunpack.c.l.b16 %v6640
        %v7411 = vunpack.c.l.b16 %v6641
        %v7412 = vunpack.c.l.b16 %v6642
        %v7413 = vunpack.c.l.b16 %v6643
        %v7414 = vunpack.c.l.b16 %v6644
        %v7415 = vunpack.c.l.b16 %v6645
        %v7416 = vunpack.c.l.b16 %v6646
        %v7417 = vunpack.c.l.b16 %v6647
        %v7418 = vunpack.c.l.b16 %v6648
        %v7419 = vunpack.c.l.b16 %v6649
        %v7420 = vunpack.c.l.b16 %v6650
        %v7421 = vunpack.c.l.b16 %v6651
        %v7422 = vunpack.c.l.b16 %v6652
        %v7423 = vunpack.c.l.b16 %v6653
        %v7424 = vunpack.c.l.b16 %v6654
        %v7425 = vunpack.c.l.b16 %v6655
        %v7426 = vunpack.c.l.b16 %v6656
        %v7427 = vunpack.c.l.b16 %v6657
        %v7428 = vunpack.c.l.b16 %v6658
        %v7429 = vunpack.c.l.b16 %v6659
        %v7430 = vunpack.c.l.b16 %v6660
        %v7431 = vunpack.c.l.b16 %v6661
        %v7432 = vunpack.c.l.b16 %v6662
        %v7433 = vunpack.c.l.b16 %v6663
        %v7434 = vunpack.c.l.b16 %v6664
        %v7435 = vunpack.c.l.b16 %v6665
        %v7436 = vunpack.c.l.b16 %v6666
        %v7437 = vunpack.c.l.b16 %v6667
        %v7438 = vunpack.c.l.b16 %v6668
        %v7439 = vunpack.c.l.b16 %v6669
        %v7440 = vunpack.c.l.b16 %v6670
        %v7441 = vunpack.c.l.b16 %v6671
        %v7442 = vpack.c.b16 %v7411, %v7410
        %v7443 = vpack.c.b16 %v7413, %v7412
        %v7444 = vpack.c.b16 %v7415, %v7414
        %v7445 = vpack.c.b16 %v7417, %v7416
        %v7446 = vpack.c.b16 %v7419, %v7418
        %v7447 = vpack.c.b16 %v7421, %v7420
        %v7448 = vpack.c.b16 %v7423, %v7422
        %v7449 = vpack.c.b16 %v7425, %v7424
        %v7450 = vpack.c.b16 %v7427, %v7426
        %v7451 = vpack.c.b16 %v7429, %v7428
        %v7452 = vpack.c.b16 %v7431, %v7430
        %v7453 = vpack.c.b16 %v7433, %v7432
        %v7454 = vpack.c.b16 %v7435, %v7434
        %v7455 = vpack.c.b16 %v7437, %v7436
        %v7456 = vpack.c.b16 %v7439, %v7438
        %v7457 = vpack.c.b16 %v7441, %v7440
        %v7490 = vunpack.c.l.b16 %v6672
        %v7491 = vunpack.c.l.b16 %v6673
        %v7492 = vunpack.c.l.b16 %v6674
        %v7493 = vunpack.c.l.b16 %v6675
        %v7494 = vunpack.c.l.b16 %v6676
        %v7495 = vunpack.c.l.b16 %v6677
        %v7496 = vunpack.c.l.b16 %v6678
        %v7497 = vunpack.c.l.b16 %v6679
        %v7498 = vunpack.c.l.b16 %v6680
        %v7499 = vunpack.c.l.b16 %v6681
        %v7500 = vunpack.c.l.b16 %v6682
        %v7501 = vunpack.c.l.b16 %v6683
        %v7502 = vunpack.c.l.b16 %v6684
        %v7503 = vunpack.c.l.b16 %v6685
        %v7504 = vunpack.c.l.b16 %v6686
        %v7505 = vunpack.c.l.b16 %v6687
        %v7506 = vpack.c.b16 %v7491, %v7490
        %v7507 = vpack.c.b16 %v7493, %v7492
        %v7508 = vpack.c.b16 %v7495, %v7494
        %v7509 = vpack.c.b16 %v7497, %v7496
        %v7510 = vpack.c.b16 %v7499, %v7498
        %v7511 = vpack.c.b16 %v7501, %v7500
        %v7512 = vpack.c.b16 %v7503, %v7502
        %v7513 = vpack.c.b16 %v7505, %v7504
        %7522 = vmatprep.subr.bf16.mxu0 0
        %7523 = vmatpush1.bf16.msra.mxu0 %v7513
        %7524 = vmatprep.subr.bf16.mxu0 0
        %7525 = vmatpush1.bf16.msra.mxu0 %v7512
        %7526 = vmatprep.subr.bf16.mxu0 0
        %7527 = vmatpush1.bf16.msra.mxu0 %v7511
        %7528 = vmatprep.subr.bf16.mxu0 0
        %7529 = vmatpush1.bf16.msra.mxu0 %v7510
        %7530 = vmatprep.subr.bf16.mxu0 0
        %7531 = vmatpush1.bf16.msra.mxu0 %v7509
        %7532 = vmatprep.subr.bf16.mxu0 0
        %7533 = vmatpush1.bf16.msra.mxu0 %v7508
        %7534 = vmatprep.subr.bf16.mxu0 0
        %7535 = vmatpush1.bf16.msra.mxu0 %v7507
        %7536 = vmatprep.subr.bf16.mxu0 0
        %7537 = vmatpush1.bf16.msra.mxu0 %v7506
        %7538 = vmatprep.subr.bf16.mxu0 0
        %7539 = vmatpush2.bf16.msra.mxu0 0
        %7540 = vmatprep.subr.bf16.mxu0 0
        %7541 = vmatpush2.bf16.msra.mxu0 0
        %7542 = vmatprep.subr.bf16.mxu0 0
        %7543 = vmatpush2.bf16.msra.mxu0 0
        %7544 = vmatprep.subr.bf16.mxu0 0
        %7545 = vmatpush2.bf16.msra.mxu0 0
        %7546 = vmatprep.subr.bf16.mxu0 0
        %7547 = vmatpush2.bf16.msra.mxu0 0
        %7548 = vmatprep.subr.bf16.mxu0 0
        %7549 = vmatpush2.bf16.msra.mxu0 0
        %7550 = vmatprep.subr.bf16.mxu0 0
        %7551 = vmatpush2.bf16.msra.mxu0 0
        %7552 = vmatprep.subr.bf16.mxu0 0
        %7553 = vmatpush2.bf16.msra.mxu0 0
        %7554 = vmatprep.mubr.bf16.mxu0 0
        %7555 = vmatmul.mubr.bf16.gmra.mxu0 %v7442
        %v7556 = vpop.f32.mrf.mxu0
        %v7557 = vadd.f32 %v7252, %v7556
        %v7558 = vpop.f32.mrf.mxu0
        %v7559 = vpop.f32.mrf.mxu0
        %v7560 = vadd.f32 %v7255, %v7559
        %v7561 = vpop.f32.mrf.mxu0
        %7562 = vmatprep.mubr.bf16.mxu0 0
        %7563 = vmatmul.mubr.bf16.gmra.mxu0 %v7443
        %v7564 = vpop.f32.mrf.mxu0
        %v7565 = vadd.f32 %v7260, %v7564
        %v7566 = vpop.f32.mrf.mxu0
        %v7567 = vpop.f32.mrf.mxu0
        %v7568 = vadd.f32 %v7263, %v7567
        %v7569 = vpop.f32.mrf.mxu0
        %7570 = vmatprep.mubr.bf16.mxu0 0
        %7571 = vmatmul.mubr.bf16.gmra.mxu0 %v7444
        %v7572 = vpop.f32.mrf.mxu0
        %v7573 = vadd.f32 %v7268, %v7572
        %v7574 = vpop.f32.mrf.mxu0
        %v7575 = vpop.f32.mrf.mxu0
        %v7576 = vadd.f32 %v7271, %v7575
        %v7577 = vpop.f32.mrf.mxu0
        %7578 = vmatprep.mubr.bf16.mxu0 0
        %7579 = vmatmul.mubr.bf16.gmra.mxu0 %v7445
        %v7580 = vpop.f32.mrf.mxu0
        %v7581 = vadd.f32 %v7276, %v7580
        %v7582 = vpop.f32.mrf.mxu0
        %v7583 = vpop.f32.mrf.mxu0
        %v7584 = vadd.f32 %v7279, %v7583
        %v7585 = vpop.f32.mrf.mxu0
        %7586 = vmatprep.mubr.bf16.mxu0 0
        %7587 = vmatmul.mubr.bf16.gmra.mxu0 %v7446
        %v7588 = vpop.f32.mrf.mxu0
        %v7589 = vadd.f32 %v7284, %v7588
        %v7590 = vpop.f32.mrf.mxu0
        %v7591 = vpop.f32.mrf.mxu0
        %v7592 = vadd.f32 %v7287, %v7591
        %v7593 = vpop.f32.mrf.mxu0
        %7594 = vmatprep.mubr.bf16.mxu0 0
        %7595 = vmatmul.mubr.bf16.gmra.mxu0 %v7447
        %v7596 = vpop.f32.mrf.mxu0
        %v7597 = vadd.f32 %v7292, %v7596
        %v7598 = vpop.f32.mrf.mxu0
        %v7599 = vpop.f32.mrf.mxu0
        %v7600 = vadd.f32 %v7295, %v7599
        %v7601 = vpop.f32.mrf.mxu0
        %7602 = vmatprep.mubr.bf16.mxu0 0
        %7603 = vmatmul.mubr.bf16.gmra.mxu0 %v7448
        %v7604 = vpop.f32.mrf.mxu0
        %v7605 = vadd.f32 %v7300, %v7604
        %v7606 = vpop.f32.mrf.mxu0
        %v7607 = vpop.f32.mrf.mxu0
        %v7608 = vadd.f32 %v7303, %v7607
        %v7609 = vpop.f32.mrf.mxu0
        %7610 = vmatprep.mubr.bf16.mxu0 0
        %7611 = vmatmul.mubr.bf16.gmra.mxu0 %v7449
        %v7612 = vpop.f32.mrf.mxu0
        %v7613 = vadd.f32 %v7308, %v7612
        %v7614 = vpop.f32.mrf.mxu0
        %v7615 = vpop.f32.mrf.mxu0
        %v7616 = vadd.f32 %v7311, %v7615
        %v7617 = vpop.f32.mrf.mxu0
        %7618 = vmatprep.mubr.bf16.mxu0 0
        %7619 = vmatmul.mubr.bf16.gmra.mxu0 %v7450
        %v7620 = vpop.f32.mrf.mxu0
        %v7621 = vadd.f32 %v7316, %v7620
        %v7622 = vpop.f32.mrf.mxu0
        %v7623 = vpop.f32.mrf.mxu0
        %v7624 = vadd.f32 %v7319, %v7623
        %v7625 = vpop.f32.mrf.mxu0
        %7626 = vmatprep.mubr.bf16.mxu0 0
        %7627 = vmatmul.mubr.bf16.gmra.mxu0 %v7451
        %v7628 = vpop.f32.mrf.mxu0
        %v7629 = vadd.f32 %v7324, %v7628
        %v7630 = vpop.f32.mrf.mxu0
        %v7631 = vpop.f32.mrf.mxu0
        %v7632 = vadd.f32 %v7327, %v7631
        %v7633 = vpop.f32.mrf.mxu0
        %7634 = vmatprep.mubr.bf16.mxu0 0
        %7635 = vmatmul.mubr.bf16.gmra.mxu0 %v7452
        %v7636 = vpop.f32.mrf.mxu0
        %v7637 = vadd.f32 %v7332, %v7636
        %v7638 = vpop.f32.mrf.mxu0
        %v7639 = vpop.f32.mrf.mxu0
        %v7640 = vadd.f32 %v7335, %v7639
        %v7641 = vpop.f32.mrf.mxu0
        %7642 = vmatprep.mubr.bf16.mxu0 0
        %7643 = vmatmul.mubr.bf16.gmra.mxu0 %v7453
        %v7644 = vpop.f32.mrf.mxu0
        %v7645 = vadd.f32 %v7340, %v7644
        %v7646 = vpop.f32.mrf.mxu0
        %v7647 = vpop.f32.mrf.mxu0
        %v7648 = vadd.f32 %v7343, %v7647
        %v7649 = vpop.f32.mrf.mxu0
        %7650 = vmatprep.mubr.bf16.mxu0 0
        %7651 = vmatmul.mubr.bf16.gmra.mxu0 %v7454
        %v7652 = vpop.f32.mrf.mxu0
        %v7653 = vadd.f32 %v7348, %v7652
        %v7654 = vpop.f32.mrf.mxu0
        %v7655 = vpop.f32.mrf.mxu0
        %v7656 = vadd.f32 %v7351, %v7655
        %v7657 = vpop.f32.mrf.mxu0
        %7658 = vmatprep.mubr.bf16.mxu0 0
        %7659 = vmatmul.mubr.bf16.gmra.mxu0 %v7455
        %v7660 = vpop.f32.mrf.mxu0
        %v7661 = vadd.f32 %v7356, %v7660
        %v7662 = vpop.f32.mrf.mxu0
        %v7663 = vpop.f32.mrf.mxu0
        %v7664 = vadd.f32 %v7359, %v7663
        %v7665 = vpop.f32.mrf.mxu0
        %7666 = vmatprep.mubr.bf16.mxu0 0
        %7667 = vmatmul.mubr.bf16.gmra.mxu0 %v7456
        %v7668 = vpop.f32.mrf.mxu0
        %v7669 = vadd.f32 %v7364, %v7668
        %v7670 = vpop.f32.mrf.mxu0
        %v7671 = vpop.f32.mrf.mxu0
        %v7672 = vadd.f32 %v7367, %v7671
        %v7673 = vpop.f32.mrf.mxu0
        %7674 = vmatprep.mubr.bf16.mxu0 0
        %7675 = vmatmul.mubr.bf16.gmra.mxu0 %v7457
        %v7676 = vpop.f32.mrf.mxu0
        %v7677 = vadd.f32 %v7372, %v7676
        %v7678 = vpop.f32.mrf.mxu0
        %v7679 = vpop.f32.mrf.mxu0
        %v7680 = vadd.f32 %v7375, %v7679
        %v7681 = vpop.f32.mrf.mxu0
        %7682 = vdwg.mxu0
        %v7683 = vld [vmem:[#allocation3] sm:$0xe]
        %v7684 = vld [vmem:[#allocation3 + $0xc] sm:$0xe]
        %v7685 = vld [vmem:[#allocation3 + $0x18] sm:$0xe]
        %v7686 = vld [vmem:[#allocation3 + $0x24] sm:$0xe]
        %v7687 = vld [vmem:[#allocation3 + $0x30] sm:$0xe]
        %v7688 = vld [vmem:[#allocation3 + $0x3c] sm:$0xe]
        %v7689 = vld [vmem:[#allocation3 + $0x48] sm:$0xe]
        %v7690 = vld [vmem:[#allocation3 + $0x54] sm:$0xe]
        %v7691 = vld [vmem:[#allocation3 + $0x60] sm:$0xe]
        %v7692 = vld [vmem:[#allocation3 + $0x6c] sm:$0xe]
        %v7693 = vld [vmem:[#allocation3 + $0x78] sm:$0xe]
        %v7694 = vld [vmem:[#allocation3 + $0x84] sm:$0xe]
        %v7695 = vld [vmem:[#allocation3 + $0x90] sm:$0xe]
        %v7696 = vld [vmem:[#allocation3 + $0x9c] sm:$0xe]
        %v7697 = vld [vmem:[#allocation3 + $0xa8] sm:$0xe]
        %v7698 = vld [vmem:[#allocation3 + $0xb4] sm:$0xe]
        %v7731 = vrot.slane %v7683, 5
        %v7732 = vrot.slane %v7731, 4
        %v7733 = vrot.slane %v6641, 5
        %v7734 = vsel %vm2288, %v7732, %v7733
        %v7735 = vrot.slane %v7733, 4
        %v7736 = vrot.slane %v6688, 5
        %v7737 = vsel %vm2288, %v7735, %v7736
        %v7738 = vrot.slane %v7684, 5
        %v7739 = vrot.slane %v7738, 4
        %v7740 = vrot.slane %v6643, 5
        %v7741 = vsel %vm2288, %v7739, %v7740
        %v7742 = vrot.slane %v7740, 4
        %v7743 = vrot.slane %v6689, 5
        %v7744 = vsel %vm2288, %v7742, %v7743
        %v7745 = vrot.slane %v7685, 5
        %v7746 = vrot.slane %v7745, 4
        %v7747 = vrot.slane %v6645, 5
        %v7748 = vsel %vm2288, %v7746, %v7747
        %v7749 = vrot.slane %v7747, 4
        %v7750 = vrot.slane %v6690, 5
        %v7751 = vsel %vm2288, %v7749, %v7750
        %v7752 = vrot.slane %v7686, 5
        %v7753 = vrot.slane %v7752, 4
        %v7754 = vrot.slane %v6647, 5
        %v7755 = vsel %vm2288, %v7753, %v7754
        %v7756 = vrot.slane %v7754, 4
        %v7757 = vrot.slane %v6691, 5
        %v7758 = vsel %vm2288, %v7756, %v7757
        %v7759 = vrot.slane %v7687, 5
        %v7760 = vrot.slane %v7759, 4
        %v7761 = vrot.slane %v6649, 5
        %v7762 = vsel %vm2288, %v7760, %v7761
        %v7763 = vrot.slane %v7761, 4
        %v7764 = vrot.slane %v6692, 5
        %v7765 = vsel %vm2288, %v7763, %v7764
        %v7766 = vrot.slane %v7688, 5
        %v7767 = vrot.slane %v7766, 4
        %v7768 = vrot.slane %v6651, 5
        %v7769 = vsel %vm2288, %v7767, %v7768
        %v7770 = vrot.slane %v7768, 4
        %v7771 = vrot.slane %v6693, 5
        %v7772 = vsel %vm2288, %v7770, %v7771
        %v7773 = vrot.slane %v7689, 5
        %v7774 = vrot.slane %v7773, 4
        %v7775 = vrot.slane %v6653, 5
        %v7776 = vsel %vm2288, %v7774, %v7775
        %v7777 = vrot.slane %v7775, 4
        %v7778 = vrot.slane %v6694, 5
        %v7779 = vsel %vm2288, %v7777, %v7778
        %v7780 = vrot.slane %v7690, 5
        %v7781 = vrot.slane %v7780, 4
        %v7782 = vrot.slane %v6655, 5
        %v7783 = vsel %vm2288, %v7781, %v7782
        %v7784 = vrot.slane %v7782, 4
        %v7785 = vrot.slane %v6695, 5
        %v7786 = vsel %vm2288, %v7784, %v7785
        %v7787 = vrot.slane %v7691, 5
        %v7788 = vrot.slane %v7787, 4
        %v7789 = vrot.slane %v6657, 5
        %v7790 = vsel %vm2288, %v7788, %v7789
        %v7791 = vrot.slane %v7789, 4
        %v7792 = vrot.slane %v6696, 5
        %v7793 = vsel %vm2288, %v7791, %v7792
        %v7794 = vrot.slane %v7692, 5
        %v7795 = vrot.slane %v7794, 4
        %v7796 = vrot.slane %v6659, 5
        %v7797 = vsel %vm2288, %v7795, %v7796
        %v7798 = vrot.slane %v7796, 4
        %v7799 = vrot.slane %v6697, 5
        %v7800 = vsel %vm2288, %v7798, %v7799
        %v7801 = vrot.slane %v7693, 5
        %v7802 = vrot.slane %v7801, 4
        %v7803 = vrot.slane %v6661, 5
        %v7804 = vsel %vm2288, %v7802, %v7803
        %v7805 = vrot.slane %v7803, 4
        %v7806 = vrot.slane %v6698, 5
        %v7807 = vsel %vm2288, %v7805, %v7806
        %v7808 = vrot.slane %v7694, 5
        %v7809 = vrot.slane %v7808, 4
        %v7810 = vrot.slane %v6663, 5
        %v7811 = vsel %vm2288, %v7809, %v7810
        %v7812 = vrot.slane %v7810, 4
        %v7813 = vrot.slane %v6699, 5
        %v7814 = vsel %vm2288, %v7812, %v7813
        %v7815 = vrot.slane %v7695, 5
        %v7816 = vrot.slane %v7815, 4
        %v7817 = vrot.slane %v6665, 5
        %v7818 = vsel %vm2288, %v7816, %v7817
        %v7819 = vrot.slane %v7817, 4
        %v7820 = vrot.slane %v6700, 5
        %v7821 = vsel %vm2288, %v7819, %v7820
        %v7822 = vrot.slane %v7696, 5
        %v7823 = vrot.slane %v7822, 4
        %v7824 = vrot.slane %v6667, 5
        %v7825 = vsel %vm2288, %v7823, %v7824
        %v7826 = vrot.slane %v7824, 4
        %v7827 = vrot.slane %v6701, 5
        %v7828 = vsel %vm2288, %v7826, %v7827
        %v7829 = vrot.slane %v7697, 5
        %v7830 = vrot.slane %v7829, 4
        %v7831 = vrot.slane %v6669, 5
        %v7832 = vsel %vm2288, %v7830, %v7831
        %v7833 = vrot.slane %v7831, 4
        %v7834 = vrot.slane %v6702, 5
        %v7835 = vsel %vm2288, %v7833, %v7834
        %v7836 = vrot.slane %v7698, 5
        %v7837 = vrot.slane %v7836, 4
        %v7838 = vrot.slane %v6671, 5
        %v7839 = vsel %vm2288, %v7837, %v7838
        %v7840 = vrot.slane %v7838, 4
        %v7841 = vrot.slane %v6703, 5
        %v7842 = vsel %vm2288, %v7840, %v7841
        %s7843 = scalar_lea.vmem [#allocation4], 128
        %v7844 = vld [vmem:[%s7843] sm:$0xf]
        %v7845 = vld [vmem:[%s7843 + $0x4] sm:$0xf]
        %v7846 = vld [vmem:[%s7843 + $0x8] sm:$0xf]
        %v7847 = vld [vmem:[%s7843 + $0xc] sm:$0xf]
        %v7848 = vld [vmem:[%s7843 + $0x10] sm:$0xf]
        %v7849 = vld [vmem:[%s7843 + $0x14] sm:$0xf]
        %v7850 = vld [vmem:[%s7843 + $0x18] sm:$0xf]
        %v7851 = vld [vmem:[%s7843 + $0x1c] sm:$0xf]
        %v7852 = vld [vmem:[%s7843 + $0x20] sm:$0xf]
        %v7853 = vld [vmem:[%s7843 + $0x24] sm:$0xf]
        %v7854 = vld [vmem:[%s7843 + $0x28] sm:$0xf]
        %v7855 = vld [vmem:[%s7843 + $0x2c] sm:$0xf]
        %v7856 = vld [vmem:[%s7843 + $0x30] sm:$0xf]
        %v7857 = vld [vmem:[%s7843 + $0x34] sm:$0xf]
        %v7858 = vld [vmem:[%s7843 + $0x38] sm:$0xf]
        %v7859 = vld [vmem:[%s7843 + $0x3c] sm:$0xf]
        %v7860 = vunpack.c.l.b16 %v7734
        %v7861 = vunpack.c.l.b16 %v7737
        %v7862 = vunpack.c.l.b16 %v7741
        %v7863 = vunpack.c.l.b16 %v7744
        %v7864 = vunpack.c.l.b16 %v7748
        %v7865 = vunpack.c.l.b16 %v7751
        %v7866 = vunpack.c.l.b16 %v7755
        %v7867 = vunpack.c.l.b16 %v7758
        %v7868 = vunpack.c.l.b16 %v7762
        %v7869 = vunpack.c.l.b16 %v7765
        %v7870 = vunpack.c.l.b16 %v7769
        %v7871 = vunpack.c.l.b16 %v7772
        %v7872 = vunpack.c.l.b16 %v7776
        %v7873 = vunpack.c.l.b16 %v7779
        %v7874 = vunpack.c.l.b16 %v7783
        %v7875 = vunpack.c.l.b16 %v7786
        %v7876 = vunpack.c.l.b16 %v7790
        %v7877 = vunpack.c.l.b16 %v7793
        %v7878 = vunpack.c.l.b16 %v7797
        %v7879 = vunpack.c.l.b16 %v7800
        %v7880 = vunpack.c.l.b16 %v7804
        %v7881 = vunpack.c.l.b16 %v7807
        %v7882 = vunpack.c.l.b16 %v7811
        %v7883 = vunpack.c.l.b16 %v7814
        %v7884 = vunpack.c.l.b16 %v7818
        %v7885 = vunpack.c.l.b16 %v7821
        %v7886 = vunpack.c.l.b16 %v7825
        %v7887 = vunpack.c.l.b16 %v7828
        %v7888 = vunpack.c.l.b16 %v7832
        %v7889 = vunpack.c.l.b16 %v7835
        %v7890 = vunpack.c.l.b16 %v7839
        %v7891 = vunpack.c.l.b16 %v7842
        %v7892 = vpack.c.b16 %v7861, %v7860
        %v7893 = vpack.c.b16 %v7863, %v7862
        %v7894 = vpack.c.b16 %v7865, %v7864
        %v7895 = vpack.c.b16 %v7867, %v7866
        %v7896 = vpack.c.b16 %v7869, %v7868
        %v7897 = vpack.c.b16 %v7871, %v7870
        %v7898 = vpack.c.b16 %v7873, %v7872
        %v7899 = vpack.c.b16 %v7875, %v7874
        %v7900 = vpack.c.b16 %v7877, %v7876
        %v7901 = vpack.c.b16 %v7879, %v7878
        %v7902 = vpack.c.b16 %v7881, %v7880
        %v7903 = vpack.c.b16 %v7883, %v7882
        %v7904 = vpack.c.b16 %v7885, %v7884
        %v7905 = vpack.c.b16 %v7887, %v7886
        %v7906 = vpack.c.b16 %v7889, %v7888
        %v7907 = vpack.c.b16 %v7891, %v7890
        %v7940 = vunpack.c.l.b16 %v7844
        %v7941 = vunpack.c.l.b16 %v7845
        %v7942 = vunpack.c.l.b16 %v7846
        %v7943 = vunpack.c.l.b16 %v7847
        %v7944 = vunpack.c.l.b16 %v7848
        %v7945 = vunpack.c.l.b16 %v7849
        %v7946 = vunpack.c.l.b16 %v7850
        %v7947 = vunpack.c.l.b16 %v7851
        %v7948 = vunpack.c.l.b16 %v7852
        %v7949 = vunpack.c.l.b16 %v7853
        %v7950 = vunpack.c.l.b16 %v7854
        %v7951 = vunpack.c.l.b16 %v7855
        %v7952 = vunpack.c.l.b16 %v7856
        %v7953 = vunpack.c.l.b16 %v7857
        %v7954 = vunpack.c.l.b16 %v7858
        %v7955 = vunpack.c.l.b16 %v7859
        %v7956 = vpack.c.b16 %v7941, %v7940
        %v7957 = vpack.c.b16 %v7943, %v7942
        %v7958 = vpack.c.b16 %v7945, %v7944
        %v7959 = vpack.c.b16 %v7947, %v7946
        %v7960 = vpack.c.b16 %v7949, %v7948
        %v7961 = vpack.c.b16 %v7951, %v7950
        %v7962 = vpack.c.b16 %v7953, %v7952
        %v7963 = vpack.c.b16 %v7955, %v7954
        %7972 = vmatprep.subr.bf16.mxu0 0
        %7973 = vmatpush1.bf16.msra.mxu0 %v7963
        %7974 = vmatprep.subr.bf16.mxu0 0
        %7975 = vmatpush1.bf16.msra.mxu0 %v7962
        %7976 = vmatprep.subr.bf16.mxu0 0
        %7977 = vmatpush1.bf16.msra.mxu0 %v7961
        %7978 = vmatprep.subr.bf16.mxu0 0
        %7979 = vmatpush1.bf16.msra.mxu0 %v7960
        %7980 = vmatprep.subr.bf16.mxu0 0
        %7981 = vmatpush1.bf16.msra.mxu0 %v7959
        %7982 = vmatprep.subr.bf16.mxu0 0
        %7983 = vmatpush1.bf16.msra.mxu0 %v7958
        %7984 = vmatprep.subr.bf16.mxu0 0
        %7985 = vmatpush1.bf16.msra.mxu0 %v7957
        %7986 = vmatprep.subr.bf16.mxu0 0
        %7987 = vmatpush1.bf16.msra.mxu0 %v7956
        %7988 = vmatprep.subr.bf16.mxu0 0
        %7989 = vmatpush2.bf16.msra.mxu0 0
        %7990 = vmatprep.subr.bf16.mxu0 0
        %7991 = vmatpush2.bf16.msra.mxu0 0
        %7992 = vmatprep.subr.bf16.mxu0 0
        %7993 = vmatpush2.bf16.msra.mxu0 0
        %7994 = vmatprep.subr.bf16.mxu0 0
        %7995 = vmatpush2.bf16.msra.mxu0 0
        %7996 = vmatprep.subr.bf16.mxu0 0
        %7997 = vmatpush2.bf16.msra.mxu0 0
        %7998 = vmatprep.subr.bf16.mxu0 0
        %7999 = vmatpush2.bf16.msra.mxu0 0
        %8000 = vmatprep.subr.bf16.mxu0 0
        %8001 = vmatpush2.bf16.msra.mxu0 0
        %8002 = vmatprep.subr.bf16.mxu0 0
        %8003 = vmatpush2.bf16.msra.mxu0 0
        %8004 = vmatprep.mubr.bf16.mxu0 0
        %8005 = vmatmul.mubr.bf16.gmra.mxu0 %v7892
        %v8006 = vpop.f32.mrf.mxu0
        %v8007 = vadd.f32 0.0, %v8006
        %v8008 = vpop.f32.mrf.mxu0
        %v8009 = vpop.f32.mrf.mxu0
        %v8010 = vadd.f32 0.0, %v8009
        %v8011 = vpop.f32.mrf.mxu0
        %8012 = vmatprep.mubr.bf16.mxu0 0
        %8013 = vmatmul.mubr.bf16.gmra.mxu0 %v7893
        %v8014 = vpop.f32.mrf.mxu0
        %v8015 = vadd.f32 0.0, %v8014
        %v8016 = vpop.f32.mrf.mxu0
        %v8017 = vpop.f32.mrf.mxu0
        %v8018 = vadd.f32 0.0, %v8017
        %v8019 = vpop.f32.mrf.mxu0
        %8020 = vmatprep.mubr.bf16.mxu0 0
        %8021 = vmatmul.mubr.bf16.gmra.mxu0 %v7894
        %v8022 = vpop.f32.mrf.mxu0
        %v8023 = vadd.f32 0.0, %v8022
        %v8024 = vpop.f32.mrf.mxu0
        %v8025 = vpop.f32.mrf.mxu0
        %v8026 = vadd.f32 0.0, %v8025
        %v8027 = vpop.f32.mrf.mxu0
        %8028 = vmatprep.mubr.bf16.mxu0 0
        %8029 = vmatmul.mubr.bf16.gmra.mxu0 %v7895
        %v8030 = vpop.f32.mrf.mxu0
        %v8031 = vadd.f32 0.0, %v8030
        %v8032 = vpop.f32.mrf.mxu0
        %v8033 = vpop.f32.mrf.mxu0
        %v8034 = vadd.f32 0.0, %v8033
        %v8035 = vpop.f32.mrf.mxu0
        %8036 = vmatprep.mubr.bf16.mxu0 0
        %8037 = vmatmul.mubr.bf16.gmra.mxu0 %v7896
        %v8038 = vpop.f32.mrf.mxu0
        %v8039 = vadd.f32 0.0, %v8038
        %v8040 = vpop.f32.mrf.mxu0
        %v8041 = vpop.f32.mrf.mxu0
        %v8042 = vadd.f32 0.0, %v8041
        %v8043 = vpop.f32.mrf.mxu0
        %8044 = vmatprep.mubr.bf16.mxu0 0
        %8045 = vmatmul.mubr.bf16.gmra.mxu0 %v7897
        %v8046 = vpop.f32.mrf.mxu0
        %v8047 = vadd.f32 0.0, %v8046
        %v8048 = vpop.f32.mrf.mxu0
        %v8049 = vpop.f32.mrf.mxu0
        %v8050 = vadd.f32 0.0, %v8049
        %v8051 = vpop.f32.mrf.mxu0
        %8052 = vmatprep.mubr.bf16.mxu0 0
        %8053 = vmatmul.mubr.bf16.gmra.mxu0 %v7898
        %v8054 = vpop.f32.mrf.mxu0
        %v8055 = vadd.f32 0.0, %v8054
        %v8056 = vpop.f32.mrf.mxu0
        %v8057 = vpop.f32.mrf.mxu0
        %v8058 = vadd.f32 0.0, %v8057
        %v8059 = vpop.f32.mrf.mxu0
        %8060 = vmatprep.mubr.bf16.mxu0 0
        %8061 = vmatmul.mubr.bf16.gmra.mxu0 %v7899
        %v8062 = vpop.f32.mrf.mxu0
        %v8063 = vadd.f32 0.0, %v8062
        %v8064 = vpop.f32.mrf.mxu0
        %v8065 = vpop.f32.mrf.mxu0
        %v8066 = vadd.f32 0.0, %v8065
        %v8067 = vpop.f32.mrf.mxu0
        %8068 = vmatprep.mubr.bf16.mxu0 0
        %8069 = vmatmul.mubr.bf16.gmra.mxu0 %v7900
        %v8070 = vpop.f32.mrf.mxu0
        %v8071 = vadd.f32 0.0, %v8070
        %v8072 = vpop.f32.mrf.mxu0
        %v8073 = vpop.f32.mrf.mxu0
        %v8074 = vadd.f32 0.0, %v8073
        %v8075 = vpop.f32.mrf.mxu0
        %8076 = vmatprep.mubr.bf16.mxu0 0
        %8077 = vmatmul.mubr.bf16.gmra.mxu0 %v7901
        %v8078 = vpop.f32.mrf.mxu0
        %v8079 = vadd.f32 0.0, %v8078
        %v8080 = vpop.f32.mrf.mxu0
        %v8081 = vpop.f32.mrf.mxu0
        %v8082 = vadd.f32 0.0, %v8081
        %v8083 = vpop.f32.mrf.mxu0
        %8084 = vmatprep.mubr.bf16.mxu0 0
        %8085 = vmatmul.mubr.bf16.gmra.mxu0 %v7902
        %v8086 = vpop.f32.mrf.mxu0
        %v8087 = vadd.f32 0.0, %v8086
        %v8088 = vpop.f32.mrf.mxu0
        %v8089 = vpop.f32.mrf.mxu0
        %v8090 = vadd.f32 0.0, %v8089
        %v8091 = vpop.f32.mrf.mxu0
        %8092 = vmatprep.mubr.bf16.mxu0 0
        %8093 = vmatmul.mubr.bf16.gmra.mxu0 %v7903
        %v8094 = vpop.f32.mrf.mxu0
        %v8095 = vadd.f32 0.0, %v8094
        %v8096 = vpop.f32.mrf.mxu0
        %v8097 = vpop.f32.mrf.mxu0
        %v8098 = vadd.f32 0.0, %v8097
        %v8099 = vpop.f32.mrf.mxu0
        %8100 = vmatprep.mubr.bf16.mxu0 0
        %8101 = vmatmul.mubr.bf16.gmra.mxu0 %v7904
        %v8102 = vpop.f32.mrf.mxu0
        %v8103 = vadd.f32 0.0, %v8102
        %v8104 = vpop.f32.mrf.mxu0
        %v8105 = vpop.f32.mrf.mxu0
        %v8106 = vadd.f32 0.0, %v8105
        %v8107 = vpop.f32.mrf.mxu0
        %8108 = vmatprep.mubr.bf16.mxu0 0
        %8109 = vmatmul.mubr.bf16.gmra.mxu0 %v7905
        %v8110 = vpop.f32.mrf.mxu0
        %v8111 = vadd.f32 0.0, %v8110
        %v8112 = vpop.f32.mrf.mxu0
        %v8113 = vpop.f32.mrf.mxu0
        %v8114 = vadd.f32 0.0, %v8113
        %v8115 = vpop.f32.mrf.mxu0
        %8116 = vmatprep.mubr.bf16.mxu0 0
        %8117 = vmatmul.mubr.bf16.gmra.mxu0 %v7906
        %v8118 = vpop.f32.mrf.mxu0
        %v8119 = vadd.f32 0.0, %v8118
        %v8120 = vpop.f32.mrf.mxu0
        %v8121 = vpop.f32.mrf.mxu0
        %v8122 = vadd.f32 0.0, %v8121
        %v8123 = vpop.f32.mrf.mxu0
        %8124 = vmatprep.mubr.bf16.mxu0 0
        %8125 = vmatmul.mubr.bf16.gmra.mxu0 %v7907
        %v8126 = vpop.f32.mrf.mxu0
        %v8127 = vadd.f32 0.0, %v8126
        %v8128 = vpop.f32.mrf.mxu0
        %v8129 = vpop.f32.mrf.mxu0
        %v8130 = vadd.f32 0.0, %v8129
        %v8131 = vpop.f32.mrf.mxu0
        %8132 = vdwg.mxu0
        %v8133 = vadd.f32 %v7557, %v8007
        %v8134 = vadd.f32 %v7560, %v8010
        %v8135 = vadd.f32 %v7565, %v8015
        %v8136 = vadd.f32 %v7568, %v8018
        %v8137 = vadd.f32 %v7573, %v8023
        %v8138 = vadd.f32 %v7576, %v8026
        %v8139 = vadd.f32 %v7581, %v8031
        %v8140 = vadd.f32 %v7584, %v8034
        %v8141 = vadd.f32 %v7589, %v8039
        %v8142 = vadd.f32 %v7592, %v8042
        %v8143 = vadd.f32 %v7597, %v8047
        %v8144 = vadd.f32 %v7600, %v8050
        %v8145 = vadd.f32 %v7605, %v8055
        %v8146 = vadd.f32 %v7608, %v8058
        %v8147 = vadd.f32 %v7613, %v8063
        %v8148 = vadd.f32 %v7616, %v8066
        %v8149 = vadd.f32 %v7621, %v8071
        %v8150 = vadd.f32 %v7624, %v8074
        %v8151 = vadd.f32 %v7629, %v8079
        %v8152 = vadd.f32 %v7632, %v8082
        %v8153 = vadd.f32 %v7637, %v8087
        %v8154 = vadd.f32 %v7640, %v8090
        %v8155 = vadd.f32 %v7645, %v8095
        %v8156 = vadd.f32 %v7648, %v8098
        %v8157 = vadd.f32 %v7653, %v8103
        %v8158 = vadd.f32 %v7656, %v8106
        %v8159 = vadd.f32 %v7661, %v8111
        %v8160 = vadd.f32 %v7664, %v8114
        %v8161 = vadd.f32 %v7669, %v8119
        %v8162 = vadd.f32 %v7672, %v8122
        %v8163 = vadd.f32 %v7677, %v8127
        %v8164 = vadd.f32 %v7680, %v8130
        %v8165 = vld [vmem:[%s1095] sm:$0xf]
        %v8166 = vld [vmem:[%s1095 + $0x4] sm:$0xf]
        %v8167 = vld [vmem:[%s1095 + $0xc] sm:$0xf]
        %v8168 = vld [vmem:[%s1095 + $0x10] sm:$0xf]
        %v8169 = vld [vmem:[%s1095 + $0x18] sm:$0xf]
        %v8170 = vld [vmem:[%s1095 + $0x1c] sm:$0xf]
        %v8171 = vld [vmem:[%s1095 + $0x24] sm:$0xf]
        %v8172 = vld [vmem:[%s1095 + $0x28] sm:$0xf]
        %v8173 = vld [vmem:[%s1095 + $0x30] sm:$0xf]
        %v8174 = vld [vmem:[%s1095 + $0x34] sm:$0xf]
        %v8175 = vld [vmem:[%s1095 + $0x3c] sm:$0xf]
        %v8176 = vld [vmem:[%s1095 + $0x40] sm:$0xf]
        %v8177 = vld [vmem:[%s1095 + $0x48] sm:$0xf]
        %v8178 = vld [vmem:[%s1095 + $0x4c] sm:$0xf]
        %v8179 = vld [vmem:[%s1095 + $0x54] sm:$0xf]
        %v8180 = vld [vmem:[%s1095 + $0x58] sm:$0xf]
        %v8181 = vld [vmem:[%s1095 + $0x60] sm:$0xf]
        %v8182 = vld [vmem:[%s1095 + $0x64] sm:$0xf]
        %v8183 = vld [vmem:[%s1095 + $0x6c] sm:$0xf]
        %v8184 = vld [vmem:[%s1095 + $0x70] sm:$0xf]
        %v8185 = vld [vmem:[%s1095 + $0x78] sm:$0xf]
        %v8186 = vld [vmem:[%s1095 + $0x7c] sm:$0xf]
        %v8187 = vld [vmem:[%s1095 + $0x84] sm:$0xf]
        %v8188 = vld [vmem:[%s1095 + $0x88] sm:$0xf]
        %v8189 = vld [vmem:[%s1095 + $0x90] sm:$0xf]
        %v8190 = vld [vmem:[%s1095 + $0x94] sm:$0xf]
        %v8191 = vld [vmem:[%s1095 + $0x9c] sm:$0xf]
        %v8192 = vld [vmem:[%s1095 + $0xa0] sm:$0xf]
        %v8193 = vld [vmem:[%s1095 + $0xa8] sm:$0xf]
        %v8194 = vld [vmem:[%s1095 + $0xac] sm:$0xf]
        %v8195 = vld [vmem:[%s1095 + $0xb4] sm:$0xf]
        %v8196 = vld [vmem:[%s1095 + $0xb8] sm:$0xf]
        %s8197 = scalar_lea.vmem [#allocation4], 192
        %v8198 = vld [vmem:[%s8197] sm:$0xf]
        %v8199 = vld [vmem:[%s8197 + $0x4] sm:$0xf]
        %v8200 = vld [vmem:[%s8197 + $0x8] sm:$0xf]
        %v8201 = vld [vmem:[%s8197 + $0xc] sm:$0xf]
        %v8202 = vld [vmem:[%s8197 + $0x10] sm:$0xf]
        %v8203 = vld [vmem:[%s8197 + $0x14] sm:$0xf]
        %v8204 = vld [vmem:[%s8197 + $0x18] sm:$0xf]
        %v8205 = vld [vmem:[%s8197 + $0x1c] sm:$0xf]
        %v8206 = vld [vmem:[%s8197 + $0x20] sm:$0xf]
        %v8207 = vld [vmem:[%s8197 + $0x24] sm:$0xf]
        %v8208 = vld [vmem:[%s8197 + $0x28] sm:$0xf]
        %v8209 = vld [vmem:[%s8197 + $0x2c] sm:$0xf]
        %v8210 = vld [vmem:[%s8197 + $0x30] sm:$0xf]
        %v8211 = vld [vmem:[%s8197 + $0x34] sm:$0xf]
        %v8212 = vld [vmem:[%s8197 + $0x38] sm:$0xf]
        %v8213 = vld [vmem:[%s8197 + $0x3c] sm:$0xf]
        %v8246 = vunpack.c.l.b16 %v8165
        %v8247 = vunpack.c.l.b16 %v8166
        %v8248 = vunpack.c.l.b16 %v8167
        %v8249 = vunpack.c.l.b16 %v8168
        %v8250 = vunpack.c.l.b16 %v8169
        %v8251 = vunpack.c.l.b16 %v8170
        %v8252 = vunpack.c.l.b16 %v8171
        %v8253 = vunpack.c.l.b16 %v8172
        %v8254 = vunpack.c.l.b16 %v8173
        %v8255 = vunpack.c.l.b16 %v8174
        %v8256 = vunpack.c.l.b16 %v8175
        %v8257 = vunpack.c.l.b16 %v8176
        %v8258 = vunpack.c.l.b16 %v8177
        %v8259 = vunpack.c.l.b16 %v8178
        %v8260 = vunpack.c.l.b16 %v8179
        %v8261 = vunpack.c.l.b16 %v8180
        %v8262 = vunpack.c.l.b16 %v8181
        %v8263 = vunpack.c.l.b16 %v8182
        %v8264 = vunpack.c.l.b16 %v8183
        %v8265 = vunpack.c.l.b16 %v8184
        %v8266 = vunpack.c.l.b16 %v8185
        %v8267 = vunpack.c.l.b16 %v8186
        %v8268 = vunpack.c.l.b16 %v8187
        %v8269 = vunpack.c.l.b16 %v8188
        %v8270 = vunpack.c.l.b16 %v8189
        %v8271 = vunpack.c.l.b16 %v8190
        %v8272 = vunpack.c.l.b16 %v8191
        %v8273 = vunpack.c.l.b16 %v8192
        %v8274 = vunpack.c.l.b16 %v8193
        %v8275 = vunpack.c.l.b16 %v8194
        %v8276 = vunpack.c.l.b16 %v8195
        %v8277 = vunpack.c.l.b16 %v8196
        %v8278 = vpack.c.b16 %v8247, %v8246
        %v8279 = vpack.c.b16 %v8249, %v8248
        %v8280 = vpack.c.b16 %v8251, %v8250
        %v8281 = vpack.c.b16 %v8253, %v8252
        %v8282 = vpack.c.b16 %v8255, %v8254
        %v8283 = vpack.c.b16 %v8257, %v8256
        %v8284 = vpack.c.b16 %v8259, %v8258
        %v8285 = vpack.c.b16 %v8261, %v8260
        %v8286 = vpack.c.b16 %v8263, %v8262
        %v8287 = vpack.c.b16 %v8265, %v8264
        %v8288 = vpack.c.b16 %v8267, %v8266
        %v8289 = vpack.c.b16 %v8269, %v8268
        %v8290 = vpack.c.b16 %v8271, %v8270
        %v8291 = vpack.c.b16 %v8273, %v8272
        %v8292 = vpack.c.b16 %v8275, %v8274
        %v8293 = vpack.c.b16 %v8277, %v8276
        %v8326 = vunpack.c.l.b16 %v8198
        %v8327 = vunpack.c.l.b16 %v8199
        %v8328 = vunpack.c.l.b16 %v8200
        %v8329 = vunpack.c.l.b16 %v8201
        %v8330 = vunpack.c.l.b16 %v8202
        %v8331 = vunpack.c.l.b16 %v8203
        %v8332 = vunpack.c.l.b16 %v8204
        %v8333 = vunpack.c.l.b16 %v8205
        %v8334 = vunpack.c.l.b16 %v8206
        %v8335 = vunpack.c.l.b16 %v8207
        %v8336 = vunpack.c.l.b16 %v8208
        %v8337 = vunpack.c.l.b16 %v8209
        %v8338 = vunpack.c.l.b16 %v8210
        %v8339 = vunpack.c.l.b16 %v8211
        %v8340 = vunpack.c.l.b16 %v8212
        %v8341 = vunpack.c.l.b16 %v8213
        %v8342 = vpack.c.b16 %v8327, %v8326
        %v8343 = vpack.c.b16 %v8329, %v8328
        %v8344 = vpack.c.b16 %v8331, %v8330
        %v8345 = vpack.c.b16 %v8333, %v8332
        %v8346 = vpack.c.b16 %v8335, %v8334
        %v8347 = vpack.c.b16 %v8337, %v8336
        %v8348 = vpack.c.b16 %v8339, %v8338
        %v8349 = vpack.c.b16 %v8341, %v8340
        %8358 = vmatprep.subr.bf16.mxu0 0
        %8359 = vmatpush1.bf16.msra.mxu0 %v8349
        %8360 = vmatprep.subr.bf16.mxu0 0
        %8361 = vmatpush1.bf16.msra.mxu0 %v8348
        %8362 = vmatprep.subr.bf16.mxu0 0
        %8363 = vmatpush1.bf16.msra.mxu0 %v8347
        %8364 = vmatprep.subr.bf16.mxu0 0
        %8365 = vmatpush1.bf16.msra.mxu0 %v8346
        %8366 = vmatprep.subr.bf16.mxu0 0
        %8367 = vmatpush1.bf16.msra.mxu0 %v8345
        %8368 = vmatprep.subr.bf16.mxu0 0
        %8369 = vmatpush1.bf16.msra.mxu0 %v8344
        %8370 = vmatprep.subr.bf16.mxu0 0
        %8371 = vmatpush1.bf16.msra.mxu0 %v8343
        %8372 = vmatprep.subr.bf16.mxu0 0
        %8373 = vmatpush1.bf16.msra.mxu0 %v8342
        %8374 = vmatprep.subr.bf16.mxu0 0
        %8375 = vmatpush2.bf16.msra.mxu0 0
        %8376 = vmatprep.subr.bf16.mxu0 0
        %8377 = vmatpush2.bf16.msra.mxu0 0
        %8378 = vmatprep.subr.bf16.mxu0 0
        %8379 = vmatpush2.bf16.msra.mxu0 0
        %8380 = vmatprep.subr.bf16.mxu0 0
        %8381 = vmatpush2.bf16.msra.mxu0 0
        %8382 = vmatprep.subr.bf16.mxu0 0
        %8383 = vmatpush2.bf16.msra.mxu0 0
        %8384 = vmatprep.subr.bf16.mxu0 0
        %8385 = vmatpush2.bf16.msra.mxu0 0
        %8386 = vmatprep.subr.bf16.mxu0 0
        %8387 = vmatpush2.bf16.msra.mxu0 0
        %8388 = vmatprep.subr.bf16.mxu0 0
        %8389 = vmatpush2.bf16.msra.mxu0 0
        %8390 = vmatprep.mubr.bf16.mxu0 0
        %8391 = vmatmul.mubr.bf16.gmra.mxu0 %v8278
        %v8392 = vpop.f32.mrf.mxu0
        %v8393 = vadd.f32 0.0, %v8392
        %v8394 = vpop.f32.mrf.mxu0
        %v8395 = vpop.f32.mrf.mxu0
        %v8396 = vadd.f32 0.0, %v8395
        %v8397 = vpop.f32.mrf.mxu0
        %8398 = vmatprep.mubr.bf16.mxu0 0
        %8399 = vmatmul.mubr.bf16.gmra.mxu0 %v8279
        %v8400 = vpop.f32.mrf.mxu0
        %v8401 = vadd.f32 0.0, %v8400
        %v8402 = vpop.f32.mrf.mxu0
        %v8403 = vpop.f32.mrf.mxu0
        %v8404 = vadd.f32 0.0, %v8403
        %v8405 = vpop.f32.mrf.mxu0
        %8406 = vmatprep.mubr.bf16.mxu0 0
        %8407 = vmatmul.mubr.bf16.gmra.mxu0 %v8280
        %v8408 = vpop.f32.mrf.mxu0
        %v8409 = vadd.f32 0.0, %v8408
        %v8410 = vpop.f32.mrf.mxu0
        %v8411 = vpop.f32.mrf.mxu0
        %v8412 = vadd.f32 0.0, %v8411
        %v8413 = vpop.f32.mrf.mxu0
        %8414 = vmatprep.mubr.bf16.mxu0 0
        %8415 = vmatmul.mubr.bf16.gmra.mxu0 %v8281
        %v8416 = vpop.f32.mrf.mxu0
        %v8417 = vadd.f32 0.0, %v8416
        %v8418 = vpop.f32.mrf.mxu0
        %v8419 = vpop.f32.mrf.mxu0
        %v8420 = vadd.f32 0.0, %v8419
        %v8421 = vpop.f32.mrf.mxu0
        %8422 = vmatprep.mubr.bf16.mxu0 0
        %8423 = vmatmul.mubr.bf16.gmra.mxu0 %v8282
        %v8424 = vpop.f32.mrf.mxu0
        %v8425 = vadd.f32 0.0, %v8424
        %v8426 = vpop.f32.mrf.mxu0
        %v8427 = vpop.f32.mrf.mxu0
        %v8428 = vadd.f32 0.0, %v8427
        %v8429 = vpop.f32.mrf.mxu0
        %8430 = vmatprep.mubr.bf16.mxu0 0
        %8431 = vmatmul.mubr.bf16.gmra.mxu0 %v8283
        %v8432 = vpop.f32.mrf.mxu0
        %v8433 = vadd.f32 0.0, %v8432
        %v8434 = vpop.f32.mrf.mxu0
        %v8435 = vpop.f32.mrf.mxu0
        %v8436 = vadd.f32 0.0, %v8435
        %v8437 = vpop.f32.mrf.mxu0
        %8438 = vmatprep.mubr.bf16.mxu0 0
        %8439 = vmatmul.mubr.bf16.gmra.mxu0 %v8284
        %v8440 = vpop.f32.mrf.mxu0
        %v8441 = vadd.f32 0.0, %v8440
        %v8442 = vpop.f32.mrf.mxu0
        %v8443 = vpop.f32.mrf.mxu0
        %v8444 = vadd.f32 0.0, %v8443
        %v8445 = vpop.f32.mrf.mxu0
        %8446 = vmatprep.mubr.bf16.mxu0 0
        %8447 = vmatmul.mubr.bf16.gmra.mxu0 %v8285
        %v8448 = vpop.f32.mrf.mxu0
        %v8449 = vadd.f32 0.0, %v8448
        %v8450 = vpop.f32.mrf.mxu0
        %v8451 = vpop.f32.mrf.mxu0
        %v8452 = vadd.f32 0.0, %v8451
        %v8453 = vpop.f32.mrf.mxu0
        %8454 = vmatprep.mubr.bf16.mxu0 0
        %8455 = vmatmul.mubr.bf16.gmra.mxu0 %v8286
        %v8456 = vpop.f32.mrf.mxu0
        %v8457 = vadd.f32 0.0, %v8456
        %v8458 = vpop.f32.mrf.mxu0
        %v8459 = vpop.f32.mrf.mxu0
        %v8460 = vadd.f32 0.0, %v8459
        %v8461 = vpop.f32.mrf.mxu0
        %8462 = vmatprep.mubr.bf16.mxu0 0
        %8463 = vmatmul.mubr.bf16.gmra.mxu0 %v8287
        %v8464 = vpop.f32.mrf.mxu0
        %v8465 = vadd.f32 0.0, %v8464
        %v8466 = vpop.f32.mrf.mxu0
        %v8467 = vpop.f32.mrf.mxu0
        %v8468 = vadd.f32 0.0, %v8467
        %v8469 = vpop.f32.mrf.mxu0
        %8470 = vmatprep.mubr.bf16.mxu0 0
        %8471 = vmatmul.mubr.bf16.gmra.mxu0 %v8288
        %v8472 = vpop.f32.mrf.mxu0
        %v8473 = vadd.f32 0.0, %v8472
        %v8474 = vpop.f32.mrf.mxu0
        %v8475 = vpop.f32.mrf.mxu0
        %v8476 = vadd.f32 0.0, %v8475
        %v8477 = vpop.f32.mrf.mxu0
        %8478 = vmatprep.mubr.bf16.mxu0 0
        %8479 = vmatmul.mubr.bf16.gmra.mxu0 %v8289
        %v8480 = vpop.f32.mrf.mxu0
        %v8481 = vadd.f32 0.0, %v8480
        %v8482 = vpop.f32.mrf.mxu0
        %v8483 = vpop.f32.mrf.mxu0
        %v8484 = vadd.f32 0.0, %v8483
        %v8485 = vpop.f32.mrf.mxu0
        %8486 = vmatprep.mubr.bf16.mxu0 0
        %8487 = vmatmul.mubr.bf16.gmra.mxu0 %v8290
        %v8488 = vpop.f32.mrf.mxu0
        %v8489 = vadd.f32 0.0, %v8488
        %v8490 = vpop.f32.mrf.mxu0
        %v8491 = vpop.f32.mrf.mxu0
        %v8492 = vadd.f32 0.0, %v8491
        %v8493 = vpop.f32.mrf.mxu0
        %8494 = vmatprep.mubr.bf16.mxu0 0
        %8495 = vmatmul.mubr.bf16.gmra.mxu0 %v8291
        %v8496 = vpop.f32.mrf.mxu0
        %v8497 = vadd.f32 0.0, %v8496
        %v8498 = vpop.f32.mrf.mxu0
        %v8499 = vpop.f32.mrf.mxu0
        %v8500 = vadd.f32 0.0, %v8499
        %v8501 = vpop.f32.mrf.mxu0
        %8502 = vmatprep.mubr.bf16.mxu0 0
        %8503 = vmatmul.mubr.bf16.gmra.mxu0 %v8292
        %v8504 = vpop.f32.mrf.mxu0
        %v8505 = vadd.f32 0.0, %v8504
        %v8506 = vpop.f32.mrf.mxu0
        %v8507 = vpop.f32.mrf.mxu0
        %v8508 = vadd.f32 0.0, %v8507
        %v8509 = vpop.f32.mrf.mxu0
        %8510 = vmatprep.mubr.bf16.mxu0 0
        %8511 = vmatmul.mubr.bf16.gmra.mxu0 %v8293
        %v8512 = vpop.f32.mrf.mxu0
        %v8513 = vadd.f32 0.0, %v8512
        %v8514 = vpop.f32.mrf.mxu0
        %v8515 = vpop.f32.mrf.mxu0
        %v8516 = vadd.f32 0.0, %v8515
        %v8517 = vpop.f32.mrf.mxu0
        %8518 = vdwg.mxu0
        %v8519 = vadd.f32 %v8133, %v8393
        %v8520 = vadd.f32 %v8134, %v8396
        %v8521 = vadd.f32 %v8135, %v8401
        %v8522 = vadd.f32 %v8136, %v8404
        %v8523 = vadd.f32 %v8137, %v8409
        %v8524 = vadd.f32 %v8138, %v8412
        %v8525 = vadd.f32 %v8139, %v8417
        %v8526 = vadd.f32 %v8140, %v8420
        %v8527 = vadd.f32 %v8141, %v8425
        %v8528 = vadd.f32 %v8142, %v8428
        %v8529 = vadd.f32 %v8143, %v8433
        %v8530 = vadd.f32 %v8144, %v8436
        %v8531 = vadd.f32 %v8145, %v8441
        %v8532 = vadd.f32 %v8146, %v8444
        %v8533 = vadd.f32 %v8147, %v8449
        %v8534 = vadd.f32 %v8148, %v8452
        %v8535 = vadd.f32 %v8149, %v8457
        %v8536 = vadd.f32 %v8150, %v8460
        %v8537 = vadd.f32 %v8151, %v8465
        %v8538 = vadd.f32 %v8152, %v8468
        %v8539 = vadd.f32 %v8153, %v8473
        %v8540 = vadd.f32 %v8154, %v8476
        %v8541 = vadd.f32 %v8155, %v8481
        %v8542 = vadd.f32 %v8156, %v8484
        %v8543 = vadd.f32 %v8157, %v8489
        %v8544 = vadd.f32 %v8158, %v8492
        %v8545 = vadd.f32 %v8159, %v8497
        %v8546 = vadd.f32 %v8160, %v8500
        %v8547 = vadd.f32 %v8161, %v8505
        %v8548 = vadd.f32 %v8162, %v8508
        %v8549 = vadd.f32 %v8163, %v8513
        %v8550 = vadd.f32 %v8164, %v8516
        %v8551 = vld [vmem:[%s1095] sm:$0xf]
        %v8552 = vld [vmem:[%s1095 + $0x4] sm:$0xf]
        %v8553 = vld [vmem:[%s1095 + $0x8] sm:$0x1]
        %v8554 = vld [vmem:[%s1095 + $0xc] sm:$0xf]
        %v8555 = vld [vmem:[%s1095 + $0x10] sm:$0xf]
        %v8556 = vld [vmem:[%s1095 + $0x14] sm:$0x1]
        %v8557 = vld [vmem:[%s1095 + $0x18] sm:$0xf]
        %v8558 = vld [vmem:[%s1095 + $0x1c] sm:$0xf]
        %v8559 = vld [vmem:[%s1095 + $0x20] sm:$0x1]
        %v8560 = vld [vmem:[%s1095 + $0x24] sm:$0xf]
        %v8561 = vld [vmem:[%s1095 + $0x28] sm:$0xf]
        %v8562 = vld [vmem:[%s1095 + $0x2c] sm:$0x1]
        %v8563 = vld [vmem:[%s1095 + $0x30] sm:$0xf]
        %v8564 = vld [vmem:[%s1095 + $0x34] sm:$0xf]
        %v8565 = vld [vmem:[%s1095 + $0x38] sm:$0x1]
        %v8566 = vld [vmem:[%s1095 + $0x3c] sm:$0xf]
        %v8567 = vld [vmem:[%s1095 + $0x40] sm:$0xf]
        %v8568 = vld [vmem:[%s1095 + $0x44] sm:$0x1]
        %v8569 = vld [vmem:[%s1095 + $0x48] sm:$0xf]
        %v8570 = vld [vmem:[%s1095 + $0x4c] sm:$0xf]
        %v8571 = vld [vmem:[%s1095 + $0x50] sm:$0x1]
        %v8572 = vld [vmem:[%s1095 + $0x54] sm:$0xf]
        %v8573 = vld [vmem:[%s1095 + $0x58] sm:$0xf]
        %v8574 = vld [vmem:[%s1095 + $0x5c] sm:$0x1]
        %v8575 = vld [vmem:[%s1095 + $0x60] sm:$0xf]
        %v8576 = vld [vmem:[%s1095 + $0x64] sm:$0xf]
        %v8577 = vld [vmem:[%s1095 + $0x68] sm:$0x1]
        %v8578 = vld [vmem:[%s1095 + $0x6c] sm:$0xf]
        %v8579 = vld [vmem:[%s1095 + $0x70] sm:$0xf]
        %v8580 = vld [vmem:[%s1095 + $0x74] sm:$0x1]
        %v8581 = vld [vmem:[%s1095 + $0x78] sm:$0xf]
        %v8582 = vld [vmem:[%s1095 + $0x7c] sm:$0xf]
        %v8583 = vld [vmem:[%s1095 + $0x80] sm:$0x1]
        %v8584 = vld [vmem:[%s1095 + $0x84] sm:$0xf]
        %v8585 = vld [vmem:[%s1095 + $0x88] sm:$0xf]
        %v8586 = vld [vmem:[%s1095 + $0x8c] sm:$0x1]
        %v8587 = vld [vmem:[%s1095 + $0x90] sm:$0xf]
        %v8588 = vld [vmem:[%s1095 + $0x94] sm:$0xf]
        %v8589 = vld [vmem:[%s1095 + $0x98] sm:$0x1]
        %v8590 = vld [vmem:[%s1095 + $0x9c] sm:$0xf]
        %v8591 = vld [vmem:[%s1095 + $0xa0] sm:$0xf]
        %v8592 = vld [vmem:[%s1095 + $0xa4] sm:$0x1]
        %v8593 = vld [vmem:[%s1095 + $0xa8] sm:$0xf]
        %v8594 = vld [vmem:[%s1095 + $0xac] sm:$0xf]
        %v8595 = vld [vmem:[%s1095 + $0xb0] sm:$0x1]
        %v8596 = vld [vmem:[%s1095 + $0xb4] sm:$0xf]
        %v8597 = vld [vmem:[%s1095 + $0xb8] sm:$0xf]
        %v8598 = vld [vmem:[%s1095 + $0xbc] sm:$0x1]
        %v8600 = vshrl.u32 %v8551, 16
        %v8602 = vrot.slane %v8600, 4
        %v8603 = vshll.u32 %v8551, 16
        %v8605 = vrot.slane %v8603, 5
        %v8606 = vor.u32 %v8602, %v8605
        %v8607 = vrot.slane %v8606, 4
        %v8609 = vshll.u32 %v8552, 16
        %v8611 = vrot.slane %v8609, 5
        %v8612 = vsel %vm1258, %v8607, %v8611
        %v8613 = vshrl.u32 %v8552, 16
        %v8615 = vrot.slane %v8613, 4
        %v8616 = vor.u32 %v8615, %v8611
        %v8617 = vrot.slane %v8616, 4
        %v8619 = vshll.u32 %v8553, 16
        %v8621 = vrot.slane %v8619, 5
        %v8622 = vsel %vm1258, %v8617, %v8621
        %v8624 = vshrl.u32 %v8554, 16
        %v8626 = vrot.slane %v8624, 4
        %v8627 = vshll.u32 %v8554, 16
        %v8629 = vrot.slane %v8627, 5
        %v8630 = vor.u32 %v8626, %v8629
        %v8631 = vrot.slane %v8630, 4
        %v8633 = vshll.u32 %v8555, 16
        %v8635 = vrot.slane %v8633, 5
        %v8636 = vsel %vm1258, %v8631, %v8635
        %v8637 = vshrl.u32 %v8555, 16
        %v8639 = vrot.slane %v8637, 4
        %v8640 = vor.u32 %v8639, %v8635
        %v8641 = vrot.slane %v8640, 4
        %v8643 = vshll.u32 %v8556, 16
        %v8645 = vrot.slane %v8643, 5
        %v8646 = vsel %vm1258, %v8641, %v8645
        %v8648 = vshrl.u32 %v8557, 16
        %v8650 = vrot.slane %v8648, 4
        %v8651 = vshll.u32 %v8557, 16
        %v8653 = vrot.slane %v8651, 5
        %v8654 = vor.u32 %v8650, %v8653
        %v8655 = vrot.slane %v8654, 4
        %v8657 = vshll.u32 %v8558, 16
        %v8659 = vrot.slane %v8657, 5
        %v8660 = vsel %vm1258, %v8655, %v8659
        %v8661 = vshrl.u32 %v8558, 16
        %v8663 = vrot.slane %v8661, 4
        %v8664 = vor.u32 %v8663, %v8659
        %v8665 = vrot.slane %v8664, 4
        %v8667 = vshll.u32 %v8559, 16
        %v8669 = vrot.slane %v8667, 5
        %v8670 = vsel %vm1258, %v8665, %v8669
        %v8672 = vshrl.u32 %v8560, 16
        %v8674 = vrot.slane %v8672, 4
        %v8675 = vshll.u32 %v8560, 16
        %v8677 = vrot.slane %v8675, 5
        %v8678 = vor.u32 %v8674, %v8677
        %v8679 = vrot.slane %v8678, 4
        %v8681 = vshll.u32 %v8561, 16
        %v8683 = vrot.slane %v8681, 5
        %v8684 = vsel %vm1258, %v8679, %v8683
        %v8685 = vshrl.u32 %v8561, 16
        %v8687 = vrot.slane %v8685, 4
        %v8688 = vor.u32 %v8687, %v8683
        %v8689 = vrot.slane %v8688, 4
        %v8691 = vshll.u32 %v8562, 16
        %v8693 = vrot.slane %v8691, 5
        %v8694 = vsel %vm1258, %v8689, %v8693
        %v8696 = vshrl.u32 %v8563, 16
        %v8698 = vrot.slane %v8696, 4
        %v8699 = vshll.u32 %v8563, 16
        %v8701 = vrot.slane %v8699, 5
        %v8702 = vor.u32 %v8698, %v8701
        %v8703 = vrot.slane %v8702, 4
        %v8705 = vshll.u32 %v8564, 16
        %v8707 = vrot.slane %v8705, 5
        %v8708 = vsel %vm1258, %v8703, %v8707
        %v8709 = vshrl.u32 %v8564, 16
        %v8711 = vrot.slane %v8709, 4
        %v8712 = vor.u32 %v8711, %v8707
        %v8713 = vrot.slane %v8712, 4
        %v8715 = vshll.u32 %v8565, 16
        %v8717 = vrot.slane %v8715, 5
        %v8718 = vsel %vm1258, %v8713, %v8717
        %v8720 = vshrl.u32 %v8566, 16
        %v8722 = vrot.slane %v8720, 4
        %v8723 = vshll.u32 %v8566, 16
        %v8725 = vrot.slane %v8723, 5
        %v8726 = vor.u32 %v8722, %v8725
        %v8727 = vrot.slane %v8726, 4
        %v8729 = vshll.u32 %v8567, 16
        %v8731 = vrot.slane %v8729, 5
        %v8732 = vsel %vm1258, %v8727, %v8731
        %v8733 = vshrl.u32 %v8567, 16
        %v8735 = vrot.slane %v8733, 4
        %v8736 = vor.u32 %v8735, %v8731
        %v8737 = vrot.slane %v8736, 4
        %v8739 = vshll.u32 %v8568, 16
        %v8741 = vrot.slane %v8739, 5
        %v8742 = vsel %vm1258, %v8737, %v8741
        %v8744 = vshrl.u32 %v8569, 16
        %v8746 = vrot.slane %v8744, 4
        %v8747 = vshll.u32 %v8569, 16
        %v8749 = vrot.slane %v8747, 5
        %v8750 = vor.u32 %v8746, %v8749
        %v8751 = vrot.slane %v8750, 4
        %v8753 = vshll.u32 %v8570, 16
        %v8755 = vrot.slane %v8753, 5
        %v8756 = vsel %vm1258, %v8751, %v8755
        %v8757 = vshrl.u32 %v8570, 16
        %v8759 = vrot.slane %v8757, 4
        %v8760 = vor.u32 %v8759, %v8755
        %v8761 = vrot.slane %v8760, 4
        %v8763 = vshll.u32 %v8571, 16
        %v8765 = vrot.slane %v8763, 5
        %v8766 = vsel %vm1258, %v8761, %v8765
        %v8768 = vshrl.u32 %v8572, 16
        %v8770 = vrot.slane %v8768, 4
        %v8771 = vshll.u32 %v8572, 16
        %v8773 = vrot.slane %v8771, 5
        %v8774 = vor.u32 %v8770, %v8773
        %v8775 = vrot.slane %v8774, 4
        %v8777 = vshll.u32 %v8573, 16
        %v8779 = vrot.slane %v8777, 5
        %v8780 = vsel %vm1258, %v8775, %v8779
        %v8781 = vshrl.u32 %v8573, 16
        %v8783 = vrot.slane %v8781, 4
        %v8784 = vor.u32 %v8783, %v8779
        %v8785 = vrot.slane %v8784, 4
        %v8787 = vshll.u32 %v8574, 16
        %v8789 = vrot.slane %v8787, 5
        %v8790 = vsel %vm1258, %v8785, %v8789
        %v8792 = vshrl.u32 %v8575, 16
        %v8794 = vrot.slane %v8792, 4
        %v8795 = vshll.u32 %v8575, 16
        %v8797 = vrot.slane %v8795, 5
        %v8798 = vor.u32 %v8794, %v8797
        %v8799 = vrot.slane %v8798, 4
        %v8801 = vshll.u32 %v8576, 16
        %v8803 = vrot.slane %v8801, 5
        %v8804 = vsel %vm1258, %v8799, %v8803
        %v8805 = vshrl.u32 %v8576, 16
        %v8807 = vrot.slane %v8805, 4
        %v8808 = vor.u32 %v8807, %v8803
        %v8809 = vrot.slane %v8808, 4
        %v8811 = vshll.u32 %v8577, 16
        %v8813 = vrot.slane %v8811, 5
        %v8814 = vsel %vm1258, %v8809, %v8813
        %v8816 = vshrl.u32 %v8578, 16
        %v8818 = vrot.slane %v8816, 4
        %v8819 = vshll.u32 %v8578, 16
        %v8821 = vrot.slane %v8819, 5
        %v8822 = vor.u32 %v8818, %v8821
        %v8823 = vrot.slane %v8822, 4
        %v8825 = vshll.u32 %v8579, 16
        %v8827 = vrot.slane %v8825, 5
        %v8828 = vsel %vm1258, %v8823, %v8827
        %v8829 = vshrl.u32 %v8579, 16
        %v8831 = vrot.slane %v8829, 4
        %v8832 = vor.u32 %v8831, %v8827
        %v8833 = vrot.slane %v8832, 4
        %v8835 = vshll.u32 %v8580, 16
        %v8837 = vrot.slane %v8835, 5
        %v8838 = vsel %vm1258, %v8833, %v8837
        %v8840 = vshrl.u32 %v8581, 16
        %v8842 = vrot.slane %v8840, 4
        %v8843 = vshll.u32 %v8581, 16
        %v8845 = vrot.slane %v8843, 5
        %v8846 = vor.u32 %v8842, %v8845
        %v8847 = vrot.slane %v8846, 4
        %v8849 = vshll.u32 %v8582, 16
        %v8851 = vrot.slane %v8849, 5
        %v8852 = vsel %vm1258, %v8847, %v8851
        %v8853 = vshrl.u32 %v8582, 16
        %v8855 = vrot.slane %v8853, 4
        %v8856 = vor.u32 %v8855, %v8851
        %v8857 = vrot.slane %v8856, 4
        %v8859 = vshll.u32 %v8583, 16
        %v8861 = vrot.slane %v8859, 5
        %v8862 = vsel %vm1258, %v8857, %v8861
        %v8864 = vshrl.u32 %v8584, 16
        %v8866 = vrot.slane %v8864, 4
        %v8867 = vshll.u32 %v8584, 16
        %v8869 = vrot.slane %v8867, 5
        %v8870 = vor.u32 %v8866, %v8869
        %v8871 = vrot.slane %v8870, 4
        %v8873 = vshll.u32 %v8585, 16
        %v8875 = vrot.slane %v8873, 5
        %v8876 = vsel %vm1258, %v8871, %v8875
        %v8877 = vshrl.u32 %v8585, 16
        %v8879 = vrot.slane %v8877, 4
        %v8880 = vor.u32 %v8879, %v8875
        %v8881 = vrot.slane %v8880, 4
        %v8883 = vshll.u32 %v8586, 16
        %v8885 = vrot.slane %v8883, 5
        %v8886 = vsel %vm1258, %v8881, %v8885
        %v8888 = vshrl.u32 %v8587, 16
        %v8890 = vrot.slane %v8888, 4
        %v8891 = vshll.u32 %v8587, 16
        %v8893 = vrot.slane %v8891, 5
        %v8894 = vor.u32 %v8890, %v8893
        %v8895 = vrot.slane %v8894, 4
        %v8897 = vshll.u32 %v8588, 16
        %v8899 = vrot.slane %v8897, 5
        %v8900 = vsel %vm1258, %v8895, %v8899
        %v8901 = vshrl.u32 %v8588, 16
        %v8903 = vrot.slane %v8901, 4
        %v8904 = vor.u32 %v8903, %v8899
        %v8905 = vrot.slane %v8904, 4
        %v8907 = vshll.u32 %v8589, 16
        %v8909 = vrot.slane %v8907, 5
        %v8910 = vsel %vm1258, %v8905, %v8909
        %v8912 = vshrl.u32 %v8590, 16
        %v8914 = vrot.slane %v8912, 4
        %v8915 = vshll.u32 %v8590, 16
        %v8917 = vrot.slane %v8915, 5
        %v8918 = vor.u32 %v8914, %v8917
        %v8919 = vrot.slane %v8918, 4
        %v8921 = vshll.u32 %v8591, 16
        %v8923 = vrot.slane %v8921, 5
        %v8924 = vsel %vm1258, %v8919, %v8923
        %v8925 = vshrl.u32 %v8591, 16
        %v8927 = vrot.slane %v8925, 4
        %v8928 = vor.u32 %v8927, %v8923
        %v8929 = vrot.slane %v8928, 4
        %v8931 = vshll.u32 %v8592, 16
        %v8933 = vrot.slane %v8931, 5
        %v8934 = vsel %vm1258, %v8929, %v8933
        %v8936 = vshrl.u32 %v8593, 16
        %v8938 = vrot.slane %v8936, 4
        %v8939 = vshll.u32 %v8593, 16
        %v8941 = vrot.slane %v8939, 5
        %v8942 = vor.u32 %v8938, %v8941
        %v8943 = vrot.slane %v8942, 4
        %v8945 = vshll.u32 %v8594, 16
        %v8947 = vrot.slane %v8945, 5
        %v8948 = vsel %vm1258, %v8943, %v8947
        %v8949 = vshrl.u32 %v8594, 16
        %v8951 = vrot.slane %v8949, 4
        %v8952 = vor.u32 %v8951, %v8947
        %v8953 = vrot.slane %v8952, 4
        %v8955 = vshll.u32 %v8595, 16
        %v8957 = vrot.slane %v8955, 5
        %v8958 = vsel %vm1258, %v8953, %v8957
        %v8960 = vshrl.u32 %v8596, 16
        %v8962 = vrot.slane %v8960, 4
        %v8963 = vshll.u32 %v8596, 16
        %v8965 = vrot.slane %v8963, 5
        %v8966 = vor.u32 %v8962, %v8965
        %v8967 = vrot.slane %v8966, 4
        %v8969 = vshll.u32 %v8597, 16
        %v8971 = vrot.slane %v8969, 5
        %v8972 = vsel %vm1258, %v8967, %v8971
        %v8973 = vshrl.u32 %v8597, 16
        %v8975 = vrot.slane %v8973, 4
        %v8976 = vor.u32 %v8975, %v8971
        %v8977 = vrot.slane %v8976, 4
        %v8979 = vshll.u32 %v8598, 16
        %v8981 = vrot.slane %v8979, 5
        %v8982 = vsel %vm1258, %v8977, %v8981
        %s8983 = scalar_lea.vmem [#allocation4], 256
        %v8984 = vld [vmem:[%s8983] sm:$0xf]
        %v8985 = vld [vmem:[%s8983 + $0x4] sm:$0xf]
        %v8986 = vld [vmem:[%s8983 + $0x8] sm:$0xf]
        %v8987 = vld [vmem:[%s8983 + $0xc] sm:$0xf]
        %v8988 = vld [vmem:[%s8983 + $0x10] sm:$0xf]
        %v8989 = vld [vmem:[%s8983 + $0x14] sm:$0xf]
        %v8990 = vld [vmem:[%s8983 + $0x18] sm:$0xf]
        %v8991 = vld [vmem:[%s8983 + $0x1c] sm:$0xf]
        %v8992 = vld [vmem:[%s8983 + $0x20] sm:$0xf]
        %v8993 = vld [vmem:[%s8983 + $0x24] sm:$0xf]
        %v8994 = vld [vmem:[%s8983 + $0x28] sm:$0xf]
        %v8995 = vld [vmem:[%s8983 + $0x2c] sm:$0xf]
        %v8996 = vld [vmem:[%s8983 + $0x30] sm:$0xf]
        %v8997 = vld [vmem:[%s8983 + $0x34] sm:$0xf]
        %v8998 = vld [vmem:[%s8983 + $0x38] sm:$0xf]
        %v8999 = vld [vmem:[%s8983 + $0x3c] sm:$0xf]
        %v9000 = vunpack.c.l.b16 %v8612
        %v9001 = vunpack.c.l.b16 %v8622
        %v9002 = vunpack.c.l.b16 %v8636
        %v9003 = vunpack.c.l.b16 %v8646
        %v9004 = vunpack.c.l.b16 %v8660
        %v9005 = vunpack.c.l.b16 %v8670
        %v9006 = vunpack.c.l.b16 %v8684
        %v9007 = vunpack.c.l.b16 %v8694
        %v9008 = vunpack.c.l.b16 %v8708
        %v9009 = vunpack.c.l.b16 %v8718
        %v9010 = vunpack.c.l.b16 %v8732
        %v9011 = vunpack.c.l.b16 %v8742
        %v9012 = vunpack.c.l.b16 %v8756
        %v9013 = vunpack.c.l.b16 %v8766
        %v9014 = vunpack.c.l.b16 %v8780
        %v9015 = vunpack.c.l.b16 %v8790
        %v9016 = vunpack.c.l.b16 %v8804
        %v9017 = vunpack.c.l.b16 %v8814
        %v9018 = vunpack.c.l.b16 %v8828
        %v9019 = vunpack.c.l.b16 %v8838
        %v9020 = vunpack.c.l.b16 %v8852
        %v9021 = vunpack.c.l.b16 %v8862
        %v9022 = vunpack.c.l.b16 %v8876
        %v9023 = vunpack.c.l.b16 %v8886
        %v9024 = vunpack.c.l.b16 %v8900
        %v9025 = vunpack.c.l.b16 %v8910
        %v9026 = vunpack.c.l.b16 %v8924
        %v9027 = vunpack.c.l.b16 %v8934
        %v9028 = vunpack.c.l.b16 %v8948
        %v9029 = vunpack.c.l.b16 %v8958
        %v9030 = vunpack.c.l.b16 %v8972
        %v9031 = vunpack.c.l.b16 %v8982
        %v9032 = vpack.c.b16 %v9001, %v9000
        %v9033 = vpack.c.b16 %v9003, %v9002
        %v9034 = vpack.c.b16 %v9005, %v9004
        %v9035 = vpack.c.b16 %v9007, %v9006
        %v9036 = vpack.c.b16 %v9009, %v9008
        %v9037 = vpack.c.b16 %v9011, %v9010
        %v9038 = vpack.c.b16 %v9013, %v9012
        %v9039 = vpack.c.b16 %v9015, %v9014
        %v9040 = vpack.c.b16 %v9017, %v9016
        %v9041 = vpack.c.b16 %v9019, %v9018
        %v9042 = vpack.c.b16 %v9021, %v9020
        %v9043 = vpack.c.b16 %v9023, %v9022
        %v9044 = vpack.c.b16 %v9025, %v9024
        %v9045 = vpack.c.b16 %v9027, %v9026
        %v9046 = vpack.c.b16 %v9029, %v9028
        %v9047 = vpack.c.b16 %v9031, %v9030
        %v9080 = vunpack.c.l.b16 %v8984
        %v9081 = vunpack.c.l.b16 %v8985
        %v9082 = vunpack.c.l.b16 %v8986
        %v9083 = vunpack.c.l.b16 %v8987
        %v9084 = vunpack.c.l.b16 %v8988
        %v9085 = vunpack.c.l.b16 %v8989
        %v9086 = vunpack.c.l.b16 %v8990
        %v9087 = vunpack.c.l.b16 %v8991
        %v9088 = vunpack.c.l.b16 %v8992
        %v9089 = vunpack.c.l.b16 %v8993
        %v9090 = vunpack.c.l.b16 %v8994
        %v9091 = vunpack.c.l.b16 %v8995
        %v9092 = vunpack.c.l.b16 %v8996
        %v9093 = vunpack.c.l.b16 %v8997
        %v9094 = vunpack.c.l.b16 %v8998
        %v9095 = vunpack.c.l.b16 %v8999
        %v9096 = vpack.c.b16 %v9081, %v9080
        %v9097 = vpack.c.b16 %v9083, %v9082
        %v9098 = vpack.c.b16 %v9085, %v9084
        %v9099 = vpack.c.b16 %v9087, %v9086
        %v9100 = vpack.c.b16 %v9089, %v9088
        %v9101 = vpack.c.b16 %v9091, %v9090
        %v9102 = vpack.c.b16 %v9093, %v9092
        %v9103 = vpack.c.b16 %v9095, %v9094
        %9112 = vmatprep.subr.bf16.mxu0 0
        %9113 = vmatpush1.bf16.msra.mxu0 %v9103
        %9114 = vmatprep.subr.bf16.mxu0 0
        %9115 = vmatpush1.bf16.msra.mxu0 %v9102
        %9116 = vmatprep.subr.bf16.mxu0 0
        %9117 = vmatpush1.bf16.msra.mxu0 %v9101
        %9118 = vmatprep.subr.bf16.mxu0 0
        %9119 = vmatpush1.bf16.msra.mxu0 %v9100
        %9120 = vmatprep.subr.bf16.mxu0 0
        %9121 = vmatpush1.bf16.msra.mxu0 %v9099
        %9122 = vmatprep.subr.bf16.mxu0 0
        %9123 = vmatpush1.bf16.msra.mxu0 %v9098
        %9124 = vmatprep.subr.bf16.mxu0 0
        %9125 = vmatpush1.bf16.msra.mxu0 %v9097
        %9126 = vmatprep.subr.bf16.mxu0 0
        %9127 = vmatpush1.bf16.msra.mxu0 %v9096
        %9128 = vmatprep.subr.bf16.mxu0 0
        %9129 = vmatpush2.bf16.msra.mxu0 0
        %9130 = vmatprep.subr.bf16.mxu0 0
        %9131 = vmatpush2.bf16.msra.mxu0 0
        %9132 = vmatprep.subr.bf16.mxu0 0
        %9133 = vmatpush2.bf16.msra.mxu0 0
        %9134 = vmatprep.subr.bf16.mxu0 0
        %9135 = vmatpush2.bf16.msra.mxu0 0
        %9136 = vmatprep.subr.bf16.mxu0 0
        %9137 = vmatpush2.bf16.msra.mxu0 0
        %9138 = vmatprep.subr.bf16.mxu0 0
        %9139 = vmatpush2.bf16.msra.mxu0 0
        %9140 = vmatprep.subr.bf16.mxu0 0
        %9141 = vmatpush2.bf16.msra.mxu0 0
        %9142 = vmatprep.subr.bf16.mxu0 0
        %9143 = vmatpush2.bf16.msra.mxu0 0
        %9144 = vmatprep.mubr.bf16.mxu0 0
        %9145 = vmatmul.mubr.bf16.gmra.mxu0 %v9032
        %v9146 = vpop.f32.mrf.mxu0
        %v9147 = vadd.f32 0.0, %v9146
        %v9148 = vpop.f32.mrf.mxu0
        %v9149 = vpop.f32.mrf.mxu0
        %v9150 = vadd.f32 0.0, %v9149
        %v9151 = vpop.f32.mrf.mxu0
        %9152 = vmatprep.mubr.bf16.mxu0 0
        %9153 = vmatmul.mubr.bf16.gmra.mxu0 %v9033
        %v9154 = vpop.f32.mrf.mxu0
        %v9155 = vadd.f32 0.0, %v9154
        %v9156 = vpop.f32.mrf.mxu0
        %v9157 = vpop.f32.mrf.mxu0
        %v9158 = vadd.f32 0.0, %v9157
        %v9159 = vpop.f32.mrf.mxu0
        %9160 = vmatprep.mubr.bf16.mxu0 0
        %9161 = vmatmul.mubr.bf16.gmra.mxu0 %v9034
        %v9162 = vpop.f32.mrf.mxu0
        %v9163 = vadd.f32 0.0, %v9162
        %v9164 = vpop.f32.mrf.mxu0
        %v9165 = vpop.f32.mrf.mxu0
        %v9166 = vadd.f32 0.0, %v9165
        %v9167 = vpop.f32.mrf.mxu0
        %9168 = vmatprep.mubr.bf16.mxu0 0
        %9169 = vmatmul.mubr.bf16.gmra.mxu0 %v9035
        %v9170 = vpop.f32.mrf.mxu0
        %v9171 = vadd.f32 0.0, %v9170
        %v9172 = vpop.f32.mrf.mxu0
        %v9173 = vpop.f32.mrf.mxu0
        %v9174 = vadd.f32 0.0, %v9173
        %v9175 = vpop.f32.mrf.mxu0
        %9176 = vmatprep.mubr.bf16.mxu0 0
        %9177 = vmatmul.mubr.bf16.gmra.mxu0 %v9036
        %v9178 = vpop.f32.mrf.mxu0
        %v9179 = vadd.f32 0.0, %v9178
        %v9180 = vpop.f32.mrf.mxu0
        %v9181 = vpop.f32.mrf.mxu0
        %v9182 = vadd.f32 0.0, %v9181
        %v9183 = vpop.f32.mrf.mxu0
        %9184 = vmatprep.mubr.bf16.mxu0 0
        %9185 = vmatmul.mubr.bf16.gmra.mxu0 %v9037
        %v9186 = vpop.f32.mrf.mxu0
        %v9187 = vadd.f32 0.0, %v9186
        %v9188 = vpop.f32.mrf.mxu0
        %v9189 = vpop.f32.mrf.mxu0
        %v9190 = vadd.f32 0.0, %v9189
        %v9191 = vpop.f32.mrf.mxu0
        %9192 = vmatprep.mubr.bf16.mxu0 0
        %9193 = vmatmul.mubr.bf16.gmra.mxu0 %v9038
        %v9194 = vpop.f32.mrf.mxu0
        %v9195 = vadd.f32 0.0, %v9194
        %v9196 = vpop.f32.mrf.mxu0
        %v9197 = vpop.f32.mrf.mxu0
        %v9198 = vadd.f32 0.0, %v9197
        %v9199 = vpop.f32.mrf.mxu0
        %9200 = vmatprep.mubr.bf16.mxu0 0
        %9201 = vmatmul.mubr.bf16.gmra.mxu0 %v9039
        %v9202 = vpop.f32.mrf.mxu0
        %v9203 = vadd.f32 0.0, %v9202
        %v9204 = vpop.f32.mrf.mxu0
        %v9205 = vpop.f32.mrf.mxu0
        %v9206 = vadd.f32 0.0, %v9205
        %v9207 = vpop.f32.mrf.mxu0
        %9208 = vmatprep.mubr.bf16.mxu0 0
        %9209 = vmatmul.mubr.bf16.gmra.mxu0 %v9040
        %v9210 = vpop.f32.mrf.mxu0
        %v9211 = vadd.f32 0.0, %v9210
        %v9212 = vpop.f32.mrf.mxu0
        %v9213 = vpop.f32.mrf.mxu0
        %v9214 = vadd.f32 0.0, %v9213
        %v9215 = vpop.f32.mrf.mxu0
        %9216 = vmatprep.mubr.bf16.mxu0 0
        %9217 = vmatmul.mubr.bf16.gmra.mxu0 %v9041
        %v9218 = vpop.f32.mrf.mxu0
        %v9219 = vadd.f32 0.0, %v9218
        %v9220 = vpop.f32.mrf.mxu0
        %v9221 = vpop.f32.mrf.mxu0
        %v9222 = vadd.f32 0.0, %v9221
        %v9223 = vpop.f32.mrf.mxu0
        %9224 = vmatprep.mubr.bf16.mxu0 0
        %9225 = vmatmul.mubr.bf16.gmra.mxu0 %v9042
        %v9226 = vpop.f32.mrf.mxu0
        %v9227 = vadd.f32 0.0, %v9226
        %v9228 = vpop.f32.mrf.mxu0
        %v9229 = vpop.f32.mrf.mxu0
        %v9230 = vadd.f32 0.0, %v9229
        %v9231 = vpop.f32.mrf.mxu0
        %9232 = vmatprep.mubr.bf16.mxu0 0
        %9233 = vmatmul.mubr.bf16.gmra.mxu0 %v9043
        %v9234 = vpop.f32.mrf.mxu0
        %v9235 = vadd.f32 0.0, %v9234
        %v9236 = vpop.f32.mrf.mxu0
        %v9237 = vpop.f32.mrf.mxu0
        %v9238 = vadd.f32 0.0, %v9237
        %v9239 = vpop.f32.mrf.mxu0
        %9240 = vmatprep.mubr.bf16.mxu0 0
        %9241 = vmatmul.mubr.bf16.gmra.mxu0 %v9044
        %v9242 = vpop.f32.mrf.mxu0
        %v9243 = vadd.f32 0.0, %v9242
        %v9244 = vpop.f32.mrf.mxu0
        %v9245 = vpop.f32.mrf.mxu0
        %v9246 = vadd.f32 0.0, %v9245
        %v9247 = vpop.f32.mrf.mxu0
        %9248 = vmatprep.mubr.bf16.mxu0 0
        %9249 = vmatmul.mubr.bf16.gmra.mxu0 %v9045
        %v9250 = vpop.f32.mrf.mxu0
        %v9251 = vadd.f32 0.0, %v9250
        %v9252 = vpop.f32.mrf.mxu0
        %v9253 = vpop.f32.mrf.mxu0
        %v9254 = vadd.f32 0.0, %v9253
        %v9255 = vpop.f32.mrf.mxu0
        %9256 = vmatprep.mubr.bf16.mxu0 0
        %9257 = vmatmul.mubr.bf16.gmra.mxu0 %v9046
        %v9258 = vpop.f32.mrf.mxu0
        %v9259 = vadd.f32 0.0, %v9258
        %v9260 = vpop.f32.mrf.mxu0
        %v9261 = vpop.f32.mrf.mxu0
        %v9262 = vadd.f32 0.0, %v9261
        %v9263 = vpop.f32.mrf.mxu0
        %9264 = vmatprep.mubr.bf16.mxu0 0
        %9265 = vmatmul.mubr.bf16.gmra.mxu0 %v9047
        %v9266 = vpop.f32.mrf.mxu0
        %v9267 = vadd.f32 0.0, %v9266
        %v9268 = vpop.f32.mrf.mxu0
        %v9269 = vpop.f32.mrf.mxu0
        %v9270 = vadd.f32 0.0, %v9269
        %v9271 = vpop.f32.mrf.mxu0
        %9272 = vdwg.mxu0
        %v9273 = vadd.f32 %v8519, %v9147
        %v9274 = vadd.f32 %v8520, %v9150
        %v9275 = vadd.f32 %v8521, %v9155
        %v9276 = vadd.f32 %v8522, %v9158
        %v9277 = vadd.f32 %v8523, %v9163
        %v9278 = vadd.f32 %v8524, %v9166
        %v9279 = vadd.f32 %v8525, %v9171
        %v9280 = vadd.f32 %v8526, %v9174
        %v9281 = vadd.f32 %v8527, %v9179
        %v9282 = vadd.f32 %v8528, %v9182
        %v9283 = vadd.f32 %v8529, %v9187
        %v9284 = vadd.f32 %v8530, %v9190
        %v9285 = vadd.f32 %v8531, %v9195
        %v9286 = vadd.f32 %v8532, %v9198
        %v9287 = vadd.f32 %v8533, %v9203
        %v9288 = vadd.f32 %v8534, %v9206
        %v9289 = vadd.f32 %v8535, %v9211
        %v9290 = vadd.f32 %v8536, %v9214
        %v9291 = vadd.f32 %v8537, %v9219
        %v9292 = vadd.f32 %v8538, %v9222
        %v9293 = vadd.f32 %v8539, %v9227
        %v9294 = vadd.f32 %v8540, %v9230
        %v9295 = vadd.f32 %v8541, %v9235
        %v9296 = vadd.f32 %v8542, %v9238
        %v9297 = vadd.f32 %v8543, %v9243
        %v9298 = vadd.f32 %v8544, %v9246
        %v9299 = vadd.f32 %v8545, %v9251
        %v9300 = vadd.f32 %v8546, %v9254
        %v9301 = vadd.f32 %v8547, %v9259
        %v9302 = vadd.f32 %v8548, %v9262
        %v9303 = vadd.f32 %v8549, %v9267
        %v9304 = vadd.f32 %v8550, %v9270
        %v9305 = vld [vmem:[%s1095] sm:$0xe]
        %v9306 = vld [vmem:[%s1095 + $0xc] sm:$0xe]
        %v9307 = vld [vmem:[%s1095 + $0x18] sm:$0xe]
        %v9308 = vld [vmem:[%s1095 + $0x24] sm:$0xe]
        %v9309 = vld [vmem:[%s1095 + $0x30] sm:$0xe]
        %v9310 = vld [vmem:[%s1095 + $0x3c] sm:$0xe]
        %v9311 = vld [vmem:[%s1095 + $0x48] sm:$0xe]
        %v9312 = vld [vmem:[%s1095 + $0x54] sm:$0xe]
        %v9313 = vld [vmem:[%s1095 + $0x60] sm:$0xe]
        %v9314 = vld [vmem:[%s1095 + $0x6c] sm:$0xe]
        %v9315 = vld [vmem:[%s1095 + $0x78] sm:$0xe]
        %v9316 = vld [vmem:[%s1095 + $0x84] sm:$0xe]
        %v9317 = vld [vmem:[%s1095 + $0x90] sm:$0xe]
        %v9318 = vld [vmem:[%s1095 + $0x9c] sm:$0xe]
        %v9319 = vld [vmem:[%s1095 + $0xa8] sm:$0xe]
        %v9320 = vld [vmem:[%s1095 + $0xb4] sm:$0xe]
        %v9369 = vrot.slane %v9305, 5
        %v9370 = vrot.slane %v9369, 4
        %v9371 = vrot.slane %v8552, 5
        %v9372 = vsel %vm2288, %v9370, %v9371
        %v9373 = vrot.slane %v9371, 4
        %v9374 = vrot.slane %v8553, 5
        %v9375 = vsel %vm2288, %v9373, %v9374
        %v9376 = vrot.slane %v9306, 5
        %v9377 = vrot.slane %v9376, 4
        %v9378 = vrot.slane %v8555, 5
        %v9379 = vsel %vm2288, %v9377, %v9378
        %v9380 = vrot.slane %v9378, 4
        %v9381 = vrot.slane %v8556, 5
        %v9382 = vsel %vm2288, %v9380, %v9381
        %v9383 = vrot.slane %v9307, 5
        %v9384 = vrot.slane %v9383, 4
        %v9385 = vrot.slane %v8558, 5
        %v9386 = vsel %vm2288, %v9384, %v9385
        %v9387 = vrot.slane %v9385, 4
        %v9388 = vrot.slane %v8559, 5
        %v9389 = vsel %vm2288, %v9387, %v9388
        %v9390 = vrot.slane %v9308, 5
        %v9391 = vrot.slane %v9390, 4
        %v9392 = vrot.slane %v8561, 5
        %v9393 = vsel %vm2288, %v9391, %v9392
        %v9394 = vrot.slane %v9392, 4
        %v9395 = vrot.slane %v8562, 5
        %v9396 = vsel %vm2288, %v9394, %v9395
        %v9397 = vrot.slane %v9309, 5
        %v9398 = vrot.slane %v9397, 4
        %v9399 = vrot.slane %v8564, 5
        %v9400 = vsel %vm2288, %v9398, %v9399
        %v9401 = vrot.slane %v9399, 4
        %v9402 = vrot.slane %v8565, 5
        %v9403 = vsel %vm2288, %v9401, %v9402
        %v9404 = vrot.slane %v9310, 5
        %v9405 = vrot.slane %v9404, 4
        %v9406 = vrot.slane %v8567, 5
        %v9407 = vsel %vm2288, %v9405, %v9406
        %v9408 = vrot.slane %v9406, 4
        %v9409 = vrot.slane %v8568, 5
        %v9410 = vsel %vm2288, %v9408, %v9409
        %v9411 = vrot.slane %v9311, 5
        %v9412 = vrot.slane %v9411, 4
        %v9413 = vrot.slane %v8570, 5
        %v9414 = vsel %vm2288, %v9412, %v9413
        %v9415 = vrot.slane %v9413, 4
        %v9416 = vrot.slane %v8571, 5
        %v9417 = vsel %vm2288, %v9415, %v9416
        %v9418 = vrot.slane %v9312, 5
        %v9419 = vrot.slane %v9418, 4
        %v9420 = vrot.slane %v8573, 5
        %v9421 = vsel %vm2288, %v9419, %v9420
        %v9422 = vrot.slane %v9420, 4
        %v9423 = vrot.slane %v8574, 5
        %v9424 = vsel %vm2288, %v9422, %v9423
        %v9425 = vrot.slane %v9313, 5
        %v9426 = vrot.slane %v9425, 4
        %v9427 = vrot.slane %v8576, 5
        %v9428 = vsel %vm2288, %v9426, %v9427
        %v9429 = vrot.slane %v9427, 4
        %v9430 = vrot.slane %v8577, 5
        %v9431 = vsel %vm2288, %v9429, %v9430
        %v9432 = vrot.slane %v9314, 5
        %v9433 = vrot.slane %v9432, 4
        %v9434 = vrot.slane %v8579, 5
        %v9435 = vsel %vm2288, %v9433, %v9434
        %v9436 = vrot.slane %v9434, 4
        %v9437 = vrot.slane %v8580, 5
        %v9438 = vsel %vm2288, %v9436, %v9437
        %v9439 = vrot.slane %v9315, 5
        %v9440 = vrot.slane %v9439, 4
        %v9441 = vrot.slane %v8582, 5
        %v9442 = vsel %vm2288, %v9440, %v9441
        %v9443 = vrot.slane %v9441, 4
        %v9444 = vrot.slane %v8583, 5
        %v9445 = vsel %vm2288, %v9443, %v9444
        %v9446 = vrot.slane %v9316, 5
        %v9447 = vrot.slane %v9446, 4
        %v9448 = vrot.slane %v8585, 5
        %v9449 = vsel %vm2288, %v9447, %v9448
        %v9450 = vrot.slane %v9448, 4
        %v9451 = vrot.slane %v8586, 5
        %v9452 = vsel %vm2288, %v9450, %v9451
        %v9453 = vrot.slane %v9317, 5
        %v9454 = vrot.slane %v9453, 4
        %v9455 = vrot.slane %v8588, 5
        %v9456 = vsel %vm2288, %v9454, %v9455
        %v9457 = vrot.slane %v9455, 4
        %v9458 = vrot.slane %v8589, 5
        %v9459 = vsel %vm2288, %v9457, %v9458
        %v9460 = vrot.slane %v9318, 5
        %v9461 = vrot.slane %v9460, 4
        %v9462 = vrot.slane %v8591, 5
        %v9463 = vsel %vm2288, %v9461, %v9462
        %v9464 = vrot.slane %v9462, 4
        %v9465 = vrot.slane %v8592, 5
        %v9466 = vsel %vm2288, %v9464, %v9465
        %v9467 = vrot.slane %v9319, 5
        %v9468 = vrot.slane %v9467, 4
        %v9469 = vrot.slane %v8594, 5
        %v9470 = vsel %vm2288, %v9468, %v9469
        %v9471 = vrot.slane %v9469, 4
        %v9472 = vrot.slane %v8595, 5
        %v9473 = vsel %vm2288, %v9471, %v9472
        %v9474 = vrot.slane %v9320, 5
        %v9475 = vrot.slane %v9474, 4
        %v9476 = vrot.slane %v8597, 5
        %v9477 = vsel %vm2288, %v9475, %v9476
        %v9478 = vrot.slane %v9476, 4
        %v9479 = vrot.slane %v8598, 5
        %v9480 = vsel %vm2288, %v9478, %v9479
        %s9481 = scalar_lea.vmem [#allocation4], 320
        %v9482 = vld [vmem:[%s9481] sm:$0xf]
        %v9483 = vld [vmem:[%s9481 + $0x4] sm:$0xf]
        %v9484 = vld [vmem:[%s9481 + $0x8] sm:$0xf]
        %v9485 = vld [vmem:[%s9481 + $0xc] sm:$0xf]
        %v9486 = vld [vmem:[%s9481 + $0x10] sm:$0xf]
        %v9487 = vld [vmem:[%s9481 + $0x14] sm:$0xf]
        %v9488 = vld [vmem:[%s9481 + $0x18] sm:$0xf]
        %v9489 = vld [vmem:[%s9481 + $0x1c] sm:$0xf]
        %v9490 = vld [vmem:[%s9481 + $0x20] sm:$0xf]
        %v9491 = vld [vmem:[%s9481 + $0x24] sm:$0xf]
        %v9492 = vld [vmem:[%s9481 + $0x28] sm:$0xf]
        %v9493 = vld [vmem:[%s9481 + $0x2c] sm:$0xf]
        %v9494 = vld [vmem:[%s9481 + $0x30] sm:$0xf]
        %v9495 = vld [vmem:[%s9481 + $0x34] sm:$0xf]
        %v9496 = vld [vmem:[%s9481 + $0x38] sm:$0xf]
        %v9497 = vld [vmem:[%s9481 + $0x3c] sm:$0xf]
        %v9498 = vunpack.c.l.b16 %v9372
        %v9499 = vunpack.c.l.b16 %v9375
        %v9500 = vunpack.c.l.b16 %v9379
        %v9501 = vunpack.c.l.b16 %v9382
        %v9502 = vunpack.c.l.b16 %v9386
        %v9503 = vunpack.c.l.b16 %v9389
        %v9504 = vunpack.c.l.b16 %v9393
        %v9505 = vunpack.c.l.b16 %v9396
        %v9506 = vunpack.c.l.b16 %v9400
        %v9507 = vunpack.c.l.b16 %v9403
        %v9508 = vunpack.c.l.b16 %v9407
        %v9509 = vunpack.c.l.b16 %v9410
        %v9510 = vunpack.c.l.b16 %v9414
        %v9511 = vunpack.c.l.b16 %v9417
        %v9512 = vunpack.c.l.b16 %v9421
        %v9513 = vunpack.c.l.b16 %v9424
        %v9514 = vunpack.c.l.b16 %v9428
        %v9515 = vunpack.c.l.b16 %v9431
        %v9516 = vunpack.c.l.b16 %v9435
        %v9517 = vunpack.c.l.b16 %v9438
        %v9518 = vunpack.c.l.b16 %v9442
        %v9519 = vunpack.c.l.b16 %v9445
        %v9520 = vunpack.c.l.b16 %v9449
        %v9521 = vunpack.c.l.b16 %v9452
        %v9522 = vunpack.c.l.b16 %v9456
        %v9523 = vunpack.c.l.b16 %v9459
        %v9524 = vunpack.c.l.b16 %v9463
        %v9525 = vunpack.c.l.b16 %v9466
        %v9526 = vunpack.c.l.b16 %v9470
        %v9527 = vunpack.c.l.b16 %v9473
        %v9528 = vunpack.c.l.b16 %v9477
        %v9529 = vunpack.c.l.b16 %v9480
        %v9530 = vpack.c.b16 %v9499, %v9498
        %v9531 = vpack.c.b16 %v9501, %v9500
        %v9532 = vpack.c.b16 %v9503, %v9502
        %v9533 = vpack.c.b16 %v9505, %v9504
        %v9534 = vpack.c.b16 %v9507, %v9506
        %v9535 = vpack.c.b16 %v9509, %v9508
        %v9536 = vpack.c.b16 %v9511, %v9510
        %v9537 = vpack.c.b16 %v9513, %v9512
        %v9538 = vpack.c.b16 %v9515, %v9514
        %v9539 = vpack.c.b16 %v9517, %v9516
        %v9540 = vpack.c.b16 %v9519, %v9518
        %v9541 = vpack.c.b16 %v9521, %v9520
        %v9542 = vpack.c.b16 %v9523, %v9522
        %v9543 = vpack.c.b16 %v9525, %v9524
        %v9544 = vpack.c.b16 %v9527, %v9526
        %v9545 = vpack.c.b16 %v9529, %v9528
        %v9578 = vunpack.c.l.b16 %v9482
        %v9579 = vunpack.c.l.b16 %v9483
        %v9580 = vunpack.c.l.b16 %v9484
        %v9581 = vunpack.c.l.b16 %v9485
        %v9582 = vunpack.c.l.b16 %v9486
        %v9583 = vunpack.c.l.b16 %v9487
        %v9584 = vunpack.c.l.b16 %v9488
        %v9585 = vunpack.c.l.b16 %v9489
        %v9586 = vunpack.c.l.b16 %v9490
        %v9587 = vunpack.c.l.b16 %v9491
        %v9588 = vunpack.c.l.b16 %v9492
        %v9589 = vunpack.c.l.b16 %v9493
        %v9590 = vunpack.c.l.b16 %v9494
        %v9591 = vunpack.c.l.b16 %v9495
        %v9592 = vunpack.c.l.b16 %v9496
        %v9593 = vunpack.c.l.b16 %v9497
        %v9594 = vpack.c.b16 %v9579, %v9578
        %v9595 = vpack.c.b16 %v9581, %v9580
        %v9596 = vpack.c.b16 %v9583, %v9582
        %v9597 = vpack.c.b16 %v9585, %v9584
        %v9598 = vpack.c.b16 %v9587, %v9586
        %v9599 = vpack.c.b16 %v9589, %v9588
        %v9600 = vpack.c.b16 %v9591, %v9590
        %v9601 = vpack.c.b16 %v9593, %v9592
        %9610 = vmatprep.subr.bf16.mxu0 0
        %9611 = vmatpush1.bf16.msra.mxu0 %v9601
        %9612 = vmatprep.subr.bf16.mxu0 0
        %9613 = vmatpush1.bf16.msra.mxu0 %v9600
        %9614 = vmatprep.subr.bf16.mxu0 0
        %9615 = vmatpush1.bf16.msra.mxu0 %v9599
        %9616 = vmatprep.subr.bf16.mxu0 0
        %9617 = vmatpush1.bf16.msra.mxu0 %v9598
        %9618 = vmatprep.subr.bf16.mxu0 0
        %9619 = vmatpush1.bf16.msra.mxu0 %v9597
        %9620 = vmatprep.subr.bf16.mxu0 0
        %9621 = vmatpush1.bf16.msra.mxu0 %v9596
        %9622 = vmatprep.subr.bf16.mxu0 0
        %9623 = vmatpush1.bf16.msra.mxu0 %v9595
        %9624 = vmatprep.subr.bf16.mxu0 0
        %9625 = vmatpush1.bf16.msra.mxu0 %v9594
        %9626 = vmatprep.subr.bf16.mxu0 0
        %9627 = vmatpush2.bf16.msra.mxu0 0
        %9628 = vmatprep.subr.bf16.mxu0 0
        %9629 = vmatpush2.bf16.msra.mxu0 0
        %9630 = vmatprep.subr.bf16.mxu0 0
        %9631 = vmatpush2.bf16.msra.mxu0 0
        %9632 = vmatprep.subr.bf16.mxu0 0
        %9633 = vmatpush2.bf16.msra.mxu0 0
        %9634 = vmatprep.subr.bf16.mxu0 0
        %9635 = vmatpush2.bf16.msra.mxu0 0
        %9636 = vmatprep.subr.bf16.mxu0 0
        %9637 = vmatpush2.bf16.msra.mxu0 0
        %9638 = vmatprep.subr.bf16.mxu0 0
        %9639 = vmatpush2.bf16.msra.mxu0 0
        %9640 = vmatprep.subr.bf16.mxu0 0
        %9641 = vmatpush2.bf16.msra.mxu0 0
        %9642 = vmatprep.mubr.bf16.mxu0 0
        %9643 = vmatmul.mubr.bf16.gmra.mxu0 %v9530
        %v9644 = vpop.f32.mrf.mxu0
        %v9645 = vadd.f32 0.0, %v9644
        %v9646 = vpop.f32.mrf.mxu0
        %v9647 = vpop.f32.mrf.mxu0
        %v9648 = vadd.f32 0.0, %v9647
        %v9649 = vpop.f32.mrf.mxu0
        %9650 = vmatprep.mubr.bf16.mxu0 0
        %9651 = vmatmul.mubr.bf16.gmra.mxu0 %v9531
        %v9652 = vpop.f32.mrf.mxu0
        %v9653 = vadd.f32 0.0, %v9652
        %v9654 = vpop.f32.mrf.mxu0
        %v9655 = vpop.f32.mrf.mxu0
        %v9656 = vadd.f32 0.0, %v9655
        %v9657 = vpop.f32.mrf.mxu0
        %9658 = vmatprep.mubr.bf16.mxu0 0
        %9659 = vmatmul.mubr.bf16.gmra.mxu0 %v9532
        %v9660 = vpop.f32.mrf.mxu0
        %v9661 = vadd.f32 0.0, %v9660
        %v9662 = vpop.f32.mrf.mxu0
        %v9663 = vpop.f32.mrf.mxu0
        %v9664 = vadd.f32 0.0, %v9663
        %v9665 = vpop.f32.mrf.mxu0
        %9666 = vmatprep.mubr.bf16.mxu0 0
        %9667 = vmatmul.mubr.bf16.gmra.mxu0 %v9533
        %v9668 = vpop.f32.mrf.mxu0
        %v9669 = vadd.f32 0.0, %v9668
        %v9670 = vpop.f32.mrf.mxu0
        %v9671 = vpop.f32.mrf.mxu0
        %v9672 = vadd.f32 0.0, %v9671
        %v9673 = vpop.f32.mrf.mxu0
        %9674 = vmatprep.mubr.bf16.mxu0 0
        %9675 = vmatmul.mubr.bf16.gmra.mxu0 %v9534
        %v9676 = vpop.f32.mrf.mxu0
        %v9677 = vadd.f32 0.0, %v9676
        %v9678 = vpop.f32.mrf.mxu0
        %v9679 = vpop.f32.mrf.mxu0
        %v9680 = vadd.f32 0.0, %v9679
        %v9681 = vpop.f32.mrf.mxu0
        %9682 = vmatprep.mubr.bf16.mxu0 0
        %9683 = vmatmul.mubr.bf16.gmra.mxu0 %v9535
        %v9684 = vpop.f32.mrf.mxu0
        %v9685 = vadd.f32 0.0, %v9684
        %v9686 = vpop.f32.mrf.mxu0
        %v9687 = vpop.f32.mrf.mxu0
        %v9688 = vadd.f32 0.0, %v9687
        %v9689 = vpop.f32.mrf.mxu0
        %9690 = vmatprep.mubr.bf16.mxu0 0
        %9691 = vmatmul.mubr.bf16.gmra.mxu0 %v9536
        %v9692 = vpop.f32.mrf.mxu0
        %v9693 = vadd.f32 0.0, %v9692
        %v9694 = vpop.f32.mrf.mxu0
        %v9695 = vpop.f32.mrf.mxu0
        %v9696 = vadd.f32 0.0, %v9695
        %v9697 = vpop.f32.mrf.mxu0
        %9698 = vmatprep.mubr.bf16.mxu0 0
        %9699 = vmatmul.mubr.bf16.gmra.mxu0 %v9537
        %v9700 = vpop.f32.mrf.mxu0
        %v9701 = vadd.f32 0.0, %v9700
        %v9702 = vpop.f32.mrf.mxu0
        %v9703 = vpop.f32.mrf.mxu0
        %v9704 = vadd.f32 0.0, %v9703
        %v9705 = vpop.f32.mrf.mxu0
        %9706 = vmatprep.mubr.bf16.mxu0 0
        %9707 = vmatmul.mubr.bf16.gmra.mxu0 %v9538
        %v9708 = vpop.f32.mrf.mxu0
        %v9709 = vadd.f32 0.0, %v9708
        %v9710 = vpop.f32.mrf.mxu0
        %v9711 = vpop.f32.mrf.mxu0
        %v9712 = vadd.f32 0.0, %v9711
        %v9713 = vpop.f32.mrf.mxu0
        %9714 = vmatprep.mubr.bf16.mxu0 0
        %9715 = vmatmul.mubr.bf16.gmra.mxu0 %v9539
        %v9716 = vpop.f32.mrf.mxu0
        %v9717 = vadd.f32 0.0, %v9716
        %v9718 = vpop.f32.mrf.mxu0
        %v9719 = vpop.f32.mrf.mxu0
        %v9720 = vadd.f32 0.0, %v9719
        %v9721 = vpop.f32.mrf.mxu0
        %9722 = vmatprep.mubr.bf16.mxu0 0
        %9723 = vmatmul.mubr.bf16.gmra.mxu0 %v9540
        %v9724 = vpop.f32.mrf.mxu0
        %v9725 = vadd.f32 0.0, %v9724
        %v9726 = vpop.f32.mrf.mxu0
        %v9727 = vpop.f32.mrf.mxu0
        %v9728 = vadd.f32 0.0, %v9727
        %v9729 = vpop.f32.mrf.mxu0
        %9730 = vmatprep.mubr.bf16.mxu0 0
        %9731 = vmatmul.mubr.bf16.gmra.mxu0 %v9541
        %v9732 = vpop.f32.mrf.mxu0
        %v9733 = vadd.f32 0.0, %v9732
        %v9734 = vpop.f32.mrf.mxu0
        %v9735 = vpop.f32.mrf.mxu0
        %v9736 = vadd.f32 0.0, %v9735
        %v9737 = vpop.f32.mrf.mxu0
        %9738 = vmatprep.mubr.bf16.mxu0 0
        %9739 = vmatmul.mubr.bf16.gmra.mxu0 %v9542
        %v9740 = vpop.f32.mrf.mxu0
        %v9741 = vadd.f32 0.0, %v9740
        %v9742 = vpop.f32.mrf.mxu0
        %v9743 = vpop.f32.mrf.mxu0
        %v9744 = vadd.f32 0.0, %v9743
        %v9745 = vpop.f32.mrf.mxu0
        %9746 = vmatprep.mubr.bf16.mxu0 0
        %9747 = vmatmul.mubr.bf16.gmra.mxu0 %v9543
        %v9748 = vpop.f32.mrf.mxu0
        %v9749 = vadd.f32 0.0, %v9748
        %v9750 = vpop.f32.mrf.mxu0
        %v9751 = vpop.f32.mrf.mxu0
        %v9752 = vadd.f32 0.0, %v9751
        %v9753 = vpop.f32.mrf.mxu0
        %9754 = vmatprep.mubr.bf16.mxu0 0
        %9755 = vmatmul.mubr.bf16.gmra.mxu0 %v9544
        %v9756 = vpop.f32.mrf.mxu0
        %v9757 = vadd.f32 0.0, %v9756
        %v9758 = vpop.f32.mrf.mxu0
        %v9759 = vpop.f32.mrf.mxu0
        %v9760 = vadd.f32 0.0, %v9759
        %v9761 = vpop.f32.mrf.mxu0
        %9762 = vmatprep.mubr.bf16.mxu0 0
        %9763 = vmatmul.mubr.bf16.gmra.mxu0 %v9545
        %v9764 = vpop.f32.mrf.mxu0
        %v9765 = vadd.f32 0.0, %v9764
        %v9766 = vpop.f32.mrf.mxu0
        %v9767 = vpop.f32.mrf.mxu0
        %v9768 = vadd.f32 0.0, %v9767
        %v9769 = vpop.f32.mrf.mxu0
        %9770 = vdwg.mxu0
        %v9771 = vadd.f32 %v9273, %v9645
        %v9772 = vadd.f32 %v9274, %v9648
        %v9773 = vadd.f32 %v9275, %v9653
        %v9774 = vadd.f32 %v9276, %v9656
        %v9775 = vadd.f32 %v9277, %v9661
        %v9776 = vadd.f32 %v9278, %v9664
        %v9777 = vadd.f32 %v9279, %v9669
        %v9778 = vadd.f32 %v9280, %v9672
        %v9779 = vadd.f32 %v9281, %v9677
        %v9780 = vadd.f32 %v9282, %v9680
        %v9781 = vadd.f32 %v9283, %v9685
        %v9782 = vadd.f32 %v9284, %v9688
        %v9783 = vadd.f32 %v9285, %v9693
        %v9784 = vadd.f32 %v9286, %v9696
        %v9785 = vadd.f32 %v9287, %v9701
        %v9786 = vadd.f32 %v9288, %v9704
        %v9787 = vadd.f32 %v9289, %v9709
        %v9788 = vadd.f32 %v9290, %v9712
        %v9789 = vadd.f32 %v9291, %v9717
        %v9790 = vadd.f32 %v9292, %v9720
        %v9791 = vadd.f32 %v9293, %v9725
        %v9792 = vadd.f32 %v9294, %v9728
        %v9793 = vadd.f32 %v9295, %v9733
        %v9794 = vadd.f32 %v9296, %v9736
        %v9795 = vadd.f32 %v9297, %v9741
        %v9796 = vadd.f32 %v9298, %v9744
        %v9797 = vadd.f32 %v9299, %v9749
        %v9798 = vadd.f32 %v9300, %v9752
        %v9799 = vadd.f32 %v9301, %v9757
        %v9800 = vadd.f32 %v9302, %v9760
        %v9801 = vadd.f32 %v9303, %v9765
        %v9802 = vadd.f32 %v9304, %v9768
        %s9803 = scalar_lea.vmem [#allocation3], 24
        %v9804 = vld [vmem:[%s9803] sm:$0xf]
        %v9805 = vld [vmem:[%s9803 + $0x4] sm:$0xf]
        %v9806 = vld [vmem:[%s9803 + $0xc] sm:$0xf]
        %v9807 = vld [vmem:[%s9803 + $0x10] sm:$0xf]
        %v9808 = vld [vmem:[%s9803 + $0x18] sm:$0xf]
        %v9809 = vld [vmem:[%s9803 + $0x1c] sm:$0xf]
        %v9810 = vld [vmem:[%s9803 + $0x24] sm:$0xf]
        %v9811 = vld [vmem:[%s9803 + $0x28] sm:$0xf]
        %v9812 = vld [vmem:[%s9803 + $0x30] sm:$0xf]
        %v9813 = vld [vmem:[%s9803 + $0x34] sm:$0xf]
        %v9814 = vld [vmem:[%s9803 + $0x3c] sm:$0xf]
        %v9815 = vld [vmem:[%s9803 + $0x40] sm:$0xf]
        %v9816 = vld [vmem:[%s9803 + $0x48] sm:$0xf]
        %v9817 = vld [vmem:[%s9803 + $0x4c] sm:$0xf]
        %v9818 = vld [vmem:[%s9803 + $0x54] sm:$0xf]
        %v9819 = vld [vmem:[%s9803 + $0x58] sm:$0xf]
        %v9820 = vld [vmem:[%s9803 + $0x60] sm:$0xf]
        %v9821 = vld [vmem:[%s9803 + $0x64] sm:$0xf]
        %v9822 = vld [vmem:[%s9803 + $0x6c] sm:$0xf]
        %v9823 = vld [vmem:[%s9803 + $0x70] sm:$0xf]
        %v9824 = vld [vmem:[%s9803 + $0x78] sm:$0xf]
        %v9825 = vld [vmem:[%s9803 + $0x7c] sm:$0xf]
        %v9826 = vld [vmem:[%s9803 + $0x84] sm:$0xf]
        %v9827 = vld [vmem:[%s9803 + $0x88] sm:$0xf]
        %v9828 = vld [vmem:[%s9803 + $0x90] sm:$0xf]
        %v9829 = vld [vmem:[%s9803 + $0x94] sm:$0xf]
        %v9830 = vld [vmem:[%s9803 + $0x9c] sm:$0xf]
        %v9831 = vld [vmem:[%s9803 + $0xa0] sm:$0xf]
        %v9832 = vld [vmem:[%s9803 + $0xa8] sm:$0xf]
        %v9833 = vld [vmem:[%s9803 + $0xac] sm:$0xf]
        %v9834 = vld [vmem:[%s9803 + $0xb4] sm:$0xf]
        %v9835 = vld [vmem:[%s9803 + $0xb8] sm:$0xf]
        %s9836 = scalar_lea.vmem [#allocation4], 384
        %v9837 = vld [vmem:[%s9836] sm:$0xf]
        %v9838 = vld [vmem:[%s9836 + $0x4] sm:$0xf]
        %v9839 = vld [vmem:[%s9836 + $0x8] sm:$0xf]
        %v9840 = vld [vmem:[%s9836 + $0xc] sm:$0xf]
        %v9841 = vld [vmem:[%s9836 + $0x10] sm:$0xf]
        %v9842 = vld [vmem:[%s9836 + $0x14] sm:$0xf]
        %v9843 = vld [vmem:[%s9836 + $0x18] sm:$0xf]
        %v9844 = vld [vmem:[%s9836 + $0x1c] sm:$0xf]
        %v9845 = vld [vmem:[%s9836 + $0x20] sm:$0xf]
        %v9846 = vld [vmem:[%s9836 + $0x24] sm:$0xf]
        %v9847 = vld [vmem:[%s9836 + $0x28] sm:$0xf]
        %v9848 = vld [vmem:[%s9836 + $0x2c] sm:$0xf]
        %v9849 = vld [vmem:[%s9836 + $0x30] sm:$0xf]
        %v9850 = vld [vmem:[%s9836 + $0x34] sm:$0xf]
        %v9851 = vld [vmem:[%s9836 + $0x38] sm:$0xf]
        %v9852 = vld [vmem:[%s9836 + $0x3c] sm:$0xf]
        %v9885 = vunpack.c.l.b16 %v9804
        %v9886 = vunpack.c.l.b16 %v9805
        %v9887 = vunpack.c.l.b16 %v9806
        %v9888 = vunpack.c.l.b16 %v9807
        %v9889 = vunpack.c.l.b16 %v9808
        %v9890 = vunpack.c.l.b16 %v9809
        %v9891 = vunpack.c.l.b16 %v9810
        %v9892 = vunpack.c.l.b16 %v9811
        %v9893 = vunpack.c.l.b16 %v9812
        %v9894 = vunpack.c.l.b16 %v9813
        %v9895 = vunpack.c.l.b16 %v9814
        %v9896 = vunpack.c.l.b16 %v9815
        %v9897 = vunpack.c.l.b16 %v9816
        %v9898 = vunpack.c.l.b16 %v9817
        %v9899 = vunpack.c.l.b16 %v9818
        %v9900 = vunpack.c.l.b16 %v9819
        %v9901 = vunpack.c.l.b16 %v9820
        %v9902 = vunpack.c.l.b16 %v9821
        %v9903 = vunpack.c.l.b16 %v9822
        %v9904 = vunpack.c.l.b16 %v9823
        %v9905 = vunpack.c.l.b16 %v9824
        %v9906 = vunpack.c.l.b16 %v9825
        %v9907 = vunpack.c.l.b16 %v9826
        %v9908 = vunpack.c.l.b16 %v9827
        %v9909 = vunpack.c.l.b16 %v9828
        %v9910 = vunpack.c.l.b16 %v9829
        %v9911 = vunpack.c.l.b16 %v9830
        %v9912 = vunpack.c.l.b16 %v9831
        %v9913 = vunpack.c.l.b16 %v9832
        %v9914 = vunpack.c.l.b16 %v9833
        %v9915 = vunpack.c.l.b16 %v9834
        %v9916 = vunpack.c.l.b16 %v9835
        %v9917 = vpack.c.b16 %v9886, %v9885
        %v9918 = vpack.c.b16 %v9888, %v9887
        %v9919 = vpack.c.b16 %v9890, %v9889
        %v9920 = vpack.c.b16 %v9892, %v9891
        %v9921 = vpack.c.b16 %v9894, %v9893
        %v9922 = vpack.c.b16 %v9896, %v9895
        %v9923 = vpack.c.b16 %v9898, %v9897
        %v9924 = vpack.c.b16 %v9900, %v9899
        %v9925 = vpack.c.b16 %v9902, %v9901
        %v9926 = vpack.c.b16 %v9904, %v9903
        %v9927 = vpack.c.b16 %v9906, %v9905
        %v9928 = vpack.c.b16 %v9908, %v9907
        %v9929 = vpack.c.b16 %v9910, %v9909
        %v9930 = vpack.c.b16 %v9912, %v9911
        %v9931 = vpack.c.b16 %v9914, %v9913
        %v9932 = vpack.c.b16 %v9916, %v9915
        %v9965 = vunpack.c.l.b16 %v9837
        %v9966 = vunpack.c.l.b16 %v9838
        %v9967 = vunpack.c.l.b16 %v9839
        %v9968 = vunpack.c.l.b16 %v9840
        %v9969 = vunpack.c.l.b16 %v9841
        %v9970 = vunpack.c.l.b16 %v9842
        %v9971 = vunpack.c.l.b16 %v9843
        %v9972 = vunpack.c.l.b16 %v9844
        %v9973 = vunpack.c.l.b16 %v9845
        %v9974 = vunpack.c.l.b16 %v9846
        %v9975 = vunpack.c.l.b16 %v9847
        %v9976 = vunpack.c.l.b16 %v9848
        %v9977 = vunpack.c.l.b16 %v9849
        %v9978 = vunpack.c.l.b16 %v9850
        %v9979 = vunpack.c.l.b16 %v9851
        %v9980 = vunpack.c.l.b16 %v9852
        %v9981 = vpack.c.b16 %v9966, %v9965
        %v9982 = vpack.c.b16 %v9968, %v9967
        %v9983 = vpack.c.b16 %v9970, %v9969
        %v9984 = vpack.c.b16 %v9972, %v9971
        %v9985 = vpack.c.b16 %v9974, %v9973
        %v9986 = vpack.c.b16 %v9976, %v9975
        %v9987 = vpack.c.b16 %v9978, %v9977
        %v9988 = vpack.c.b16 %v9980, %v9979
        %9997 = vmatprep.subr.bf16.mxu0 0
        %9998 = vmatpush1.bf16.msra.mxu0 %v9988
        %9999 = vmatprep.subr.bf16.mxu0 0
        %10000 = vmatpush1.bf16.msra.mxu0 %v9987
        %10001 = vmatprep.subr.bf16.mxu0 0
        %10002 = vmatpush1.bf16.msra.mxu0 %v9986
        %10003 = vmatprep.subr.bf16.mxu0 0
        %10004 = vmatpush1.bf16.msra.mxu0 %v9985
        %10005 = vmatprep.subr.bf16.mxu0 0
        %10006 = vmatpush1.bf16.msra.mxu0 %v9984
        %10007 = vmatprep.subr.bf16.mxu0 0
        %10008 = vmatpush1.bf16.msra.mxu0 %v9983
        %10009 = vmatprep.subr.bf16.mxu0 0
        %10010 = vmatpush1.bf16.msra.mxu0 %v9982
        %10011 = vmatprep.subr.bf16.mxu0 0
        %10012 = vmatpush1.bf16.msra.mxu0 %v9981
        %10013 = vmatprep.subr.bf16.mxu0 0
        %10014 = vmatpush2.bf16.msra.mxu0 0
        %10015 = vmatprep.subr.bf16.mxu0 0
        %10016 = vmatpush2.bf16.msra.mxu0 0
        %10017 = vmatprep.subr.bf16.mxu0 0
        %10018 = vmatpush2.bf16.msra.mxu0 0
        %10019 = vmatprep.subr.bf16.mxu0 0
        %10020 = vmatpush2.bf16.msra.mxu0 0
        %10021 = vmatprep.subr.bf16.mxu0 0
        %10022 = vmatpush2.bf16.msra.mxu0 0
        %10023 = vmatprep.subr.bf16.mxu0 0
        %10024 = vmatpush2.bf16.msra.mxu0 0
        %10025 = vmatprep.subr.bf16.mxu0 0
        %10026 = vmatpush2.bf16.msra.mxu0 0
        %10027 = vmatprep.subr.bf16.mxu0 0
        %10028 = vmatpush2.bf16.msra.mxu0 0
        %10029 = vmatprep.mubr.bf16.mxu0 0
        %10030 = vmatmul.mubr.bf16.gmra.mxu0 %v9917
        %v10031 = vpop.f32.mrf.mxu0
        %v10032 = vadd.f32 0.0, %v10031
        %v10033 = vpop.f32.mrf.mxu0
        %v10034 = vpop.f32.mrf.mxu0
        %v10035 = vadd.f32 0.0, %v10034
        %v10036 = vpop.f32.mrf.mxu0
        %10037 = vmatprep.mubr.bf16.mxu0 0
        %10038 = vmatmul.mubr.bf16.gmra.mxu0 %v9918
        %v10039 = vpop.f32.mrf.mxu0
        %v10040 = vadd.f32 0.0, %v10039
        %v10041 = vpop.f32.mrf.mxu0
        %v10042 = vpop.f32.mrf.mxu0
        %v10043 = vadd.f32 0.0, %v10042
        %v10044 = vpop.f32.mrf.mxu0
        %10045 = vmatprep.mubr.bf16.mxu0 0
        %10046 = vmatmul.mubr.bf16.gmra.mxu0 %v9919
        %v10047 = vpop.f32.mrf.mxu0
        %v10048 = vadd.f32 0.0, %v10047
        %v10049 = vpop.f32.mrf.mxu0
        %v10050 = vpop.f32.mrf.mxu0
        %v10051 = vadd.f32 0.0, %v10050
        %v10052 = vpop.f32.mrf.mxu0
        %10053 = vmatprep.mubr.bf16.mxu0 0
        %10054 = vmatmul.mubr.bf16.gmra.mxu0 %v9920
        %v10055 = vpop.f32.mrf.mxu0
        %v10056 = vadd.f32 0.0, %v10055
        %v10057 = vpop.f32.mrf.mxu0
        %v10058 = vpop.f32.mrf.mxu0
        %v10059 = vadd.f32 0.0, %v10058
        %v10060 = vpop.f32.mrf.mxu0
        %10061 = vmatprep.mubr.bf16.mxu0 0
        %10062 = vmatmul.mubr.bf16.gmra.mxu0 %v9921
        %v10063 = vpop.f32.mrf.mxu0
        %v10064 = vadd.f32 0.0, %v10063
        %v10065 = vpop.f32.mrf.mxu0
        %v10066 = vpop.f32.mrf.mxu0
        %v10067 = vadd.f32 0.0, %v10066
        %v10068 = vpop.f32.mrf.mxu0
        %10069 = vmatprep.mubr.bf16.mxu0 0
        %10070 = vmatmul.mubr.bf16.gmra.mxu0 %v9922
        %v10071 = vpop.f32.mrf.mxu0
        %v10072 = vadd.f32 0.0, %v10071
        %v10073 = vpop.f32.mrf.mxu0
        %v10074 = vpop.f32.mrf.mxu0
        %v10075 = vadd.f32 0.0, %v10074
        %v10076 = vpop.f32.mrf.mxu0
        %10077 = vmatprep.mubr.bf16.mxu0 0
        %10078 = vmatmul.mubr.bf16.gmra.mxu0 %v9923
        %v10079 = vpop.f32.mrf.mxu0
        %v10080 = vadd.f32 0.0, %v10079
        %v10081 = vpop.f32.mrf.mxu0
        %v10082 = vpop.f32.mrf.mxu0
        %v10083 = vadd.f32 0.0, %v10082
        %v10084 = vpop.f32.mrf.mxu0
        %10085 = vmatprep.mubr.bf16.mxu0 0
        %10086 = vmatmul.mubr.bf16.gmra.mxu0 %v9924
        %v10087 = vpop.f32.mrf.mxu0
        %v10088 = vadd.f32 0.0, %v10087
        %v10089 = vpop.f32.mrf.mxu0
        %v10090 = vpop.f32.mrf.mxu0
        %v10091 = vadd.f32 0.0, %v10090
        %v10092 = vpop.f32.mrf.mxu0
        %10093 = vmatprep.mubr.bf16.mxu0 0
        %10094 = vmatmul.mubr.bf16.gmra.mxu0 %v9925
        %v10095 = vpop.f32.mrf.mxu0
        %v10096 = vadd.f32 0.0, %v10095
        %v10097 = vpop.f32.mrf.mxu0
        %v10098 = vpop.f32.mrf.mxu0
        %v10099 = vadd.f32 0.0, %v10098
        %v10100 = vpop.f32.mrf.mxu0
        %10101 = vmatprep.mubr.bf16.mxu0 0
        %10102 = vmatmul.mubr.bf16.gmra.mxu0 %v9926
        %v10103 = vpop.f32.mrf.mxu0
        %v10104 = vadd.f32 0.0, %v10103
        %v10105 = vpop.f32.mrf.mxu0
        %v10106 = vpop.f32.mrf.mxu0
        %v10107 = vadd.f32 0.0, %v10106
        %v10108 = vpop.f32.mrf.mxu0
        %10109 = vmatprep.mubr.bf16.mxu0 0
        %10110 = vmatmul.mubr.bf16.gmra.mxu0 %v9927
        %v10111 = vpop.f32.mrf.mxu0
        %v10112 = vadd.f32 0.0, %v10111
        %v10113 = vpop.f32.mrf.mxu0
        %v10114 = vpop.f32.mrf.mxu0
        %v10115 = vadd.f32 0.0, %v10114
        %v10116 = vpop.f32.mrf.mxu0
        %10117 = vmatprep.mubr.bf16.mxu0 0
        %10118 = vmatmul.mubr.bf16.gmra.mxu0 %v9928
        %v10119 = vpop.f32.mrf.mxu0
        %v10120 = vadd.f32 0.0, %v10119
        %v10121 = vpop.f32.mrf.mxu0
        %v10122 = vpop.f32.mrf.mxu0
        %v10123 = vadd.f32 0.0, %v10122
        %v10124 = vpop.f32.mrf.mxu0
        %10125 = vmatprep.mubr.bf16.mxu0 0
        %10126 = vmatmul.mubr.bf16.gmra.mxu0 %v9929
        %v10127 = vpop.f32.mrf.mxu0
        %v10128 = vadd.f32 0.0, %v10127
        %v10129 = vpop.f32.mrf.mxu0
        %v10130 = vpop.f32.mrf.mxu0
        %v10131 = vadd.f32 0.0, %v10130
        %v10132 = vpop.f32.mrf.mxu0
        %10133 = vmatprep.mubr.bf16.mxu0 0
        %10134 = vmatmul.mubr.bf16.gmra.mxu0 %v9930
        %v10135 = vpop.f32.mrf.mxu0
        %v10136 = vadd.f32 0.0, %v10135
        %v10137 = vpop.f32.mrf.mxu0
        %v10138 = vpop.f32.mrf.mxu0
        %v10139 = vadd.f32 0.0, %v10138
        %v10140 = vpop.f32.mrf.mxu0
        %10141 = vmatprep.mubr.bf16.mxu0 0
        %10142 = vmatmul.mubr.bf16.gmra.mxu0 %v9931
        %v10143 = vpop.f32.mrf.mxu0
        %v10144 = vadd.f32 0.0, %v10143
        %v10145 = vpop.f32.mrf.mxu0
        %v10146 = vpop.f32.mrf.mxu0
        %v10147 = vadd.f32 0.0, %v10146
        %v10148 = vpop.f32.mrf.mxu0
        %10149 = vmatprep.mubr.bf16.mxu0 0
        %10150 = vmatmul.mubr.bf16.gmra.mxu0 %v9932
        %v10151 = vpop.f32.mrf.mxu0
        %v10152 = vadd.f32 0.0, %v10151
        %v10153 = vpop.f32.mrf.mxu0
        %v10154 = vpop.f32.mrf.mxu0
        %v10155 = vadd.f32 0.0, %v10154
        %v10156 = vpop.f32.mrf.mxu0
        %10157 = vdwg.mxu0
        %v10158 = vadd.f32 %v9771, %v10032
        %v10159 = vadd.f32 %v9772, %v10035
        %v10160 = vadd.f32 %v9773, %v10040
        %v10161 = vadd.f32 %v9774, %v10043
        %v10162 = vadd.f32 %v9775, %v10048
        %v10163 = vadd.f32 %v9776, %v10051
        %v10164 = vadd.f32 %v9777, %v10056
        %v10165 = vadd.f32 %v9778, %v10059
        %v10166 = vadd.f32 %v9779, %v10064
        %v10167 = vadd.f32 %v9780, %v10067
        %v10168 = vadd.f32 %v9781, %v10072
        %v10169 = vadd.f32 %v9782, %v10075
        %v10170 = vadd.f32 %v9783, %v10080
        %v10171 = vadd.f32 %v9784, %v10083
        %v10172 = vadd.f32 %v9785, %v10088
        %v10173 = vadd.f32 %v9786, %v10091
        %v10174 = vadd.f32 %v9787, %v10096
        %v10175 = vadd.f32 %v9788, %v10099
        %v10176 = vadd.f32 %v9789, %v10104
        %v10177 = vadd.f32 %v9790, %v10107
        %v10178 = vadd.f32 %v9791, %v10112
        %v10179 = vadd.f32 %v9792, %v10115
        %v10180 = vadd.f32 %v9793, %v10120
        %v10181 = vadd.f32 %v9794, %v10123
        %v10182 = vadd.f32 %v9795, %v10128
        %v10183 = vadd.f32 %v9796, %v10131
        %v10184 = vadd.f32 %v9797, %v10136
        %v10185 = vadd.f32 %v9798, %v10139
        %v10186 = vadd.f32 %v9799, %v10144
        %v10187 = vadd.f32 %v9800, %v10147
        %v10188 = vadd.f32 %v9801, %v10152
        %v10189 = vadd.f32 %v9802, %v10155
        %v10190 = vld [vmem:[%s9803] sm:$0xf]
        %v10191 = vld [vmem:[%s9803 + $0x4] sm:$0xf]
        %v10192 = vld [vmem:[%s9803 + $0x8] sm:$0x1]
        %v10193 = vld [vmem:[%s9803 + $0xc] sm:$0xf]
        %v10194 = vld [vmem:[%s9803 + $0x10] sm:$0xf]
        %v10195 = vld [vmem:[%s9803 + $0x14] sm:$0x1]
        %v10196 = vld [vmem:[%s9803 + $0x18] sm:$0xf]
        %v10197 = vld [vmem:[%s9803 + $0x1c] sm:$0xf]
        %v10198 = vld [vmem:[%s9803 + $0x20] sm:$0x1]
        %v10199 = vld [vmem:[%s9803 + $0x24] sm:$0xf]
        %v10200 = vld [vmem:[%s9803 + $0x28] sm:$0xf]
        %v10201 = vld [vmem:[%s9803 + $0x2c] sm:$0x1]
        %v10202 = vld [vmem:[%s9803 + $0x30] sm:$0xf]
        %v10203 = vld [vmem:[%s9803 + $0x34] sm:$0xf]
        %v10204 = vld [vmem:[%s9803 + $0x38] sm:$0x1]
        %v10205 = vld [vmem:[%s9803 + $0x3c] sm:$0xf]
        %v10206 = vld [vmem:[%s9803 + $0x40] sm:$0xf]
        %v10207 = vld [vmem:[%s9803 + $0x44] sm:$0x1]
        %v10208 = vld [vmem:[%s9803 + $0x48] sm:$0xf]
        %v10209 = vld [vmem:[%s9803 + $0x4c] sm:$0xf]
        %v10210 = vld [vmem:[%s9803 + $0x50] sm:$0x1]
        %v10211 = vld [vmem:[%s9803 + $0x54] sm:$0xf]
        %v10212 = vld [vmem:[%s9803 + $0x58] sm:$0xf]
        %v10213 = vld [vmem:[%s9803 + $0x5c] sm:$0x1]
        %v10214 = vld [vmem:[%s9803 + $0x60] sm:$0xf]
        %v10215 = vld [vmem:[%s9803 + $0x64] sm:$0xf]
        %v10216 = vld [vmem:[%s9803 + $0x68] sm:$0x1]
        %v10217 = vld [vmem:[%s9803 + $0x6c] sm:$0xf]
        %v10218 = vld [vmem:[%s9803 + $0x70] sm:$0xf]
        %v10219 = vld [vmem:[%s9803 + $0x74] sm:$0x1]
        %v10220 = vld [vmem:[%s9803 + $0x78] sm:$0xf]
        %v10221 = vld [vmem:[%s9803 + $0x7c] sm:$0xf]
        %v10222 = vld [vmem:[%s9803 + $0x80] sm:$0x1]
        %v10223 = vld [vmem:[%s9803 + $0x84] sm:$0xf]
        %v10224 = vld [vmem:[%s9803 + $0x88] sm:$0xf]
        %v10225 = vld [vmem:[%s9803 + $0x8c] sm:$0x1]
        %v10226 = vld [vmem:[%s9803 + $0x90] sm:$0xf]
        %v10227 = vld [vmem:[%s9803 + $0x94] sm:$0xf]
        %v10228 = vld [vmem:[%s9803 + $0x98] sm:$0x1]
        %v10229 = vld [vmem:[%s9803 + $0x9c] sm:$0xf]
        %v10230 = vld [vmem:[%s9803 + $0xa0] sm:$0xf]
        %v10231 = vld [vmem:[%s9803 + $0xa4] sm:$0x1]
        %v10232 = vld [vmem:[%s9803 + $0xa8] sm:$0xf]
        %v10233 = vld [vmem:[%s9803 + $0xac] sm:$0xf]
        %v10234 = vld [vmem:[%s9803 + $0xb0] sm:$0x1]
        %v10235 = vld [vmem:[%s9803 + $0xb4] sm:$0xf]
        %v10236 = vld [vmem:[%s9803 + $0xb8] sm:$0xf]
        %v10237 = vld [vmem:[%s9803 + $0xbc] sm:$0x1]
        %v10239 = vshrl.u32 %v10190, 16
        %v10241 = vrot.slane %v10239, 4
        %v10242 = vshll.u32 %v10190, 16
        %v10244 = vrot.slane %v10242, 5
        %v10245 = vor.u32 %v10241, %v10244
        %v10246 = vrot.slane %v10245, 4
        %v10248 = vshll.u32 %v10191, 16
        %v10250 = vrot.slane %v10248, 5
        %v10251 = vsel %vm1258, %v10246, %v10250
        %v10252 = vshrl.u32 %v10191, 16
        %v10254 = vrot.slane %v10252, 4
        %v10255 = vor.u32 %v10254, %v10250
        %v10256 = vrot.slane %v10255, 4
        %v10258 = vshll.u32 %v10192, 16
        %v10260 = vrot.slane %v10258, 5
        %v10261 = vsel %vm1258, %v10256, %v10260
        %v10263 = vshrl.u32 %v10193, 16
        %v10265 = vrot.slane %v10263, 4
        %v10266 = vshll.u32 %v10193, 16
        %v10268 = vrot.slane %v10266, 5
        %v10269 = vor.u32 %v10265, %v10268
        %v10270 = vrot.slane %v10269, 4
        %v10272 = vshll.u32 %v10194, 16
        %v10274 = vrot.slane %v10272, 5
        %v10275 = vsel %vm1258, %v10270, %v10274
        %v10276 = vshrl.u32 %v10194, 16
        %v10278 = vrot.slane %v10276, 4
        %v10279 = vor.u32 %v10278, %v10274
        %v10280 = vrot.slane %v10279, 4
        %v10282 = vshll.u32 %v10195, 16
        %v10284 = vrot.slane %v10282, 5
        %v10285 = vsel %vm1258, %v10280, %v10284
        %v10287 = vshrl.u32 %v10196, 16
        %v10289 = vrot.slane %v10287, 4
        %v10290 = vshll.u32 %v10196, 16
        %v10292 = vrot.slane %v10290, 5
        %v10293 = vor.u32 %v10289, %v10292
        %v10294 = vrot.slane %v10293, 4
        %v10296 = vshll.u32 %v10197, 16
        %v10298 = vrot.slane %v10296, 5
        %v10299 = vsel %vm1258, %v10294, %v10298
        %v10300 = vshrl.u32 %v10197, 16
        %v10302 = vrot.slane %v10300, 4
        %v10303 = vor.u32 %v10302, %v10298
        %v10304 = vrot.slane %v10303, 4
        %v10306 = vshll.u32 %v10198, 16
        %v10308 = vrot.slane %v10306, 5
        %v10309 = vsel %vm1258, %v10304, %v10308
        %v10311 = vshrl.u32 %v10199, 16
        %v10313 = vrot.slane %v10311, 4
        %v10314 = vshll.u32 %v10199, 16
        %v10316 = vrot.slane %v10314, 5
        %v10317 = vor.u32 %v10313, %v10316
        %v10318 = vrot.slane %v10317, 4
        %v10320 = vshll.u32 %v10200, 16
        %v10322 = vrot.slane %v10320, 5
        %v10323 = vsel %vm1258, %v10318, %v10322
        %v10324 = vshrl.u32 %v10200, 16
        %v10326 = vrot.slane %v10324, 4
        %v10327 = vor.u32 %v10326, %v10322
        %v10328 = vrot.slane %v10327, 4
        %v10330 = vshll.u32 %v10201, 16
        %v10332 = vrot.slane %v10330, 5
        %v10333 = vsel %vm1258, %v10328, %v10332
        %v10335 = vshrl.u32 %v10202, 16
        %v10337 = vrot.slane %v10335, 4
        %v10338 = vshll.u32 %v10202, 16
        %v10340 = vrot.slane %v10338, 5
        %v10341 = vor.u32 %v10337, %v10340
        %v10342 = vrot.slane %v10341, 4
        %v10344 = vshll.u32 %v10203, 16
        %v10346 = vrot.slane %v10344, 5
        %v10347 = vsel %vm1258, %v10342, %v10346
        %v10348 = vshrl.u32 %v10203, 16
        %v10350 = vrot.slane %v10348, 4
        %v10351 = vor.u32 %v10350, %v10346
        %v10352 = vrot.slane %v10351, 4
        %v10354 = vshll.u32 %v10204, 16
        %v10356 = vrot.slane %v10354, 5
        %v10357 = vsel %vm1258, %v10352, %v10356
        %v10359 = vshrl.u32 %v10205, 16
        %v10361 = vrot.slane %v10359, 4
        %v10362 = vshll.u32 %v10205, 16
        %v10364 = vrot.slane %v10362, 5
        %v10365 = vor.u32 %v10361, %v10364
        %v10366 = vrot.slane %v10365, 4
        %v10368 = vshll.u32 %v10206, 16
        %v10370 = vrot.slane %v10368, 5
        %v10371 = vsel %vm1258, %v10366, %v10370
        %v10372 = vshrl.u32 %v10206, 16
        %v10374 = vrot.slane %v10372, 4
        %v10375 = vor.u32 %v10374, %v10370
        %v10376 = vrot.slane %v10375, 4
        %v10378 = vshll.u32 %v10207, 16
        %v10380 = vrot.slane %v10378, 5
        %v10381 = vsel %vm1258, %v10376, %v10380
        %v10383 = vshrl.u32 %v10208, 16
        %v10385 = vrot.slane %v10383, 4
        %v10386 = vshll.u32 %v10208, 16
        %v10388 = vrot.slane %v10386, 5
        %v10389 = vor.u32 %v10385, %v10388
        %v10390 = vrot.slane %v10389, 4
        %v10392 = vshll.u32 %v10209, 16
        %v10394 = vrot.slane %v10392, 5
        %v10395 = vsel %vm1258, %v10390, %v10394
        %v10396 = vshrl.u32 %v10209, 16
        %v10398 = vrot.slane %v10396, 4
        %v10399 = vor.u32 %v10398, %v10394
        %v10400 = vrot.slane %v10399, 4
        %v10402 = vshll.u32 %v10210, 16
        %v10404 = vrot.slane %v10402, 5
        %v10405 = vsel %vm1258, %v10400, %v10404
        %v10407 = vshrl.u32 %v10211, 16
        %v10409 = vrot.slane %v10407, 4
        %v10410 = vshll.u32 %v10211, 16
        %v10412 = vrot.slane %v10410, 5
        %v10413 = vor.u32 %v10409, %v10412
        %v10414 = vrot.slane %v10413, 4
        %v10416 = vshll.u32 %v10212, 16
        %v10418 = vrot.slane %v10416, 5
        %v10419 = vsel %vm1258, %v10414, %v10418
        %v10420 = vshrl.u32 %v10212, 16
        %v10422 = vrot.slane %v10420, 4
        %v10423 = vor.u32 %v10422, %v10418
        %v10424 = vrot.slane %v10423, 4
        %v10426 = vshll.u32 %v10213, 16
        %v10428 = vrot.slane %v10426, 5
        %v10429 = vsel %vm1258, %v10424, %v10428
        %v10431 = vshrl.u32 %v10214, 16
        %v10433 = vrot.slane %v10431, 4
        %v10434 = vshll.u32 %v10214, 16
        %v10436 = vrot.slane %v10434, 5
        %v10437 = vor.u32 %v10433, %v10436
        %v10438 = vrot.slane %v10437, 4
        %v10440 = vshll.u32 %v10215, 16
        %v10442 = vrot.slane %v10440, 5
        %v10443 = vsel %vm1258, %v10438, %v10442
        %v10444 = vshrl.u32 %v10215, 16
        %v10446 = vrot.slane %v10444, 4
        %v10447 = vor.u32 %v10446, %v10442
        %v10448 = vrot.slane %v10447, 4
        %v10450 = vshll.u32 %v10216, 16
        %v10452 = vrot.slane %v10450, 5
        %v10453 = vsel %vm1258, %v10448, %v10452
        %v10455 = vshrl.u32 %v10217, 16
        %v10457 = vrot.slane %v10455, 4
        %v10458 = vshll.u32 %v10217, 16
        %v10460 = vrot.slane %v10458, 5
        %v10461 = vor.u32 %v10457, %v10460
        %v10462 = vrot.slane %v10461, 4
        %v10464 = vshll.u32 %v10218, 16
        %v10466 = vrot.slane %v10464, 5
        %v10467 = vsel %vm1258, %v10462, %v10466
        %v10468 = vshrl.u32 %v10218, 16
        %v10470 = vrot.slane %v10468, 4
        %v10471 = vor.u32 %v10470, %v10466
        %v10472 = vrot.slane %v10471, 4
        %v10474 = vshll.u32 %v10219, 16
        %v10476 = vrot.slane %v10474, 5
        %v10477 = vsel %vm1258, %v10472, %v10476
        %v10479 = vshrl.u32 %v10220, 16
        %v10481 = vrot.slane %v10479, 4
        %v10482 = vshll.u32 %v10220, 16
        %v10484 = vrot.slane %v10482, 5
        %v10485 = vor.u32 %v10481, %v10484
        %v10486 = vrot.slane %v10485, 4
        %v10488 = vshll.u32 %v10221, 16
        %v10490 = vrot.slane %v10488, 5
        %v10491 = vsel %vm1258, %v10486, %v10490
        %v10492 = vshrl.u32 %v10221, 16
        %v10494 = vrot.slane %v10492, 4
        %v10495 = vor.u32 %v10494, %v10490
        %v10496 = vrot.slane %v10495, 4
        %v10498 = vshll.u32 %v10222, 16
        %v10500 = vrot.slane %v10498, 5
        %v10501 = vsel %vm1258, %v10496, %v10500
        %v10503 = vshrl.u32 %v10223, 16
        %v10505 = vrot.slane %v10503, 4
        %v10506 = vshll.u32 %v10223, 16
        %v10508 = vrot.slane %v10506, 5
        %v10509 = vor.u32 %v10505, %v10508
        %v10510 = vrot.slane %v10509, 4
        %v10512 = vshll.u32 %v10224, 16
        %v10514 = vrot.slane %v10512, 5
        %v10515 = vsel %vm1258, %v10510, %v10514
        %v10516 = vshrl.u32 %v10224, 16
        %v10518 = vrot.slane %v10516, 4
        %v10519 = vor.u32 %v10518, %v10514
        %v10520 = vrot.slane %v10519, 4
        %v10522 = vshll.u32 %v10225, 16
        %v10524 = vrot.slane %v10522, 5
        %v10525 = vsel %vm1258, %v10520, %v10524
        %v10527 = vshrl.u32 %v10226, 16
        %v10529 = vrot.slane %v10527, 4
        %v10530 = vshll.u32 %v10226, 16
        %v10532 = vrot.slane %v10530, 5
        %v10533 = vor.u32 %v10529, %v10532
        %v10534 = vrot.slane %v10533, 4
        %v10536 = vshll.u32 %v10227, 16
        %v10538 = vrot.slane %v10536, 5
        %v10539 = vsel %vm1258, %v10534, %v10538
        %v10540 = vshrl.u32 %v10227, 16
        %v10542 = vrot.slane %v10540, 4
        %v10543 = vor.u32 %v10542, %v10538
        %v10544 = vrot.slane %v10543, 4
        %v10546 = vshll.u32 %v10228, 16
        %v10548 = vrot.slane %v10546, 5
        %v10549 = vsel %vm1258, %v10544, %v10548
        %v10551 = vshrl.u32 %v10229, 16
        %v10553 = vrot.slane %v10551, 4
        %v10554 = vshll.u32 %v10229, 16
        %v10556 = vrot.slane %v10554, 5
        %v10557 = vor.u32 %v10553, %v10556
        %v10558 = vrot.slane %v10557, 4
        %v10560 = vshll.u32 %v10230, 16
        %v10562 = vrot.slane %v10560, 5
        %v10563 = vsel %vm1258, %v10558, %v10562
        %v10564 = vshrl.u32 %v10230, 16
        %v10566 = vrot.slane %v10564, 4
        %v10567 = vor.u32 %v10566, %v10562
        %v10568 = vrot.slane %v10567, 4
        %v10570 = vshll.u32 %v10231, 16
        %v10572 = vrot.slane %v10570, 5
        %v10573 = vsel %vm1258, %v10568, %v10572
        %v10575 = vshrl.u32 %v10232, 16
        %v10577 = vrot.slane %v10575, 4
        %v10578 = vshll.u32 %v10232, 16
        %v10580 = vrot.slane %v10578, 5
        %v10581 = vor.u32 %v10577, %v10580
        %v10582 = vrot.slane %v10581, 4
        %v10584 = vshll.u32 %v10233, 16
        %v10586 = vrot.slane %v10584, 5
        %v10587 = vsel %vm1258, %v10582, %v10586
        %v10588 = vshrl.u32 %v10233, 16
        %v10590 = vrot.slane %v10588, 4
        %v10591 = vor.u32 %v10590, %v10586
        %v10592 = vrot.slane %v10591, 4
        %v10594 = vshll.u32 %v10234, 16
        %v10596 = vrot.slane %v10594, 5
        %v10597 = vsel %vm1258, %v10592, %v10596
        %v10599 = vshrl.u32 %v10235, 16
        %v10601 = vrot.slane %v10599, 4
        %v10602 = vshll.u32 %v10235, 16
        %v10604 = vrot.slane %v10602, 5
        %v10605 = vor.u32 %v10601, %v10604
        %v10606 = vrot.slane %v10605, 4
        %v10608 = vshll.u32 %v10236, 16
        %v10610 = vrot.slane %v10608, 5
        %v10611 = vsel %vm1258, %v10606, %v10610
        %v10612 = vshrl.u32 %v10236, 16
        %v10614 = vrot.slane %v10612, 4
        %v10615 = vor.u32 %v10614, %v10610
        %v10616 = vrot.slane %v10615, 4
        %v10618 = vshll.u32 %v10237, 16
        %v10620 = vrot.slane %v10618, 5
        %v10621 = vsel %vm1258, %v10616, %v10620
        %s10622 = scalar_lea.vmem [#allocation4], 448
        %v10623 = vld [vmem:[%s10622] sm:$0xf]
        %v10624 = vld [vmem:[%s10622 + $0x4] sm:$0xf]
        %v10625 = vld [vmem:[%s10622 + $0x8] sm:$0xf]
        %v10626 = vld [vmem:[%s10622 + $0xc] sm:$0xf]
        %v10627 = vld [vmem:[%s10622 + $0x10] sm:$0xf]
        %v10628 = vld [vmem:[%s10622 + $0x14] sm:$0xf]
        %v10629 = vld [vmem:[%s10622 + $0x18] sm:$0xf]
        %v10630 = vld [vmem:[%s10622 + $0x1c] sm:$0xf]
        %v10631 = vld [vmem:[%s10622 + $0x20] sm:$0xf]
        %v10632 = vld [vmem:[%s10622 + $0x24] sm:$0xf]
        %v10633 = vld [vmem:[%s10622 + $0x28] sm:$0xf]
        %v10634 = vld [vmem:[%s10622 + $0x2c] sm:$0xf]
        %v10635 = vld [vmem:[%s10622 + $0x30] sm:$0xf]
        %v10636 = vld [vmem:[%s10622 + $0x34] sm:$0xf]
        %v10637 = vld [vmem:[%s10622 + $0x38] sm:$0xf]
        %v10638 = vld [vmem:[%s10622 + $0x3c] sm:$0xf]
        %v10639 = vunpack.c.l.b16 %v10251
        %v10640 = vunpack.c.l.b16 %v10261
        %v10641 = vunpack.c.l.b16 %v10275
        %v10642 = vunpack.c.l.b16 %v10285
        %v10643 = vunpack.c.l.b16 %v10299
        %v10644 = vunpack.c.l.b16 %v10309
        %v10645 = vunpack.c.l.b16 %v10323
        %v10646 = vunpack.c.l.b16 %v10333
        %v10647 = vunpack.c.l.b16 %v10347
        %v10648 = vunpack.c.l.b16 %v10357
        %v10649 = vunpack.c.l.b16 %v10371
        %v10650 = vunpack.c.l.b16 %v10381
        %v10651 = vunpack.c.l.b16 %v10395
        %v10652 = vunpack.c.l.b16 %v10405
        %v10653 = vunpack.c.l.b16 %v10419
        %v10654 = vunpack.c.l.b16 %v10429
        %v10655 = vunpack.c.l.b16 %v10443
        %v10656 = vunpack.c.l.b16 %v10453
        %v10657 = vunpack.c.l.b16 %v10467
        %v10658 = vunpack.c.l.b16 %v10477
        %v10659 = vunpack.c.l.b16 %v10491
        %v10660 = vunpack.c.l.b16 %v10501
        %v10661 = vunpack.c.l.b16 %v10515
        %v10662 = vunpack.c.l.b16 %v10525
        %v10663 = vunpack.c.l.b16 %v10539
        %v10664 = vunpack.c.l.b16 %v10549
        %v10665 = vunpack.c.l.b16 %v10563
        %v10666 = vunpack.c.l.b16 %v10573
        %v10667 = vunpack.c.l.b16 %v10587
        %v10668 = vunpack.c.l.b16 %v10597
        %v10669 = vunpack.c.l.b16 %v10611
        %v10670 = vunpack.c.l.b16 %v10621
        %v10671 = vpack.c.b16 %v10640, %v10639
        %v10672 = vpack.c.b16 %v10642, %v10641
        %v10673 = vpack.c.b16 %v10644, %v10643
        %v10674 = vpack.c.b16 %v10646, %v10645
        %v10675 = vpack.c.b16 %v10648, %v10647
        %v10676 = vpack.c.b16 %v10650, %v10649
        %v10677 = vpack.c.b16 %v10652, %v10651
        %v10678 = vpack.c.b16 %v10654, %v10653
        %v10679 = vpack.c.b16 %v10656, %v10655
        %v10680 = vpack.c.b16 %v10658, %v10657
        %v10681 = vpack.c.b16 %v10660, %v10659
        %v10682 = vpack.c.b16 %v10662, %v10661
        %v10683 = vpack.c.b16 %v10664, %v10663
        %v10684 = vpack.c.b16 %v10666, %v10665
        %v10685 = vpack.c.b16 %v10668, %v10667
        %v10686 = vpack.c.b16 %v10670, %v10669
        %v10719 = vunpack.c.l.b16 %v10623
        %v10720 = vunpack.c.l.b16 %v10624
        %v10721 = vunpack.c.l.b16 %v10625
        %v10722 = vunpack.c.l.b16 %v10626
        %v10723 = vunpack.c.l.b16 %v10627
        %v10724 = vunpack.c.l.b16 %v10628
        %v10725 = vunpack.c.l.b16 %v10629
        %v10726 = vunpack.c.l.b16 %v10630
        %v10727 = vunpack.c.l.b16 %v10631
        %v10728 = vunpack.c.l.b16 %v10632
        %v10729 = vunpack.c.l.b16 %v10633
        %v10730 = vunpack.c.l.b16 %v10634
        %v10731 = vunpack.c.l.b16 %v10635
        %v10732 = vunpack.c.l.b16 %v10636
        %v10733 = vunpack.c.l.b16 %v10637
        %v10734 = vunpack.c.l.b16 %v10638
        %v10735 = vpack.c.b16 %v10720, %v10719
        %v10736 = vpack.c.b16 %v10722, %v10721
        %v10737 = vpack.c.b16 %v10724, %v10723
        %v10738 = vpack.c.b16 %v10726, %v10725
        %v10739 = vpack.c.b16 %v10728, %v10727
        %v10740 = vpack.c.b16 %v10730, %v10729
        %v10741 = vpack.c.b16 %v10732, %v10731
        %v10742 = vpack.c.b16 %v10734, %v10733
        %10751 = vmatprep.subr.bf16.mxu0 0
        %10752 = vmatpush1.bf16.msra.mxu0 %v10742
        %10753 = vmatprep.subr.bf16.mxu0 0
        %10754 = vmatpush1.bf16.msra.mxu0 %v10741
        %10755 = vmatprep.subr.bf16.mxu0 0
        %10756 = vmatpush1.bf16.msra.mxu0 %v10740
        %10757 = vmatprep.subr.bf16.mxu0 0
        %10758 = vmatpush1.bf16.msra.mxu0 %v10739
        %10759 = vmatprep.subr.bf16.mxu0 0
        %10760 = vmatpush1.bf16.msra.mxu0 %v10738
        %10761 = vmatprep.subr.bf16.mxu0 0
        %10762 = vmatpush1.bf16.msra.mxu0 %v10737
        %10763 = vmatprep.subr.bf16.mxu0 0
        %10764 = vmatpush1.bf16.msra.mxu0 %v10736
        %10765 = vmatprep.subr.bf16.mxu0 0
        %10766 = vmatpush1.bf16.msra.mxu0 %v10735
        %10767 = vmatprep.subr.bf16.mxu0 0
        %10768 = vmatpush2.bf16.msra.mxu0 0
        %10769 = vmatprep.subr.bf16.mxu0 0
        %10770 = vmatpush2.bf16.msra.mxu0 0
        %10771 = vmatprep.subr.bf16.mxu0 0
        %10772 = vmatpush2.bf16.msra.mxu0 0
        %10773 = vmatprep.subr.bf16.mxu0 0
        %10774 = vmatpush2.bf16.msra.mxu0 0
        %10775 = vmatprep.subr.bf16.mxu0 0
        %10776 = vmatpush2.bf16.msra.mxu0 0
        %10777 = vmatprep.subr.bf16.mxu0 0
        %10778 = vmatpush2.bf16.msra.mxu0 0
        %10779 = vmatprep.subr.bf16.mxu0 0
        %10780 = vmatpush2.bf16.msra.mxu0 0
        %10781 = vmatprep.subr.bf16.mxu0 0
        %10782 = vmatpush2.bf16.msra.mxu0 0
        %10783 = vmatprep.mubr.bf16.mxu0 0
        %10784 = vmatmul.mubr.bf16.gmra.mxu0 %v10671
        %v10785 = vpop.f32.mrf.mxu0
        %v10786 = vadd.f32 0.0, %v10785
        %v10787 = vpop.f32.mrf.mxu0
        %v10788 = vpop.f32.mrf.mxu0
        %v10789 = vadd.f32 0.0, %v10788
        %v10790 = vpop.f32.mrf.mxu0
        %10791 = vmatprep.mubr.bf16.mxu0 0
        %10792 = vmatmul.mubr.bf16.gmra.mxu0 %v10672
        %v10793 = vpop.f32.mrf.mxu0
        %v10794 = vadd.f32 0.0, %v10793
        %v10795 = vpop.f32.mrf.mxu0
        %v10796 = vpop.f32.mrf.mxu0
        %v10797 = vadd.f32 0.0, %v10796
        %v10798 = vpop.f32.mrf.mxu0
        %10799 = vmatprep.mubr.bf16.mxu0 0
        %10800 = vmatmul.mubr.bf16.gmra.mxu0 %v10673
        %v10801 = vpop.f32.mrf.mxu0
        %v10802 = vadd.f32 0.0, %v10801
        %v10803 = vpop.f32.mrf.mxu0
        %v10804 = vpop.f32.mrf.mxu0
        %v10805 = vadd.f32 0.0, %v10804
        %v10806 = vpop.f32.mrf.mxu0
        %10807 = vmatprep.mubr.bf16.mxu0 0
        %10808 = vmatmul.mubr.bf16.gmra.mxu0 %v10674
        %v10809 = vpop.f32.mrf.mxu0
        %v10810 = vadd.f32 0.0, %v10809
        %v10811 = vpop.f32.mrf.mxu0
        %v10812 = vpop.f32.mrf.mxu0
        %v10813 = vadd.f32 0.0, %v10812
        %v10814 = vpop.f32.mrf.mxu0
        %10815 = vmatprep.mubr.bf16.mxu0 0
        %10816 = vmatmul.mubr.bf16.gmra.mxu0 %v10675
        %v10817 = vpop.f32.mrf.mxu0
        %v10818 = vadd.f32 0.0, %v10817
        %v10819 = vpop.f32.mrf.mxu0
        %v10820 = vpop.f32.mrf.mxu0
        %v10821 = vadd.f32 0.0, %v10820
        %v10822 = vpop.f32.mrf.mxu0
        %10823 = vmatprep.mubr.bf16.mxu0 0
        %10824 = vmatmul.mubr.bf16.gmra.mxu0 %v10676
        %v10825 = vpop.f32.mrf.mxu0
        %v10826 = vadd.f32 0.0, %v10825
        %v10827 = vpop.f32.mrf.mxu0
        %v10828 = vpop.f32.mrf.mxu0
        %v10829 = vadd.f32 0.0, %v10828
        %v10830 = vpop.f32.mrf.mxu0
        %10831 = vmatprep.mubr.bf16.mxu0 0
        %10832 = vmatmul.mubr.bf16.gmra.mxu0 %v10677
        %v10833 = vpop.f32.mrf.mxu0
        %v10834 = vadd.f32 0.0, %v10833
        %v10835 = vpop.f32.mrf.mxu0
        %v10836 = vpop.f32.mrf.mxu0
        %v10837 = vadd.f32 0.0, %v10836
        %v10838 = vpop.f32.mrf.mxu0
        %10839 = vmatprep.mubr.bf16.mxu0 0
        %10840 = vmatmul.mubr.bf16.gmra.mxu0 %v10678
        %v10841 = vpop.f32.mrf.mxu0
        %v10842 = vadd.f32 0.0, %v10841
        %v10843 = vpop.f32.mrf.mxu0
        %v10844 = vpop.f32.mrf.mxu0
        %v10845 = vadd.f32 0.0, %v10844
        %v10846 = vpop.f32.mrf.mxu0
        %10847 = vmatprep.mubr.bf16.mxu0 0
        %10848 = vmatmul.mubr.bf16.gmra.mxu0 %v10679
        %v10849 = vpop.f32.mrf.mxu0
        %v10850 = vadd.f32 0.0, %v10849
        %v10851 = vpop.f32.mrf.mxu0
        %v10852 = vpop.f32.mrf.mxu0
        %v10853 = vadd.f32 0.0, %v10852
        %v10854 = vpop.f32.mrf.mxu0
        %10855 = vmatprep.mubr.bf16.mxu0 0
        %10856 = vmatmul.mubr.bf16.gmra.mxu0 %v10680
        %v10857 = vpop.f32.mrf.mxu0
        %v10858 = vadd.f32 0.0, %v10857
        %v10859 = vpop.f32.mrf.mxu0
        %v10860 = vpop.f32.mrf.mxu0
        %v10861 = vadd.f32 0.0, %v10860
        %v10862 = vpop.f32.mrf.mxu0
        %10863 = vmatprep.mubr.bf16.mxu0 0
        %10864 = vmatmul.mubr.bf16.gmra.mxu0 %v10681
        %v10865 = vpop.f32.mrf.mxu0
        %v10866 = vadd.f32 0.0, %v10865
        %v10867 = vpop.f32.mrf.mxu0
        %v10868 = vpop.f32.mrf.mxu0
        %v10869 = vadd.f32 0.0, %v10868
        %v10870 = vpop.f32.mrf.mxu0
        %10871 = vmatprep.mubr.bf16.mxu0 0
        %10872 = vmatmul.mubr.bf16.gmra.mxu0 %v10682
        %v10873 = vpop.f32.mrf.mxu0
        %v10874 = vadd.f32 0.0, %v10873
        %v10875 = vpop.f32.mrf.mxu0
        %v10876 = vpop.f32.mrf.mxu0
        %v10877 = vadd.f32 0.0, %v10876
        %v10878 = vpop.f32.mrf.mxu0
        %10879 = vmatprep.mubr.bf16.mxu0 0
        %10880 = vmatmul.mubr.bf16.gmra.mxu0 %v10683
        %v10881 = vpop.f32.mrf.mxu0
        %v10882 = vadd.f32 0.0, %v10881
        %v10883 = vpop.f32.mrf.mxu0
        %v10884 = vpop.f32.mrf.mxu0
        %v10885 = vadd.f32 0.0, %v10884
        %v10886 = vpop.f32.mrf.mxu0
        %10887 = vmatprep.mubr.bf16.mxu0 0
        %10888 = vmatmul.mubr.bf16.gmra.mxu0 %v10684
        %v10889 = vpop.f32.mrf.mxu0
        %v10890 = vadd.f32 0.0, %v10889
        %v10891 = vpop.f32.mrf.mxu0
        %v10892 = vpop.f32.mrf.mxu0
        %v10893 = vadd.f32 0.0, %v10892
        %v10894 = vpop.f32.mrf.mxu0
        %10895 = vmatprep.mubr.bf16.mxu0 0
        %10896 = vmatmul.mubr.bf16.gmra.mxu0 %v10685
        %v10897 = vpop.f32.mrf.mxu0
        %v10898 = vadd.f32 0.0, %v10897
        %v10899 = vpop.f32.mrf.mxu0
        %v10900 = vpop.f32.mrf.mxu0
        %v10901 = vadd.f32 0.0, %v10900
        %v10902 = vpop.f32.mrf.mxu0
        %10903 = vmatprep.mubr.bf16.mxu0 0
        %10904 = vmatmul.mubr.bf16.gmra.mxu0 %v10686
        %v10905 = vpop.f32.mrf.mxu0
        %v10906 = vadd.f32 0.0, %v10905
        %v10907 = vpop.f32.mrf.mxu0
        %v10908 = vpop.f32.mrf.mxu0
        %v10909 = vadd.f32 0.0, %v10908
        %v10910 = vpop.f32.mrf.mxu0
        %10911 = vdwg.mxu0
        %v10912 = vadd.f32 %v10158, %v10786
        %v10913 = vadd.f32 %v10159, %v10789
        %v10914 = vadd.f32 %v10160, %v10794
        %v10915 = vadd.f32 %v10161, %v10797
        %v10916 = vadd.f32 %v10162, %v10802
        %v10917 = vadd.f32 %v10163, %v10805
        %v10918 = vadd.f32 %v10164, %v10810
        %v10919 = vadd.f32 %v10165, %v10813
        %v10920 = vadd.f32 %v10166, %v10818
        %v10921 = vadd.f32 %v10167, %v10821
        %v10922 = vadd.f32 %v10168, %v10826
        %v10923 = vadd.f32 %v10169, %v10829
        %v10924 = vadd.f32 %v10170, %v10834
        %v10925 = vadd.f32 %v10171, %v10837
        %v10926 = vadd.f32 %v10172, %v10842
        %v10927 = vadd.f32 %v10173, %v10845
        %v10928 = vadd.f32 %v10174, %v10850
        %v10929 = vadd.f32 %v10175, %v10853
        %v10930 = vadd.f32 %v10176, %v10858
        %v10931 = vadd.f32 %v10177, %v10861
        %v10932 = vadd.f32 %v10178, %v10866
        %v10933 = vadd.f32 %v10179, %v10869
        %v10934 = vadd.f32 %v10180, %v10874
        %v10935 = vadd.f32 %v10181, %v10877
        %v10936 = vadd.f32 %v10182, %v10882
        %v10937 = vadd.f32 %v10183, %v10885
        %v10938 = vadd.f32 %v10184, %v10890
        %v10939 = vadd.f32 %v10185, %v10893
        %v10940 = vadd.f32 %v10186, %v10898
        %v10941 = vadd.f32 %v10187, %v10901
        %v10942 = vadd.f32 %v10188, %v10906
        %v10943 = vadd.f32 %v10189, %v10909
        %v10944 = vld [vmem:[%s9803] sm:$0xe]
        %v10945 = vld [vmem:[%s9803 + $0xc] sm:$0xe]
        %v10946 = vld [vmem:[%s9803 + $0x18] sm:$0xe]
        %v10947 = vld [vmem:[%s9803 + $0x24] sm:$0xe]
        %v10948 = vld [vmem:[%s9803 + $0x30] sm:$0xe]
        %v10949 = vld [vmem:[%s9803 + $0x3c] sm:$0xe]
        %v10950 = vld [vmem:[%s9803 + $0x48] sm:$0xe]
        %v10951 = vld [vmem:[%s9803 + $0x54] sm:$0xe]
        %v10952 = vld [vmem:[%s9803 + $0x60] sm:$0xe]
        %v10953 = vld [vmem:[%s9803 + $0x6c] sm:$0xe]
        %v10954 = vld [vmem:[%s9803 + $0x78] sm:$0xe]
        %v10955 = vld [vmem:[%s9803 + $0x84] sm:$0xe]
        %v10956 = vld [vmem:[%s9803 + $0x90] sm:$0xe]
        %v10957 = vld [vmem:[%s9803 + $0x9c] sm:$0xe]
        %v10958 = vld [vmem:[%s9803 + $0xa8] sm:$0xe]
        %v10959 = vld [vmem:[%s9803 + $0xb4] sm:$0xe]
        %v11008 = vrot.slane %v10944, 5
        %v11009 = vrot.slane %v11008, 4
        %v11010 = vrot.slane %v10191, 5
        %v11011 = vsel %vm2288, %v11009, %v11010
        %v11012 = vrot.slane %v11010, 4
        %v11013 = vrot.slane %v10192, 5
        %v11014 = vsel %vm2288, %v11012, %v11013
        %v11015 = vrot.slane %v10945, 5
        %v11016 = vrot.slane %v11015, 4
        %v11017 = vrot.slane %v10194, 5
        %v11018 = vsel %vm2288, %v11016, %v11017
        %v11019 = vrot.slane %v11017, 4
        %v11020 = vrot.slane %v10195, 5
        %v11021 = vsel %vm2288, %v11019, %v11020
        %v11022 = vrot.slane %v10946, 5
        %v11023 = vrot.slane %v11022, 4
        %v11024 = vrot.slane %v10197, 5
        %v11025 = vsel %vm2288, %v11023, %v11024
        %v11026 = vrot.slane %v11024, 4
        %v11027 = vrot.slane %v10198, 5
        %v11028 = vsel %vm2288, %v11026, %v11027
        %v11029 = vrot.slane %v10947, 5
        %v11030 = vrot.slane %v11029, 4
        %v11031 = vrot.slane %v10200, 5
        %v11032 = vsel %vm2288, %v11030, %v11031
        %v11033 = vrot.slane %v11031, 4
        %v11034 = vrot.slane %v10201, 5
        %v11035 = vsel %vm2288, %v11033, %v11034
        %v11036 = vrot.slane %v10948, 5
        %v11037 = vrot.slane %v11036, 4
        %v11038 = vrot.slane %v10203, 5
        %v11039 = vsel %vm2288, %v11037, %v11038
        %v11040 = vrot.slane %v11038, 4
        %v11041 = vrot.slane %v10204, 5
        %v11042 = vsel %vm2288, %v11040, %v11041
        %v11043 = vrot.slane %v10949, 5
        %v11044 = vrot.slane %v11043, 4
        %v11045 = vrot.slane %v10206, 5
        %v11046 = vsel %vm2288, %v11044, %v11045
        %v11047 = vrot.slane %v11045, 4
        %v11048 = vrot.slane %v10207, 5
        %v11049 = vsel %vm2288, %v11047, %v11048
        %v11050 = vrot.slane %v10950, 5
        %v11051 = vrot.slane %v11050, 4
        %v11052 = vrot.slane %v10209, 5
        %v11053 = vsel %vm2288, %v11051, %v11052
        %v11054 = vrot.slane %v11052, 4
        %v11055 = vrot.slane %v10210, 5
        %v11056 = vsel %vm2288, %v11054, %v11055
        %v11057 = vrot.slane %v10951, 5
        %v11058 = vrot.slane %v11057, 4
        %v11059 = vrot.slane %v10212, 5
        %v11060 = vsel %vm2288, %v11058, %v11059
        %v11061 = vrot.slane %v11059, 4
        %v11062 = vrot.slane %v10213, 5
        %v11063 = vsel %vm2288, %v11061, %v11062
        %v11064 = vrot.slane %v10952, 5
        %v11065 = vrot.slane %v11064, 4
        %v11066 = vrot.slane %v10215, 5
        %v11067 = vsel %vm2288, %v11065, %v11066
        %v11068 = vrot.slane %v11066, 4
        %v11069 = vrot.slane %v10216, 5
        %v11070 = vsel %vm2288, %v11068, %v11069
        %v11071 = vrot.slane %v10953, 5
        %v11072 = vrot.slane %v11071, 4
        %v11073 = vrot.slane %v10218, 5
        %v11074 = vsel %vm2288, %v11072, %v11073
        %v11075 = vrot.slane %v11073, 4
        %v11076 = vrot.slane %v10219, 5
        %v11077 = vsel %vm2288, %v11075, %v11076
        %v11078 = vrot.slane %v10954, 5
        %v11079 = vrot.slane %v11078, 4
        %v11080 = vrot.slane %v10221, 5
        %v11081 = vsel %vm2288, %v11079, %v11080
        %v11082 = vrot.slane %v11080, 4
        %v11083 = vrot.slane %v10222, 5
        %v11084 = vsel %vm2288, %v11082, %v11083
        %v11085 = vrot.slane %v10955, 5
        %v11086 = vrot.slane %v11085, 4
        %v11087 = vrot.slane %v10224, 5
        %v11088 = vsel %vm2288, %v11086, %v11087
        %v11089 = vrot.slane %v11087, 4
        %v11090 = vrot.slane %v10225, 5
        %v11091 = vsel %vm2288, %v11089, %v11090
        %v11092 = vrot.slane %v10956, 5
        %v11093 = vrot.slane %v11092, 4
        %v11094 = vrot.slane %v10227, 5
        %v11095 = vsel %vm2288, %v11093, %v11094
        %v11096 = vrot.slane %v11094, 4
        %v11097 = vrot.slane %v10228, 5
        %v11098 = vsel %vm2288, %v11096, %v11097
        %v11099 = vrot.slane %v10957, 5
        %v11100 = vrot.slane %v11099, 4
        %v11101 = vrot.slane %v10230, 5
        %v11102 = vsel %vm2288, %v11100, %v11101
        %v11103 = vrot.slane %v11101, 4
        %v11104 = vrot.slane %v10231, 5
        %v11105 = vsel %vm2288, %v11103, %v11104
        %v11106 = vrot.slane %v10958, 5
        %v11107 = vrot.slane %v11106, 4
        %v11108 = vrot.slane %v10233, 5
        %v11109 = vsel %vm2288, %v11107, %v11108
        %v11110 = vrot.slane %v11108, 4
        %v11111 = vrot.slane %v10234, 5
        %v11112 = vsel %vm2288, %v11110, %v11111
        %v11113 = vrot.slane %v10959, 5
        %v11114 = vrot.slane %v11113, 4
        %v11115 = vrot.slane %v10236, 5
        %v11116 = vsel %vm2288, %v11114, %v11115
        %v11117 = vrot.slane %v11115, 4
        %v11118 = vrot.slane %v10237, 5
        %v11119 = vsel %vm2288, %v11117, %v11118
        %s11120 = scalar_lea.vmem [#allocation4], 512
        %v11121 = vld [vmem:[%s11120] sm:$0xf]
        %v11122 = vld [vmem:[%s11120 + $0x4] sm:$0xf]
        %v11123 = vld [vmem:[%s11120 + $0x8] sm:$0xf]
        %v11124 = vld [vmem:[%s11120 + $0xc] sm:$0xf]
        %v11125 = vld [vmem:[%s11120 + $0x10] sm:$0xf]
        %v11126 = vld [vmem:[%s11120 + $0x14] sm:$0xf]
        %v11127 = vld [vmem:[%s11120 + $0x18] sm:$0xf]
        %v11128 = vld [vmem:[%s11120 + $0x1c] sm:$0xf]
        %v11129 = vld [vmem:[%s11120 + $0x20] sm:$0xf]
        %v11130 = vld [vmem:[%s11120 + $0x24] sm:$0xf]
        %v11131 = vld [vmem:[%s11120 + $0x28] sm:$0xf]
        %v11132 = vld [vmem:[%s11120 + $0x2c] sm:$0xf]
        %v11133 = vld [vmem:[%s11120 + $0x30] sm:$0xf]
        %v11134 = vld [vmem:[%s11120 + $0x34] sm:$0xf]
        %v11135 = vld [vmem:[%s11120 + $0x38] sm:$0xf]
        %v11136 = vld [vmem:[%s11120 + $0x3c] sm:$0xf]
        %v11137 = vunpack.c.l.b16 %v11011
        %v11138 = vunpack.c.l.b16 %v11014
        %v11139 = vunpack.c.l.b16 %v11018
        %v11140 = vunpack.c.l.b16 %v11021
        %v11141 = vunpack.c.l.b16 %v11025
        %v11142 = vunpack.c.l.b16 %v11028
        %v11143 = vunpack.c.l.b16 %v11032
        %v11144 = vunpack.c.l.b16 %v11035
        %v11145 = vunpack.c.l.b16 %v11039
        %v11146 = vunpack.c.l.b16 %v11042
        %v11147 = vunpack.c.l.b16 %v11046
        %v11148 = vunpack.c.l.b16 %v11049
        %v11149 = vunpack.c.l.b16 %v11053
        %v11150 = vunpack.c.l.b16 %v11056
        %v11151 = vunpack.c.l.b16 %v11060
        %v11152 = vunpack.c.l.b16 %v11063
        %v11153 = vunpack.c.l.b16 %v11067
        %v11154 = vunpack.c.l.b16 %v11070
        %v11155 = vunpack.c.l.b16 %v11074
        %v11156 = vunpack.c.l.b16 %v11077
        %v11157 = vunpack.c.l.b16 %v11081
        %v11158 = vunpack.c.l.b16 %v11084
        %v11159 = vunpack.c.l.b16 %v11088
        %v11160 = vunpack.c.l.b16 %v11091
        %v11161 = vunpack.c.l.b16 %v11095
        %v11162 = vunpack.c.l.b16 %v11098
        %v11163 = vunpack.c.l.b16 %v11102
        %v11164 = vunpack.c.l.b16 %v11105
        %v11165 = vunpack.c.l.b16 %v11109
        %v11166 = vunpack.c.l.b16 %v11112
        %v11167 = vunpack.c.l.b16 %v11116
        %v11168 = vunpack.c.l.b16 %v11119
        %v11169 = vpack.c.b16 %v11138, %v11137
        %v11170 = vpack.c.b16 %v11140, %v11139
        %v11171 = vpack.c.b16 %v11142, %v11141
        %v11172 = vpack.c.b16 %v11144, %v11143
        %v11173 = vpack.c.b16 %v11146, %v11145
        %v11174 = vpack.c.b16 %v11148, %v11147
        %v11175 = vpack.c.b16 %v11150, %v11149
        %v11176 = vpack.c.b16 %v11152, %v11151
        %v11177 = vpack.c.b16 %v11154, %v11153
        %v11178 = vpack.c.b16 %v11156, %v11155
        %v11179 = vpack.c.b16 %v11158, %v11157
        %v11180 = vpack.c.b16 %v11160, %v11159
        %v11181 = vpack.c.b16 %v11162, %v11161
        %v11182 = vpack.c.b16 %v11164, %v11163
        %v11183 = vpack.c.b16 %v11166, %v11165
        %v11184 = vpack.c.b16 %v11168, %v11167
        %v11217 = vunpack.c.l.b16 %v11121
        %v11218 = vunpack.c.l.b16 %v11122
        %v11219 = vunpack.c.l.b16 %v11123
        %v11220 = vunpack.c.l.b16 %v11124
        %v11221 = vunpack.c.l.b16 %v11125
        %v11222 = vunpack.c.l.b16 %v11126
        %v11223 = vunpack.c.l.b16 %v11127
        %v11224 = vunpack.c.l.b16 %v11128
        %v11225 = vunpack.c.l.b16 %v11129
        %v11226 = vunpack.c.l.b16 %v11130
        %v11227 = vunpack.c.l.b16 %v11131
        %v11228 = vunpack.c.l.b16 %v11132
        %v11229 = vunpack.c.l.b16 %v11133
        %v11230 = vunpack.c.l.b16 %v11134
        %v11231 = vunpack.c.l.b16 %v11135
        %v11232 = vunpack.c.l.b16 %v11136
        %v11233 = vpack.c.b16 %v11218, %v11217
        %v11234 = vpack.c.b16 %v11220, %v11219
        %v11235 = vpack.c.b16 %v11222, %v11221
        %v11236 = vpack.c.b16 %v11224, %v11223
        %v11237 = vpack.c.b16 %v11226, %v11225
        %v11238 = vpack.c.b16 %v11228, %v11227
        %v11239 = vpack.c.b16 %v11230, %v11229
        %v11240 = vpack.c.b16 %v11232, %v11231
        %11249 = vmatprep.subr.bf16.mxu0 0
        %11250 = vmatpush1.bf16.msra.mxu0 %v11240
        %11251 = vmatprep.subr.bf16.mxu0 0
        %11252 = vmatpush1.bf16.msra.mxu0 %v11239
        %11253 = vmatprep.subr.bf16.mxu0 0
        %11254 = vmatpush1.bf16.msra.mxu0 %v11238
        %11255 = vmatprep.subr.bf16.mxu0 0
        %11256 = vmatpush1.bf16.msra.mxu0 %v11237
        %11257 = vmatprep.subr.bf16.mxu0 0
        %11258 = vmatpush1.bf16.msra.mxu0 %v11236
        %11259 = vmatprep.subr.bf16.mxu0 0
        %11260 = vmatpush1.bf16.msra.mxu0 %v11235
        %11261 = vmatprep.subr.bf16.mxu0 0
        %11262 = vmatpush1.bf16.msra.mxu0 %v11234
        %11263 = vmatprep.subr.bf16.mxu0 0
        %11264 = vmatpush1.bf16.msra.mxu0 %v11233
        %11265 = vmatprep.subr.bf16.mxu0 0
        %11266 = vmatpush2.bf16.msra.mxu0 0
        %11267 = vmatprep.subr.bf16.mxu0 0
        %11268 = vmatpush2.bf16.msra.mxu0 0
        %11269 = vmatprep.subr.bf16.mxu0 0
        %11270 = vmatpush2.bf16.msra.mxu0 0
        %11271 = vmatprep.subr.bf16.mxu0 0
        %11272 = vmatpush2.bf16.msra.mxu0 0
        %11273 = vmatprep.subr.bf16.mxu0 0
        %11274 = vmatpush2.bf16.msra.mxu0 0
        %11275 = vmatprep.subr.bf16.mxu0 0
        %11276 = vmatpush2.bf16.msra.mxu0 0
        %11277 = vmatprep.subr.bf16.mxu0 0
        %11278 = vmatpush2.bf16.msra.mxu0 0
        %11279 = vmatprep.subr.bf16.mxu0 0
        %11280 = vmatpush2.bf16.msra.mxu0 0
        %11281 = vmatprep.mubr.bf16.mxu0 0
        %11282 = vmatmul.mubr.bf16.gmra.mxu0 %v11169
        %v11283 = vpop.f32.mrf.mxu0
        %v11284 = vadd.f32 0.0, %v11283
        %v11285 = vpop.f32.mrf.mxu0
        %v11286 = vpop.f32.mrf.mxu0
        %v11287 = vadd.f32 0.0, %v11286
        %v11288 = vpop.f32.mrf.mxu0
        %11289 = vmatprep.mubr.bf16.mxu0 0
        %11290 = vmatmul.mubr.bf16.gmra.mxu0 %v11170
        %v11291 = vpop.f32.mrf.mxu0
        %v11292 = vadd.f32 0.0, %v11291
        %v11293 = vpop.f32.mrf.mxu0
        %v11294 = vpop.f32.mrf.mxu0
        %v11295 = vadd.f32 0.0, %v11294
        %v11296 = vpop.f32.mrf.mxu0
        %11297 = vmatprep.mubr.bf16.mxu0 0
        %11298 = vmatmul.mubr.bf16.gmra.mxu0 %v11171
        %v11299 = vpop.f32.mrf.mxu0
        %v11300 = vadd.f32 0.0, %v11299
        %v11301 = vpop.f32.mrf.mxu0
        %v11302 = vpop.f32.mrf.mxu0
        %v11303 = vadd.f32 0.0, %v11302
        %v11304 = vpop.f32.mrf.mxu0
        %11305 = vmatprep.mubr.bf16.mxu0 0
        %11306 = vmatmul.mubr.bf16.gmra.mxu0 %v11172
        %v11307 = vpop.f32.mrf.mxu0
        %v11308 = vadd.f32 0.0, %v11307
        %v11309 = vpop.f32.mrf.mxu0
        %v11310 = vpop.f32.mrf.mxu0
        %v11311 = vadd.f32 0.0, %v11310
        %v11312 = vpop.f32.mrf.mxu0
        %11313 = vmatprep.mubr.bf16.mxu0 0
        %11314 = vmatmul.mubr.bf16.gmra.mxu0 %v11173
        %v11315 = vpop.f32.mrf.mxu0
        %v11316 = vadd.f32 0.0, %v11315
        %v11317 = vpop.f32.mrf.mxu0
        %v11318 = vpop.f32.mrf.mxu0
        %v11319 = vadd.f32 0.0, %v11318
        %v11320 = vpop.f32.mrf.mxu0
        %11321 = vmatprep.mubr.bf16.mxu0 0
        %11322 = vmatmul.mubr.bf16.gmra.mxu0 %v11174
        %v11323 = vpop.f32.mrf.mxu0
        %v11324 = vadd.f32 0.0, %v11323
        %v11325 = vpop.f32.mrf.mxu0
        %v11326 = vpop.f32.mrf.mxu0
        %v11327 = vadd.f32 0.0, %v11326
        %v11328 = vpop.f32.mrf.mxu0
        %11329 = vmatprep.mubr.bf16.mxu0 0
        %11330 = vmatmul.mubr.bf16.gmra.mxu0 %v11175
        %v11331 = vpop.f32.mrf.mxu0
        %v11332 = vadd.f32 0.0, %v11331
        %v11333 = vpop.f32.mrf.mxu0
        %v11334 = vpop.f32.mrf.mxu0
        %v11335 = vadd.f32 0.0, %v11334
        %v11336 = vpop.f32.mrf.mxu0
        %11337 = vmatprep.mubr.bf16.mxu0 0
        %11338 = vmatmul.mubr.bf16.gmra.mxu0 %v11176
        %v11339 = vpop.f32.mrf.mxu0
        %v11340 = vadd.f32 0.0, %v11339
        %v11341 = vpop.f32.mrf.mxu0
        %v11342 = vpop.f32.mrf.mxu0
        %v11343 = vadd.f32 0.0, %v11342
        %v11344 = vpop.f32.mrf.mxu0
        %11345 = vmatprep.mubr.bf16.mxu0 0
        %11346 = vmatmul.mubr.bf16.gmra.mxu0 %v11177
        %v11347 = vpop.f32.mrf.mxu0
        %v11348 = vadd.f32 0.0, %v11347
        %v11349 = vpop.f32.mrf.mxu0
        %v11350 = vpop.f32.mrf.mxu0
        %v11351 = vadd.f32 0.0, %v11350
        %v11352 = vpop.f32.mrf.mxu0
        %11353 = vmatprep.mubr.bf16.mxu0 0
        %11354 = vmatmul.mubr.bf16.gmra.mxu0 %v11178
        %v11355 = vpop.f32.mrf.mxu0
        %v11356 = vadd.f32 0.0, %v11355
        %v11357 = vpop.f32.mrf.mxu0
        %v11358 = vpop.f32.mrf.mxu0
        %v11359 = vadd.f32 0.0, %v11358
        %v11360 = vpop.f32.mrf.mxu0
        %11361 = vmatprep.mubr.bf16.mxu0 0
        %11362 = vmatmul.mubr.bf16.gmra.mxu0 %v11179
        %v11363 = vpop.f32.mrf.mxu0
        %v11364 = vadd.f32 0.0, %v11363
        %v11365 = vpop.f32.mrf.mxu0
        %v11366 = vpop.f32.mrf.mxu0
        %v11367 = vadd.f32 0.0, %v11366
        %v11368 = vpop.f32.mrf.mxu0
        %11369 = vmatprep.mubr.bf16.mxu0 0
        %11370 = vmatmul.mubr.bf16.gmra.mxu0 %v11180
        %v11371 = vpop.f32.mrf.mxu0
        %v11372 = vadd.f32 0.0, %v11371
        %v11373 = vpop.f32.mrf.mxu0
        %v11374 = vpop.f32.mrf.mxu0
        %v11375 = vadd.f32 0.0, %v11374
        %v11376 = vpop.f32.mrf.mxu0
        %11377 = vmatprep.mubr.bf16.mxu0 0
        %11378 = vmatmul.mubr.bf16.gmra.mxu0 %v11181
        %v11379 = vpop.f32.mrf.mxu0
        %v11380 = vadd.f32 0.0, %v11379
        %v11381 = vpop.f32.mrf.mxu0
        %v11382 = vpop.f32.mrf.mxu0
        %v11383 = vadd.f32 0.0, %v11382
        %v11384 = vpop.f32.mrf.mxu0
        %11385 = vmatprep.mubr.bf16.mxu0 0
        %11386 = vmatmul.mubr.bf16.gmra.mxu0 %v11182
        %v11387 = vpop.f32.mrf.mxu0
        %v11388 = vadd.f32 0.0, %v11387
        %v11389 = vpop.f32.mrf.mxu0
        %v11390 = vpop.f32.mrf.mxu0
        %v11391 = vadd.f32 0.0, %v11390
        %v11392 = vpop.f32.mrf.mxu0
        %11393 = vmatprep.mubr.bf16.mxu0 0
        %11394 = vmatmul.mubr.bf16.gmra.mxu0 %v11183
        %v11395 = vpop.f32.mrf.mxu0
        %v11396 = vadd.f32 0.0, %v11395
        %v11397 = vpop.f32.mrf.mxu0
        %v11398 = vpop.f32.mrf.mxu0
        %v11399 = vadd.f32 0.0, %v11398
        %v11400 = vpop.f32.mrf.mxu0
        %11401 = vmatprep.mubr.bf16.mxu0 0
        %11402 = vmatmul.mubr.bf16.gmra.mxu0 %v11184
        %v11403 = vpop.f32.mrf.mxu0
        %v11404 = vadd.f32 0.0, %v11403
        %v11405 = vpop.f32.mrf.mxu0
        %v11406 = vpop.f32.mrf.mxu0
        %v11407 = vadd.f32 0.0, %v11406
        %v11408 = vpop.f32.mrf.mxu0
        %11409 = vdwg.mxu0
        %v11410 = vadd.f32 %v10912, %v11284
        %v11411 = vadd.f32 %v10913, %v11287
        %v11412 = vadd.f32 %v10914, %v11292
        %v11413 = vadd.f32 %v10915, %v11295
        %v11414 = vadd.f32 %v10916, %v11300
        %v11415 = vadd.f32 %v10917, %v11303
        %v11416 = vadd.f32 %v10918, %v11308
        %v11417 = vadd.f32 %v10919, %v11311
        %v11418 = vadd.f32 %v10920, %v11316
        %v11419 = vadd.f32 %v10921, %v11319
        %v11420 = vadd.f32 %v10922, %v11324
        %v11421 = vadd.f32 %v10923, %v11327
        %v11422 = vadd.f32 %v10924, %v11332
        %v11423 = vadd.f32 %v10925, %v11335
        %v11424 = vadd.f32 %v10926, %v11340
        %v11425 = vadd.f32 %v10927, %v11343
        %v11426 = vadd.f32 %v10928, %v11348
        %v11427 = vadd.f32 %v10929, %v11351
        %v11428 = vadd.f32 %v10930, %v11356
        %v11429 = vadd.f32 %v10931, %v11359
        %v11430 = vadd.f32 %v10932, %v11364
        %v11431 = vadd.f32 %v10933, %v11367
        %v11432 = vadd.f32 %v10934, %v11372
        %v11433 = vadd.f32 %v10935, %v11375
        %v11434 = vadd.f32 %v10936, %v11380
        %v11435 = vadd.f32 %v10937, %v11383
        %v11436 = vadd.f32 %v10938, %v11388
        %v11437 = vadd.f32 %v10939, %v11391
        %v11438 = vadd.f32 %v10940, %v11396
        %v11439 = vadd.f32 %v10941, %v11399
        %v11440 = vadd.f32 %v10942, %v11404
        %v11441 = vadd.f32 %v10943, %v11407
        %v11442 = vld [vmem:[%s5] sm:$0x1]
        %v11444 = vlaneseq
        %v11445 = vshrl.u32 %v11444, 7
        %v11446 = vsub.s32 0, %v11445
        %v11447 = vrot.slane %v11442, %v11446
        %v11449 = vmul.f32 %v11410, %v11447
        %v11450 = vmul.f32 %v11411, %v11447
        %v11451 = vmul.f32 %v11412, %v11447
        %v11452 = vmul.f32 %v11413, %v11447
        %v11453 = vmul.f32 %v11414, %v11447
        %v11454 = vmul.f32 %v11415, %v11447
        %v11455 = vmul.f32 %v11416, %v11447
        %v11456 = vmul.f32 %v11417, %v11447
        %v11457 = vmul.f32 %v11418, %v11447
        %v11458 = vmul.f32 %v11419, %v11447
        %v11459 = vmul.f32 %v11420, %v11447
        %v11460 = vmul.f32 %v11421, %v11447
        %v11461 = vmul.f32 %v11422, %v11447
        %v11462 = vmul.f32 %v11423, %v11447
        %v11463 = vmul.f32 %v11424, %v11447
        %v11464 = vmul.f32 %v11425, %v11447
        %v11465 = vmul.f32 %v11426, %v11447
        %v11466 = vmul.f32 %v11427, %v11447
        %v11467 = vmul.f32 %v11428, %v11447
        %v11468 = vmul.f32 %v11429, %v11447
        %v11469 = vmul.f32 %v11430, %v11447
        %v11470 = vmul.f32 %v11431, %v11447
        %v11471 = vmul.f32 %v11432, %v11447
        %v11472 = vmul.f32 %v11433, %v11447
        %v11473 = vmul.f32 %v11434, %v11447
        %v11474 = vmul.f32 %v11435, %v11447
        %v11475 = vmul.f32 %v11436, %v11447
        %v11476 = vmul.f32 %v11437, %v11447
        %v11477 = vmul.f32 %v11438, %v11447
        %v11478 = vmul.f32 %v11439, %v11447
        %v11479 = vmul.f32 %v11440, %v11447
        %v11480 = vmul.f32 %v11441, %v11447
        %v11481 = vld [vmem:[%s6] sm:$0x1]
        %v11483 = vlaneseq
        %v11484 = vshrl.u32 %v11483, 7
        %v11485 = vsub.s32 0, %v11484
        %v11486 = vrot.slane %v11481, %v11485
        %v11488 = vadd.f32 %v11449, %v11486
        %v11489 = vadd.f32 %v11450, %v11486
        %v11490 = vadd.f32 %v11451, %v11486
        %v11491 = vadd.f32 %v11452, %v11486
        %v11492 = vadd.f32 %v11453, %v11486
        %v11493 = vadd.f32 %v11454, %v11486
        %v11494 = vadd.f32 %v11455, %v11486
        %v11495 = vadd.f32 %v11456, %v11486
        %v11496 = vadd.f32 %v11457, %v11486
        %v11497 = vadd.f32 %v11458, %v11486
        %v11498 = vadd.f32 %v11459, %v11486
        %v11499 = vadd.f32 %v11460, %v11486
        %v11500 = vadd.f32 %v11461, %v11486
        %v11501 = vadd.f32 %v11462, %v11486
        %v11502 = vadd.f32 %v11463, %v11486
        %v11503 = vadd.f32 %v11464, %v11486
        %v11504 = vadd.f32 %v11465, %v11486
        %v11505 = vadd.f32 %v11466, %v11486
        %v11506 = vadd.f32 %v11467, %v11486
        %v11507 = vadd.f32 %v11468, %v11486
        %v11508 = vadd.f32 %v11469, %v11486
        %v11509 = vadd.f32 %v11470, %v11486
        %v11510 = vadd.f32 %v11471, %v11486
        %v11511 = vadd.f32 %v11472, %v11486
        %v11512 = vadd.f32 %v11473, %v11486
        %v11513 = vadd.f32 %v11474, %v11486
        %v11514 = vadd.f32 %v11475, %v11486
        %v11515 = vadd.f32 %v11476, %v11486
        %v11516 = vadd.f32 %v11477, %v11486
        %v11517 = vadd.f32 %v11478, %v11486
        %v11518 = vadd.f32 %v11479, %v11486
        %v11519 = vadd.f32 %v11480, %v11486
        %v11520 = vld [vmem:[%s288] sm:$0xff]
        %v11521 = vld [vmem:[%s288 + $0x8] sm:$0xff]
        %v11522 = vld [vmem:[%s288 + $0x10] sm:$0xff]
        %v11523 = vld [vmem:[%s288 + $0x18] sm:$0xff]
        %v11524 = vld [vmem:[%s288 + $0x20] sm:$0xff]
        %v11525 = vld [vmem:[%s288 + $0x28] sm:$0xff]
        %v11526 = vld [vmem:[%s288 + $0x30] sm:$0xff]
        %v11527 = vld [vmem:[%s288 + $0x38] sm:$0xff]
        %v11528 = vld [vmem:[%s288 + $0x40] sm:$0xff]
        %v11529 = vld [vmem:[%s288 + $0x48] sm:$0xff]
        %v11530 = vld [vmem:[%s288 + $0x50] sm:$0xff]
        %v11531 = vld [vmem:[%s288 + $0x58] sm:$0xff]
        %v11532 = vld [vmem:[%s288 + $0x60] sm:$0xff]
        %v11533 = vld [vmem:[%s288 + $0x68] sm:$0xff]
        %v11534 = vld [vmem:[%s288 + $0x70] sm:$0xff]
        %v11535 = vld [vmem:[%s288 + $0x78] sm:$0xff]
        %v11536 = vld [vmem:[%s288 + $0x80] sm:$0xff]
        %v11537 = vld [vmem:[%s288 + $0x88] sm:$0xff]
        %v11538 = vld [vmem:[%s288 + $0x90] sm:$0xff]
        %v11539 = vld [vmem:[%s288 + $0x98] sm:$0xff]
        %v11540 = vld [vmem:[%s288 + $0xa0] sm:$0xff]
        %v11541 = vld [vmem:[%s288 + $0xa8] sm:$0xff]
        %v11542 = vld [vmem:[%s288 + $0xb0] sm:$0xff]
        %v11543 = vld [vmem:[%s288 + $0xb8] sm:$0xff]
        %v11544 = vld [vmem:[%s288 + $0xc0] sm:$0xff]
        %v11545 = vld [vmem:[%s288 + $0xc8] sm:$0xff]
        %v11546 = vld [vmem:[%s288 + $0xd0] sm:$0xff]
        %v11547 = vld [vmem:[%s288 + $0xd8] sm:$0xff]
        %v11548 = vld [vmem:[%s288 + $0xe0] sm:$0xff]
        %v11549 = vld [vmem:[%s288 + $0xe8] sm:$0xff]
        %v11550 = vld [vmem:[%s288 + $0xf0] sm:$0xff]
        %v11551 = vld [vmem:[%s288 + $0xf8] sm:$0xff]
        %v11552 = vadd.f32 %v11488, %v11520
        %v11553 = vadd.f32 %v11489, %v11521
        %v11554 = vadd.f32 %v11490, %v11522
        %v11555 = vadd.f32 %v11491, %v11523
        %v11556 = vadd.f32 %v11492, %v11524
        %v11557 = vadd.f32 %v11493, %v11525
        %v11558 = vadd.f32 %v11494, %v11526
        %v11559 = vadd.f32 %v11495, %v11527
        %v11560 = vadd.f32 %v11496, %v11528
        %v11561 = vadd.f32 %v11497, %v11529
        %v11562 = vadd.f32 %v11498, %v11530
        %v11563 = vadd.f32 %v11499, %v11531
        %v11564 = vadd.f32 %v11500, %v11532
        %v11565 = vadd.f32 %v11501, %v11533
        %v11566 = vadd.f32 %v11502, %v11534
        %v11567 = vadd.f32 %v11503, %v11535
        %v11568 = vadd.f32 %v11504, %v11536
        %v11569 = vadd.f32 %v11505, %v11537
        %v11570 = vadd.f32 %v11506, %v11538
        %v11571 = vadd.f32 %v11507, %v11539
        %v11572 = vadd.f32 %v11508, %v11540
        %v11573 = vadd.f32 %v11509, %v11541
        %v11574 = vadd.f32 %v11510, %v11542
        %v11575 = vadd.f32 %v11511, %v11543
        %v11576 = vadd.f32 %v11512, %v11544
        %v11577 = vadd.f32 %v11513, %v11545
        %v11578 = vadd.f32 %v11514, %v11546
        %v11579 = vadd.f32 %v11515, %v11547
        %v11580 = vadd.f32 %v11516, %v11548
        %v11581 = vadd.f32 %v11517, %v11549
        %v11582 = vadd.f32 %v11518, %v11550
        %v11583 = vadd.f32 %v11519, %v11551
        %v11584 = vmax.f32 %v11552, 0.0
        %v11585 = vmax.f32 %v11553, 0.0
        %v11586 = vmax.f32 %v11554, 0.0
        %v11587 = vmax.f32 %v11555, 0.0
        %v11588 = vmax.f32 %v11556, 0.0
        %v11589 = vmax.f32 %v11557, 0.0
        %v11590 = vmax.f32 %v11558, 0.0
        %v11591 = vmax.f32 %v11559, 0.0
        %v11592 = vmax.f32 %v11560, 0.0
        %v11593 = vmax.f32 %v11561, 0.0
        %v11594 = vmax.f32 %v11562, 0.0
        %v11595 = vmax.f32 %v11563, 0.0
        %v11596 = vmax.f32 %v11564, 0.0
        %v11597 = vmax.f32 %v11565, 0.0
        %v11598 = vmax.f32 %v11566, 0.0
        %v11599 = vmax.f32 %v11567, 0.0
        %v11600 = vmax.f32 %v11568, 0.0
        %v11601 = vmax.f32 %v11569, 0.0
        %v11602 = vmax.f32 %v11570, 0.0
        %v11603 = vmax.f32 %v11571, 0.0
        %v11604 = vmax.f32 %v11572, 0.0
        %v11605 = vmax.f32 %v11573, 0.0
        %v11606 = vmax.f32 %v11574, 0.0
        %v11607 = vmax.f32 %v11575, 0.0
        %v11608 = vmax.f32 %v11576, 0.0
        %v11609 = vmax.f32 %v11577, 0.0
        %v11610 = vmax.f32 %v11578, 0.0
        %v11611 = vmax.f32 %v11579, 0.0
        %v11612 = vmax.f32 %v11580, 0.0
        %v11613 = vmax.f32 %v11581, 0.0
        %v11614 = vmax.f32 %v11582, 0.0
        %v11615 = vmax.f32 %v11583, 0.0
        %vm11616 = vcmask 31744
        %11617 = vst.msk [vmem:[%s293] sm:$0xff] %vm11616, %v11584
        %11618 = vst.msk [vmem:[%s293 + $0x8] sm:$0xff] %vm11616, %v11585
        %11619 = vst.msk [vmem:[%s293 + $0x10] sm:$0xff] %vm11616, %v11586
        %11620 = vst.msk [vmem:[%s293 + $0x18] sm:$0xff] %vm11616, %v11587
        %11621 = vst.msk [vmem:[%s293 + $0x20] sm:$0xff] %vm11616, %v11588
        %11622 = vst.msk [vmem:[%s293 + $0x28] sm:$0xff] %vm11616, %v11589
        %11623 = vst.msk [vmem:[%s293 + $0x30] sm:$0xff] %vm11616, %v11590
        %11624 = vst.msk [vmem:[%s293 + $0x38] sm:$0xff] %vm11616, %v11591
        %11625 = vst.msk [vmem:[%s293 + $0x40] sm:$0xff] %vm11616, %v11592
        %11626 = vst.msk [vmem:[%s293 + $0x48] sm:$0xff] %vm11616, %v11593
        %11627 = vst.msk [vmem:[%s293 + $0x50] sm:$0xff] %vm11616, %v11594
        %11628 = vst.msk [vmem:[%s293 + $0x58] sm:$0xff] %vm11616, %v11595
        %11629 = vst.msk [vmem:[%s293 + $0x60] sm:$0xff] %vm11616, %v11596
        %11630 = vst.msk [vmem:[%s293 + $0x68] sm:$0xff] %vm11616, %v11597
        %11631 = vst.msk [vmem:[%s293 + $0x70] sm:$0xff] %vm11616, %v11598
        %11632 = vst.msk [vmem:[%s293 + $0x78] sm:$0xff] %vm11616, %v11599
        %11633 = vst.msk [vmem:[%s293 + $0x80] sm:$0xff] %vm11616, %v11600
        %11634 = vst.msk [vmem:[%s293 + $0x88] sm:$0xff] %vm11616, %v11601
        %11635 = vst.msk [vmem:[%s293 + $0x90] sm:$0xff] %vm11616, %v11602
        %11636 = vst.msk [vmem:[%s293 + $0x98] sm:$0xff] %vm11616, %v11603
        %11637 = vst.msk [vmem:[%s293 + $0xa0] sm:$0xff] %vm11616, %v11604
        %11638 = vst.msk [vmem:[%s293 + $0xa8] sm:$0xff] %vm11616, %v11605
        %11639 = vst.msk [vmem:[%s293 + $0xb0] sm:$0xff] %vm11616, %v11606
        %11640 = vst.msk [vmem:[%s293 + $0xb8] sm:$0xff] %vm11616, %v11607
        %11641 = vst.msk [vmem:[%s293 + $0xc0] sm:$0xff] %vm11616, %v11608
        %11642 = vst.msk [vmem:[%s293 + $0xc8] sm:$0xff] %vm11616, %v11609
        %11643 = vst.msk [vmem:[%s293 + $0xd0] sm:$0xff] %vm11616, %v11610
        %11644 = vst.msk [vmem:[%s293 + $0xd8] sm:$0xff] %vm11616, %v11611
        %11645 = vst.msk [vmem:[%s293 + $0xe0] sm:$0xff] %vm11616, %v11612
        %11646 = vst.msk [vmem:[%s293 + $0xe8] sm:$0xff] %vm11616, %v11613
        %11647 = vst.msk [vmem:[%s293 + $0xf0] sm:$0xff] %vm11616, %v11614
        %11648 = vst.msk [vmem:[%s293 + $0xf8] sm:$0xff] %vm11616, %v11615
        %p11649 = scmp.lt.s32.totalorder %s19, 1
        %s11650 = scalar_select %p11649, %s19, 1
        %s11651 = smul.addr %s11650, 32
        %s11652 = smul.addr %s11651, 8
        %s11653 = scalar_lea.vmem %s7, %s11652
        // Predicated region
        $region53: #{tpu_custom_call.1} parent=47 // pred_check
          %p11654 = pneg %p189
        $region54: #{tpu_custom_call.1} parent=47 // pred_check_branch
          %11656 = sbr.rel (%p11654) target = $region56
        $region55: #{tpu_custom_call.1} parent=47 // pred_region
          _
        $region56: #{tpu_custom_call.1} parent=47 // pred_fallthru
          _
      $region48: #{tpu_custom_call.1} parent=5 // pred_fallthru
        _
      %p11657 = scmp.le.s32.totalorder 2, %s14
      // Predicated region
      $region57: #{tpu_custom_call.1} parent=5 // pred_check
        %p11658 = pneg %p11657
      $region58: #{tpu_custom_call.1} parent=5 // pred_check_branch
        %11660 = sbr.rel (%p11658) target = $region60
      $region59: #{tpu_custom_call.1} parent=5 // pred_region
        %s11661 = ssub.s32 %s14, 2
        // Predicated region
        $region61: #{tpu_custom_call.1} parent=59 // pred_check
          %p11662 = pneg %p195
        $region62: #{tpu_custom_call.1} parent=59 // pred_check_branch
          %11664 = sbr.rel (%p11662) target = $region64
        $region63: #{tpu_custom_call.1} parent=59 // pred_region
          %p11665 = scmp.lt.s32.totalorder %s20, 1
          %s11666 = scalar_select %p11665, %s20, 1
          %s11667 = smul.addr %s11666, 32
          %s11668 = smul.addr %s11667, 8
          %s11669 = scalar_lea.vmem %s7, %s11668
        $region64: #{tpu_custom_call.1} parent=59 // pred_fallthru
          _
      $region60: #{tpu_custom_call.1} parent=5 // pred_fallthru
        _
    $region6: #{tpu_custom_call.1} parent=1 // loop_footer
      %s18 = sadd.s32 1, %s14
    $region7: #{tpu_custom_call.1} parent=1 // loop_footer_branch
      %13 = sbr.rel target = $region3
    $region8: #{tpu_custom_call.1} parent=1 // loop_exit
      _
    %11670 = vsyncpa [#allocation5], 1
    %s11671 = scalar_lea.sflag [#allocation5], 1
    %11672 = vsyncpa %s11671, 1

</llo_original>
